<compile_context>
chip_gen: v7x
topology: tpu7x:2x2x1
jax: 0.10.0
libtpu: 0.0.40
codegen_flags: <defaults>
</compile_context>

<pallas_src>
import functools

import jax
import jax.numpy as jnp
from jax.experimental import pallas as pl
from jax.experimental.pallas import tpu as pltpu

_SUBLANE = 8     # f32 sublane tile
_LANE = 128      # lane tile


def _round_up(x, m):
    return (x + m - 1) // m * m


def _fused_lstm_kernel(*refs, seq_len, batch_pad, hidden_pad, num_layers,
                       time_unroll):
    """All layers + all time steps in one kernel invocation.

    refs = (x_flat_pad,
            [W_ih_pad^T, W_hh_pad^T, bias_pad] * num_layers,
            out_flat, h_n, c_n,
            xproj_scratch, hseq_scratch)
    """
    T, Bp, Hp = seq_len, batch_pad, hidden_pad
    n_w = 3 * num_layers

    x_ref = refs[0]
    w_refs = refs[1:1 + n_w]
    out_ref, hn_ref, cn_ref = refs[1 + n_w:4 + n_w]
    xproj_sc, hseq_sc = refs[4 + n_w:]

    def sigmoid(v):
        # sigmoid(x) = rcp(1 + exp(-x)); approximate reciprocal lowers to the
        # otherwise-idle EUP slot instead of a Newton-refined VPU divide.
        return pl.reciprocal(1.0 + jnp.exp(-v), approx=True)

    for l in range(num_layers):                    # unrolled at trace time
        wih = w_refs[3 * l][...]                   # (D_l_pad, 4*Hp)
        whh = w_refs[3 * l + 1][...]               # (Hp, 4*Hp)
        bias = w_refs[3 * l + 2][...]              # (1, 4*Hp)

        # Layer input: padded x for layer 0, previous layer's h-seq afterwards.
        layer_in = x_ref[...] if l == 0 else hseq_sc[...]

        # Sequence-wide input projection: one MXU pass per layer, bias fused,
        # so only h @ W_hh^T + gate math remain on the serial recurrent path.
        xproj_sc[...] = (
            jnp.dot(layer_in, wih, preferred_element_type=jnp.float32) + bias)

        # Last layer writes straight into the VMEM-resident output block.
        dst = out_ref if l == num_layers - 1 else hseq_sc

        def step(t, carry, whh=whh, dst=dst):
            h_prev, c_prev = carry
            r = pl.multiple_of(t * Bp, _SUBLANE)    # sublane-aligned window
            gates = (xproj_sc[pl.ds(r, Bp), :]
                     + jnp.dot(h_prev, whh, preferred_element_type=jnp.float32))
            # PyTorch gate order [i, f, g, o]; each block is Hp=128 lanes so
            # these slices are whole-vreg selections, not masked extractions.
            i_g = sigmoid(gates[:, 0 * Hp:1 * Hp])
            f_g = sigmoid(gates[:, 1 * Hp:2 * Hp])
            g_g = jnp.tanh(gates[:, 2 * Hp:3 * Hp])
            o_g = sigmoid(gates[:, 3 * Hp:4 * Hp])
            c_new = f_g * c_prev + i_g * g_g
            h_new = o_g * jnp.tanh(c_new)
            dst[pl.ds(r, Bp), :] = h_new            # aligned, unmasked store
            return h_new, c_new

        h0 = jnp.zeros((Bp, Hp), jnp.float32)       # PyTorch default h0/c0 = 0
        c0 = jnp.zeros((Bp, Hp), jnp.float32)
        h_last, c_last = jax.lax.fori_loop(0, T, step, (h0, c0),
                                           unroll=time_unroll)

        hn_ref[l] = h_last      # (Bp, Hp): full-tile, lane-dense (128) store
        cn_ref[l] = c_last


def prepare_params(params, hidden_size):
    """One-time parameter prep (hoisted out of the forward path):
    transpose weights to (D_in, 4H) layout, pad H up to a multiple of 128 so
    gate boundaries fall on vreg lane boundaries, and fuse the two biases.
    Padded rows/cols/lanes are zero => padded hidden lanes stay exactly 0."""
    H = hidden_size
    Hp = _round_up(H, _LANE)
    prepped = []
    for li, (w_ih, w_hh, b_ih, b_hh) in enumerate(params):
        d_in = w_ih.shape[1]
        d_in_pad = d_in if li == 0 else Hp
        wih_p = jnp.zeros((d_in_pad, 4 * Hp), jnp.float32)
        whh_p = jnp.zeros((Hp, 4 * Hp), jnp.float32)
        bias_p = jnp.zeros((1, 4 * Hp), jnp.float32)
        b = b_ih + b_hh
        for k in range(4):
            wih_p = wih_p.at[:d_in, k * Hp:k * Hp + H].set(
                jnp.transpose(w_ih[k * H:(k + 1) * H, :]))
            whh_p = whh_p.at[:H, k * Hp:k * Hp + H].set(
                jnp.transpose(w_hh[k * H:(k + 1) * H, :]))
            bias_p = bias_p.at[0, k * Hp:k * Hp + H].set(b[k * H:(k + 1) * H])
        prepped.append((wih_p, whh_p, bias_p))
    return prepped


@functools.partial(jax.jit, static_argnums=(2, 3))
def lstm_encoder_forward(x_input, prepped_params, hidden_size, num_layers):
    """Full lstm_encoder.forward: returns (lstm_out, (h_n, c_n))."""
    T, B, D = x_input.shape
    H = hidden_size
    Hp = _round_up(H, _LANE)
    Bp = _round_up(B, _SUBLANE)

    # Pad batch to the 8-sublane tile so every per-step window is aligned.
    x_pad = jnp.zeros((T, Bp, D), jnp.float32).at[:, :B, :].set(x_input)
    x_flat = x_pad.reshape(T * Bp, D)               # free row-major reshape

    inputs = [x_flat]
    for (wih_p, whh_p, bias_p) in prepped_params:
        inputs += [wih_p, whh_p, bias_p]

    vmem = pl.BlockSpec(memory_space=pltpu.MemorySpace.VMEM)
    out_shapes = (
        jax.ShapeDtypeStruct((T * Bp, Hp), jnp.float32),          # h sequence
        jax.ShapeDtypeStruct((num_layers, Bp, Hp), jnp.float32),  # h_n
        jax.ShapeDtypeStruct((num_layers, Bp, Hp), jnp.float32),  # c_n
    )

    kernel = functools.partial(
        _fused_lstm_kernel, seq_len=T, batch_pad=Bp, hidden_pad=Hp,
        num_layers=num_layers, time_unroll=min(T, 8))

    out_flat, h_n, c_n = pl.pallas_call(
        kernel,
        out_shape=out_shapes,
        in_specs=[vmem] * len(inputs),
        out_specs=(vmem, vmem, vmem),
        scratch_shapes=[
            pltpu.VMEM((T * Bp, 4 * Hp), jnp.float32),  # seq-wide input proj
            pltpu.VMEM((T * Bp, Hp), jnp.float32),      # inter-layer h-seq
        ],
        compiler_params=pltpu.CompilerParams(
            vmem_limit_bytes=32 * 1024 * 1024),
    )(*inputs)

    lstm_out = out_flat.reshape(T, Bp, Hp)[:, :B, :H]
    return lstm_out, (h_n[:, :B, :H], c_n[:, :B, :H])


def _reference_forward(x_input, params, hidden_size, num_layers):
    """Pure-JAX reference implementing PyTorch nn.LSTM semantics."""
    T, B, _ = x_input.shape
    H = hidden_size
    layer_in = x_input
    h_fs, c_fs = [], []
    for l in range(num_layers):
        w_ih, w_hh, b_ih, b_hh = params[l]
        h = jnp.zeros((B, H), jnp.float32)
        c = jnp.zeros((B, H), jnp.float32)
        outs = []
        for t in range(T):
            g = layer_in[t] @ w_ih.T + h @ w_hh.T + b_ih + b_hh
            i = jax.nn.sigmoid(g[:, 0 * H:1 * H])
            f = jax.nn.sigmoid(g[:, 1 * H:2 * H])
            gg = jnp.tanh(g[:, 2 * H:3 * H])
            o = jax.nn.sigmoid(g[:, 3 * H:4 * H])
            c = f * c + i * gg
            h = o * jnp.tanh(c)
            outs.append(h)
        layer_in = jnp.stack(outs, axis=0)
        h_fs.append(h)
        c_fs.append(c)
    return layer_in, (jnp.stack(h_fs), jnp.stack(c_fs))


def init_params(key, input_size, hidden_size, num_layers):
    """Deterministic init mirroring PyTorch: U(-1/sqrt(H), 1/sqrt(H))."""
    k = 1.0 / jnp.sqrt(jnp.float32(hidden_size))
    params = []
    for l in range(num_layers):
        d_in = input_size if l == 0 else hidden_size
        key, k1, k2, k3, k4 = jax.random.split(key, 5)
        w_ih = jax.random.uniform(k1, (4 * hidden_size, d_in), jnp.float32, -k, k)
        w_hh = jax.random.uniform(k2, (4 * hidden_size, hidden_size), jnp.float32, -k, k)
        b_ih = jax.random.uniform(k3, (4 * hidden_size,), jnp.float32, -k, k)
        b_hh = jax.random.uniform(k4, (4 * hidden_size,), jnp.float32, -k, k)
        params.append((w_ih, w_hh, b_ih, b_hh))
    return params


if __name__ == "__main__":
    SEQ_LEN = 8
    BATCH = 2
    INPUT_SIZE = 4
    HIDDEN_SIZE = 32
    NUM_LAYERS = 3

    key = jax.random.PRNGKey(0)
    key, xk = jax.random.split(key)
    x_input = jax.random.normal(xk, (SEQ_LEN, BATCH, INPUT_SIZE), jnp.float32)

    params = init_params(key, INPUT_SIZE, HIDDEN_SIZE, NUM_LAYERS)
    prepped = prepare_params(params, HIDDEN_SIZE)   # one-time transpose/pad/bias fuse

    lstm_out, (h_n, c_n) = lstm_encoder_forward(
        x_input, prepped, HIDDEN_SIZE, NUM_LAYERS)
    jax.block_until_ready((lstm_out, h_n, c_n))

    # Sanity check against a pure-JAX reference of PyTorch nn.LSTM semantics.
    # Tolerance relaxed vs 1e-4 because sigmoid uses the EUP approximate
    # reciprocal (per performance review).
    ref_out, (ref_h, ref_c) = _reference_forward(
        x_input, params, HIDDEN_SIZE, NUM_LAYERS)
    assert lstm_out.shape == (SEQ_LEN, BATCH, HIDDEN_SIZE)
    assert h_n.shape == (NUM_LAYERS, BATCH, HIDDEN_SIZE)
    assert c_n.shape == (NUM_LAYERS, BATCH, HIDDEN_SIZE)
    assert jnp.allclose(lstm_out, ref_out, atol=1e-2, rtol=1e-2)
    assert jnp.allclose(h_n, ref_h, atol=1e-2, rtol=1e-2)
    assert jnp.allclose(c_n, ref_c, atol=1e-2, rtol=1e-2)

    print("KERNEL_OK")
</pallas_src>

<mosaic_0001>
module attributes {stable_mosaic.version = 11 : i64} {
  func.func @_fused_lstm_kernel(%arg0: memref<64x4xf32, #tpu.memory_space<vmem>>, %arg1: memref<4x512xf32, #tpu.memory_space<vmem>>, %arg2: memref<128x512xf32, #tpu.memory_space<vmem>>, %arg3: memref<1x512xf32, #tpu.memory_space<vmem>>, %arg4: memref<128x512xf32, #tpu.memory_space<vmem>>, %arg5: memref<128x512xf32, #tpu.memory_space<vmem>>, %arg6: memref<1x512xf32, #tpu.memory_space<vmem>>, %arg7: memref<128x512xf32, #tpu.memory_space<vmem>>, %arg8: memref<128x512xf32, #tpu.memory_space<vmem>>, %arg9: memref<1x512xf32, #tpu.memory_space<vmem>>, %arg10: memref<64x128xf32, #tpu.memory_space<vmem>>, %arg11: memref<3x8x128xf32, #tpu.memory_space<vmem>>, %arg12: memref<3x8x128xf32, #tpu.memory_space<vmem>>, %arg13: memref<64x512xf32, #tpu.memory_space<vmem>>, %arg14: memref<64x128xf32, #tpu.memory_space<vmem>>) attributes {dimension_semantics = [], scalar_prefetch = 0 : i64, scratch_operands = 2 : i64, tpu.core_type = #tpu.core_type<tc>} {
    %c0 = arith.constant 0 : index
    %c0_0 = arith.constant 0 : index
    %0 = vector.load %arg1[%c0, %c0_0] : memref<4x512xf32, #tpu.memory_space<vmem>>, vector<4x512xf32>
    %c0_1 = arith.constant 0 : index
    %c0_2 = arith.constant 0 : index
    %1 = vector.load %arg2[%c0_1, %c0_2] : memref<128x512xf32, #tpu.memory_space<vmem>>, vector<128x512xf32>
    %c0_3 = arith.constant 0 : index
    %c0_4 = arith.constant 0 : index
    %2 = vector.load %arg3[%c0_3, %c0_4] : memref<1x512xf32, #tpu.memory_space<vmem>>, vector<1x512xf32>
    %c0_5 = arith.constant 0 : index
    %c0_6 = arith.constant 0 : index
    %3 = vector.load %arg0[%c0_5, %c0_6] : memref<64x4xf32, #tpu.memory_space<vmem>>, vector<64x4xf32>
    %cst = arith.constant dense<0.000000e+00> : vector<64x512xf32>
    %4 = tpu.matmul %3, %0, %cst {dimension_numbers = #tpu.dot_dimension_numbers<[1], [0], [0], [1], [0, 0, 1, 1], [], []>} : vector<64x4xf32>, vector<4x512xf32>, vector<64x512xf32> -> vector<64x512xf32>
    %5 = vector.broadcast %2 : vector<1x512xf32> to vector<64x512xf32>
    %6 = arith.addf %4, %5 : vector<64x512xf32>
    %c0_7 = arith.constant 0 : index
    %c0_8 = arith.constant 0 : index
    %7 = vector.load %arg13[%c0_7, %c0_8] : memref<64x512xf32, #tpu.memory_space<vmem>>, vector<64x512xf32>
    tpu.vector_store %arg13[%c0_7, %c0_8], %6 {strides = array<i32>} : memref<64x512xf32, #tpu.memory_space<vmem>>, vector<64x512xf32>,
    %cst_9 = arith.constant 0.000000e+00 : f32
    %8 = vector.broadcast %cst_9 : f32 to vector<8x128xf32>
    %cst_10 = arith.constant 0.000000e+00 : f32
    %9 = vector.broadcast %cst_10 : f32 to vector<8x128xf32>
    %c0_i32 = arith.constant 0 : i32
    %c8_i32 = arith.constant 8 : i32
    %10 = arith.muli %c0_i32, %c8_i32 : i32
    %11 = tpu.assume_multiple %10, 8 : i32
    %12 = arith.index_cast %11 : i32 to index
    %c0_11 = arith.constant 0 : index
    %13 = vector.load %arg13[%12, %c0_11] : memref<64x512xf32, #tpu.memory_space<vmem>>, vector<8x512xf32>
    %cst_12 = arith.constant dense<0.000000e+00> : vector<8x512xf32>
    %14 = tpu.matmul %8, %1, %cst_12 {dimension_numbers = #tpu.dot_dimension_numbers<[1], [0], [0], [1], [0, 0, 1, 1], [], []>} : vector<8x128xf32>, vector<128x512xf32>, vector<8x512xf32> -> vector<8x512xf32>
    %15 = arith.addf %13, %14 : vector<8x512xf32>
    %16 = vector.extract_strided_slice %15 {offsets = [0, 0], sizes = [8, 128], strides = [1, 1]} : vector<8x512xf32> to vector<8x128xf32>
    %cst_13 = arith.constant 0.000000e+00 : f32
    %17 = vector.broadcast %cst_13 : f32 to vector<8x128xf32>
    %18 = arith.subf %17, %16 : vector<8x128xf32>
    %19 = math.exp %18 : vector<8x128xf32>
    %cst_14 = arith.constant 1.000000e+00 : f32
    %20 = vector.broadcast %cst_14 : f32 to vector<8x128xf32>
    %21 = arith.addf %20, %19 : vector<8x128xf32>
    %22 = tpu.reciprocal %21 {approx = true} : vector<8x128xf32> -> vector<8x128xf32>
    %23 = vector.extract_strided_slice %15 {offsets = [0, 128], sizes = [8, 128], strides = [1, 1]} : vector<8x512xf32> to vector<8x128xf32>
    %cst_15 = arith.constant 0.000000e+00 : f32
    %24 = vector.broadcast %cst_15 : f32 to vector<8x128xf32>
    %25 = arith.subf %24, %23 : vector<8x128xf32>
    %26 = math.exp %25 : vector<8x128xf32>
    %cst_16 = arith.constant 1.000000e+00 : f32
    %27 = vector.broadcast %cst_16 : f32 to vector<8x128xf32>
    %28 = arith.addf %27, %26 : vector<8x128xf32>
    %29 = tpu.reciprocal %28 {approx = true} : vector<8x128xf32> -> vector<8x128xf32>
    %30 = vector.extract_strided_slice %15 {offsets = [0, 256], sizes = [8, 128], strides = [1, 1]} : vector<8x512xf32> to vector<8x128xf32>
    %31 = math.tanh %30 : vector<8x128xf32>
    %32 = vector.extract_strided_slice %15 {offsets = [0, 384], sizes = [8, 128], strides = [1, 1]} : vector<8x512xf32> to vector<8x128xf32>
    %cst_17 = arith.constant 0.000000e+00 : f32
    %33 = vector.broadcast %cst_17 : f32 to vector<8x128xf32>
    %34 = arith.subf %33, %32 : vector<8x128xf32>
    %35 = math.exp %34 : vector<8x128xf32>
    %cst_18 = arith.constant 1.000000e+00 : f32
    %36 = vector.broadcast %cst_18 : f32 to vector<8x128xf32>
    %37 = arith.addf %36, %35 : vector<8x128xf32>
    %38 = tpu.reciprocal %37 {approx = true} : vector<8x128xf32> -> vector<8x128xf32>
    %39 = arith.mulf %29, %9 : vector<8x128xf32>
    %40 = arith.mulf %22, %31 : vector<8x128xf32>
    %41 = arith.addf %39, %40 : vector<8x128xf32>
    %42 = math.tanh %41 : vector<8x128xf32>
    %43 = arith.mulf %38, %42 : vector<8x128xf32>
    %44 = arith.index_cast %11 : i32 to index
    %c0_19 = arith.constant 0 : index
    %45 = vector.load %arg14[%44, %c0_19] : memref<64x128xf32, #tpu.memory_space<vmem>>, vector<8x128xf32>
    tpu.vector_store %arg14[%44, %c0_19], %43 {strides = array<i32>} : memref<64x128xf32, #tpu.memory_space<vmem>>, vector<8x128xf32>,
    %c1_i32 = arith.constant 1 : i32
    %c8_i32_20 = arith.constant 8 : i32
    %46 = arith.muli %c1_i32, %c8_i32_20 : i32
    %47 = tpu.assume_multiple %46, 8 : i32
    %48 = arith.index_cast %47 : i32 to index
    %c0_21 = arith.constant 0 : index
    %49 = vector.load %arg13[%48, %c0_21] : memref<64x512xf32, #tpu.memory_space<vmem>>, vector<8x512xf32>
    %cst_22 = arith.constant dense<0.000000e+00> : vector<8x512xf32>
    %50 = tpu.matmul %43, %1, %cst_22 {dimension_numbers = #tpu.dot_dimension_numbers<[1], [0], [0], [1], [0, 0, 1, 1], [], []>} : vector<8x128xf32>, vector<128x512xf32>, vector<8x512xf32> -> vector<8x512xf32>
    %51 = arith.addf %49, %50 : vector<8x512xf32>
    %52 = vector.extract_strided_slice %51 {offsets = [0, 0], sizes = [8, 128], strides = [1, 1]} : vector<8x512xf32> to vector<8x128xf32>
    %cst_23 = arith.constant 0.000000e+00 : f32
    %53 = vector.broadcast %cst_23 : f32 to vector<8x128xf32>
    %54 = arith.subf %53, %52 : vector<8x128xf32>
    %55 = math.exp %54 : vector<8x128xf32>
    %cst_24 = arith.constant 1.000000e+00 : f32
    %56 = vector.broadcast %cst_24 : f32 to vector<8x128xf32>
    %57 = arith.addf %56, %55 : vector<8x128xf32>
    %58 = tpu.reciprocal %57 {approx = true} : vector<8x128xf32> -> vector<8x128xf32>
    %59 = vector.extract_strided_slice %51 {offsets = [0, 128], sizes = [8, 128], strides = [1, 1]} : vector<8x512xf32> to vector<8x128xf32>
    %cst_25 = arith.constant 0.000000e+00 : f32
    %60 = vector.broadcast %cst_25 : f32 to vector<8x128xf32>
    %61 = arith.subf %60, %59 : vector<8x128xf32>
    %62 = math.exp %61 : vector<8x128xf32>
    %cst_26 = arith.constant 1.000000e+00 : f32
    %63 = vector.broadcast %cst_26 : f32 to vector<8x128xf32>
    %64 = arith.addf %63, %62 : vector<8x128xf32>
    %65 = tpu.reciprocal %64 {approx = true} : vector<8x128xf32> -> vector<8x128xf32>
    %66 = vector.extract_strided_slice %51 {offsets = [0, 256], sizes = [8, 128], strides = [1, 1]} : vector<8x512xf32> to vector<8x128xf32>
    %67 = math.tanh %66 : vector<8x128xf32>
    %68 = vector.extract_strided_slice %51 {offsets = [0, 384], sizes = [8, 128], strides = [1, 1]} : vector<8x512xf32> to vector<8x128xf32>
    %cst_27 = arith.constant 0.000000e+00 : f32
    %69 = vector.broadcast %cst_27 : f32 to vector<8x128xf32>
    %70 = arith.subf %69, %68 : vector<8x128xf32>
    %71 = math.exp %70 : vector<8x128xf32>
    %cst_28 = arith.constant 1.000000e+00 : f32
    %72 = vector.broadcast %cst_28 : f32 to vector<8x128xf32>
    %73 = arith.addf %72, %71 : vector<8x128xf32>
    %74 = tpu.reciprocal %73 {approx = true} : vector<8x128xf32> -> vector<8x128xf32>
    %75 = arith.mulf %65, %41 : vector<8x128xf32>
    %76 = arith.mulf %58, %67 : vector<8x128xf32>
    %77 = arith.addf %75, %76 : vector<8x128xf32>
    %78 = math.tanh %77 : vector<8x128xf32>
    %79 = arith.mulf %74, %78 : vector<8x128xf32>
    %80 = arith.index_cast %47 : i32 to index
    %c0_29 = arith.constant 0 : index
    %81 = vector.load %arg14[%80, %c0_29] : memref<64x128xf32, #tpu.memory_space<vmem>>, vector<8x128xf32>
    tpu.vector_store %arg14[%80, %c0_29], %79 {strides = array<i32>} : memref<64x128xf32, #tpu.memory_space<vmem>>, vector<8x128xf32>,
    %c2_i32 = arith.constant 2 : i32
    %c8_i32_30 = arith.constant 8 : i32
    %82 = arith.muli %c2_i32, %c8_i32_30 : i32
    %83 = tpu.assume_multiple %82, 8 : i32
    %84 = arith.index_cast %83 : i32 to index
    %c0_31 = arith.constant 0 : index
    %85 = vector.load %arg13[%84, %c0_31] : memref<64x512xf32, #tpu.memory_space<vmem>>, vector<8x512xf32>
    %cst_32 = arith.constant dense<0.000000e+00> : vector<8x512xf32>
    %86 = tpu.matmul %79, %1, %cst_32 {dimension_numbers = #tpu.dot_dimension_numbers<[1], [0], [0], [1], [0, 0, 1, 1], [], []>} : vector<8x128xf32>, vector<128x512xf32>, vector<8x512xf32> -> vector<8x512xf32>
    %87 = arith.addf %85, %86 : vector<8x512xf32>
    %88 = vector.extract_strided_slice %87 {offsets = [0, 0], sizes = [8, 128], strides = [1, 1]} : vector<8x512xf32> to vector<8x128xf32>
    %cst_33 = arith.constant 0.000000e+00 : f32
    %89 = vector.broadcast %cst_33 : f32 to vector<8x128xf32>
    %90 = arith.subf %89, %88 : vector<8x128xf32>
    %91 = math.exp %90 : vector<8x128xf32>
    %cst_34 = arith.constant 1.000000e+00 : f32
    %92 = vector.broadcast %cst_34 : f32 to vector<8x128xf32>
    %93 = arith.addf %92, %91 : vector<8x128xf32>
    %94 = tpu.reciprocal %93 {approx = true} : vector<8x128xf32> -> vector<8x128xf32>
    %95 = vector.extract_strided_slice %87 {offsets = [0, 128], sizes = [8, 128], strides = [1, 1]} : vector<8x512xf32> to vector<8x128xf32>
    %cst_35 = arith.constant 0.000000e+00 : f32
    %96 = vector.broadcast %cst_35 : f32 to vector<8x128xf32>
    %97 = arith.subf %96, %95 : vector<8x128xf32>
    %98 = math.exp %97 : vector<8x128xf32>
    %cst_36 = arith.constant 1.000000e+00 : f32
    %99 = vector.broadcast %cst_36 : f32 to vector<8x128xf32>
    %100 = arith.addf %99, %98 : vector<8x128xf32>
    %101 = tpu.reciprocal %100 {approx = true} : vector<8x128xf32> -> vector<8x128xf32>
    %102 = vector.extract_strided_slice %87 {offsets = [0, 256], sizes = [8, 128], strides = [1, 1]} : vector<8x512xf32> to vector<8x128xf32>
    %103 = math.tanh %102 : vector<8x128xf32>
    %104 = vector.extract_strided_slice %87 {offsets = [0, 384], sizes = [8, 128], strides = [1, 1]} : vector<8x512xf32> to vector<8x128xf32>
    %cst_37 = arith.constant 0.000000e+00 : f32
    %105 = vector.broadcast %cst_37 : f32 to vector<8x128xf32>
    %106 = arith.subf %105, %104 : vector<8x128xf32>
    %107 = math.exp %106 : vector<8x128xf32>
    %cst_38 = arith.constant 1.000000e+00 : f32
    %108 = vector.broadcast %cst_38 : f32 to vector<8x128xf32>
    %109 = arith.addf %108, %107 : vector<8x128xf32>
    %110 = tpu.reciprocal %109 {approx = true} : vector<8x128xf32> -> vector<8x128xf32>
    %111 = arith.mulf %101, %77 : vector<8x128xf32>
    %112 = arith.mulf %94, %103 : vector<8x128xf32>
    %113 = arith.addf %111, %112 : vector<8x128xf32>
    %114 = math.tanh %113 : vector<8x128xf32>
    %115 = arith.mulf %110, %114 : vector<8x128xf32>
    %116 = arith.index_cast %83 : i32 to index
    %c0_39 = arith.constant 0 : index
    %117 = vector.load %arg14[%116, %c0_39] : memref<64x128xf32, #tpu.memory_space<vmem>>, vector<8x128xf32>
    tpu.vector_store %arg14[%116, %c0_39], %115 {strides = array<i32>} : memref<64x128xf32, #tpu.memory_space<vmem>>, vector<8x128xf32>,
    %c3_i32 = arith.constant 3 : i32
    %c8_i32_40 = arith.constant 8 : i32
    %118 = arith.muli %c3_i32, %c8_i32_40 : i32
    %119 = tpu.assume_multiple %118, 8 : i32
    %120 = arith.index_cast %119 : i32 to index
    %c0_41 = arith.constant 0 : index
    %121 = vector.load %arg13[%120, %c0_41] : memref<64x512xf32, #tpu.memory_space<vmem>>, vector<8x512xf32>
    %cst_42 = arith.constant dense<0.000000e+00> : vector<8x512xf32>
    %122 = tpu.matmul %115, %1, %cst_42 {dimension_numbers = #tpu.dot_dimension_numbers<[1], [0], [0], [1], [0, 0, 1, 1], [], []>} : vector<8x128xf32>, vector<128x512xf32>, vector<8x512xf32> -> vector<8x512xf32>
    %123 = arith.addf %121, %122 : vector<8x512xf32>
    %124 = vector.extract_strided_slice %123 {offsets = [0, 0], sizes = [8, 128], strides = [1, 1]} : vector<8x512xf32> to vector<8x128xf32>
    %cst_43 = arith.constant 0.000000e+00 : f32
    %125 = vector.broadcast %cst_43 : f32 to vector<8x128xf32>
    %126 = arith.subf %125, %124 : vector<8x128xf32>
    %127 = math.exp %126 : vector<8x128xf32>
    %cst_44 = arith.constant 1.000000e+00 : f32
    %128 = vector.broadcast %cst_44 : f32 to vector<8x128xf32>
    %129 = arith.addf %128, %127 : vector<8x128xf32>
    %130 = tpu.reciprocal %129 {approx = true} : vector<8x128xf32> -> vector<8x128xf32>
    %131 = vector.extract_strided_slice %123 {offsets = [0, 128], sizes = [8, 128], strides = [1, 1]} : vector<8x512xf32> to vector<8x128xf32>
    %cst_45 = arith.constant 0.000000e+00 : f32
    %132 = vector.broadcast %cst_45 : f32 to vector<8x128xf32>
    %133 = arith.subf %132, %131 : vector<8x128xf32>
    %134 = math.exp %133 : vector<8x128xf32>
    %cst_46 = arith.constant 1.000000e+00 : f32
    %135 = vector.broadcast %cst_46 : f32 to vector<8x128xf32>
    %136 = arith.addf %135, %134 : vector<8x128xf32>
    %137 = tpu.reciprocal %136 {approx = true} : vector<8x128xf32> -> vector<8x128xf32>
    %138 = vector.extract_strided_slice %123 {offsets = [0, 256], sizes = [8, 128], strides = [1, 1]} : vector<8x512xf32> to vector<8x128xf32>
    %139 = math.tanh %138 : vector<8x128xf32>
    %140 = vector.extract_strided_slice %123 {offsets = [0, 384], sizes = [8, 128], strides = [1, 1]} : vector<8x512xf32> to vector<8x128xf32>
    %cst_47 = arith.constant 0.000000e+00 : f32
    %141 = vector.broadcast %cst_47 : f32 to vector<8x128xf32>
    %142 = arith.subf %141, %140 : vector<8x128xf32>
    %143 = math.exp %142 : vector<8x128xf32>
    %cst_48 = arith.constant 1.000000e+00 : f32
    %144 = vector.broadcast %cst_48 : f32 to vector<8x128xf32>
    %145 = arith.addf %144, %143 : vector<8x128xf32>
    %146 = tpu.reciprocal %145 {approx = true} : vector<8x128xf32> -> vector<8x128xf32>
    %147 = arith.mulf %137, %113 : vector<8x128xf32>
    %148 = arith.mulf %130, %139 : vector<8x128xf32>
    %149 = arith.addf %147, %148 : vector<8x128xf32>
    %150 = math.tanh %149 : vector<8x128xf32>
    %151 = arith.mulf %146, %150 : vector<8x128xf32>
    %152 = arith.index_cast %119 : i32 to index
    %c0_49 = arith.constant 0 : index
    %153 = vector.load %arg14[%152, %c0_49] : memref<64x128xf32, #tpu.memory_space<vmem>>, vector<8x128xf32>
    tpu.vector_store %arg14[%152, %c0_49], %151 {strides = array<i32>} : memref<64x128xf32, #tpu.memory_space<vmem>>, vector<8x128xf32>,
    %c4_i32 = arith.constant 4 : i32
    %c8_i32_50 = arith.constant 8 : i32
    %154 = arith.muli %c4_i32, %c8_i32_50 : i32
    %155 = tpu.assume_multiple %154, 8 : i32
    %156 = arith.index_cast %155 : i32 to index
    %c0_51 = arith.constant 0 : index
    %157 = vector.load %arg13[%156, %c0_51] : memref<64x512xf32, #tpu.memory_space<vmem>>, vector<8x512xf32>
    %cst_52 = arith.constant dense<0.000000e+00> : vector<8x512xf32>
    %158 = tpu.matmul %151, %1, %cst_52 {dimension_numbers = #tpu.dot_dimension_numbers<[1], [0], [0], [1], [0, 0, 1, 1], [], []>} : vector<8x128xf32>, vector<128x512xf32>, vector<8x512xf32> -> vector<8x512xf32>
    %159 = arith.addf %157, %158 : vector<8x512xf32>
    %160 = vector.extract_strided_slice %159 {offsets = [0, 0], sizes = [8, 128], strides = [1, 1]} : vector<8x512xf32> to vector<8x128xf32>
    %cst_53 = arith.constant 0.000000e+00 : f32
    %161 = vector.broadcast %cst_53 : f32 to vector<8x128xf32>
    %162 = arith.subf %161, %160 : vector<8x128xf32>
    %163 = math.exp %162 : vector<8x128xf32>
    %cst_54 = arith.constant 1.000000e+00 : f32
    %164 = vector.broadcast %cst_54 : f32 to vector<8x128xf32>
    %165 = arith.addf %164, %163 : vector<8x128xf32>
    %166 = tpu.reciprocal %165 {approx = true} : vector<8x128xf32> -> vector<8x128xf32>
    %167 = vector.extract_strided_slice %159 {offsets = [0, 128], sizes = [8, 128], strides = [1, 1]} : vector<8x512xf32> to vector<8x128xf32>
    %cst_55 = arith.constant 0.000000e+00 : f32
    %168 = vector.broadcast %cst_55 : f32 to vector<8x128xf32>
    %169 = arith.subf %168, %167 : vector<8x128xf32>
    %170 = math.exp %169 : vector<8x128xf32>
    %cst_56 = arith.constant 1.000000e+00 : f32
    %171 = vector.broadcast %cst_56 : f32 to vector<8x128xf32>
    %172 = arith.addf %171, %170 : vector<8x128xf32>
    %173 = tpu.reciprocal %172 {approx = true} : vector<8x128xf32> -> vector<8x128xf32>
    %174 = vector.extract_strided_slice %159 {offsets = [0, 256], sizes = [8, 128], strides = [1, 1]} : vector<8x512xf32> to vector<8x128xf32>
    %175 = math.tanh %174 : vector<8x128xf32>
    %176 = vector.extract_strided_slice %159 {offsets = [0, 384], sizes = [8, 128], strides = [1, 1]} : vector<8x512xf32> to vector<8x128xf32>
    %cst_57 = arith.constant 0.000000e+00 : f32
    %177 = vector.broadcast %cst_57 : f32 to vector<8x128xf32>
    %178 = arith.subf %177, %176 : vector<8x128xf32>
    %179 = math.exp %178 : vector<8x128xf32>
    %cst_58 = arith.constant 1.000000e+00 : f32
    %180 = vector.broadcast %cst_58 : f32 to vector<8x128xf32>
    %181 = arith.addf %180, %179 : vector<8x128xf32>
    %182 = tpu.reciprocal %181 {approx = true} : vector<8x128xf32> -> vector<8x128xf32>
    %183 = arith.mulf %173, %149 : vector<8x128xf32>
    %184 = arith.mulf %166, %175 : vector<8x128xf32>
    %185 = arith.addf %183, %184 : vector<8x128xf32>
    %186 = math.tanh %185 : vector<8x128xf32>
    %187 = arith.mulf %182, %186 : vector<8x128xf32>
    %188 = arith.index_cast %155 : i32 to index
    %c0_59 = arith.constant 0 : index
    %189 = vector.load %arg14[%188, %c0_59] : memref<64x128xf32, #tpu.memory_space<vmem>>, vector<8x128xf32>
    tpu.vector_store %arg14[%188, %c0_59], %187 {strides = array<i32>} : memref<64x128xf32, #tpu.memory_space<vmem>>, vector<8x128xf32>,
    %c5_i32 = arith.constant 5 : i32
    %c8_i32_60 = arith.constant 8 : i32
    %190 = arith.muli %c5_i32, %c8_i32_60 : i32
    %191 = tpu.assume_multiple %190, 8 : i32
    %192 = arith.index_cast %191 : i32 to index
    %c0_61 = arith.constant 0 : index
    %193 = vector.load %arg13[%192, %c0_61] : memref<64x512xf32, #tpu.memory_space<vmem>>, vector<8x512xf32>
    %cst_62 = arith.constant dense<0.000000e+00> : vector<8x512xf32>
    %194 = tpu.matmul %187, %1, %cst_62 {dimension_numbers = #tpu.dot_dimension_numbers<[1], [0], [0], [1], [0, 0, 1, 1], [], []>} : vector<8x128xf32>, vector<128x512xf32>, vector<8x512xf32> -> vector<8x512xf32>
    %195 = arith.addf %193, %194 : vector<8x512xf32>
    %196 = vector.extract_strided_slice %195 {offsets = [0, 0], sizes = [8, 128], strides = [1, 1]} : vector<8x512xf32> to vector<8x128xf32>
    %cst_63 = arith.constant 0.000000e+00 : f32
    %197 = vector.broadcast %cst_63 : f32 to vector<8x128xf32>
    %198 = arith.subf %197, %196 : vector<8x128xf32>
    %199 = math.exp %198 : vector<8x128xf32>
    %cst_64 = arith.constant 1.000000e+00 : f32
    %200 = vector.broadcast %cst_64 : f32 to vector<8x128xf32>
    %201 = arith.addf %200, %199 : vector<8x128xf32>
    %202 = tpu.reciprocal %201 {approx = true} : vector<8x128xf32> -> vector<8x128xf32>
    %203 = vector.extract_strided_slice %195 {offsets = [0, 128], sizes = [8, 128], strides = [1, 1]} : vector<8x512xf32> to vector<8x128xf32>
    %cst_65 = arith.constant 0.000000e+00 : f32
    %204 = vector.broadcast %cst_65 : f32 to vector<8x128xf32>
    %205 = arith.subf %204, %203 : vector<8x128xf32>
    %206 = math.exp %205 : vector<8x128xf32>
    %cst_66 = arith.constant 1.000000e+00 : f32
    %207 = vector.broadcast %cst_66 : f32 to vector<8x128xf32>
    %208 = arith.addf %207, %206 : vector<8x128xf32>
    %209 = tpu.reciprocal %208 {approx = true} : vector<8x128xf32> -> vector<8x128xf32>
    %210 = vector.extract_strided_slice %195 {offsets = [0, 256], sizes = [8, 128], strides = [1, 1]} : vector<8x512xf32> to vector<8x128xf32>
    %211 = math.tanh %210 : vector<8x128xf32>
    %212 = vector.extract_strided_slice %195 {offsets = [0, 384], sizes = [8, 128], strides = [1, 1]} : vector<8x512xf32> to vector<8x128xf32>
    %cst_67 = arith.constant 0.000000e+00 : f32
    %213 = vector.broadcast %cst_67 : f32 to vector<8x128xf32>
    %214 = arith.subf %213, %212 : vector<8x128xf32>
    %215 = math.exp %214 : vector<8x128xf32>
    %cst_68 = arith.constant 1.000000e+00 : f32
    %216 = vector.broadcast %cst_68 : f32 to vector<8x128xf32>
    %217 = arith.addf %216, %215 : vector<8x128xf32>
    %218 = tpu.reciprocal %217 {approx = true} : vector<8x128xf32> -> vector<8x128xf32>
    %219 = arith.mulf %209, %185 : vector<8x128xf32>
    %220 = arith.mulf %202, %211 : vector<8x128xf32>
    %221 = arith.addf %219, %220 : vector<8x128xf32>
    %222 = math.tanh %221 : vector<8x128xf32>
    %223 = arith.mulf %218, %222 : vector<8x128xf32>
    %224 = arith.index_cast %191 : i32 to index
    %c0_69 = arith.constant 0 : index
    %225 = vector.load %arg14[%224, %c0_69] : memref<64x128xf32, #tpu.memory_space<vmem>>, vector<8x128xf32>
    tpu.vector_store %arg14[%224, %c0_69], %223 {strides = array<i32>} : memref<64x128xf32, #tpu.memory_space<vmem>>, vector<8x128xf32>,
    %c6_i32 = arith.constant 6 : i32
    %c8_i32_70 = arith.constant 8 : i32
    %226 = arith.muli %c6_i32, %c8_i32_70 : i32
    %227 = tpu.assume_multiple %226, 8 : i32
    %228 = arith.index_cast %227 : i32 to index
    %c0_71 = arith.constant 0 : index
    %229 = vector.load %arg13[%228, %c0_71] : memref<64x512xf32, #tpu.memory_space<vmem>>, vector<8x512xf32>
    %cst_72 = arith.constant dense<0.000000e+00> : vector<8x512xf32>
    %230 = tpu.matmul %223, %1, %cst_72 {dimension_numbers = #tpu.dot_dimension_numbers<[1], [0], [0], [1], [0, 0, 1, 1], [], []>} : vector<8x128xf32>, vector<128x512xf32>, vector<8x512xf32> -> vector<8x512xf32>
    %231 = arith.addf %229, %230 : vector<8x512xf32>
    %232 = vector.extract_strided_slice %231 {offsets = [0, 0], sizes = [8, 128], strides = [1, 1]} : vector<8x512xf32> to vector<8x128xf32>
    %cst_73 = arith.constant 0.000000e+00 : f32
    %233 = vector.broadcast %cst_73 : f32 to vector<8x128xf32>
    %234 = arith.subf %233, %232 : vector<8x128xf32>
    %235 = math.exp %234 : vector<8x128xf32>
    %cst_74 = arith.constant 1.000000e+00 : f32
    %236 = vector.broadcast %cst_74 : f32 to vector<8x128xf32>
    %237 = arith.addf %236, %235 : vector<8x128xf32>
    %238 = tpu.reciprocal %237 {approx = true} : vector<8x128xf32> -> vector<8x128xf32>
    %239 = vector.extract_strided_slice %231 {offsets = [0, 128], sizes = [8, 128], strides = [1, 1]} : vector<8x512xf32> to vector<8x128xf32>
    %cst_75 = arith.constant 0.000000e+00 : f32
    %240 = vector.broadcast %cst_75 : f32 to vector<8x128xf32>
    %241 = arith.subf %240, %239 : vector<8x128xf32>
    %242 = math.exp %241 : vector<8x128xf32>
    %cst_76 = arith.constant 1.000000e+00 : f32
    %243 = vector.broadcast %cst_76 : f32 to vector<8x128xf32>
    %244 = arith.addf %243, %242 : vector<8x128xf32>
    %245 = tpu.reciprocal %244 {approx = true} : vector<8x128xf32> -> vector<8x128xf32>
    %246 = vector.extract_strided_slice %231 {offsets = [0, 256], sizes = [8, 128], strides = [1, 1]} : vector<8x512xf32> to vector<8x128xf32>
    %247 = math.tanh %246 : vector<8x128xf32>
    %248 = vector.extract_strided_slice %231 {offsets = [0, 384], sizes = [8, 128], strides = [1, 1]} : vector<8x512xf32> to vector<8x128xf32>
    %cst_77 = arith.constant 0.000000e+00 : f32
    %249 = vector.broadcast %cst_77 : f32 to vector<8x128xf32>
    %250 = arith.subf %249, %248 : vector<8x128xf32>
    %251 = math.exp %250 : vector<8x128xf32>
    %cst_78 = arith.constant 1.000000e+00 : f32
    %252 = vector.broadcast %cst_78 : f32 to vector<8x128xf32>
    %253 = arith.addf %252, %251 : vector<8x128xf32>
    %254 = tpu.reciprocal %253 {approx = true} : vector<8x128xf32> -> vector<8x128xf32>
    %255 = arith.mulf %245, %221 : vector<8x128xf32>
    %256 = arith.mulf %238, %247 : vector<8x128xf32>
    %257 = arith.addf %255, %256 : vector<8x128xf32>
    %258 = math.tanh %257 : vector<8x128xf32>
    %259 = arith.mulf %254, %258 : vector<8x128xf32>
    %260 = arith.index_cast %227 : i32 to index
    %c0_79 = arith.constant 0 : index
    %261 = vector.load %arg14[%260, %c0_79] : memref<64x128xf32, #tpu.memory_space<vmem>>, vector<8x128xf32>
    tpu.vector_store %arg14[%260, %c0_79], %259 {strides = array<i32>} : memref<64x128xf32, #tpu.memory_space<vmem>>, vector<8x128xf32>,
    %c7_i32 = arith.constant 7 : i32
    %c8_i32_80 = arith.constant 8 : i32
    %262 = arith.muli %c7_i32, %c8_i32_80 : i32
    %263 = tpu.assume_multiple %262, 8 : i32
    %264 = arith.index_cast %263 : i32 to index
    %c0_81 = arith.constant 0 : index
    %265 = vector.load %arg13[%264, %c0_81] : memref<64x512xf32, #tpu.memory_space<vmem>>, vector<8x512xf32>
    %cst_82 = arith.constant dense<0.000000e+00> : vector<8x512xf32>
    %266 = tpu.matmul %259, %1, %cst_82 {dimension_numbers = #tpu.dot_dimension_numbers<[1], [0], [0], [1], [0, 0, 1, 1], [], []>} : vector<8x128xf32>, vector<128x512xf32>, vector<8x512xf32> -> vector<8x512xf32>
    %267 = arith.addf %265, %266 : vector<8x512xf32>
    %268 = vector.extract_strided_slice %267 {offsets = [0, 0], sizes = [8, 128], strides = [1, 1]} : vector<8x512xf32> to vector<8x128xf32>
    %cst_83 = arith.constant 0.000000e+00 : f32
    %269 = vector.broadcast %cst_83 : f32 to vector<8x128xf32>
    %270 = arith.subf %269, %268 : vector<8x128xf32>
    %271 = math.exp %270 : vector<8x128xf32>
    %cst_84 = arith.constant 1.000000e+00 : f32
    %272 = vector.broadcast %cst_84 : f32 to vector<8x128xf32>
    %273 = arith.addf %272, %271 : vector<8x128xf32>
    %274 = tpu.reciprocal %273 {approx = true} : vector<8x128xf32> -> vector<8x128xf32>
    %275 = vector.extract_strided_slice %267 {offsets = [0, 128], sizes = [8, 128], strides = [1, 1]} : vector<8x512xf32> to vector<8x128xf32>
    %cst_85 = arith.constant 0.000000e+00 : f32
    %276 = vector.broadcast %cst_85 : f32 to vector<8x128xf32>
    %277 = arith.subf %276, %275 : vector<8x128xf32>
    %278 = math.exp %277 : vector<8x128xf32>
    %cst_86 = arith.constant 1.000000e+00 : f32
    %279 = vector.broadcast %cst_86 : f32 to vector<8x128xf32>
    %280 = arith.addf %279, %278 : vector<8x128xf32>
    %281 = tpu.reciprocal %280 {approx = true} : vector<8x128xf32> -> vector<8x128xf32>
    %282 = vector.extract_strided_slice %267 {offsets = [0, 256], sizes = [8, 128], strides = [1, 1]} : vector<8x512xf32> to vector<8x128xf32>
    %283 = math.tanh %282 : vector<8x128xf32>
    %284 = vector.extract_strided_slice %267 {offsets = [0, 384], sizes = [8, 128], strides = [1, 1]} : vector<8x512xf32> to vector<8x128xf32>
    %cst_87 = arith.constant 0.000000e+00 : f32
    %285 = vector.broadcast %cst_87 : f32 to vector<8x128xf32>
    %286 = arith.subf %285, %284 : vector<8x128xf32>
    %287 = math.exp %286 : vector<8x128xf32>
    %cst_88 = arith.constant 1.000000e+00 : f32
    %288 = vector.broadcast %cst_88 : f32 to vector<8x128xf32>
    %289 = arith.addf %288, %287 : vector<8x128xf32>
    %290 = tpu.reciprocal %289 {approx = true} : vector<8x128xf32> -> vector<8x128xf32>
    %291 = arith.mulf %281, %257 : vector<8x128xf32>
    %292 = arith.mulf %274, %283 : vector<8x128xf32>
    %293 = arith.addf %291, %292 : vector<8x128xf32>
    %294 = math.tanh %293 : vector<8x128xf32>
    %295 = arith.mulf %290, %294 : vector<8x128xf32>
    %296 = arith.index_cast %263 : i32 to index
    %c0_89 = arith.constant 0 : index
    %297 = vector.load %arg14[%296, %c0_89] : memref<64x128xf32, #tpu.memory_space<vmem>>, vector<8x128xf32>
    tpu.vector_store %arg14[%296, %c0_89], %295 {strides = array<i32>} : memref<64x128xf32, #tpu.memory_space<vmem>>, vector<8x128xf32>,
    %c8_i32_90 = arith.constant 8 : i32
    %c0_91 = arith.constant 0 : index
    %c0_92 = arith.constant 0 : index
    %c0_93 = arith.constant 0 : index
    %298 = vector.load %arg11[%c0_91, %c0_92, %c0_93] : memref<3x8x128xf32, #tpu.memory_space<vmem>>, vector<1x8x128xf32>
    %299 = vector.shape_cast %298 : vector<1x8x128xf32> to vector<8x128xf32>
    %300 = vector.shape_cast %295 : vector<8x128xf32> to vector<1x8x128xf32>
    tpu.vector_store %arg11[%c0_91, %c0_92, %c0_93], %300 {strides = array<i32>} : memref<3x8x128xf32, #tpu.memory_space<vmem>>, vector<1x8x128xf32>,
    %c0_94 = arith.constant 0 : index
    %c0_95 = arith.constant 0 : index
    %c0_96 = arith.constant 0 : index
    %301 = vector.load %arg12[%c0_94, %c0_95, %c0_96] : memref<3x8x128xf32, #tpu.memory_space<vmem>>, vector<1x8x128xf32>
    %302 = vector.shape_cast %301 : vector<1x8x128xf32> to vector<8x128xf32>
    %303 = vector.shape_cast %293 : vector<8x128xf32> to vector<1x8x128xf32>
    tpu.vector_store %arg12[%c0_94, %c0_95, %c0_96], %303 {strides = array<i32>} : memref<3x8x128xf32, #tpu.memory_space<vmem>>, vector<1x8x128xf32>,
    %c0_97 = arith.constant 0 : index
    %c0_98 = arith.constant 0 : index
    %304 = vector.load %arg4[%c0_97, %c0_98] : memref<128x512xf32, #tpu.memory_space<vmem>>, vector<128x512xf32>
    %c0_99 = arith.constant 0 : index
    %c0_100 = arith.constant 0 : index
    %305 = vector.load %arg5[%c0_99, %c0_100] : memref<128x512xf32, #tpu.memory_space<vmem>>, vector<128x512xf32>
    %c0_101 = arith.constant 0 : index
    %c0_102 = arith.constant 0 : index
    %306 = vector.load %arg6[%c0_101, %c0_102] : memref<1x512xf32, #tpu.memory_space<vmem>>, vector<1x512xf32>
    %c0_103 = arith.constant 0 : index
    %c0_104 = arith.constant 0 : index
    %307 = vector.load %arg14[%c0_103, %c0_104] : memref<64x128xf32, #tpu.memory_space<vmem>>, vector<64x128xf32>
    %cst_105 = arith.constant dense<0.000000e+00> : vector<64x512xf32>
    %308 = tpu.matmul %307, %304, %cst_105 {dimension_numbers = #tpu.dot_dimension_numbers<[1], [0], [0], [1], [0, 0, 1, 1], [], []>} : vector<64x128xf32>, vector<128x512xf32>, vector<64x512xf32> -> vector<64x512xf32>
    %309 = vector.broadcast %306 : vector<1x512xf32> to vector<64x512xf32>
    %310 = arith.addf %308, %309 : vector<64x512xf32>
    %c0_106 = arith.constant 0 : index
    %c0_107 = arith.constant 0 : index
    %311 = vector.load %arg13[%c0_106, %c0_107] : memref<64x512xf32, #tpu.memory_space<vmem>>, vector<64x512xf32>
    tpu.vector_store %arg13[%c0_106, %c0_107], %310 {strides = array<i32>} : memref<64x512xf32, #tpu.memory_space<vmem>>, vector<64x512xf32>,
    %cst_108 = arith.constant 0.000000e+00 : f32
    %312 = vector.broadcast %cst_108 : f32 to vector<8x128xf32>
    %cst_109 = arith.constant 0.000000e+00 : f32
    %313 = vector.broadcast %cst_109 : f32 to vector<8x128xf32>
    %c0_i32_110 = arith.constant 0 : i32
    %c8_i32_111 = arith.constant 8 : i32
    %314 = arith.muli %c0_i32_110, %c8_i32_111 : i32
    %315 = tpu.assume_multiple %314, 8 : i32
    %316 = arith.index_cast %315 : i32 to index
    %c0_112 = arith.constant 0 : index
    %317 = vector.load %arg13[%316, %c0_112] : memref<64x512xf32, #tpu.memory_space<vmem>>, vector<8x512xf32>
    %cst_113 = arith.constant dense<0.000000e+00> : vector<8x512xf32>
    %318 = tpu.matmul %312, %305, %cst_113 {dimension_numbers = #tpu.dot_dimension_numbers<[1], [0], [0], [1], [0, 0, 1, 1], [], []>} : vector<8x128xf32>, vector<128x512xf32>, vector<8x512xf32> -> vector<8x512xf32>
    %319 = arith.addf %317, %318 : vector<8x512xf32>
    %320 = vector.extract_strided_slice %319 {offsets = [0, 0], sizes = [8, 128], strides = [1, 1]} : vector<8x512xf32> to vector<8x128xf32>
    %cst_114 = arith.constant 0.000000e+00 : f32
    %321 = vector.broadcast %cst_114 : f32 to vector<8x128xf32>
    %322 = arith.subf %321, %320 : vector<8x128xf32>
    %323 = math.exp %322 : vector<8x128xf32>
    %cst_115 = arith.constant 1.000000e+00 : f32
    %324 = vector.broadcast %cst_115 : f32 to vector<8x128xf32>
    %325 = arith.addf %324, %323 : vector<8x128xf32>
    %326 = tpu.reciprocal %325 {approx = true} : vector<8x128xf32> -> vector<8x128xf32>
    %327 = vector.extract_strided_slice %319 {offsets = [0, 128], sizes = [8, 128], strides = [1, 1]} : vector<8x512xf32> to vector<8x128xf32>
    %cst_116 = arith.constant 0.000000e+00 : f32
    %328 = vector.broadcast %cst_116 : f32 to vector<8x128xf32>
    %329 = arith.subf %328, %327 : vector<8x128xf32>
    %330 = math.exp %329 : vector<8x128xf32>
    %cst_117 = arith.constant 1.000000e+00 : f32
    %331 = vector.broadcast %cst_117 : f32 to vector<8x128xf32>
    %332 = arith.addf %331, %330 : vector<8x128xf32>
    %333 = tpu.reciprocal %332 {approx = true} : vector<8x128xf32> -> vector<8x128xf32>
    %334 = vector.extract_strided_slice %319 {offsets = [0, 256], sizes = [8, 128], strides = [1, 1]} : vector<8x512xf32> to vector<8x128xf32>
    %335 = math.tanh %334 : vector<8x128xf32>
    %336 = vector.extract_strided_slice %319 {offsets = [0, 384], sizes = [8, 128], strides = [1, 1]} : vector<8x512xf32> to vector<8x128xf32>
    %cst_118 = arith.constant 0.000000e+00 : f32
    %337 = vector.broadcast %cst_118 : f32 to vector<8x128xf32>
    %338 = arith.subf %337, %336 : vector<8x128xf32>
    %339 = math.exp %338 : vector<8x128xf32>
    %cst_119 = arith.constant 1.000000e+00 : f32
    %340 = vector.broadcast %cst_119 : f32 to vector<8x128xf32>
    %341 = arith.addf %340, %339 : vector<8x128xf32>
    %342 = tpu.reciprocal %341 {approx = true} : vector<8x128xf32> -> vector<8x128xf32>
    %343 = arith.mulf %333, %313 : vector<8x128xf32>
    %344 = arith.mulf %326, %335 : vector<8x128xf32>
    %345 = arith.addf %343, %344 : vector<8x128xf32>
    %346 = math.tanh %345 : vector<8x128xf32>
    %347 = arith.mulf %342, %346 : vector<8x128xf32>
    %348 = arith.index_cast %315 : i32 to index
    %c0_120 = arith.constant 0 : index
    %349 = vector.load %arg14[%348, %c0_120] : memref<64x128xf32, #tpu.memory_space<vmem>>, vector<8x128xf32>
    tpu.vector_store %arg14[%348, %c0_120], %347 {strides = array<i32>} : memref<64x128xf32, #tpu.memory_space<vmem>>, vector<8x128xf32>,
    %c1_i32_121 = arith.constant 1 : i32
    %c8_i32_122 = arith.constant 8 : i32
    %350 = arith.muli %c1_i32_121, %c8_i32_122 : i32
    %351 = tpu.assume_multiple %350, 8 : i32
    %352 = arith.index_cast %351 : i32 to index
    %c0_123 = arith.constant 0 : index
    %353 = vector.load %arg13[%352, %c0_123] : memref<64x512xf32, #tpu.memory_space<vmem>>, vector<8x512xf32>
    %cst_124 = arith.constant dense<0.000000e+00> : vector<8x512xf32>
    %354 = tpu.matmul %347, %305, %cst_124 {dimension_numbers = #tpu.dot_dimension_numbers<[1], [0], [0], [1], [0, 0, 1, 1], [], []>} : vector<8x128xf32>, vector<128x512xf32>, vector<8x512xf32> -> vector<8x512xf32>
    %355 = arith.addf %353, %354 : vector<8x512xf32>
    %356 = vector.extract_strided_slice %355 {offsets = [0, 0], sizes = [8, 128], strides = [1, 1]} : vector<8x512xf32> to vector<8x128xf32>
    %cst_125 = arith.constant 0.000000e+00 : f32
    %357 = vector.broadcast %cst_125 : f32 to vector<8x128xf32>
    %358 = arith.subf %357, %356 : vector<8x128xf32>
    %359 = math.exp %358 : vector<8x128xf32>
    %cst_126 = arith.constant 1.000000e+00 : f32
    %360 = vector.broadcast %cst_126 : f32 to vector<8x128xf32>
    %361 = arith.addf %360, %359 : vector<8x128xf32>
    %362 = tpu.reciprocal %361 {approx = true} : vector<8x128xf32> -> vector<8x128xf32>
    %363 = vector.extract_strided_slice %355 {offsets = [0, 128], sizes = [8, 128], strides = [1, 1]} : vector<8x512xf32> to vector<8x128xf32>
    %cst_127 = arith.constant 0.000000e+00 : f32
    %364 = vector.broadcast %cst_127 : f32 to vector<8x128xf32>
    %365 = arith.subf %364, %363 : vector<8x128xf32>
    %366 = math.exp %365 : vector<8x128xf32>
    %cst_128 = arith.constant 1.000000e+00 : f32
    %367 = vector.broadcast %cst_128 : f32 to vector<8x128xf32>
    %368 = arith.addf %367, %366 : vector<8x128xf32>
    %369 = tpu.reciprocal %368 {approx = true} : vector<8x128xf32> -> vector<8x128xf32>
    %370 = vector.extract_strided_slice %355 {offsets = [0, 256], sizes = [8, 128], strides = [1, 1]} : vector<8x512xf32> to vector<8x128xf32>
    %371 = math.tanh %370 : vector<8x128xf32>
    %372 = vector.extract_strided_slice %355 {offsets = [0, 384], sizes = [8, 128], strides = [1, 1]} : vector<8x512xf32> to vector<8x128xf32>
    %cst_129 = arith.constant 0.000000e+00 : f32
    %373 = vector.broadcast %cst_129 : f32 to vector<8x128xf32>
    %374 = arith.subf %373, %372 : vector<8x128xf32>
    %375 = math.exp %374 : vector<8x128xf32>
    %cst_130 = arith.constant 1.000000e+00 : f32
    %376 = vector.broadcast %cst_130 : f32 to vector<8x128xf32>
    %377 = arith.addf %376, %375 : vector<8x128xf32>
    %378 = tpu.reciprocal %377 {approx = true} : vector<8x128xf32> -> vector<8x128xf32>
    %379 = arith.mulf %369, %345 : vector<8x128xf32>
    %380 = arith.mulf %362, %371 : vector<8x128xf32>
    %381 = arith.addf %379, %380 : vector<8x128xf32>
    %382 = math.tanh %381 : vector<8x128xf32>
    %383 = arith.mulf %378, %382 : vector<8x128xf32>
    %384 = arith.index_cast %351 : i32 to index
    %c0_131 = arith.constant 0 : index
    %385 = vector.load %arg14[%384, %c0_131] : memref<64x128xf32, #tpu.memory_space<vmem>>, vector<8x128xf32>
    tpu.vector_store %arg14[%384, %c0_131], %383 {strides = array<i32>} : memref<64x128xf32, #tpu.memory_space<vmem>>, vector<8x128xf32>,
    %c2_i32_132 = arith.constant 2 : i32
    %c8_i32_133 = arith.constant 8 : i32
    %386 = arith.muli %c2_i32_132, %c8_i32_133 : i32
    %387 = tpu.assume_multiple %386, 8 : i32
    %388 = arith.index_cast %387 : i32 to index
    %c0_134 = arith.constant 0 : index
    %389 = vector.load %arg13[%388, %c0_134] : memref<64x512xf32, #tpu.memory_space<vmem>>, vector<8x512xf32>
    %cst_135 = arith.constant dense<0.000000e+00> : vector<8x512xf32>
    %390 = tpu.matmul %383, %305, %cst_135 {dimension_numbers = #tpu.dot_dimension_numbers<[1], [0], [0], [1], [0, 0, 1, 1], [], []>} : vector<8x128xf32>, vector<128x512xf32>, vector<8x512xf32> -> vector<8x512xf32>
    %391 = arith.addf %389, %390 : vector<8x512xf32>
    %392 = vector.extract_strided_slice %391 {offsets = [0, 0], sizes = [8, 128], strides = [1, 1]} : vector<8x512xf32> to vector<8x128xf32>
    %cst_136 = arith.constant 0.000000e+00 : f32
    %393 = vector.broadcast %cst_136 : f32 to vector<8x128xf32>
    %394 = arith.subf %393, %392 : vector<8x128xf32>
    %395 = math.exp %394 : vector<8x128xf32>
    %cst_137 = arith.constant 1.000000e+00 : f32
    %396 = vector.broadcast %cst_137 : f32 to vector<8x128xf32>
    %397 = arith.addf %396, %395 : vector<8x128xf32>
    %398 = tpu.reciprocal %397 {approx = true} : vector<8x128xf32> -> vector<8x128xf32>
    %399 = vector.extract_strided_slice %391 {offsets = [0, 128], sizes = [8, 128], strides = [1, 1]} : vector<8x512xf32> to vector<8x128xf32>
    %cst_138 = arith.constant 0.000000e+00 : f32
    %400 = vector.broadcast %cst_138 : f32 to vector<8x128xf32>
    %401 = arith.subf %400, %399 : vector<8x128xf32>
    %402 = math.exp %401 : vector<8x128xf32>
    %cst_139 = arith.constant 1.000000e+00 : f32
    %403 = vector.broadcast %cst_139 : f32 to vector<8x128xf32>
    %404 = arith.addf %403, %402 : vector<8x128xf32>
    %405 = tpu.reciprocal %404 {approx = true} : vector<8x128xf32> -> vector<8x128xf32>
    %406 = vector.extract_strided_slice %391 {offsets = [0, 256], sizes = [8, 128], strides = [1, 1]} : vector<8x512xf32> to vector<8x128xf32>
    %407 = math.tanh %406 : vector<8x128xf32>
    %408 = vector.extract_strided_slice %391 {offsets = [0, 384], sizes = [8, 128], strides = [1, 1]} : vector<8x512xf32> to vector<8x128xf32>
    %cst_140 = arith.constant 0.000000e+00 : f32
    %409 = vector.broadcast %cst_140 : f32 to vector<8x128xf32>
    %410 = arith.subf %409, %408 : vector<8x128xf32>
    %411 = math.exp %410 : vector<8x128xf32>
    %cst_141 = arith.constant 1.000000e+00 : f32
    %412 = vector.broadcast %cst_141 : f32 to vector<8x128xf32>
    %413 = arith.addf %412, %411 : vector<8x128xf32>
    %414 = tpu.reciprocal %413 {approx = true} : vector<8x128xf32> -> vector<8x128xf32>
    %415 = arith.mulf %405, %381 : vector<8x128xf32>
    %416 = arith.mulf %398, %407 : vector<8x128xf32>
    %417 = arith.addf %415, %416 : vector<8x128xf32>
    %418 = math.tanh %417 : vector<8x128xf32>
    %419 = arith.mulf %414, %418 : vector<8x128xf32>
    %420 = arith.index_cast %387 : i32 to index
    %c0_142 = arith.constant 0 : index
    %421 = vector.load %arg14[%420, %c0_142] : memref<64x128xf32, #tpu.memory_space<vmem>>, vector<8x128xf32>
    tpu.vector_store %arg14[%420, %c0_142], %419 {strides = array<i32>} : memref<64x128xf32, #tpu.memory_space<vmem>>, vector<8x128xf32>,
    %c3_i32_143 = arith.constant 3 : i32
    %c8_i32_144 = arith.constant 8 : i32
    %422 = arith.muli %c3_i32_143, %c8_i32_144 : i32
    %423 = tpu.assume_multiple %422, 8 : i32
    %424 = arith.index_cast %423 : i32 to index
    %c0_145 = arith.constant 0 : index
    %425 = vector.load %arg13[%424, %c0_145] : memref<64x512xf32, #tpu.memory_space<vmem>>, vector<8x512xf32>
    %cst_146 = arith.constant dense<0.000000e+00> : vector<8x512xf32>
    %426 = tpu.matmul %419, %305, %cst_146 {dimension_numbers = #tpu.dot_dimension_numbers<[1], [0], [0], [1], [0, 0, 1, 1], [], []>} : vector<8x128xf32>, vector<128x512xf32>, vector<8x512xf32> -> vector<8x512xf32>
    %427 = arith.addf %425, %426 : vector<8x512xf32>
    %428 = vector.extract_strided_slice %427 {offsets = [0, 0], sizes = [8, 128], strides = [1, 1]} : vector<8x512xf32> to vector<8x128xf32>
    %cst_147 = arith.constant 0.000000e+00 : f32
    %429 = vector.broadcast %cst_147 : f32 to vector<8x128xf32>
    %430 = arith.subf %429, %428 : vector<8x128xf32>
    %431 = math.exp %430 : vector<8x128xf32>
    %cst_148 = arith.constant 1.000000e+00 : f32
    %432 = vector.broadcast %cst_148 : f32 to vector<8x128xf32>
    %433 = arith.addf %432, %431 : vector<8x128xf32>
    %434 = tpu.reciprocal %433 {approx = true} : vector<8x128xf32> -> vector<8x128xf32>
    %435 = vector.extract_strided_slice %427 {offsets = [0, 128], sizes = [8, 128], strides = [1, 1]} : vector<8x512xf32> to vector<8x128xf32>
    %cst_149 = arith.constant 0.000000e+00 : f32
    %436 = vector.broadcast %cst_149 : f32 to vector<8x128xf32>
    %437 = arith.subf %436, %435 : vector<8x128xf32>
    %438 = math.exp %437 : vector<8x128xf32>
    %cst_150 = arith.constant 1.000000e+00 : f32
    %439 = vector.broadcast %cst_150 : f32 to vector<8x128xf32>
    %440 = arith.addf %439, %438 : vector<8x128xf32>
    %441 = tpu.reciprocal %440 {approx = true} : vector<8x128xf32> -> vector<8x128xf32>
    %442 = vector.extract_strided_slice %427 {offsets = [0, 256], sizes = [8, 128], strides = [1, 1]} : vector<8x512xf32> to vector<8x128xf32>
    %443 = math.tanh %442 : vector<8x128xf32>
    %444 = vector.extract_strided_slice %427 {offsets = [0, 384], sizes = [8, 128], strides = [1, 1]} : vector<8x512xf32> to vector<8x128xf32>
    %cst_151 = arith.constant 0.000000e+00 : f32
    %445 = vector.broadcast %cst_151 : f32 to vector<8x128xf32>
    %446 = arith.subf %445, %444 : vector<8x128xf32>
    %447 = math.exp %446 : vector<8x128xf32>
    %cst_152 = arith.constant 1.000000e+00 : f32
    %448 = vector.broadcast %cst_152 : f32 to vector<8x128xf32>
    %449 = arith.addf %448, %447 : vector<8x128xf32>
    %450 = tpu.reciprocal %449 {approx = true} : vector<8x128xf32> -> vector<8x128xf32>
    %451 = arith.mulf %441, %417 : vector<8x128xf32>
    %452 = arith.mulf %434, %443 : vector<8x128xf32>
    %453 = arith.addf %451, %452 : vector<8x128xf32>
    %454 = math.tanh %453 : vector<8x128xf32>
    %455 = arith.mulf %450, %454 : vector<8x128xf32>
    %456 = arith.index_cast %423 : i32 to index
    %c0_153 = arith.constant 0 : index
    %457 = vector.load %arg14[%456, %c0_153] : memref<64x128xf32, #tpu.memory_space<vmem>>, vector<8x128xf32>
    tpu.vector_store %arg14[%456, %c0_153], %455 {strides = array<i32>} : memref<64x128xf32, #tpu.memory_space<vmem>>, vector<8x128xf32>,
    %c4_i32_154 = arith.constant 4 : i32
    %c8_i32_155 = arith.constant 8 : i32
    %458 = arith.muli %c4_i32_154, %c8_i32_155 : i32
    %459 = tpu.assume_multiple %458, 8 : i32
    %460 = arith.index_cast %459 : i32 to index
    %c0_156 = arith.constant 0 : index
    %461 = vector.load %arg13[%460, %c0_156] : memref<64x512xf32, #tpu.memory_space<vmem>>, vector<8x512xf32>
    %cst_157 = arith.constant dense<0.000000e+00> : vector<8x512xf32>
    %462 = tpu.matmul %455, %305, %cst_157 {dimension_numbers = #tpu.dot_dimension_numbers<[1], [0], [0], [1], [0, 0, 1, 1], [], []>} : vector<8x128xf32>, vector<128x512xf32>, vector<8x512xf32> -> vector<8x512xf32>
    %463 = arith.addf %461, %462 : vector<8x512xf32>
    %464 = vector.extract_strided_slice %463 {offsets = [0, 0], sizes = [8, 128], strides = [1, 1]} : vector<8x512xf32> to vector<8x128xf32>
    %cst_158 = arith.constant 0.000000e+00 : f32
    %465 = vector.broadcast %cst_158 : f32 to vector<8x128xf32>
    %466 = arith.subf %465, %464 : vector<8x128xf32>
    %467 = math.exp %466 : vector<8x128xf32>
    %cst_159 = arith.constant 1.000000e+00 : f32
    %468 = vector.broadcast %cst_159 : f32 to vector<8x128xf32>
    %469 = arith.addf %468, %467 : vector<8x128xf32>
    %470 = tpu.reciprocal %469 {approx = true} : vector<8x128xf32> -> vector<8x128xf32>
    %471 = vector.extract_strided_slice %463 {offsets = [0, 128], sizes = [8, 128], strides = [1, 1]} : vector<8x512xf32> to vector<8x128xf32>
    %cst_160 = arith.constant 0.000000e+00 : f32
    %472 = vector.broadcast %cst_160 : f32 to vector<8x128xf32>
    %473 = arith.subf %472, %471 : vector<8x128xf32>
    %474 = math.exp %473 : vector<8x128xf32>
    %cst_161 = arith.constant 1.000000e+00 : f32
    %475 = vector.broadcast %cst_161 : f32 to vector<8x128xf32>
    %476 = arith.addf %475, %474 : vector<8x128xf32>
    %477 = tpu.reciprocal %476 {approx = true} : vector<8x128xf32> -> vector<8x128xf32>
    %478 = vector.extract_strided_slice %463 {offsets = [0, 256], sizes = [8, 128], strides = [1, 1]} : vector<8x512xf32> to vector<8x128xf32>
    %479 = math.tanh %478 : vector<8x128xf32>
    %480 = vector.extract_strided_slice %463 {offsets = [0, 384], sizes = [8, 128], strides = [1, 1]} : vector<8x512xf32> to vector<8x128xf32>
    %cst_162 = arith.constant 0.000000e+00 : f32
    %481 = vector.broadcast %cst_162 : f32 to vector<8x128xf32>
    %482 = arith.subf %481, %480 : vector<8x128xf32>
    %483 = math.exp %482 : vector<8x128xf32>
    %cst_163 = arith.constant 1.000000e+00 : f32
    %484 = vector.broadcast %cst_163 : f32 to vector<8x128xf32>
    %485 = arith.addf %484, %483 : vector<8x128xf32>
    %486 = tpu.reciprocal %485 {approx = true} : vector<8x128xf32> -> vector<8x128xf32>
    %487 = arith.mulf %477, %453 : vector<8x128xf32>
    %488 = arith.mulf %470, %479 : vector<8x128xf32>
    %489 = arith.addf %487, %488 : vector<8x128xf32>
    %490 = math.tanh %489 : vector<8x128xf32>
    %491 = arith.mulf %486, %490 : vector<8x128xf32>
    %492 = arith.index_cast %459 : i32 to index
    %c0_164 = arith.constant 0 : index
    %493 = vector.load %arg14[%492, %c0_164] : memref<64x128xf32, #tpu.memory_space<vmem>>, vector<8x128xf32>
    tpu.vector_store %arg14[%492, %c0_164], %491 {strides = array<i32>} : memref<64x128xf32, #tpu.memory_space<vmem>>, vector<8x128xf32>,
    %c5_i32_165 = arith.constant 5 : i32
    %c8_i32_166 = arith.constant 8 : i32
    %494 = arith.muli %c5_i32_165, %c8_i32_166 : i32
    %495 = tpu.assume_multiple %494, 8 : i32
    %496 = arith.index_cast %495 : i32 to index
    %c0_167 = arith.constant 0 : index
    %497 = vector.load %arg13[%496, %c0_167] : memref<64x512xf32, #tpu.memory_space<vmem>>, vector<8x512xf32>
    %cst_168 = arith.constant dense<0.000000e+00> : vector<8x512xf32>
    %498 = tpu.matmul %491, %305, %cst_168 {dimension_numbers = #tpu.dot_dimension_numbers<[1], [0], [0], [1], [0, 0, 1, 1], [], []>} : vector<8x128xf32>, vector<128x512xf32>, vector<8x512xf32> -> vector<8x512xf32>
    %499 = arith.addf %497, %498 : vector<8x512xf32>
    %500 = vector.extract_strided_slice %499 {offsets = [0, 0], sizes = [8, 128], strides = [1, 1]} : vector<8x512xf32> to vector<8x128xf32>
    %cst_169 = arith.constant 0.000000e+00 : f32
    %501 = vector.broadcast %cst_169 : f32 to vector<8x128xf32>
    %502 = arith.subf %501, %500 : vector<8x128xf32>
    %503 = math.exp %502 : vector<8x128xf32>
    %cst_170 = arith.constant 1.000000e+00 : f32
    %504 = vector.broadcast %cst_170 : f32 to vector<8x128xf32>
    %505 = arith.addf %504, %503 : vector<8x128xf32>
    %506 = tpu.reciprocal %505 {approx = true} : vector<8x128xf32> -> vector<8x128xf32>
    %507 = vector.extract_strided_slice %499 {offsets = [0, 128], sizes = [8, 128], strides = [1, 1]} : vector<8x512xf32> to vector<8x128xf32>
    %cst_171 = arith.constant 0.000000e+00 : f32
    %508 = vector.broadcast %cst_171 : f32 to vector<8x128xf32>
    %509 = arith.subf %508, %507 : vector<8x128xf32>
    %510 = math.exp %509 : vector<8x128xf32>
    %cst_172 = arith.constant 1.000000e+00 : f32
    %511 = vector.broadcast %cst_172 : f32 to vector<8x128xf32>
    %512 = arith.addf %511, %510 : vector<8x128xf32>
    %513 = tpu.reciprocal %512 {approx = true} : vector<8x128xf32> -> vector<8x128xf32>
    %514 = vector.extract_strided_slice %499 {offsets = [0, 256], sizes = [8, 128], strides = [1, 1]} : vector<8x512xf32> to vector<8x128xf32>
    %515 = math.tanh %514 : vector<8x128xf32>
    %516 = vector.extract_strided_slice %499 {offsets = [0, 384], sizes = [8, 128], strides = [1, 1]} : vector<8x512xf32> to vector<8x128xf32>
    %cst_173 = arith.constant 0.000000e+00 : f32
    %517 = vector.broadcast %cst_173 : f32 to vector<8x128xf32>
    %518 = arith.subf %517, %516 : vector<8x128xf32>
    %519 = math.exp %518 : vector<8x128xf32>
    %cst_174 = arith.constant 1.000000e+00 : f32
    %520 = vector.broadcast %cst_174 : f32 to vector<8x128xf32>
    %521 = arith.addf %520, %519 : vector<8x128xf32>
    %522 = tpu.reciprocal %521 {approx = true} : vector<8x128xf32> -> vector<8x128xf32>
    %523 = arith.mulf %513, %489 : vector<8x128xf32>
    %524 = arith.mulf %506, %515 : vector<8x128xf32>
    %525 = arith.addf %523, %524 : vector<8x128xf32>
    %526 = math.tanh %525 : vector<8x128xf32>
    %527 = arith.mulf %522, %526 : vector<8x128xf32>
    %528 = arith.index_cast %495 : i32 to index
    %c0_175 = arith.constant 0 : index
    %529 = vector.load %arg14[%528, %c0_175] : memref<64x128xf32, #tpu.memory_space<vmem>>, vector<8x128xf32>
    tpu.vector_store %arg14[%528, %c0_175], %527 {strides = array<i32>} : memref<64x128xf32, #tpu.memory_space<vmem>>, vector<8x128xf32>,
    %c6_i32_176 = arith.constant 6 : i32
    %c8_i32_177 = arith.constant 8 : i32
    %530 = arith.muli %c6_i32_176, %c8_i32_177 : i32
    %531 = tpu.assume_multiple %530, 8 : i32
    %532 = arith.index_cast %531 : i32 to index
    %c0_178 = arith.constant 0 : index
    %533 = vector.load %arg13[%532, %c0_178] : memref<64x512xf32, #tpu.memory_space<vmem>>, vector<8x512xf32>
    %cst_179 = arith.constant dense<0.000000e+00> : vector<8x512xf32>
    %534 = tpu.matmul %527, %305, %cst_179 {dimension_numbers = #tpu.dot_dimension_numbers<[1], [0], [0], [1], [0, 0, 1, 1], [], []>} : vector<8x128xf32>, vector<128x512xf32>, vector<8x512xf32> -> vector<8x512xf32>
    %535 = arith.addf %533, %534 : vector<8x512xf32>
    %536 = vector.extract_strided_slice %535 {offsets = [0, 0], sizes = [8, 128], strides = [1, 1]} : vector<8x512xf32> to vector<8x128xf32>
    %cst_180 = arith.constant 0.000000e+00 : f32
    %537 = vector.broadcast %cst_180 : f32 to vector<8x128xf32>
    %538 = arith.subf %537, %536 : vector<8x128xf32>
    %539 = math.exp %538 : vector<8x128xf32>
    %cst_181 = arith.constant 1.000000e+00 : f32
    %540 = vector.broadcast %cst_181 : f32 to vector<8x128xf32>
    %541 = arith.addf %540, %539 : vector<8x128xf32>
    %542 = tpu.reciprocal %541 {approx = true} : vector<8x128xf32> -> vector<8x128xf32>
    %543 = vector.extract_strided_slice %535 {offsets = [0, 128], sizes = [8, 128], strides = [1, 1]} : vector<8x512xf32> to vector<8x128xf32>
    %cst_182 = arith.constant 0.000000e+00 : f32
    %544 = vector.broadcast %cst_182 : f32 to vector<8x128xf32>
    %545 = arith.subf %544, %543 : vector<8x128xf32>
    %546 = math.exp %545 : vector<8x128xf32>
    %cst_183 = arith.constant 1.000000e+00 : f32
    %547 = vector.broadcast %cst_183 : f32 to vector<8x128xf32>
    %548 = arith.addf %547, %546 : vector<8x128xf32>
    %549 = tpu.reciprocal %548 {approx = true} : vector<8x128xf32> -> vector<8x128xf32>
    %550 = vector.extract_strided_slice %535 {offsets = [0, 256], sizes = [8, 128], strides = [1, 1]} : vector<8x512xf32> to vector<8x128xf32>
    %551 = math.tanh %550 : vector<8x128xf32>
    %552 = vector.extract_strided_slice %535 {offsets = [0, 384], sizes = [8, 128], strides = [1, 1]} : vector<8x512xf32> to vector<8x128xf32>
    %cst_184 = arith.constant 0.000000e+00 : f32
    %553 = vector.broadcast %cst_184 : f32 to vector<8x128xf32>
    %554 = arith.subf %553, %552 : vector<8x128xf32>
    %555 = math.exp %554 : vector<8x128xf32>
    %cst_185 = arith.constant 1.000000e+00 : f32
    %556 = vector.broadcast %cst_185 : f32 to vector<8x128xf32>
    %557 = arith.addf %556, %555 : vector<8x128xf32>
    %558 = tpu.reciprocal %557 {approx = true} : vector<8x128xf32> -> vector<8x128xf32>
    %559 = arith.mulf %549, %525 : vector<8x128xf32>
    %560 = arith.mulf %542, %551 : vector<8x128xf32>
    %561 = arith.addf %559, %560 : vector<8x128xf32>
    %562 = math.tanh %561 : vector<8x128xf32>
    %563 = arith.mulf %558, %562 : vector<8x128xf32>
    %564 = arith.index_cast %531 : i32 to index
    %c0_186 = arith.constant 0 : index
    %565 = vector.load %arg14[%564, %c0_186] : memref<64x128xf32, #tpu.memory_space<vmem>>, vector<8x128xf32>
    tpu.vector_store %arg14[%564, %c0_186], %563 {strides = array<i32>} : memref<64x128xf32, #tpu.memory_space<vmem>>, vector<8x128xf32>,
    %c7_i32_187 = arith.constant 7 : i32
    %c8_i32_188 = arith.constant 8 : i32
    %566 = arith.muli %c7_i32_187, %c8_i32_188 : i32
    %567 = tpu.assume_multiple %566, 8 : i32
    %568 = arith.index_cast %567 : i32 to index
    %c0_189 = arith.constant 0 : index
    %569 = vector.load %arg13[%568, %c0_189] : memref<64x512xf32, #tpu.memory_space<vmem>>, vector<8x512xf32>
    %cst_190 = arith.constant dense<0.000000e+00> : vector<8x512xf32>
    %570 = tpu.matmul %563, %305, %cst_190 {dimension_numbers = #tpu.dot_dimension_numbers<[1], [0], [0], [1], [0, 0, 1, 1], [], []>} : vector<8x128xf32>, vector<128x512xf32>, vector<8x512xf32> -> vector<8x512xf32>
    %571 = arith.addf %569, %570 : vector<8x512xf32>
    %572 = vector.extract_strided_slice %571 {offsets = [0, 0], sizes = [8, 128], strides = [1, 1]} : vector<8x512xf32> to vector<8x128xf32>
    %cst_191 = arith.constant 0.000000e+00 : f32
    %573 = vector.broadcast %cst_191 : f32 to vector<8x128xf32>
    %574 = arith.subf %573, %572 : vector<8x128xf32>
    %575 = math.exp %574 : vector<8x128xf32>
    %cst_192 = arith.constant 1.000000e+00 : f32
    %576 = vector.broadcast %cst_192 : f32 to vector<8x128xf32>
    %577 = arith.addf %576, %575 : vector<8x128xf32>
    %578 = tpu.reciprocal %577 {approx = true} : vector<8x128xf32> -> vector<8x128xf32>
    %579 = vector.extract_strided_slice %571 {offsets = [0, 128], sizes = [8, 128], strides = [1, 1]} : vector<8x512xf32> to vector<8x128xf32>
    %cst_193 = arith.constant 0.000000e+00 : f32
    %580 = vector.broadcast %cst_193 : f32 to vector<8x128xf32>
    %581 = arith.subf %580, %579 : vector<8x128xf32>
    %582 = math.exp %581 : vector<8x128xf32>
    %cst_194 = arith.constant 1.000000e+00 : f32
    %583 = vector.broadcast %cst_194 : f32 to vector<8x128xf32>
    %584 = arith.addf %583, %582 : vector<8x128xf32>
    %585 = tpu.reciprocal %584 {approx = true} : vector<8x128xf32> -> vector<8x128xf32>
    %586 = vector.extract_strided_slice %571 {offsets = [0, 256], sizes = [8, 128], strides = [1, 1]} : vector<8x512xf32> to vector<8x128xf32>
    %587 = math.tanh %586 : vector<8x128xf32>
    %588 = vector.extract_strided_slice %571 {offsets = [0, 384], sizes = [8, 128], strides = [1, 1]} : vector<8x512xf32> to vector<8x128xf32>
    %cst_195 = arith.constant 0.000000e+00 : f32
    %589 = vector.broadcast %cst_195 : f32 to vector<8x128xf32>
    %590 = arith.subf %589, %588 : vector<8x128xf32>
    %591 = math.exp %590 : vector<8x128xf32>
    %cst_196 = arith.constant 1.000000e+00 : f32
    %592 = vector.broadcast %cst_196 : f32 to vector<8x128xf32>
    %593 = arith.addf %592, %591 : vector<8x128xf32>
    %594 = tpu.reciprocal %593 {approx = true} : vector<8x128xf32> -> vector<8x128xf32>
    %595 = arith.mulf %585, %561 : vector<8x128xf32>
    %596 = arith.mulf %578, %587 : vector<8x128xf32>
    %597 = arith.addf %595, %596 : vector<8x128xf32>
    %598 = math.tanh %597 : vector<8x128xf32>
    %599 = arith.mulf %594, %598 : vector<8x128xf32>
    %600 = arith.index_cast %567 : i32 to index
    %c0_197 = arith.constant 0 : index
    %601 = vector.load %arg14[%600, %c0_197] : memref<64x128xf32, #tpu.memory_space<vmem>>, vector<8x128xf32>
    tpu.vector_store %arg14[%600, %c0_197], %599 {strides = array<i32>} : memref<64x128xf32, #tpu.memory_space<vmem>>, vector<8x128xf32>,
    %c8_i32_198 = arith.constant 8 : i32
    %c1 = arith.constant 1 : index
    %c0_199 = arith.constant 0 : index
    %c0_200 = arith.constant 0 : index
    %602 = vector.load %arg11[%c1, %c0_199, %c0_200] : memref<3x8x128xf32, #tpu.memory_space<vmem>>, vector<1x8x128xf32>
    %603 = vector.shape_cast %602 : vector<1x8x128xf32> to vector<8x128xf32>
    %604 = vector.shape_cast %599 : vector<8x128xf32> to vector<1x8x128xf32>
    tpu.vector_store %arg11[%c1, %c0_199, %c0_200], %604 {strides = array<i32>} : memref<3x8x128xf32, #tpu.memory_space<vmem>>, vector<1x8x128xf32>,
    %c1_201 = arith.constant 1 : index
    %c0_202 = arith.constant 0 : index
    %c0_203 = arith.constant 0 : index
    %605 = vector.load %arg12[%c1_201, %c0_202, %c0_203] : memref<3x8x128xf32, #tpu.memory_space<vmem>>, vector<1x8x128xf32>
    %606 = vector.shape_cast %605 : vector<1x8x128xf32> to vector<8x128xf32>
    %607 = vector.shape_cast %597 : vector<8x128xf32> to vector<1x8x128xf32>
    tpu.vector_store %arg12[%c1_201, %c0_202, %c0_203], %607 {strides = array<i32>} : memref<3x8x128xf32, #tpu.memory_space<vmem>>, vector<1x8x128xf32>,
    %c0_204 = arith.constant 0 : index
    %c0_205 = arith.constant 0 : index
    %608 = vector.load %arg7[%c0_204, %c0_205] : memref<128x512xf32, #tpu.memory_space<vmem>>, vector<128x512xf32>
    %c0_206 = arith.constant 0 : index
    %c0_207 = arith.constant 0 : index
    %609 = vector.load %arg8[%c0_206, %c0_207] : memref<128x512xf32, #tpu.memory_space<vmem>>, vector<128x512xf32>
    %c0_208 = arith.constant 0 : index
    %c0_209 = arith.constant 0 : index
    %610 = vector.load %arg9[%c0_208, %c0_209] : memref<1x512xf32, #tpu.memory_space<vmem>>, vector<1x512xf32>
    %c0_210 = arith.constant 0 : index
    %c0_211 = arith.constant 0 : index
    %611 = vector.load %arg14[%c0_210, %c0_211] : memref<64x128xf32, #tpu.memory_space<vmem>>, vector<64x128xf32>
    %cst_212 = arith.constant dense<0.000000e+00> : vector<64x512xf32>
    %612 = tpu.matmul %611, %608, %cst_212 {dimension_numbers = #tpu.dot_dimension_numbers<[1], [0], [0], [1], [0, 0, 1, 1], [], []>} : vector<64x128xf32>, vector<128x512xf32>, vector<64x512xf32> -> vector<64x512xf32>
    %613 = vector.broadcast %610 : vector<1x512xf32> to vector<64x512xf32>
    %614 = arith.addf %612, %613 : vector<64x512xf32>
    %c0_213 = arith.constant 0 : index
    %c0_214 = arith.constant 0 : index
    %615 = vector.load %arg13[%c0_213, %c0_214] : memref<64x512xf32, #tpu.memory_space<vmem>>, vector<64x512xf32>
    tpu.vector_store %arg13[%c0_213, %c0_214], %614 {strides = array<i32>} : memref<64x512xf32, #tpu.memory_space<vmem>>, vector<64x512xf32>,
    %cst_215 = arith.constant 0.000000e+00 : f32
    %616 = vector.broadcast %cst_215 : f32 to vector<8x128xf32>
    %cst_216 = arith.constant 0.000000e+00 : f32
    %617 = vector.broadcast %cst_216 : f32 to vector<8x128xf32>
    %c0_i32_217 = arith.constant 0 : i32
    %c8_i32_218 = arith.constant 8 : i32
    %618 = arith.muli %c0_i32_217, %c8_i32_218 : i32
    %619 = tpu.assume_multiple %618, 8 : i32
    %620 = arith.index_cast %619 : i32 to index
    %c0_219 = arith.constant 0 : index
    %621 = vector.load %arg13[%620, %c0_219] : memref<64x512xf32, #tpu.memory_space<vmem>>, vector<8x512xf32>
    %cst_220 = arith.constant dense<0.000000e+00> : vector<8x512xf32>
    %622 = tpu.matmul %616, %609, %cst_220 {dimension_numbers = #tpu.dot_dimension_numbers<[1], [0], [0], [1], [0, 0, 1, 1], [], []>} : vector<8x128xf32>, vector<128x512xf32>, vector<8x512xf32> -> vector<8x512xf32>
    %623 = arith.addf %621, %622 : vector<8x512xf32>
    %624 = vector.extract_strided_slice %623 {offsets = [0, 0], sizes = [8, 128], strides = [1, 1]} : vector<8x512xf32> to vector<8x128xf32>
    %cst_221 = arith.constant 0.000000e+00 : f32
    %625 = vector.broadcast %cst_221 : f32 to vector<8x128xf32>
    %626 = arith.subf %625, %624 : vector<8x128xf32>
    %627 = math.exp %626 : vector<8x128xf32>
    %cst_222 = arith.constant 1.000000e+00 : f32
    %628 = vector.broadcast %cst_222 : f32 to vector<8x128xf32>
    %629 = arith.addf %628, %627 : vector<8x128xf32>
    %630 = tpu.reciprocal %629 {approx = true} : vector<8x128xf32> -> vector<8x128xf32>
    %631 = vector.extract_strided_slice %623 {offsets = [0, 128], sizes = [8, 128], strides = [1, 1]} : vector<8x512xf32> to vector<8x128xf32>
    %cst_223 = arith.constant 0.000000e+00 : f32
    %632 = vector.broadcast %cst_223 : f32 to vector<8x128xf32>
    %633 = arith.subf %632, %631 : vector<8x128xf32>
    %634 = math.exp %633 : vector<8x128xf32>
    %cst_224 = arith.constant 1.000000e+00 : f32
    %635 = vector.broadcast %cst_224 : f32 to vector<8x128xf32>
    %636 = arith.addf %635, %634 : vector<8x128xf32>
    %637 = tpu.reciprocal %636 {approx = true} : vector<8x128xf32> -> vector<8x128xf32>
    %638 = vector.extract_strided_slice %623 {offsets = [0, 256], sizes = [8, 128], strides = [1, 1]} : vector<8x512xf32> to vector<8x128xf32>
    %639 = math.tanh %638 : vector<8x128xf32>
    %640 = vector.extract_strided_slice %623 {offsets = [0, 384], sizes = [8, 128], strides = [1, 1]} : vector<8x512xf32> to vector<8x128xf32>
    %cst_225 = arith.constant 0.000000e+00 : f32
    %641 = vector.broadcast %cst_225 : f32 to vector<8x128xf32>
    %642 = arith.subf %641, %640 : vector<8x128xf32>
    %643 = math.exp %642 : vector<8x128xf32>
    %cst_226 = arith.constant 1.000000e+00 : f32
    %644 = vector.broadcast %cst_226 : f32 to vector<8x128xf32>
    %645 = arith.addf %644, %643 : vector<8x128xf32>
    %646 = tpu.reciprocal %645 {approx = true} : vector<8x128xf32> -> vector<8x128xf32>
    %647 = arith.mulf %637, %617 : vector<8x128xf32>
    %648 = arith.mulf %630, %639 : vector<8x128xf32>
    %649 = arith.addf %647, %648 : vector<8x128xf32>
    %650 = math.tanh %649 : vector<8x128xf32>
    %651 = arith.mulf %646, %650 : vector<8x128xf32>
    %652 = arith.index_cast %619 : i32 to index
    %c0_227 = arith.constant 0 : index
    %653 = vector.load %arg10[%652, %c0_227] : memref<64x128xf32, #tpu.memory_space<vmem>>, vector<8x128xf32>
    tpu.vector_store %arg10[%652, %c0_227], %651 {strides = array<i32>} : memref<64x128xf32, #tpu.memory_space<vmem>>, vector<8x128xf32>,
    %c1_i32_228 = arith.constant 1 : i32
    %c8_i32_229 = arith.constant 8 : i32
    %654 = arith.muli %c1_i32_228, %c8_i32_229 : i32
    %655 = tpu.assume_multiple %654, 8 : i32
    %656 = arith.index_cast %655 : i32 to index
    %c0_230 = arith.constant 0 : index
    %657 = vector.load %arg13[%656, %c0_230] : memref<64x512xf32, #tpu.memory_space<vmem>>, vector<8x512xf32>
    %cst_231 = arith.constant dense<0.000000e+00> : vector<8x512xf32>
    %658 = tpu.matmul %651, %609, %cst_231 {dimension_numbers = #tpu.dot_dimension_numbers<[1], [0], [0], [1], [0, 0, 1, 1], [], []>} : vector<8x128xf32>, vector<128x512xf32>, vector<8x512xf32> -> vector<8x512xf32>
    %659 = arith.addf %657, %658 : vector<8x512xf32>
    %660 = vector.extract_strided_slice %659 {offsets = [0, 0], sizes = [8, 128], strides = [1, 1]} : vector<8x512xf32> to vector<8x128xf32>
    %cst_232 = arith.constant 0.000000e+00 : f32
    %661 = vector.broadcast %cst_232 : f32 to vector<8x128xf32>
    %662 = arith.subf %661, %660 : vector<8x128xf32>
    %663 = math.exp %662 : vector<8x128xf32>
    %cst_233 = arith.constant 1.000000e+00 : f32
    %664 = vector.broadcast %cst_233 : f32 to vector<8x128xf32>
    %665 = arith.addf %664, %663 : vector<8x128xf32>
    %666 = tpu.reciprocal %665 {approx = true} : vector<8x128xf32> -> vector<8x128xf32>
    %667 = vector.extract_strided_slice %659 {offsets = [0, 128], sizes = [8, 128], strides = [1, 1]} : vector<8x512xf32> to vector<8x128xf32>
    %cst_234 = arith.constant 0.000000e+00 : f32
    %668 = vector.broadcast %cst_234 : f32 to vector<8x128xf32>
    %669 = arith.subf %668, %667 : vector<8x128xf32>
    %670 = math.exp %669 : vector<8x128xf32>
    %cst_235 = arith.constant 1.000000e+00 : f32
    %671 = vector.broadcast %cst_235 : f32 to vector<8x128xf32>
    %672 = arith.addf %671, %670 : vector<8x128xf32>
    %673 = tpu.reciprocal %672 {approx = true} : vector<8x128xf32> -> vector<8x128xf32>
    %674 = vector.extract_strided_slice %659 {offsets = [0, 256], sizes = [8, 128], strides = [1, 1]} : vector<8x512xf32> to vector<8x128xf32>
    %675 = math.tanh %674 : vector<8x128xf32>
    %676 = vector.extract_strided_slice %659 {offsets = [0, 384], sizes = [8, 128], strides = [1, 1]} : vector<8x512xf32> to vector<8x128xf32>
    %cst_236 = arith.constant 0.000000e+00 : f32
    %677 = vector.broadcast %cst_236 : f32 to vector<8x128xf32>
    %678 = arith.subf %677, %676 : vector<8x128xf32>
    %679 = math.exp %678 : vector<8x128xf32>
    %cst_237 = arith.constant 1.000000e+00 : f32
    %680 = vector.broadcast %cst_237 : f32 to vector<8x128xf32>
    %681 = arith.addf %680, %679 : vector<8x128xf32>
    %682 = tpu.reciprocal %681 {approx = true} : vector<8x128xf32> -> vector<8x128xf32>
    %683 = arith.mulf %673, %649 : vector<8x128xf32>
    %684 = arith.mulf %666, %675 : vector<8x128xf32>
    %685 = arith.addf %683, %684 : vector<8x128xf32>
    %686 = math.tanh %685 : vector<8x128xf32>
    %687 = arith.mulf %682, %686 : vector<8x128xf32>
    %688 = arith.index_cast %655 : i32 to index
    %c0_238 = arith.constant 0 : index
    %689 = vector.load %arg10[%688, %c0_238] : memref<64x128xf32, #tpu.memory_space<vmem>>, vector<8x128xf32>
    tpu.vector_store %arg10[%688, %c0_238], %687 {strides = array<i32>} : memref<64x128xf32, #tpu.memory_space<vmem>>, vector<8x128xf32>,
    %c2_i32_239 = arith.constant 2 : i32
    %c8_i32_240 = arith.constant 8 : i32
    %690 = arith.muli %c2_i32_239, %c8_i32_240 : i32
    %691 = tpu.assume_multiple %690, 8 : i32
    %692 = arith.index_cast %691 : i32 to index
    %c0_241 = arith.constant 0 : index
    %693 = vector.load %arg13[%692, %c0_241] : memref<64x512xf32, #tpu.memory_space<vmem>>, vector<8x512xf32>
    %cst_242 = arith.constant dense<0.000000e+00> : vector<8x512xf32>
    %694 = tpu.matmul %687, %609, %cst_242 {dimension_numbers = #tpu.dot_dimension_numbers<[1], [0], [0], [1], [0, 0, 1, 1], [], []>} : vector<8x128xf32>, vector<128x512xf32>, vector<8x512xf32> -> vector<8x512xf32>
    %695 = arith.addf %693, %694 : vector<8x512xf32>
    %696 = vector.extract_strided_slice %695 {offsets = [0, 0], sizes = [8, 128], strides = [1, 1]} : vector<8x512xf32> to vector<8x128xf32>
    %cst_243 = arith.constant 0.000000e+00 : f32
    %697 = vector.broadcast %cst_243 : f32 to vector<8x128xf32>
    %698 = arith.subf %697, %696 : vector<8x128xf32>
    %699 = math.exp %698 : vector<8x128xf32>
    %cst_244 = arith.constant 1.000000e+00 : f32
    %700 = vector.broadcast %cst_244 : f32 to vector<8x128xf32>
    %701 = arith.addf %700, %699 : vector<8x128xf32>
    %702 = tpu.reciprocal %701 {approx = true} : vector<8x128xf32> -> vector<8x128xf32>
    %703 = vector.extract_strided_slice %695 {offsets = [0, 128], sizes = [8, 128], strides = [1, 1]} : vector<8x512xf32> to vector<8x128xf32>
    %cst_245 = arith.constant 0.000000e+00 : f32
    %704 = vector.broadcast %cst_245 : f32 to vector<8x128xf32>
    %705 = arith.subf %704, %703 : vector<8x128xf32>
    %706 = math.exp %705 : vector<8x128xf32>
    %cst_246 = arith.constant 1.000000e+00 : f32
    %707 = vector.broadcast %cst_246 : f32 to vector<8x128xf32>
    %708 = arith.addf %707, %706 : vector<8x128xf32>
    %709 = tpu.reciprocal %708 {approx = true} : vector<8x128xf32> -> vector<8x128xf32>
    %710 = vector.extract_strided_slice %695 {offsets = [0, 256], sizes = [8, 128], strides = [1, 1]} : vector<8x512xf32> to vector<8x128xf32>
    %711 = math.tanh %710 : vector<8x128xf32>
    %712 = vector.extract_strided_slice %695 {offsets = [0, 384], sizes = [8, 128], strides = [1, 1]} : vector<8x512xf32> to vector<8x128xf32>
    %cst_247 = arith.constant 0.000000e+00 : f32
    %713 = vector.broadcast %cst_247 : f32 to vector<8x128xf32>
    %714 = arith.subf %713, %712 : vector<8x128xf32>
    %715 = math.exp %714 : vector<8x128xf32>
    %cst_248 = arith.constant 1.000000e+00 : f32
    %716 = vector.broadcast %cst_248 : f32 to vector<8x128xf32>
    %717 = arith.addf %716, %715 : vector<8x128xf32>
    %718 = tpu.reciprocal %717 {approx = true} : vector<8x128xf32> -> vector<8x128xf32>
    %719 = arith.mulf %709, %685 : vector<8x128xf32>
    %720 = arith.mulf %702, %711 : vector<8x128xf32>
    %721 = arith.addf %719, %720 : vector<8x128xf32>
    %722 = math.tanh %721 : vector<8x128xf32>
    %723 = arith.mulf %718, %722 : vector<8x128xf32>
    %724 = arith.index_cast %691 : i32 to index
    %c0_249 = arith.constant 0 : index
    %725 = vector.load %arg10[%724, %c0_249] : memref<64x128xf32, #tpu.memory_space<vmem>>, vector<8x128xf32>
    tpu.vector_store %arg10[%724, %c0_249], %723 {strides = array<i32>} : memref<64x128xf32, #tpu.memory_space<vmem>>, vector<8x128xf32>,
    %c3_i32_250 = arith.constant 3 : i32
    %c8_i32_251 = arith.constant 8 : i32
    %726 = arith.muli %c3_i32_250, %c8_i32_251 : i32
    %727 = tpu.assume_multiple %726, 8 : i32
    %728 = arith.index_cast %727 : i32 to index
    %c0_252 = arith.constant 0 : index
    %729 = vector.load %arg13[%728, %c0_252] : memref<64x512xf32, #tpu.memory_space<vmem>>, vector<8x512xf32>
    %cst_253 = arith.constant dense<0.000000e+00> : vector<8x512xf32>
    %730 = tpu.matmul %723, %609, %cst_253 {dimension_numbers = #tpu.dot_dimension_numbers<[1], [0], [0], [1], [0, 0, 1, 1], [], []>} : vector<8x128xf32>, vector<128x512xf32>, vector<8x512xf32> -> vector<8x512xf32>
    %731 = arith.addf %729, %730 : vector<8x512xf32>
    %732 = vector.extract_strided_slice %731 {offsets = [0, 0], sizes = [8, 128], strides = [1, 1]} : vector<8x512xf32> to vector<8x128xf32>
    %cst_254 = arith.constant 0.000000e+00 : f32
    %733 = vector.broadcast %cst_254 : f32 to vector<8x128xf32>
    %734 = arith.subf %733, %732 : vector<8x128xf32>
    %735 = math.exp %734 : vector<8x128xf32>
    %cst_255 = arith.constant 1.000000e+00 : f32
    %736 = vector.broadcast %cst_255 : f32 to vector<8x128xf32>
    %737 = arith.addf %736, %735 : vector<8x128xf32>
    %738 = tpu.reciprocal %737 {approx = true} : vector<8x128xf32> -> vector<8x128xf32>
    %739 = vector.extract_strided_slice %731 {offsets = [0, 128], sizes = [8, 128], strides = [1, 1]} : vector<8x512xf32> to vector<8x128xf32>
    %cst_256 = arith.constant 0.000000e+00 : f32
    %740 = vector.broadcast %cst_256 : f32 to vector<8x128xf32>
    %741 = arith.subf %740, %739 : vector<8x128xf32>
    %742 = math.exp %741 : vector<8x128xf32>
    %cst_257 = arith.constant 1.000000e+00 : f32
    %743 = vector.broadcast %cst_257 : f32 to vector<8x128xf32>
    %744 = arith.addf %743, %742 : vector<8x128xf32>
    %745 = tpu.reciprocal %744 {approx = true} : vector<8x128xf32> -> vector<8x128xf32>
    %746 = vector.extract_strided_slice %731 {offsets = [0, 256], sizes = [8, 128], strides = [1, 1]} : vector<8x512xf32> to vector<8x128xf32>
    %747 = math.tanh %746 : vector<8x128xf32>
    %748 = vector.extract_strided_slice %731 {offsets = [0, 384], sizes = [8, 128], strides = [1, 1]} : vector<8x512xf32> to vector<8x128xf32>
    %cst_258 = arith.constant 0.000000e+00 : f32
    %749 = vector.broadcast %cst_258 : f32 to vector<8x128xf32>
    %750 = arith.subf %749, %748 : vector<8x128xf32>
    %751 = math.exp %750 : vector<8x128xf32>
    %cst_259 = arith.constant 1.000000e+00 : f32
    %752 = vector.broadcast %cst_259 : f32 to vector<8x128xf32>
    %753 = arith.addf %752, %751 : vector<8x128xf32>
    %754 = tpu.reciprocal %753 {approx = true} : vector<8x128xf32> -> vector<8x128xf32>
    %755 = arith.mulf %745, %721 : vector<8x128xf32>
    %756 = arith.mulf %738, %747 : vector<8x128xf32>
    %757 = arith.addf %755, %756 : vector<8x128xf32>
    %758 = math.tanh %757 : vector<8x128xf32>
    %759 = arith.mulf %754, %758 : vector<8x128xf32>
    %760 = arith.index_cast %727 : i32 to index
    %c0_260 = arith.constant 0 : index
    %761 = vector.load %arg10[%760, %c0_260] : memref<64x128xf32, #tpu.memory_space<vmem>>, vector<8x128xf32>
    tpu.vector_store %arg10[%760, %c0_260], %759 {strides = array<i32>} : memref<64x128xf32, #tpu.memory_space<vmem>>, vector<8x128xf32>,
    %c4_i32_261 = arith.constant 4 : i32
    %c8_i32_262 = arith.constant 8 : i32
    %762 = arith.muli %c4_i32_261, %c8_i32_262 : i32
    %763 = tpu.assume_multiple %762, 8 : i32
    %764 = arith.index_cast %763 : i32 to index
    %c0_263 = arith.constant 0 : index
    %765 = vector.load %arg13[%764, %c0_263] : memref<64x512xf32, #tpu.memory_space<vmem>>, vector<8x512xf32>
    %cst_264 = arith.constant dense<0.000000e+00> : vector<8x512xf32>
    %766 = tpu.matmul %759, %609, %cst_264 {dimension_numbers = #tpu.dot_dimension_numbers<[1], [0], [0], [1], [0, 0, 1, 1], [], []>} : vector<8x128xf32>, vector<128x512xf32>, vector<8x512xf32> -> vector<8x512xf32>
    %767 = arith.addf %765, %766 : vector<8x512xf32>
    %768 = vector.extract_strided_slice %767 {offsets = [0, 0], sizes = [8, 128], strides = [1, 1]} : vector<8x512xf32> to vector<8x128xf32>
    %cst_265 = arith.constant 0.000000e+00 : f32
    %769 = vector.broadcast %cst_265 : f32 to vector<8x128xf32>
    %770 = arith.subf %769, %768 : vector<8x128xf32>
    %771 = math.exp %770 : vector<8x128xf32>
    %cst_266 = arith.constant 1.000000e+00 : f32
    %772 = vector.broadcast %cst_266 : f32 to vector<8x128xf32>
    %773 = arith.addf %772, %771 : vector<8x128xf32>
    %774 = tpu.reciprocal %773 {approx = true} : vector<8x128xf32> -> vector<8x128xf32>
    %775 = vector.extract_strided_slice %767 {offsets = [0, 128], sizes = [8, 128], strides = [1, 1]} : vector<8x512xf32> to vector<8x128xf32>
    %cst_267 = arith.constant 0.000000e+00 : f32
    %776 = vector.broadcast %cst_267 : f32 to vector<8x128xf32>
    %777 = arith.subf %776, %775 : vector<8x128xf32>
    %778 = math.exp %777 : vector<8x128xf32>
    %cst_268 = arith.constant 1.000000e+00 : f32
    %779 = vector.broadcast %cst_268 : f32 to vector<8x128xf32>
    %780 = arith.addf %779, %778 : vector<8x128xf32>
    %781 = tpu.reciprocal %780 {approx = true} : vector<8x128xf32> -> vector<8x128xf32>
    %782 = vector.extract_strided_slice %767 {offsets = [0, 256], sizes = [8, 128], strides = [1, 1]} : vector<8x512xf32> to vector<8x128xf32>
    %783 = math.tanh %782 : vector<8x128xf32>
    %784 = vector.extract_strided_slice %767 {offsets = [0, 384], sizes = [8, 128], strides = [1, 1]} : vector<8x512xf32> to vector<8x128xf32>
    %cst_269 = arith.constant 0.000000e+00 : f32
    %785 = vector.broadcast %cst_269 : f32 to vector<8x128xf32>
    %786 = arith.subf %785, %784 : vector<8x128xf32>
    %787 = math.exp %786 : vector<8x128xf32>
    %cst_270 = arith.constant 1.000000e+00 : f32
    %788 = vector.broadcast %cst_270 : f32 to vector<8x128xf32>
    %789 = arith.addf %788, %787 : vector<8x128xf32>
    %790 = tpu.reciprocal %789 {approx = true} : vector<8x128xf32> -> vector<8x128xf32>
    %791 = arith.mulf %781, %757 : vector<8x128xf32>
    %792 = arith.mulf %774, %783 : vector<8x128xf32>
    %793 = arith.addf %791, %792 : vector<8x128xf32>
    %794 = math.tanh %793 : vector<8x128xf32>
    %795 = arith.mulf %790, %794 : vector<8x128xf32>
    %796 = arith.index_cast %763 : i32 to index
    %c0_271 = arith.constant 0 : index
    %797 = vector.load %arg10[%796, %c0_271] : memref<64x128xf32, #tpu.memory_space<vmem>>, vector<8x128xf32>
    tpu.vector_store %arg10[%796, %c0_271], %795 {strides = array<i32>} : memref<64x128xf32, #tpu.memory_space<vmem>>, vector<8x128xf32>,
    %c5_i32_272 = arith.constant 5 : i32
    %c8_i32_273 = arith.constant 8 : i32
    %798 = arith.muli %c5_i32_272, %c8_i32_273 : i32
    %799 = tpu.assume_multiple %798, 8 : i32
    %800 = arith.index_cast %799 : i32 to index
    %c0_274 = arith.constant 0 : index
    %801 = vector.load %arg13[%800, %c0_274] : memref<64x512xf32, #tpu.memory_space<vmem>>, vector<8x512xf32>
    %cst_275 = arith.constant dense<0.000000e+00> : vector<8x512xf32>
    %802 = tpu.matmul %795, %609, %cst_275 {dimension_numbers = #tpu.dot_dimension_numbers<[1], [0], [0], [1], [0, 0, 1, 1], [], []>} : vector<8x128xf32>, vector<128x512xf32>, vector<8x512xf32> -> vector<8x512xf32>
    %803 = arith.addf %801, %802 : vector<8x512xf32>
    %804 = vector.extract_strided_slice %803 {offsets = [0, 0], sizes = [8, 128], strides = [1, 1]} : vector<8x512xf32> to vector<8x128xf32>
    %cst_276 = arith.constant 0.000000e+00 : f32
    %805 = vector.broadcast %cst_276 : f32 to vector<8x128xf32>
    %806 = arith.subf %805, %804 : vector<8x128xf32>
    %807 = math.exp %806 : vector<8x128xf32>
    %cst_277 = arith.constant 1.000000e+00 : f32
    %808 = vector.broadcast %cst_277 : f32 to vector<8x128xf32>
    %809 = arith.addf %808, %807 : vector<8x128xf32>
    %810 = tpu.reciprocal %809 {approx = true} : vector<8x128xf32> -> vector<8x128xf32>
    %811 = vector.extract_strided_slice %803 {offsets = [0, 128], sizes = [8, 128], strides = [1, 1]} : vector<8x512xf32> to vector<8x128xf32>
    %cst_278 = arith.constant 0.000000e+00 : f32
    %812 = vector.broadcast %cst_278 : f32 to vector<8x128xf32>
    %813 = arith.subf %812, %811 : vector<8x128xf32>
    %814 = math.exp %813 : vector<8x128xf32>
    %cst_279 = arith.constant 1.000000e+00 : f32
    %815 = vector.broadcast %cst_279 : f32 to vector<8x128xf32>
    %816 = arith.addf %815, %814 : vector<8x128xf32>
    %817 = tpu.reciprocal %816 {approx = true} : vector<8x128xf32> -> vector<8x128xf32>
    %818 = vector.extract_strided_slice %803 {offsets = [0, 256], sizes = [8, 128], strides = [1, 1]} : vector<8x512xf32> to vector<8x128xf32>
    %819 = math.tanh %818 : vector<8x128xf32>
    %820 = vector.extract_strided_slice %803 {offsets = [0, 384], sizes = [8, 128], strides = [1, 1]} : vector<8x512xf32> to vector<8x128xf32>
    %cst_280 = arith.constant 0.000000e+00 : f32
    %821 = vector.broadcast %cst_280 : f32 to vector<8x128xf32>
    %822 = arith.subf %821, %820 : vector<8x128xf32>
    %823 = math.exp %822 : vector<8x128xf32>
    %cst_281 = arith.constant 1.000000e+00 : f32
    %824 = vector.broadcast %cst_281 : f32 to vector<8x128xf32>
    %825 = arith.addf %824, %823 : vector<8x128xf32>
    %826 = tpu.reciprocal %825 {approx = true} : vector<8x128xf32> -> vector<8x128xf32>
    %827 = arith.mulf %817, %793 : vector<8x128xf32>
    %828 = arith.mulf %810, %819 : vector<8x128xf32>
    %829 = arith.addf %827, %828 : vector<8x128xf32>
    %830 = math.tanh %829 : vector<8x128xf32>
    %831 = arith.mulf %826, %830 : vector<8x128xf32>
    %832 = arith.index_cast %799 : i32 to index
    %c0_282 = arith.constant 0 : index
    %833 = vector.load %arg10[%832, %c0_282] : memref<64x128xf32, #tpu.memory_space<vmem>>, vector<8x128xf32>
    tpu.vector_store %arg10[%832, %c0_282], %831 {strides = array<i32>} : memref<64x128xf32, #tpu.memory_space<vmem>>, vector<8x128xf32>,
    %c6_i32_283 = arith.constant 6 : i32
    %c8_i32_284 = arith.constant 8 : i32
    %834 = arith.muli %c6_i32_283, %c8_i32_284 : i32
    %835 = tpu.assume_multiple %834, 8 : i32
    %836 = arith.index_cast %835 : i32 to index
    %c0_285 = arith.constant 0 : index
    %837 = vector.load %arg13[%836, %c0_285] : memref<64x512xf32, #tpu.memory_space<vmem>>, vector<8x512xf32>
    %cst_286 = arith.constant dense<0.000000e+00> : vector<8x512xf32>
    %838 = tpu.matmul %831, %609, %cst_286 {dimension_numbers = #tpu.dot_dimension_numbers<[1], [0], [0], [1], [0, 0, 1, 1], [], []>} : vector<8x128xf32>, vector<128x512xf32>, vector<8x512xf32> -> vector<8x512xf32>
    %839 = arith.addf %837, %838 : vector<8x512xf32>
    %840 = vector.extract_strided_slice %839 {offsets = [0, 0], sizes = [8, 128], strides = [1, 1]} : vector<8x512xf32> to vector<8x128xf32>
    %cst_287 = arith.constant 0.000000e+00 : f32
    %841 = vector.broadcast %cst_287 : f32 to vector<8x128xf32>
    %842 = arith.subf %841, %840 : vector<8x128xf32>
    %843 = math.exp %842 : vector<8x128xf32>
    %cst_288 = arith.constant 1.000000e+00 : f32
    %844 = vector.broadcast %cst_288 : f32 to vector<8x128xf32>
    %845 = arith.addf %844, %843 : vector<8x128xf32>
    %846 = tpu.reciprocal %845 {approx = true} : vector<8x128xf32> -> vector<8x128xf32>
    %847 = vector.extract_strided_slice %839 {offsets = [0, 128], sizes = [8, 128], strides = [1, 1]} : vector<8x512xf32> to vector<8x128xf32>
    %cst_289 = arith.constant 0.000000e+00 : f32
    %848 = vector.broadcast %cst_289 : f32 to vector<8x128xf32>
    %849 = arith.subf %848, %847 : vector<8x128xf32>
    %850 = math.exp %849 : vector<8x128xf32>
    %cst_290 = arith.constant 1.000000e+00 : f32
    %851 = vector.broadcast %cst_290 : f32 to vector<8x128xf32>
    %852 = arith.addf %851, %850 : vector<8x128xf32>
    %853 = tpu.reciprocal %852 {approx = true} : vector<8x128xf32> -> vector<8x128xf32>
    %854 = vector.extract_strided_slice %839 {offsets = [0, 256], sizes = [8, 128], strides = [1, 1]} : vector<8x512xf32> to vector<8x128xf32>
    %855 = math.tanh %854 : vector<8x128xf32>
    %856 = vector.extract_strided_slice %839 {offsets = [0, 384], sizes = [8, 128], strides = [1, 1]} : vector<8x512xf32> to vector<8x128xf32>
    %cst_291 = arith.constant 0.000000e+00 : f32
    %857 = vector.broadcast %cst_291 : f32 to vector<8x128xf32>
    %858 = arith.subf %857, %856 : vector<8x128xf32>
    %859 = math.exp %858 : vector<8x128xf32>
    %cst_292 = arith.constant 1.000000e+00 : f32
    %860 = vector.broadcast %cst_292 : f32 to vector<8x128xf32>
    %861 = arith.addf %860, %859 : vector<8x128xf32>
    %862 = tpu.reciprocal %861 {approx = true} : vector<8x128xf32> -> vector<8x128xf32>
    %863 = arith.mulf %853, %829 : vector<8x128xf32>
    %864 = arith.mulf %846, %855 : vector<8x128xf32>
    %865 = arith.addf %863, %864 : vector<8x128xf32>
    %866 = math.tanh %865 : vector<8x128xf32>
    %867 = arith.mulf %862, %866 : vector<8x128xf32>
    %868 = arith.index_cast %835 : i32 to index
    %c0_293 = arith.constant 0 : index
    %869 = vector.load %arg10[%868, %c0_293] : memref<64x128xf32, #tpu.memory_space<vmem>>, vector<8x128xf32>
    tpu.vector_store %arg10[%868, %c0_293], %867 {strides = array<i32>} : memref<64x128xf32, #tpu.memory_space<vmem>>, vector<8x128xf32>,
    %c7_i32_294 = arith.constant 7 : i32
    %c8_i32_295 = arith.constant 8 : i32
    %870 = arith.muli %c7_i32_294, %c8_i32_295 : i32
    %871 = tpu.assume_multiple %870, 8 : i32
    %872 = arith.index_cast %871 : i32 to index
    %c0_296 = arith.constant 0 : index
    %873 = vector.load %arg13[%872, %c0_296] : memref<64x512xf32, #tpu.memory_space<vmem>>, vector<8x512xf32>
    %cst_297 = arith.constant dense<0.000000e+00> : vector<8x512xf32>
    %874 = tpu.matmul %867, %609, %cst_297 {dimension_numbers = #tpu.dot_dimension_numbers<[1], [0], [0], [1], [0, 0, 1, 1], [], []>} : vector<8x128xf32>, vector<128x512xf32>, vector<8x512xf32> -> vector<8x512xf32>
    %875 = arith.addf %873, %874 : vector<8x512xf32>
    %876 = vector.extract_strided_slice %875 {offsets = [0, 0], sizes = [8, 128], strides = [1, 1]} : vector<8x512xf32> to vector<8x128xf32>
    %cst_298 = arith.constant 0.000000e+00 : f32
    %877 = vector.broadcast %cst_298 : f32 to vector<8x128xf32>
    %878 = arith.subf %877, %876 : vector<8x128xf32>
    %879 = math.exp %878 : vector<8x128xf32>
    %cst_299 = arith.constant 1.000000e+00 : f32
    %880 = vector.broadcast %cst_299 : f32 to vector<8x128xf32>
    %881 = arith.addf %880, %879 : vector<8x128xf32>
    %882 = tpu.reciprocal %881 {approx = true} : vector<8x128xf32> -> vector<8x128xf32>
    %883 = vector.extract_strided_slice %875 {offsets = [0, 128], sizes = [8, 128], strides = [1, 1]} : vector<8x512xf32> to vector<8x128xf32>
    %cst_300 = arith.constant 0.000000e+00 : f32
    %884 = vector.broadcast %cst_300 : f32 to vector<8x128xf32>
    %885 = arith.subf %884, %883 : vector<8x128xf32>
    %886 = math.exp %885 : vector<8x128xf32>
    %cst_301 = arith.constant 1.000000e+00 : f32
    %887 = vector.broadcast %cst_301 : f32 to vector<8x128xf32>
    %888 = arith.addf %887, %886 : vector<8x128xf32>
    %889 = tpu.reciprocal %888 {approx = true} : vector<8x128xf32> -> vector<8x128xf32>
    %890 = vector.extract_strided_slice %875 {offsets = [0, 256], sizes = [8, 128], strides = [1, 1]} : vector<8x512xf32> to vector<8x128xf32>
    %891 = math.tanh %890 : vector<8x128xf32>
    %892 = vector.extract_strided_slice %875 {offsets = [0, 384], sizes = [8, 128], strides = [1, 1]} : vector<8x512xf32> to vector<8x128xf32>
    %cst_302 = arith.constant 0.000000e+00 : f32
    %893 = vector.broadcast %cst_302 : f32 to vector<8x128xf32>
    %894 = arith.subf %893, %892 : vector<8x128xf32>
    %895 = math.exp %894 : vector<8x128xf32>
    %cst_303 = arith.constant 1.000000e+00 : f32
    %896 = vector.broadcast %cst_303 : f32 to vector<8x128xf32>
    %897 = arith.addf %896, %895 : vector<8x128xf32>
    %898 = tpu.reciprocal %897 {approx = true} : vector<8x128xf32> -> vector<8x128xf32>
    %899 = arith.mulf %889, %865 : vector<8x128xf32>
    %900 = arith.mulf %882, %891 : vector<8x128xf32>
    %901 = arith.addf %899, %900 : vector<8x128xf32>
    %902 = math.tanh %901 : vector<8x128xf32>
    %903 = arith.mulf %898, %902 : vector<8x128xf32>
    %904 = arith.index_cast %871 : i32 to index
    %c0_304 = arith.constant 0 : index
    %905 = vector.load %arg10[%904, %c0_304] : memref<64x128xf32, #tpu.memory_space<vmem>>, vector<8x128xf32>
    tpu.vector_store %arg10[%904, %c0_304], %903 {strides = array<i32>} : memref<64x128xf32, #tpu.memory_space<vmem>>, vector<8x128xf32>,
    %c8_i32_305 = arith.constant 8 : i32
    %c2 = arith.constant 2 : index
    %c0_306 = arith.constant 0 : index
    %c0_307 = arith.constant 0 : index
    %906 = vector.load %arg11[%c2, %c0_306, %c0_307] : memref<3x8x128xf32, #tpu.memory_space<vmem>>, vector<1x8x128xf32>
    %907 = vector.shape_cast %906 : vector<1x8x128xf32> to vector<8x128xf32>
    %908 = vector.shape_cast %903 : vector<8x128xf32> to vector<1x8x128xf32>
    tpu.vector_store %arg11[%c2, %c0_306, %c0_307], %908 {strides = array<i32>} : memref<3x8x128xf32, #tpu.memory_space<vmem>>, vector<1x8x128xf32>,
    %c2_308 = arith.constant 2 : index
    %c0_309 = arith.constant 0 : index
    %c0_310 = arith.constant 0 : index
    %909 = vector.load %arg12[%c2_308, %c0_309, %c0_310] : memref<3x8x128xf32, #tpu.memory_space<vmem>>, vector<1x8x128xf32>
    %910 = vector.shape_cast %909 : vector<1x8x128xf32> to vector<8x128xf32>
    %911 = vector.shape_cast %901 : vector<8x128xf32> to vector<1x8x128xf32>
    tpu.vector_store %arg12[%c2_308, %c0_309, %c0_310], %911 {strides = array<i32>} : memref<3x8x128xf32, #tpu.memory_space<vmem>>, vector<1x8x128xf32>,
    return
  }
}

</mosaic_0001>

<llo_original>
// kernel: lstm_encoder_forward.1
$region0: #{lstm_encoder_forward.1}
  #allocation0 [shape = 'u32[]', space=smem, size = 0x4, offset = 0x4, fixed_abs, tag = 'smem constant byte address 0x4 - core index']
  #allocation1 [shape = 'u32[144,128]{1,0:T(1,128)}', space=vmem, size = 0x12000, scoped, tag = 'internal scratch']
  #allocation2 [shape = 'f32[64,512]{1,0:T(8,128)}', space=vmem, size = 0x20000, scoped, tag = 'scratch operand']
  #allocation3 [shape = 'f32[64,128]{1,0:T(8,128)}', space=vmem, size = 0x8000, scoped, tag = 'scratch operand']
  %s0 = inlined_call_operand.vmem [shape: f32[64,4], index: 0, kind: input, shape index: {}]
  %s1 = inlined_call_operand.vmem [shape: f32[4,512], index: 1, kind: input, shape index: {}]
  %s2 = inlined_call_operand.hbm [shape: f32[128,512], index: 2, kind: input, shape index: {}]
  %s3 = inlined_call_operand.vmem [shape: f32[1,512], index: 3, kind: input, shape index: {}]
  %s4 = inlined_call_operand.hbm [shape: f32[128,512], index: 4, kind: input, shape index: {}]
  %s5 = inlined_call_operand.hbm [shape: f32[128,512], index: 5, kind: input, shape index: {}]
  %s6 = inlined_call_operand.vmem [shape: f32[1,512], index: 6, kind: input, shape index: {}]
  %s7 = inlined_call_operand.hbm [shape: f32[128,512], index: 7, kind: input, shape index: {}]
  %s8 = inlined_call_operand.hbm [shape: f32[128,512], index: 8, kind: input, shape index: {}]
  %s9 = inlined_call_operand.vmem [shape: f32[1,512], index: 9, kind: input, shape index: {}]
  %s10 = inlined_call_operand.vmem [shape: f32[64,128], index: 10, kind: output, shape index: {0}]
  %s11 = inlined_call_operand.vmem [shape: f32[3,8,128], index: 11, kind: output, shape index: {1}]
  %s12 = inlined_call_operand.vmem [shape: f32[3,8,128], index: 12, kind: output, shape index: {2}]
  %13 = xla_tuple %s10, %s11, %s12
  %s14 = sld [smem:[#allocation0]]
  $region86: #{lstm_encoder_forward.1} parent=0
    _
  %s16 = ssub.s32 1, %s14
  %s17 = scalar_select 0, %s16, %s14
  $region1: #{lstm_encoder_forward.1} parent=0
    #allocation4 [shape = 'u8[262144]{0}', space=vmem, size = 0x40000, scoped, tag = 'input window, operand 2, single buffered']
    #allocation5 [shape = 's32[1]{0}', space=sflag, size = 0x4, scoped, tag = 'scoped memory for lstm_encoder_forward.1']
    #allocation6 [shape = 'u8[262144]{0}', space=vmem, size = 0x40000, scoped, tag = 'input window, operand 4, single buffered']
    #allocation7 [shape = 's32[1]{0}', space=sflag, size = 0x4, scoped, tag = 'scoped memory for lstm_encoder_forward.1']
    #allocation8 [shape = 'u8[262144]{0}', space=vmem, size = 0x40000, scoped, tag = 'input window, operand 5, single buffered']
    #allocation9 [shape = 'u8[262144]{0}', space=vmem, size = 0x40000, scoped, tag = 'input window, operand 7, single buffered']
    #allocation10 [shape = 's32[1]{0}', space=sflag, size = 0x4, scoped, tag = 'scoped memory for lstm_encoder_forward.1']
    #allocation11 [shape = 'u8[262144]{0}', space=vmem, size = 0x40000, scoped, tag = 'input window, operand 8, single buffered']
    %18 = vsyncpa [#allocation5], 0
    %19 = vsyncpa [#allocation7], 0
    %20 = vsyncpa [#allocation10], 0
    // Predicated region
    $region2: #{lstm_encoder_forward.1} parent=1 // pred_check
      _
    $region3: #{lstm_encoder_forward.1} parent=1 // pred_check_branch
      %22 = sbr.rel (0) target = $region5
    $region4: #{lstm_encoder_forward.1} parent=1 // pred_region
      _
    $region5: #{lstm_encoder_forward.1} parent=1 // pred_fallthru
      _
    // Predicated region
    $region6: #{lstm_encoder_forward.1} parent=1 // pred_check
      _
    $region7: #{lstm_encoder_forward.1} parent=1 // pred_check_branch
      %24 = sbr.rel (0) target = $region9
    $region8: #{lstm_encoder_forward.1} parent=1 // pred_region
      _
    $region9: #{lstm_encoder_forward.1} parent=1 // pred_fallthru
      _
    // Predicated region
    $region10: #{lstm_encoder_forward.1} parent=1 // pred_check
      _
    $region11: #{lstm_encoder_forward.1} parent=1 // pred_check_branch
      %26 = sbr.rel (0) target = $region13
    $region12: #{lstm_encoder_forward.1} parent=1 // pred_region
      %s28 = ssub.s32 8192, 8192
      %29 = vsyncadd [#allocation5], %s28
      %s30 = sshll.u32 [#allocation4], 4
      %s31 = int_to_ptr.vmem [resolvable:$true] %s30
      %36 = dma.hbm_to_vmem [thread:$0]  %s2, 8192, %s31, [#allocation5], 512, 512, 32
    $region13: #{lstm_encoder_forward.1} parent=1 // pred_fallthru
      _
    // Predicated region
    $region14: #{lstm_encoder_forward.1} parent=1 // pred_check
      _
    $region15: #{lstm_encoder_forward.1} parent=1 // pred_check_branch
      %38 = sbr.rel (0) target = $region17
    $region16: #{lstm_encoder_forward.1} parent=1 // pred_region
      _
    $region17: #{lstm_encoder_forward.1} parent=1 // pred_fallthru
      _
    // Predicated region
    $region18: #{lstm_encoder_forward.1} parent=1 // pred_check
      _
    $region19: #{lstm_encoder_forward.1} parent=1 // pred_check_branch
      %40 = sbr.rel (0) target = $region21
    $region20: #{lstm_encoder_forward.1} parent=1 // pred_region
      %s42 = ssub.s32 8192, 8192
      %43 = vsyncadd [#allocation7], %s42
      %s44 = sshll.u32 [#allocation6], 4
      %s45 = int_to_ptr.vmem [resolvable:$true] %s44
      %50 = dma.hbm_to_vmem [thread:$0]  %s4, 8192, %s45, [#allocation7], 512, 512, 32
    $region21: #{lstm_encoder_forward.1} parent=1 // pred_fallthru
      _
    // Predicated region
    $region22: #{lstm_encoder_forward.1} parent=1 // pred_check
      _
    $region23: #{lstm_encoder_forward.1} parent=1 // pred_check_branch
      %52 = sbr.rel (0) target = $region25
    $region24: #{lstm_encoder_forward.1} parent=1 // pred_region
      %s54 = ssub.s32 8192, 8192
      %55 = vsyncadd [#allocation7], %s54
      %s56 = sshll.u32 [#allocation8], 4
      %s57 = int_to_ptr.vmem [resolvable:$true] %s56
      %62 = dma.hbm_to_vmem [thread:$0]  %s5, 8192, %s57, [#allocation7], 512, 512, 32
    $region25: #{lstm_encoder_forward.1} parent=1 // pred_fallthru
      _
    // Predicated region
    $region26: #{lstm_encoder_forward.1} parent=1 // pred_check
      _
    $region27: #{lstm_encoder_forward.1} parent=1 // pred_check_branch
      %64 = sbr.rel (0) target = $region29
    $region28: #{lstm_encoder_forward.1} parent=1 // pred_region
      _
    $region29: #{lstm_encoder_forward.1} parent=1 // pred_fallthru
      _
    // Predicated region
    $region30: #{lstm_encoder_forward.1} parent=1 // pred_check
      _
    $region31: #{lstm_encoder_forward.1} parent=1 // pred_check_branch
      %66 = sbr.rel (0) target = $region33
    $region32: #{lstm_encoder_forward.1} parent=1 // pred_region
      %s68 = ssub.s32 8192, 8192
      %69 = vsyncadd [#allocation10], %s68
      %s70 = sshll.u32 [#allocation9], 4
      %s71 = int_to_ptr.vmem [resolvable:$true] %s70
      %76 = dma.hbm_to_vmem [thread:$0]  %s7, 8192, %s71, [#allocation10], 512, 512, 32
    $region33: #{lstm_encoder_forward.1} parent=1 // pred_fallthru
      _
    // Predicated region
    $region34: #{lstm_encoder_forward.1} parent=1 // pred_check
      _
    $region35: #{lstm_encoder_forward.1} parent=1 // pred_check_branch
      %78 = sbr.rel (0) target = $region37
    $region36: #{lstm_encoder_forward.1} parent=1 // pred_region
      %s80 = ssub.s32 8192, 8192
      %81 = vsyncadd [#allocation10], %s80
      %s82 = sshll.u32 [#allocation11], 4
      %s83 = int_to_ptr.vmem [resolvable:$true] %s82
      %88 = dma.hbm_to_vmem [thread:$0]  %s8, 8192, %s83, [#allocation10], 512, 512, 32
    $region37: #{lstm_encoder_forward.1} parent=1 // pred_fallthru
      _
    // Predicated region
    $region38: #{lstm_encoder_forward.1} parent=1 // pred_check
      _
    $region39: #{lstm_encoder_forward.1} parent=1 // pred_check_branch
      %90 = sbr.rel (0) target = $region41
    $region40: #{lstm_encoder_forward.1} parent=1 // pred_region
      _
    $region41: #{lstm_encoder_forward.1} parent=1 // pred_fallthru
      _
    // Predicated region
    $region42: #{lstm_encoder_forward.1} parent=1 // pred_check
      _
    $region43: #{lstm_encoder_forward.1} parent=1 // pred_check_branch
      %92 = sbr.rel (0) target = $region45
    $region44: #{lstm_encoder_forward.1} parent=1 // pred_region
      %93 = dma.done [#allocation5], 8192
    $region45: #{lstm_encoder_forward.1} parent=1 // pred_fallthru
      _
    // Predicated region
    $region46: #{lstm_encoder_forward.1} parent=1 // pred_check
      _
    $region47: #{lstm_encoder_forward.1} parent=1 // pred_check_branch
      %95 = sbr.rel (0) target = $region49
    $region48: #{lstm_encoder_forward.1} parent=1 // pred_region
      %96 = dma.done [#allocation7], 8192
    $region49: #{lstm_encoder_forward.1} parent=1 // pred_fallthru
      _
    // Predicated region
    $region50: #{lstm_encoder_forward.1} parent=1 // pred_check
      _
    $region51: #{lstm_encoder_forward.1} parent=1 // pred_check_branch
      %98 = sbr.rel (0) target = $region53
    $region52: #{lstm_encoder_forward.1} parent=1 // pred_region
      %99 = dma.done [#allocation7], 8192
    $region53: #{lstm_encoder_forward.1} parent=1 // pred_fallthru
      _
    // Predicated region
    $region54: #{lstm_encoder_forward.1} parent=1 // pred_check
      _
    $region55: #{lstm_encoder_forward.1} parent=1 // pred_check_branch
      %101 = sbr.rel (0) target = $region57
    $region56: #{lstm_encoder_forward.1} parent=1 // pred_region
      %102 = dma.done [#allocation10], 8192
    $region57: #{lstm_encoder_forward.1} parent=1 // pred_fallthru
      _
    // Predicated region
    $region58: #{lstm_encoder_forward.1} parent=1 // pred_check
      _
    $region59: #{lstm_encoder_forward.1} parent=1 // pred_check_branch
      %104 = sbr.rel (0) target = $region61
    $region60: #{lstm_encoder_forward.1} parent=1 // pred_region
      %105 = dma.done [#allocation10], 8192
    $region61: #{lstm_encoder_forward.1} parent=1 // pred_fallthru
      _
    %v106 = vld [vmem:[%s1] sm:$0xff]
    %v107 = vld [vmem:[%s1 + $0x8] sm:$0xff]
    %v108 = vld [vmem:[#allocation4] sm:$0xff]
    %v109 = vld [vmem:[#allocation4 + $0x8] sm:$0xff]
    %v110 = vld [vmem:[#allocation4 + $0x10] sm:$0xff]
    %v111 = vld [vmem:[#allocation4 + $0x18] sm:$0xff]
    %v112 = vld [vmem:[#allocation4 + $0x20] sm:$0xff]
    %v113 = vld [vmem:[#allocation4 + $0x28] sm:$0xff]
    %v114 = vld [vmem:[#allocation4 + $0x30] sm:$0xff]
    %v115 = vld [vmem:[#allocation4 + $0x38] sm:$0xff]
    %v116 = vld [vmem:[#allocation4 + $0x40] sm:$0xff]
    %v117 = vld [vmem:[#allocation4 + $0x48] sm:$0xff]
    %v118 = vld [vmem:[#allocation4 + $0x50] sm:$0xff]
    %v119 = vld [vmem:[#allocation4 + $0x58] sm:$0xff]
    %v120 = vld [vmem:[#allocation4 + $0x60] sm:$0xff]
    %v121 = vld [vmem:[#allocation4 + $0x68] sm:$0xff]
    %v122 = vld [vmem:[#allocation4 + $0x70] sm:$0xff]
    %v123 = vld [vmem:[#allocation4 + $0x78] sm:$0xff]
    %v124 = vld [vmem:[#allocation4 + $0x80] sm:$0xff]
    %v125 = vld [vmem:[#allocation4 + $0x88] sm:$0xff]
    %v126 = vld [vmem:[#allocation4 + $0x90] sm:$0xff]
    %v127 = vld [vmem:[#allocation4 + $0x98] sm:$0xff]
    %v128 = vld [vmem:[#allocation4 + $0xa0] sm:$0xff]
    %v129 = vld [vmem:[#allocation4 + $0xa8] sm:$0xff]
    %v130 = vld [vmem:[#allocation4 + $0xb0] sm:$0xff]
    %v131 = vld [vmem:[#allocation4 + $0xb8] sm:$0xff]
    %v132 = vld [vmem:[#allocation4 + $0xc0] sm:$0xff]
    %v133 = vld [vmem:[#allocation4 + $0xc8] sm:$0xff]
    %v134 = vld [vmem:[#allocation4 + $0xd0] sm:$0xff]
    %v135 = vld [vmem:[#allocation4 + $0xd8] sm:$0xff]
    %v136 = vld [vmem:[#allocation4 + $0xe0] sm:$0xff]
    %v137 = vld [vmem:[#allocation4 + $0xe8] sm:$0xff]
    %v138 = vld [vmem:[#allocation4 + $0xf0] sm:$0xff]
    %v139 = vld [vmem:[#allocation4 + $0xf8] sm:$0xff]
    %v140 = vld [vmem:[#allocation4 + $0x100] sm:$0xff]
    %v141 = vld [vmem:[#allocation4 + $0x108] sm:$0xff]
    %v142 = vld [vmem:[#allocation4 + $0x110] sm:$0xff]
    %v143 = vld [vmem:[#allocation4 + $0x118] sm:$0xff]
    %v144 = vld [vmem:[#allocation4 + $0x120] sm:$0xff]
    %v145 = vld [vmem:[#allocation4 + $0x128] sm:$0xff]
    %v146 = vld [vmem:[#allocation4 + $0x130] sm:$0xff]
    %v147 = vld [vmem:[#allocation4 + $0x138] sm:$0xff]
    %v148 = vld [vmem:[#allocation4 + $0x140] sm:$0xff]
    %v149 = vld [vmem:[#allocation4 + $0x148] sm:$0xff]
    %v150 = vld [vmem:[#allocation4 + $0x150] sm:$0xff]
    %v151 = vld [vmem:[#allocation4 + $0x158] sm:$0xff]
    %v152 = vld [vmem:[#allocation4 + $0x160] sm:$0xff]
    %v153 = vld [vmem:[#allocation4 + $0x168] sm:$0xff]
    %v154 = vld [vmem:[#allocation4 + $0x170] sm:$0xff]
    %v155 = vld [vmem:[#allocation4 + $0x178] sm:$0xff]
    %v156 = vld [vmem:[#allocation4 + $0x180] sm:$0xff]
    %v157 = vld [vmem:[#allocation4 + $0x188] sm:$0xff]
    %v158 = vld [vmem:[#allocation4 + $0x190] sm:$0xff]
    %v159 = vld [vmem:[#allocation4 + $0x198] sm:$0xff]
    %v160 = vld [vmem:[#allocation4 + $0x1a0] sm:$0xff]
    %v161 = vld [vmem:[#allocation4 + $0x1a8] sm:$0xff]
    %v162 = vld [vmem:[#allocation4 + $0x1b0] sm:$0xff]
    %v163 = vld [vmem:[#allocation4 + $0x1b8] sm:$0xff]
    %v164 = vld [vmem:[#allocation4 + $0x1c0] sm:$0xff]
    %v165 = vld [vmem:[#allocation4 + $0x1c8] sm:$0xff]
    %v166 = vld [vmem:[#allocation4 + $0x1d0] sm:$0xff]
    %v167 = vld [vmem:[#allocation4 + $0x1d8] sm:$0xff]
    %v168 = vld [vmem:[#allocation4 + $0x1e0] sm:$0xff]
    %v169 = vld [vmem:[#allocation4 + $0x1e8] sm:$0xff]
    %v170 = vld [vmem:[#allocation4 + $0x1f0] sm:$0xff]
    %v171 = vld [vmem:[#allocation4 + $0x1f8] sm:$0xff]
    %v172 = vld [vmem:[%s3] sm:$0xf]
    %v173 = vld [vmem:[%s0] sm:$0xff]
    %v174 = vld [vmem:[%s0 + $0x8] sm:$0xff]
    %v175 = vld [vmem:[%s0 + $0x10] sm:$0xff]
    %v176 = vld [vmem:[%s0 + $0x18] sm:$0xff]
    %v177 = vld [vmem:[%s0 + $0x20] sm:$0xff]
    %v178 = vld [vmem:[%s0 + $0x28] sm:$0xff]
    %v179 = vld [vmem:[%s0 + $0x30] sm:$0xff]
    %v180 = vld [vmem:[%s0 + $0x38] sm:$0xff]
    %v182 = vlaneseq
    %v183 = vshrl.u32 %v182, 7
    %v184 = vsub.s32 0, %v183
    %v185 = vrot.slane %v172, %v184
    %v186 = vlaneseq
    %v187 = vshrl.u32 %v186, 7
    %v188 = vsub.s32 1, %v187
    %v189 = vrot.slane %v172, %v188
    %v190 = vlaneseq
    %v191 = vshrl.u32 %v190, 7
    %v192 = vsub.s32 2, %v191
    %v193 = vrot.slane %v172, %v192
    %v194 = vlaneseq
    %v195 = vshrl.u32 %v194, 7
    %v196 = vsub.s32 3, %v195
    %v197 = vrot.slane %v172, %v196
    %v204 = vcombine.high %v106, %v106
    %v205 = vcombine.high %v107, %v107
    %vm206 = vcmask 31744
    %v208 = vsel %vm206, %v173, 0
    %v211 = vsel %vm206, %v174, 0
    %v214 = vsel %vm206, %v175, 0
    %v217 = vsel %vm206, %v176, 0
    %v220 = vsel %vm206, %v177, 0
    %v223 = vsel %vm206, %v178, 0
    %v226 = vsel %vm206, %v179, 0
    %v229 = vsel %vm206, %v180, 0
    %vm231 = vcmask 1043456
    %v232 = vsel %vm231, %v106, 0
    %v234 = vsel %vm231, %v204, 0
    %v236 = vsel %vm231, %v107, 0
    %v238 = vsel %vm231, %v205, 0
    %240 = vmatprep.subr.mxu0 %v234
    %241 = vmatpush1.msra.mxu0 %v232
    %242 = vmatprep.subr.mxu0 0.0
    %243 = vmatpush1.msra.mxu0 0.0
    %244 = vmatprep.subr.mxu0 0.0
    %245 = vmatpush1.msra.mxu0 0.0
    %246 = vmatprep.subr.mxu0 0.0
    %247 = vmatpush1.msra.mxu0 0.0
    %248 = vmatprep.subr.mxu0 0.0
    %249 = vmatpush1.msra.mxu0 0.0
    %250 = vmatprep.subr.mxu0 0.0
    %251 = vmatpush1.msra.mxu0 0.0
    %252 = vmatprep.subr.mxu0 0.0
    %253 = vmatpush1.msra.mxu0 0.0
    %254 = vmatprep.subr.mxu0 0.0
    %255 = vmatpush1.msra.mxu0 0.0
    %256 = vmatprep.subr.mxu0 0.0
    %257 = vmatpush1.msra.mxu0 0.0
    %258 = vmatprep.subr.mxu0 0.0
    %259 = vmatpush1.msra.mxu0 0.0
    %260 = vmatprep.subr.mxu0 0.0
    %261 = vmatpush1.msra.mxu0 0.0
    %262 = vmatprep.subr.mxu0 0.0
    %263 = vmatpush1.msra.mxu0 0.0
    %264 = vmatprep.subr.mxu0 0.0
    %265 = vmatpush1.msra.mxu0 0.0
    %266 = vmatprep.subr.mxu0 0.0
    %267 = vmatpush1.msra.mxu0 0.0
    %268 = vmatprep.subr.mxu0 0.0
    %269 = vmatpush1.msra.mxu0 0.0
    %270 = vmatprep.subr.mxu0 0.0
    %271 = vmatpush1.msra.mxu0 0.0
    %272 = vmatprep.subr.mxu0 0.0
    %273 = vmatpush1.msra.mxu0 0.0
    %274 = vmatprep.subr.mxu0 0.0
    %275 = vmatpush1.msra.mxu0 0.0
    %276 = vmatprep.subr.mxu0 0.0
    %277 = vmatpush1.msra.mxu0 0.0
    %278 = vmatprep.subr.mxu0 0.0
    %279 = vmatpush1.msra.mxu0 0.0
    %280 = vmatprep.subr.mxu0 0.0
    %281 = vmatpush1.msra.mxu0 0.0
    %282 = vmatprep.subr.mxu0 0.0
    %283 = vmatpush1.msra.mxu0 0.0
    %284 = vmatprep.subr.mxu0 0.0
    %285 = vmatpush1.msra.mxu0 0.0
    %286 = vmatprep.subr.mxu0 0.0
    %287 = vmatpush1.msra.mxu0 0.0
    %288 = vmatprep.subr.mxu0 0.0
    %289 = vmatpush1.msra.mxu0 0.0
    %290 = vmatprep.subr.mxu0 0.0
    %291 = vmatpush1.msra.mxu0 0.0
    %292 = vmatprep.subr.mxu0 0.0
    %293 = vmatpush1.msra.mxu0 0.0
    %294 = vmatprep.subr.mxu0 0.0
    %295 = vmatpush1.msra.mxu0 0.0
    %296 = vmatprep.subr.mxu0 0.0
    %297 = vmatpush1.msra.mxu0 0.0
    %298 = vmatprep.subr.mxu0 0.0
    %299 = vmatpush1.msra.mxu0 0.0
    %300 = vmatprep.subr.mxu0 0.0
    %301 = vmatpush1.msra.mxu0 0.0
    %302 = vmatprep.subr.mxu0 0.0
    %303 = vmatpush1.msra.mxu0 0.0
    %304 = vmatprep.mubr.f32.mxu0 0.0
    %305 = vmatmul.mubr.f32.gmra.mrb[0].mxu0 %v208
    %v306 = vpop.f32.mrb[0].mxu0
    %v307 = vadd.f32 %v185, %v306
    %v308 = vpop.f32.mrb[0].mxu0
    %v309 = vadd.f32 %v189, %v308
    %310 = vmatprep.mubr.f32.mxu0 0.0
    %311 = vmatmul.mubr.f32.gmra.mrb[0].mxu0 %v211
    %v312 = vpop.f32.mrb[0].mxu0
    %v313 = vadd.f32 %v185, %v312
    %v314 = vpop.f32.mrb[0].mxu0
    %v315 = vadd.f32 %v189, %v314
    %316 = vmatprep.mubr.f32.mxu0 0.0
    %317 = vmatmul.mubr.f32.gmra.mrb[0].mxu0 %v214
    %v318 = vpop.f32.mrb[0].mxu0
    %v319 = vadd.f32 %v185, %v318
    %v320 = vpop.f32.mrb[0].mxu0
    %v321 = vadd.f32 %v189, %v320
    %322 = vmatprep.mubr.f32.mxu0 0.0
    %323 = vmatmul.mubr.f32.gmra.mrb[0].mxu0 %v217
    %v324 = vpop.f32.mrb[0].mxu0
    %v325 = vadd.f32 %v185, %v324
    %v326 = vpop.f32.mrb[0].mxu0
    %v327 = vadd.f32 %v189, %v326
    %328 = vmatprep.mubr.f32.mxu0 0.0
    %329 = vmatmul.mubr.f32.gmra.mrb[0].mxu0 %v220
    %v330 = vpop.f32.mrb[0].mxu0
    %v331 = vadd.f32 %v185, %v330
    %v332 = vpop.f32.mrb[0].mxu0
    %v333 = vadd.f32 %v189, %v332
    %334 = vmatprep.mubr.f32.mxu0 0.0
    %335 = vmatmul.mubr.f32.gmra.mrb[0].mxu0 %v223
    %v336 = vpop.f32.mrb[0].mxu0
    %v337 = vadd.f32 %v185, %v336
    %v338 = vpop.f32.mrb[0].mxu0
    %v339 = vadd.f32 %v189, %v338
    %340 = vmatprep.mubr.f32.mxu0 0.0
    %341 = vmatmul.mubr.f32.gmra.mrb[0].mxu0 %v226
    %v342 = vpop.f32.mrb[0].mxu0
    %v343 = vadd.f32 %v185, %v342
    %v344 = vpop.f32.mrb[0].mxu0
    %v345 = vadd.f32 %v189, %v344
    %346 = vmatprep.mubr.f32.mxu0 0.0
    %347 = vmatmul.mubr.f32.gmra.mrb[0].mxu0 %v229
    %v348 = vpop.f32.mrb[0].mxu0
    %v349 = vadd.f32 %v185, %v348
    %v350 = vpop.f32.mrb[0].mxu0
    %v351 = vadd.f32 %v189, %v350
    %352 = vdwg.mxu0
    %353 = vmatprep.subr.mxu0 %v238
    %354 = vmatpush1.msra.mxu0 %v236
    %355 = vmatprep.subr.mxu0 0.0
    %356 = vmatpush1.msra.mxu0 0.0
    %357 = vmatprep.subr.mxu0 0.0
    %358 = vmatpush1.msra.mxu0 0.0
    %359 = vmatprep.subr.mxu0 0.0
    %360 = vmatpush1.msra.mxu0 0.0
    %361 = vmatprep.subr.mxu0 0.0
    %362 = vmatpush1.msra.mxu0 0.0
    %363 = vmatprep.subr.mxu0 0.0
    %364 = vmatpush1.msra.mxu0 0.0
    %365 = vmatprep.subr.mxu0 0.0
    %366 = vmatpush1.msra.mxu0 0.0
    %367 = vmatprep.subr.mxu0 0.0
    %368 = vmatpush1.msra.mxu0 0.0
    %369 = vmatprep.subr.mxu0 0.0
    %370 = vmatpush1.msra.mxu0 0.0
    %371 = vmatprep.subr.mxu0 0.0
    %372 = vmatpush1.msra.mxu0 0.0
    %373 = vmatprep.subr.mxu0 0.0
    %374 = vmatpush1.msra.mxu0 0.0
    %375 = vmatprep.subr.mxu0 0.0
    %376 = vmatpush1.msra.mxu0 0.0
    %377 = vmatprep.subr.mxu0 0.0
    %378 = vmatpush1.msra.mxu0 0.0
    %379 = vmatprep.subr.mxu0 0.0
    %380 = vmatpush1.msra.mxu0 0.0
    %381 = vmatprep.subr.mxu0 0.0
    %382 = vmatpush1.msra.mxu0 0.0
    %383 = vmatprep.subr.mxu0 0.0
    %384 = vmatpush1.msra.mxu0 0.0
    %385 = vmatprep.subr.mxu0 0.0
    %386 = vmatpush1.msra.mxu0 0.0
    %387 = vmatprep.subr.mxu0 0.0
    %388 = vmatpush1.msra.mxu0 0.0
    %389 = vmatprep.subr.mxu0 0.0
    %390 = vmatpush1.msra.mxu0 0.0
    %391 = vmatprep.subr.mxu0 0.0
    %392 = vmatpush1.msra.mxu0 0.0
    %393 = vmatprep.subr.mxu0 0.0
    %394 = vmatpush1.msra.mxu0 0.0
    %395 = vmatprep.subr.mxu0 0.0
    %396 = vmatpush1.msra.mxu0 0.0
    %397 = vmatprep.subr.mxu0 0.0
    %398 = vmatpush1.msra.mxu0 0.0
    %399 = vmatprep.subr.mxu0 0.0
    %400 = vmatpush1.msra.mxu0 0.0
    %401 = vmatprep.subr.mxu0 0.0
    %402 = vmatpush1.msra.mxu0 0.0
    %403 = vmatprep.subr.mxu0 0.0
    %404 = vmatpush1.msra.mxu0 0.0
    %405 = vmatprep.subr.mxu0 0.0
    %406 = vmatpush1.msra.mxu0 0.0
    %407 = vmatprep.subr.mxu0 0.0
    %408 = vmatpush1.msra.mxu0 0.0
    %409 = vmatprep.subr.mxu0 0.0
    %410 = vmatpush1.msra.mxu0 0.0
    %411 = vmatprep.subr.mxu0 0.0
    %412 = vmatpush1.msra.mxu0 0.0
    %413 = vmatprep.subr.mxu0 0.0
    %414 = vmatpush1.msra.mxu0 0.0
    %415 = vmatprep.subr.mxu0 0.0
    %416 = vmatpush1.msra.mxu0 0.0
    %417 = vmatprep.mubr.f32.mxu0 0.0
    %418 = vmatmul.mubr.f32.gmra.mrb[0].mxu0 %v208
    %v419 = vpop.f32.mrb[0].mxu0
    %v420 = vadd.f32 %v193, %v419
    %v421 = vpop.f32.mrb[0].mxu0
    %v422 = vadd.f32 %v197, %v421
    %423 = vmatprep.mubr.f32.mxu0 0.0
    %424 = vmatmul.mubr.f32.gmra.mrb[0].mxu0 %v211
    %v425 = vpop.f32.mrb[0].mxu0
    %v426 = vadd.f32 %v193, %v425
    %v427 = vpop.f32.mrb[0].mxu0
    %v428 = vadd.f32 %v197, %v427
    %429 = vmatprep.mubr.f32.mxu0 0.0
    %430 = vmatmul.mubr.f32.gmra.mrb[0].mxu0 %v214
    %v431 = vpop.f32.mrb[0].mxu0
    %v432 = vadd.f32 %v193, %v431
    %v433 = vpop.f32.mrb[0].mxu0
    %v434 = vadd.f32 %v197, %v433
    %435 = vmatprep.mubr.f32.mxu0 0.0
    %436 = vmatmul.mubr.f32.gmra.mrb[0].mxu0 %v217
    %v437 = vpop.f32.mrb[0].mxu0
    %v438 = vadd.f32 %v193, %v437
    %v439 = vpop.f32.mrb[0].mxu0
    %v440 = vadd.f32 %v197, %v439
    %441 = vmatprep.mubr.f32.mxu0 0.0
    %442 = vmatmul.mubr.f32.gmra.mrb[0].mxu0 %v220
    %v443 = vpop.f32.mrb[0].mxu0
    %v444 = vadd.f32 %v193, %v443
    %v445 = vpop.f32.mrb[0].mxu0
    %v446 = vadd.f32 %v197, %v445
    %447 = vmatprep.mubr.f32.mxu0 0.0
    %448 = vmatmul.mubr.f32.gmra.mrb[0].mxu0 %v223
    %v449 = vpop.f32.mrb[0].mxu0
    %v450 = vadd.f32 %v193, %v449
    %v451 = vpop.f32.mrb[0].mxu0
    %v452 = vadd.f32 %v197, %v451
    %453 = vmatprep.mubr.f32.mxu0 0.0
    %454 = vmatmul.mubr.f32.gmra.mrb[0].mxu0 %v226
    %v455 = vpop.f32.mrb[0].mxu0
    %v456 = vadd.f32 %v193, %v455
    %v457 = vpop.f32.mrb[0].mxu0
    %v458 = vadd.f32 %v197, %v457
    %459 = vmatprep.mubr.f32.mxu0 0.0
    %460 = vmatmul.mubr.f32.gmra.mrb[0].mxu0 %v229
    %v461 = vpop.f32.mrb[0].mxu0
    %v462 = vadd.f32 %v193, %v461
    %v463 = vpop.f32.mrb[0].mxu0
    %v464 = vadd.f32 %v197, %v463
    %465 = vdwg.mxu0
    %466 = vst [vmem:[#allocation2] sm:$0xff] %v307
    %467 = vst [vmem:[#allocation2 + $0x8] sm:$0xff] %v309
    %468 = vst [vmem:[#allocation2 + $0x10] sm:$0xff] %v420
    %469 = vst [vmem:[#allocation2 + $0x18] sm:$0xff] %v422
    %470 = vst [vmem:[#allocation2 + $0x20] sm:$0xff] %v313
    %471 = vst [vmem:[#allocation2 + $0x28] sm:$0xff] %v315
    %472 = vst [vmem:[#allocation2 + $0x30] sm:$0xff] %v426
    %473 = vst [vmem:[#allocation2 + $0x38] sm:$0xff] %v428
    %474 = vst [vmem:[#allocation2 + $0x40] sm:$0xff] %v319
    %475 = vst [vmem:[#allocation2 + $0x48] sm:$0xff] %v321
    %476 = vst [vmem:[#allocation2 + $0x50] sm:$0xff] %v432
    %477 = vst [vmem:[#allocation2 + $0x58] sm:$0xff] %v434
    %478 = vst [vmem:[#allocation2 + $0x60] sm:$0xff] %v325
    %479 = vst [vmem:[#allocation2 + $0x68] sm:$0xff] %v327
    %480 = vst [vmem:[#allocation2 + $0x70] sm:$0xff] %v438
    %481 = vst [vmem:[#allocation2 + $0x78] sm:$0xff] %v440
    %482 = vst [vmem:[#allocation2 + $0x80] sm:$0xff] %v331
    %483 = vst [vmem:[#allocation2 + $0x88] sm:$0xff] %v333
    %484 = vst [vmem:[#allocation2 + $0x90] sm:$0xff] %v444
    %485 = vst [vmem:[#allocation2 + $0x98] sm:$0xff] %v446
    %486 = vst [vmem:[#allocation2 + $0xa0] sm:$0xff] %v337
    %487 = vst [vmem:[#allocation2 + $0xa8] sm:$0xff] %v339
    %488 = vst [vmem:[#allocation2 + $0xb0] sm:$0xff] %v450
    %489 = vst [vmem:[#allocation2 + $0xb8] sm:$0xff] %v452
    %490 = vst [vmem:[#allocation2 + $0xc0] sm:$0xff] %v343
    %491 = vst [vmem:[#allocation2 + $0xc8] sm:$0xff] %v345
    %492 = vst [vmem:[#allocation2 + $0xd0] sm:$0xff] %v456
    %493 = vst [vmem:[#allocation2 + $0xd8] sm:$0xff] %v458
    %494 = vst [vmem:[#allocation2 + $0xe0] sm:$0xff] %v349
    %495 = vst [vmem:[#allocation2 + $0xe8] sm:$0xff] %v351
    %496 = vst [vmem:[#allocation2 + $0xf0] sm:$0xff] %v462
    %497 = vst [vmem:[#allocation2 + $0xf8] sm:$0xff] %v464
    %s498 = smul.u32 0, 4
    %s499 = smul.addr %s498, 8
    %s500 = scalar_lea.vmem [#allocation2], %s499
    %v501 = vld [vmem:[%s500] sm:$0xff]
    %v502 = vld [vmem:[%s500 + $0x8] sm:$0xff]
    %v503 = vld [vmem:[%s500 + $0x10] sm:$0xff]
    %v504 = vld [vmem:[%s500 + $0x18] sm:$0xff]
    %505 = vmatprep.subr.mxu0 %v109
    %506 = vmatpush1.msra.mxu0 %v108
    %507 = vmatprep.subr.mxu0 %v113
    %508 = vmatpush1.msra.mxu0 %v112
    %509 = vmatprep.subr.mxu0 %v117
    %510 = vmatpush1.msra.mxu0 %v116
    %511 = vmatprep.subr.mxu0 %v121
    %512 = vmatpush1.msra.mxu0 %v120
    %513 = vmatprep.subr.mxu0 %v125
    %514 = vmatpush1.msra.mxu0 %v124
    %515 = vmatprep.subr.mxu0 %v129
    %516 = vmatpush1.msra.mxu0 %v128
    %517 = vmatprep.subr.mxu0 %v133
    %518 = vmatpush1.msra.mxu0 %v132
    %519 = vmatprep.subr.mxu0 %v137
    %520 = vmatpush1.msra.mxu0 %v136
    %521 = vmatprep.subr.mxu0 %v141
    %522 = vmatpush1.msra.mxu0 %v140
    %523 = vmatprep.subr.mxu0 %v145
    %524 = vmatpush1.msra.mxu0 %v144
    %525 = vmatprep.subr.mxu0 %v149
    %526 = vmatpush1.msra.mxu0 %v148
    %527 = vmatprep.subr.mxu0 %v153
    %528 = vmatpush1.msra.mxu0 %v152
    %529 = vmatprep.subr.mxu0 %v157
    %530 = vmatpush1.msra.mxu0 %v156
    %531 = vmatprep.subr.mxu0 %v161
    %532 = vmatpush1.msra.mxu0 %v160
    %533 = vmatprep.subr.mxu0 %v165
    %534 = vmatpush1.msra.mxu0 %v164
    %535 = vmatprep.subr.mxu0 %v169
    %536 = vmatpush1.msra.mxu0 %v168
    %537 = vmatprep.subr.mxu0 0.0
    %538 = vmatpush1.msra.mxu0 0.0
    %539 = vmatprep.subr.mxu0 0.0
    %540 = vmatpush1.msra.mxu0 0.0
    %541 = vmatprep.subr.mxu0 0.0
    %542 = vmatpush1.msra.mxu0 0.0
    %543 = vmatprep.subr.mxu0 0.0
    %544 = vmatpush1.msra.mxu0 0.0
    %545 = vmatprep.subr.mxu0 0.0
    %546 = vmatpush1.msra.mxu0 0.0
    %547 = vmatprep.subr.mxu0 0.0
    %548 = vmatpush1.msra.mxu0 0.0
    %549 = vmatprep.subr.mxu0 0.0
    %550 = vmatpush1.msra.mxu0 0.0
    %551 = vmatprep.subr.mxu0 0.0
    %552 = vmatpush1.msra.mxu0 0.0
    %553 = vmatprep.subr.mxu0 0.0
    %554 = vmatpush1.msra.mxu0 0.0
    %555 = vmatprep.subr.mxu0 0.0
    %556 = vmatpush1.msra.mxu0 0.0
    %557 = vmatprep.subr.mxu0 0.0
    %558 = vmatpush1.msra.mxu0 0.0
    %559 = vmatprep.subr.mxu0 0.0
    %560 = vmatpush1.msra.mxu0 0.0
    %561 = vmatprep.subr.mxu0 0.0
    %562 = vmatpush1.msra.mxu0 0.0
    %563 = vmatprep.subr.mxu0 0.0
    %564 = vmatpush1.msra.mxu0 0.0
    %565 = vmatprep.subr.mxu0 0.0
    %566 = vmatpush1.msra.mxu0 0.0
    %567 = vmatprep.subr.mxu0 0.0
    %568 = vmatpush1.msra.mxu0 0.0
    %569 = vmatprep.mubr.f32.mxu0 0.0
    %570 = vmatmul.mubr.f32.gmra.mrb[0].mxu0 0.0
    %v571 = vpop.f32.mrb[0].mxu0
    %v572 = vadd.f32 0.0, %v571
    %v573 = vpop.f32.mrb[0].mxu0
    %v574 = vadd.f32 0.0, %v573
    %575 = vdwg.mxu0
    %576 = vmatprep.subr.mxu0 %v111
    %577 = vmatpush1.msra.mxu0 %v110
    %578 = vmatprep.subr.mxu0 %v115
    %579 = vmatpush1.msra.mxu0 %v114
    %580 = vmatprep.subr.mxu0 %v119
    %581 = vmatpush1.msra.mxu0 %v118
    %582 = vmatprep.subr.mxu0 %v123
    %583 = vmatpush1.msra.mxu0 %v122
    %584 = vmatprep.subr.mxu0 %v127
    %585 = vmatpush1.msra.mxu0 %v126
    %586 = vmatprep.subr.mxu0 %v131
    %587 = vmatpush1.msra.mxu0 %v130
    %588 = vmatprep.subr.mxu0 %v135
    %589 = vmatpush1.msra.mxu0 %v134
    %590 = vmatprep.subr.mxu0 %v139
    %591 = vmatpush1.msra.mxu0 %v138
    %592 = vmatprep.subr.mxu0 %v143
    %593 = vmatpush1.msra.mxu0 %v142
    %594 = vmatprep.subr.mxu0 %v147
    %595 = vmatpush1.msra.mxu0 %v146
    %596 = vmatprep.subr.mxu0 %v151
    %597 = vmatpush1.msra.mxu0 %v150
    %598 = vmatprep.subr.mxu0 %v155
    %599 = vmatpush1.msra.mxu0 %v154
    %600 = vmatprep.subr.mxu0 %v159
    %601 = vmatpush1.msra.mxu0 %v158
    %602 = vmatprep.subr.mxu0 %v163
    %603 = vmatpush1.msra.mxu0 %v162
    %604 = vmatprep.subr.mxu0 %v167
    %605 = vmatpush1.msra.mxu0 %v166
    %606 = vmatprep.subr.mxu0 %v171
    %607 = vmatpush1.msra.mxu0 %v170
    %608 = vmatprep.subr.mxu0 0.0
    %609 = vmatpush1.msra.mxu0 0.0
    %610 = vmatprep.subr.mxu0 0.0
    %611 = vmatpush1.msra.mxu0 0.0
    %612 = vmatprep.subr.mxu0 0.0
    %613 = vmatpush1.msra.mxu0 0.0
    %614 = vmatprep.subr.mxu0 0.0
    %615 = vmatpush1.msra.mxu0 0.0
    %616 = vmatprep.subr.mxu0 0.0
    %617 = vmatpush1.msra.mxu0 0.0
    %618 = vmatprep.subr.mxu0 0.0
    %619 = vmatpush1.msra.mxu0 0.0
    %620 = vmatprep.subr.mxu0 0.0
    %621 = vmatpush1.msra.mxu0 0.0
    %622 = vmatprep.subr.mxu0 0.0
    %623 = vmatpush1.msra.mxu0 0.0
    %624 = vmatprep.subr.mxu0 0.0
    %625 = vmatpush1.msra.mxu0 0.0
    %626 = vmatprep.subr.mxu0 0.0
    %627 = vmatpush1.msra.mxu0 0.0
    %628 = vmatprep.subr.mxu0 0.0
    %629 = vmatpush1.msra.mxu0 0.0
    %630 = vmatprep.subr.mxu0 0.0
    %631 = vmatpush1.msra.mxu0 0.0
    %632 = vmatprep.subr.mxu0 0.0
    %633 = vmatpush1.msra.mxu0 0.0
    %634 = vmatprep.subr.mxu0 0.0
    %635 = vmatpush1.msra.mxu0 0.0
    %636 = vmatprep.subr.mxu0 0.0
    %637 = vmatpush1.msra.mxu0 0.0
    %638 = vmatprep.subr.mxu0 0.0
    %639 = vmatpush1.msra.mxu0 0.0
    %640 = vmatprep.mubr.f32.mxu0 0.0
    %641 = vmatmul.mubr.f32.gmra.mrb[0].mxu0 0.0
    %v642 = vpop.f32.mrb[0].mxu0
    %v643 = vadd.f32 0.0, %v642
    %v644 = vpop.f32.mrb[0].mxu0
    %v645 = vadd.f32 0.0, %v644
    %646 = vdwg.mxu0
    %v647 = vadd.f32 %v501, %v572
    %v648 = vadd.f32 %v502, %v574
    %v649 = vadd.f32 %v503, %v643
    %v650 = vadd.f32 %v504, %v645
    %v651 = vsub.f32 0.0, %v647
    %v652 = vmul.f32 %v651, 1.442695
    %v653 = vpow.pop %v652
    %v654 = vadd.f32 %v653, 1.0
    %v655 = vrcp.pop %v654
    %v656 = vsub.f32 0.0, %v648
    %v657 = vmul.f32 %v656, 1.442695
    %v658 = vpow.pop %v657
    %v659 = vadd.f32 %v658, 1.0
    %v660 = vrcp.pop %v659
    %v661 = vtanh.pop %v649
    %v662 = vsub.f32 0.0, %v650
    %v663 = vmul.f32 %v662, 1.442695
    %v664 = vpow.pop %v663
    %v665 = vadd.f32 %v664, 1.0
    %v666 = vrcp.pop %v665
    %v667 = vmul.f32 %v660, 0.0
    %v668 = vmul.f32 %v655, %v661
    %v669 = vadd.f32 %v667, %v668
    %v670 = vtanh.pop %v669
    %v671 = vmul.f32 %v666, %v670
    %672 = vst [vmem:[#allocation3] sm:$0xff] %v671
    %s673 = smul.u32 1, 4
    %s674 = smul.addr %s673, 8
    %s675 = scalar_lea.vmem [#allocation2], %s674
    %v676 = vld [vmem:[%s675] sm:$0xff]
    %v677 = vld [vmem:[%s675 + $0x8] sm:$0xff]
    %v678 = vld [vmem:[%s675 + $0x10] sm:$0xff]
    %v679 = vld [vmem:[%s675 + $0x18] sm:$0xff]
    %680 = vmatprep.subr.mxu0 %v109
    %681 = vmatpush1.msra.mxu0 %v108
    %682 = vmatprep.subr.mxu0 %v113
    %683 = vmatpush1.msra.mxu0 %v112
    %684 = vmatprep.subr.mxu0 %v117
    %685 = vmatpush1.msra.mxu0 %v116
    %686 = vmatprep.subr.mxu0 %v121
    %687 = vmatpush1.msra.mxu0 %v120
    %688 = vmatprep.subr.mxu0 %v125
    %689 = vmatpush1.msra.mxu0 %v124
    %690 = vmatprep.subr.mxu0 %v129
    %691 = vmatpush1.msra.mxu0 %v128
    %692 = vmatprep.subr.mxu0 %v133
    %693 = vmatpush1.msra.mxu0 %v132
    %694 = vmatprep.subr.mxu0 %v137
    %695 = vmatpush1.msra.mxu0 %v136
    %696 = vmatprep.subr.mxu0 %v141
    %697 = vmatpush1.msra.mxu0 %v140
    %698 = vmatprep.subr.mxu0 %v145
    %699 = vmatpush1.msra.mxu0 %v144
    %700 = vmatprep.subr.mxu0 %v149
    %701 = vmatpush1.msra.mxu0 %v148
    %702 = vmatprep.subr.mxu0 %v153
    %703 = vmatpush1.msra.mxu0 %v152
    %704 = vmatprep.subr.mxu0 %v157
    %705 = vmatpush1.msra.mxu0 %v156
    %706 = vmatprep.subr.mxu0 %v161
    %707 = vmatpush1.msra.mxu0 %v160
    %708 = vmatprep.subr.mxu0 %v165
    %709 = vmatpush1.msra.mxu0 %v164
    %710 = vmatprep.subr.mxu0 %v169
    %711 = vmatpush1.msra.mxu0 %v168
    %712 = vmatprep.subr.mxu0 0.0
    %713 = vmatpush1.msra.mxu0 0.0
    %714 = vmatprep.subr.mxu0 0.0
    %715 = vmatpush1.msra.mxu0 0.0
    %716 = vmatprep.subr.mxu0 0.0
    %717 = vmatpush1.msra.mxu0 0.0
    %718 = vmatprep.subr.mxu0 0.0
    %719 = vmatpush1.msra.mxu0 0.0
    %720 = vmatprep.subr.mxu0 0.0
    %721 = vmatpush1.msra.mxu0 0.0
    %722 = vmatprep.subr.mxu0 0.0
    %723 = vmatpush1.msra.mxu0 0.0
    %724 = vmatprep.subr.mxu0 0.0
    %725 = vmatpush1.msra.mxu0 0.0
    %726 = vmatprep.subr.mxu0 0.0
    %727 = vmatpush1.msra.mxu0 0.0
    %728 = vmatprep.subr.mxu0 0.0
    %729 = vmatpush1.msra.mxu0 0.0
    %730 = vmatprep.subr.mxu0 0.0
    %731 = vmatpush1.msra.mxu0 0.0
    %732 = vmatprep.subr.mxu0 0.0
    %733 = vmatpush1.msra.mxu0 0.0
    %734 = vmatprep.subr.mxu0 0.0
    %735 = vmatpush1.msra.mxu0 0.0
    %736 = vmatprep.subr.mxu0 0.0
    %737 = vmatpush1.msra.mxu0 0.0
    %738 = vmatprep.subr.mxu0 0.0
    %739 = vmatpush1.msra.mxu0 0.0
    %740 = vmatprep.subr.mxu0 0.0
    %741 = vmatpush1.msra.mxu0 0.0
    %742 = vmatprep.subr.mxu0 0.0
    %743 = vmatpush1.msra.mxu0 0.0
    %744 = vmatprep.mubr.f32.mxu0 0.0
    %745 = vmatmul.mubr.f32.gmra.mrb[0].mxu0 %v671
    %v746 = vpop.f32.mrb[0].mxu0
    %v747 = vadd.f32 0.0, %v746
    %v748 = vpop.f32.mrb[0].mxu0
    %v749 = vadd.f32 0.0, %v748
    %750 = vdwg.mxu0
    %751 = vmatprep.subr.mxu0 %v111
    %752 = vmatpush1.msra.mxu0 %v110
    %753 = vmatprep.subr.mxu0 %v115
    %754 = vmatpush1.msra.mxu0 %v114
    %755 = vmatprep.subr.mxu0 %v119
    %756 = vmatpush1.msra.mxu0 %v118
    %757 = vmatprep.subr.mxu0 %v123
    %758 = vmatpush1.msra.mxu0 %v122
    %759 = vmatprep.subr.mxu0 %v127
    %760 = vmatpush1.msra.mxu0 %v126
    %761 = vmatprep.subr.mxu0 %v131
    %762 = vmatpush1.msra.mxu0 %v130
    %763 = vmatprep.subr.mxu0 %v135
    %764 = vmatpush1.msra.mxu0 %v134
    %765 = vmatprep.subr.mxu0 %v139
    %766 = vmatpush1.msra.mxu0 %v138
    %767 = vmatprep.subr.mxu0 %v143
    %768 = vmatpush1.msra.mxu0 %v142
    %769 = vmatprep.subr.mxu0 %v147
    %770 = vmatpush1.msra.mxu0 %v146
    %771 = vmatprep.subr.mxu0 %v151
    %772 = vmatpush1.msra.mxu0 %v150
    %773 = vmatprep.subr.mxu0 %v155
    %774 = vmatpush1.msra.mxu0 %v154
    %775 = vmatprep.subr.mxu0 %v159
    %776 = vmatpush1.msra.mxu0 %v158
    %777 = vmatprep.subr.mxu0 %v163
    %778 = vmatpush1.msra.mxu0 %v162
    %779 = vmatprep.subr.mxu0 %v167
    %780 = vmatpush1.msra.mxu0 %v166
    %781 = vmatprep.subr.mxu0 %v171
    %782 = vmatpush1.msra.mxu0 %v170
    %783 = vmatprep.subr.mxu0 0.0
    %784 = vmatpush1.msra.mxu0 0.0
    %785 = vmatprep.subr.mxu0 0.0
    %786 = vmatpush1.msra.mxu0 0.0
    %787 = vmatprep.subr.mxu0 0.0
    %788 = vmatpush1.msra.mxu0 0.0
    %789 = vmatprep.subr.mxu0 0.0
    %790 = vmatpush1.msra.mxu0 0.0
    %791 = vmatprep.subr.mxu0 0.0
    %792 = vmatpush1.msra.mxu0 0.0
    %793 = vmatprep.subr.mxu0 0.0
    %794 = vmatpush1.msra.mxu0 0.0
    %795 = vmatprep.subr.mxu0 0.0
    %796 = vmatpush1.msra.mxu0 0.0
    %797 = vmatprep.subr.mxu0 0.0
    %798 = vmatpush1.msra.mxu0 0.0
    %799 = vmatprep.subr.mxu0 0.0
    %800 = vmatpush1.msra.mxu0 0.0
    %801 = vmatprep.subr.mxu0 0.0
    %802 = vmatpush1.msra.mxu0 0.0
    %803 = vmatprep.subr.mxu0 0.0
    %804 = vmatpush1.msra.mxu0 0.0
    %805 = vmatprep.subr.mxu0 0.0
    %806 = vmatpush1.msra.mxu0 0.0
    %807 = vmatprep.subr.mxu0 0.0
    %808 = vmatpush1.msra.mxu0 0.0
    %809 = vmatprep.subr.mxu0 0.0
    %810 = vmatpush1.msra.mxu0 0.0
    %811 = vmatprep.subr.mxu0 0.0
    %812 = vmatpush1.msra.mxu0 0.0
    %813 = vmatprep.subr.mxu0 0.0
    %814 = vmatpush1.msra.mxu0 0.0
    %815 = vmatprep.mubr.f32.mxu0 0.0
    %816 = vmatmul.mubr.f32.gmra.mrb[0].mxu0 %v671
    %v817 = vpop.f32.mrb[0].mxu0
    %v818 = vadd.f32 0.0, %v817
    %v819 = vpop.f32.mrb[0].mxu0
    %v820 = vadd.f32 0.0, %v819
    %821 = vdwg.mxu0
    %v822 = vadd.f32 %v676, %v747
    %v823 = vadd.f32 %v677, %v749
    %v824 = vadd.f32 %v678, %v818
    %v825 = vadd.f32 %v679, %v820
    %v826 = vsub.f32 0.0, %v822
    %v827 = vmul.f32 %v826, 1.442695
    %v828 = vpow.pop %v827
    %v829 = vadd.f32 %v828, 1.0
    %v830 = vrcp.pop %v829
    %v831 = vsub.f32 0.0, %v823
    %v832 = vmul.f32 %v831, 1.442695
    %v833 = vpow.pop %v832
    %v834 = vadd.f32 %v833, 1.0
    %v835 = vrcp.pop %v834
    %v836 = vtanh.pop %v824
    %v837 = vsub.f32 0.0, %v825
    %v838 = vmul.f32 %v837, 1.442695
    %v839 = vpow.pop %v838
    %v840 = vadd.f32 %v839, 1.0
    %v841 = vrcp.pop %v840
    %v842 = vmul.f32 %v835, %v669
    %v843 = vmul.f32 %v830, %v836
    %v844 = vadd.f32 %v842, %v843
    %v845 = vtanh.pop %v844
    %v846 = vmul.f32 %v841, %v845
    %s847 = scalar_lea.vmem [#allocation3], 8
    %848 = vst [vmem:[%s847] sm:$0xff] %v846
    %s849 = smul.u32 2, 4
    %s850 = smul.addr %s849, 8
    %s851 = scalar_lea.vmem [#allocation2], %s850
    %v852 = vld [vmem:[%s851] sm:$0xff]
    %v853 = vld [vmem:[%s851 + $0x8] sm:$0xff]
    %v854 = vld [vmem:[%s851 + $0x10] sm:$0xff]
    %v855 = vld [vmem:[%s851 + $0x18] sm:$0xff]
    %856 = vmatprep.subr.mxu0 %v109
    %857 = vmatpush1.msra.mxu0 %v108
    %858 = vmatprep.subr.mxu0 %v113
    %859 = vmatpush1.msra.mxu0 %v112
    %860 = vmatprep.subr.mxu0 %v117
    %861 = vmatpush1.msra.mxu0 %v116
    %862 = vmatprep.subr.mxu0 %v121
    %863 = vmatpush1.msra.mxu0 %v120
    %864 = vmatprep.subr.mxu0 %v125
    %865 = vmatpush1.msra.mxu0 %v124
    %866 = vmatprep.subr.mxu0 %v129
    %867 = vmatpush1.msra.mxu0 %v128
    %868 = vmatprep.subr.mxu0 %v133
    %869 = vmatpush1.msra.mxu0 %v132
    %870 = vmatprep.subr.mxu0 %v137
    %871 = vmatpush1.msra.mxu0 %v136
    %872 = vmatprep.subr.mxu0 %v141
    %873 = vmatpush1.msra.mxu0 %v140
    %874 = vmatprep.subr.mxu0 %v145
    %875 = vmatpush1.msra.mxu0 %v144
    %876 = vmatprep.subr.mxu0 %v149
    %877 = vmatpush1.msra.mxu0 %v148
    %878 = vmatprep.subr.mxu0 %v153
    %879 = vmatpush1.msra.mxu0 %v152
    %880 = vmatprep.subr.mxu0 %v157
    %881 = vmatpush1.msra.mxu0 %v156
    %882 = vmatprep.subr.mxu0 %v161
    %883 = vmatpush1.msra.mxu0 %v160
    %884 = vmatprep.subr.mxu0 %v165
    %885 = vmatpush1.msra.mxu0 %v164
    %886 = vmatprep.subr.mxu0 %v169
    %887 = vmatpush1.msra.mxu0 %v168
    %888 = vmatprep.subr.mxu0 0.0
    %889 = vmatpush1.msra.mxu0 0.0
    %890 = vmatprep.subr.mxu0 0.0
    %891 = vmatpush1.msra.mxu0 0.0
    %892 = vmatprep.subr.mxu0 0.0
    %893 = vmatpush1.msra.mxu0 0.0
    %894 = vmatprep.subr.mxu0 0.0
    %895 = vmatpush1.msra.mxu0 0.0
    %896 = vmatprep.subr.mxu0 0.0
    %897 = vmatpush1.msra.mxu0 0.0
    %898 = vmatprep.subr.mxu0 0.0
    %899 = vmatpush1.msra.mxu0 0.0
    %900 = vmatprep.subr.mxu0 0.0
    %901 = vmatpush1.msra.mxu0 0.0
    %902 = vmatprep.subr.mxu0 0.0
    %903 = vmatpush1.msra.mxu0 0.0
    %904 = vmatprep.subr.mxu0 0.0
    %905 = vmatpush1.msra.mxu0 0.0
    %906 = vmatprep.subr.mxu0 0.0
    %907 = vmatpush1.msra.mxu0 0.0
    %908 = vmatprep.subr.mxu0 0.0
    %909 = vmatpush1.msra.mxu0 0.0
    %910 = vmatprep.subr.mxu0 0.0
    %911 = vmatpush1.msra.mxu0 0.0
    %912 = vmatprep.subr.mxu0 0.0
    %913 = vmatpush1.msra.mxu0 0.0
    %914 = vmatprep.subr.mxu0 0.0
    %915 = vmatpush1.msra.mxu0 0.0
    %916 = vmatprep.subr.mxu0 0.0
    %917 = vmatpush1.msra.mxu0 0.0
    %918 = vmatprep.subr.mxu0 0.0
    %919 = vmatpush1.msra.mxu0 0.0
    %920 = vmatprep.mubr.f32.mxu0 0.0
    %921 = vmatmul.mubr.f32.gmra.mrb[0].mxu0 %v846
    %v922 = vpop.f32.mrb[0].mxu0
    %v923 = vadd.f32 0.0, %v922
    %v924 = vpop.f32.mrb[0].mxu0
    %v925 = vadd.f32 0.0, %v924
    %926 = vdwg.mxu0
    %927 = vmatprep.subr.mxu0 %v111
    %928 = vmatpush1.msra.mxu0 %v110
    %929 = vmatprep.subr.mxu0 %v115
    %930 = vmatpush1.msra.mxu0 %v114
    %931 = vmatprep.subr.mxu0 %v119
    %932 = vmatpush1.msra.mxu0 %v118
    %933 = vmatprep.subr.mxu0 %v123
    %934 = vmatpush1.msra.mxu0 %v122
    %935 = vmatprep.subr.mxu0 %v127
    %936 = vmatpush1.msra.mxu0 %v126
    %937 = vmatprep.subr.mxu0 %v131
    %938 = vmatpush1.msra.mxu0 %v130
    %939 = vmatprep.subr.mxu0 %v135
    %940 = vmatpush1.msra.mxu0 %v134
    %941 = vmatprep.subr.mxu0 %v139
    %942 = vmatpush1.msra.mxu0 %v138
    %943 = vmatprep.subr.mxu0 %v143
    %944 = vmatpush1.msra.mxu0 %v142
    %945 = vmatprep.subr.mxu0 %v147
    %946 = vmatpush1.msra.mxu0 %v146
    %947 = vmatprep.subr.mxu0 %v151
    %948 = vmatpush1.msra.mxu0 %v150
    %949 = vmatprep.subr.mxu0 %v155
    %950 = vmatpush1.msra.mxu0 %v154
    %951 = vmatprep.subr.mxu0 %v159
    %952 = vmatpush1.msra.mxu0 %v158
    %953 = vmatprep.subr.mxu0 %v163
    %954 = vmatpush1.msra.mxu0 %v162
    %955 = vmatprep.subr.mxu0 %v167
    %956 = vmatpush1.msra.mxu0 %v166
    %957 = vmatprep.subr.mxu0 %v171
    %958 = vmatpush1.msra.mxu0 %v170
    %959 = vmatprep.subr.mxu0 0.0
    %960 = vmatpush1.msra.mxu0 0.0
    %961 = vmatprep.subr.mxu0 0.0
    %962 = vmatpush1.msra.mxu0 0.0
    %963 = vmatprep.subr.mxu0 0.0
    %964 = vmatpush1.msra.mxu0 0.0
    %965 = vmatprep.subr.mxu0 0.0
    %966 = vmatpush1.msra.mxu0 0.0
    %967 = vmatprep.subr.mxu0 0.0
    %968 = vmatpush1.msra.mxu0 0.0
    %969 = vmatprep.subr.mxu0 0.0
    %970 = vmatpush1.msra.mxu0 0.0
    %971 = vmatprep.subr.mxu0 0.0
    %972 = vmatpush1.msra.mxu0 0.0
    %973 = vmatprep.subr.mxu0 0.0
    %974 = vmatpush1.msra.mxu0 0.0
    %975 = vmatprep.subr.mxu0 0.0
    %976 = vmatpush1.msra.mxu0 0.0
    %977 = vmatprep.subr.mxu0 0.0
    %978 = vmatpush1.msra.mxu0 0.0
    %979 = vmatprep.subr.mxu0 0.0
    %980 = vmatpush1.msra.mxu0 0.0
    %981 = vmatprep.subr.mxu0 0.0
    %982 = vmatpush1.msra.mxu0 0.0
    %983 = vmatprep.subr.mxu0 0.0
    %984 = vmatpush1.msra.mxu0 0.0
    %985 = vmatprep.subr.mxu0 0.0
    %986 = vmatpush1.msra.mxu0 0.0
    %987 = vmatprep.subr.mxu0 0.0
    %988 = vmatpush1.msra.mxu0 0.0
    %989 = vmatprep.subr.mxu0 0.0
    %990 = vmatpush1.msra.mxu0 0.0
    %991 = vmatprep.mubr.f32.mxu0 0.0
    %992 = vmatmul.mubr.f32.gmra.mrb[0].mxu0 %v846
    %v993 = vpop.f32.mrb[0].mxu0
    %v994 = vadd.f32 0.0, %v993
    %v995 = vpop.f32.mrb[0].mxu0
    %v996 = vadd.f32 0.0, %v995
    %997 = vdwg.mxu0
    %v998 = vadd.f32 %v852, %v923
    %v999 = vadd.f32 %v853, %v925
    %v1000 = vadd.f32 %v854, %v994
    %v1001 = vadd.f32 %v855, %v996
    %v1002 = vsub.f32 0.0, %v998
    %v1003 = vmul.f32 %v1002, 1.442695
    %v1004 = vpow.pop %v1003
    %v1005 = vadd.f32 %v1004, 1.0
    %v1006 = vrcp.pop %v1005
    %v1007 = vsub.f32 0.0, %v999
    %v1008 = vmul.f32 %v1007, 1.442695
    %v1009 = vpow.pop %v1008
    %v1010 = vadd.f32 %v1009, 1.0
    %v1011 = vrcp.pop %v1010
    %v1012 = vtanh.pop %v1000
    %v1013 = vsub.f32 0.0, %v1001
    %v1014 = vmul.f32 %v1013, 1.442695
    %v1015 = vpow.pop %v1014
    %v1016 = vadd.f32 %v1015, 1.0
    %v1017 = vrcp.pop %v1016
    %v1018 = vmul.f32 %v1011, %v844
    %v1019 = vmul.f32 %v1006, %v1012
    %v1020 = vadd.f32 %v1018, %v1019
    %v1021 = vtanh.pop %v1020
    %v1022 = vmul.f32 %v1017, %v1021
    %s1023 = scalar_lea.vmem [#allocation3], 16
    %1024 = vst [vmem:[%s1023] sm:$0xff] %v1022
    %s1025 = smul.u32 3, 4
    %s1026 = smul.addr %s1025, 8
    %s1027 = scalar_lea.vmem [#allocation2], %s1026
    %v1028 = vld [vmem:[%s1027] sm:$0xff]
    %v1029 = vld [vmem:[%s1027 + $0x8] sm:$0xff]
    %v1030 = vld [vmem:[%s1027 + $0x10] sm:$0xff]
    %v1031 = vld [vmem:[%s1027 + $0x18] sm:$0xff]
    %1032 = vmatprep.subr.mxu0 %v109
    %1033 = vmatpush1.msra.mxu0 %v108
    %1034 = vmatprep.subr.mxu0 %v113
    %1035 = vmatpush1.msra.mxu0 %v112
    %1036 = vmatprep.subr.mxu0 %v117
    %1037 = vmatpush1.msra.mxu0 %v116
    %1038 = vmatprep.subr.mxu0 %v121
    %1039 = vmatpush1.msra.mxu0 %v120
    %1040 = vmatprep.subr.mxu0 %v125
    %1041 = vmatpush1.msra.mxu0 %v124
    %1042 = vmatprep.subr.mxu0 %v129
    %1043 = vmatpush1.msra.mxu0 %v128
    %1044 = vmatprep.subr.mxu0 %v133
    %1045 = vmatpush1.msra.mxu0 %v132
    %1046 = vmatprep.subr.mxu0 %v137
    %1047 = vmatpush1.msra.mxu0 %v136
    %1048 = vmatprep.subr.mxu0 %v141
    %1049 = vmatpush1.msra.mxu0 %v140
    %1050 = vmatprep.subr.mxu0 %v145
    %1051 = vmatpush1.msra.mxu0 %v144
    %1052 = vmatprep.subr.mxu0 %v149
    %1053 = vmatpush1.msra.mxu0 %v148
    %1054 = vmatprep.subr.mxu0 %v153
    %1055 = vmatpush1.msra.mxu0 %v152
    %1056 = vmatprep.subr.mxu0 %v157
    %1057 = vmatpush1.msra.mxu0 %v156
    %1058 = vmatprep.subr.mxu0 %v161
    %1059 = vmatpush1.msra.mxu0 %v160
    %1060 = vmatprep.subr.mxu0 %v165
    %1061 = vmatpush1.msra.mxu0 %v164
    %1062 = vmatprep.subr.mxu0 %v169
    %1063 = vmatpush1.msra.mxu0 %v168
    %1064 = vmatprep.subr.mxu0 0.0
    %1065 = vmatpush1.msra.mxu0 0.0
    %1066 = vmatprep.subr.mxu0 0.0
    %1067 = vmatpush1.msra.mxu0 0.0
    %1068 = vmatprep.subr.mxu0 0.0
    %1069 = vmatpush1.msra.mxu0 0.0
    %1070 = vmatprep.subr.mxu0 0.0
    %1071 = vmatpush1.msra.mxu0 0.0
    %1072 = vmatprep.subr.mxu0 0.0
    %1073 = vmatpush1.msra.mxu0 0.0
    %1074 = vmatprep.subr.mxu0 0.0
    %1075 = vmatpush1.msra.mxu0 0.0
    %1076 = vmatprep.subr.mxu0 0.0
    %1077 = vmatpush1.msra.mxu0 0.0
    %1078 = vmatprep.subr.mxu0 0.0
    %1079 = vmatpush1.msra.mxu0 0.0
    %1080 = vmatprep.subr.mxu0 0.0
    %1081 = vmatpush1.msra.mxu0 0.0
    %1082 = vmatprep.subr.mxu0 0.0
    %1083 = vmatpush1.msra.mxu0 0.0
    %1084 = vmatprep.subr.mxu0 0.0
    %1085 = vmatpush1.msra.mxu0 0.0
    %1086 = vmatprep.subr.mxu0 0.0
    %1087 = vmatpush1.msra.mxu0 0.0
    %1088 = vmatprep.subr.mxu0 0.0
    %1089 = vmatpush1.msra.mxu0 0.0
    %1090 = vmatprep.subr.mxu0 0.0
    %1091 = vmatpush1.msra.mxu0 0.0
    %1092 = vmatprep.subr.mxu0 0.0
    %1093 = vmatpush1.msra.mxu0 0.0
    %1094 = vmatprep.subr.mxu0 0.0
    %1095 = vmatpush1.msra.mxu0 0.0
    %1096 = vmatprep.mubr.f32.mxu0 0.0
    %1097 = vmatmul.mubr.f32.gmra.mrb[0].mxu0 %v1022
    %v1098 = vpop.f32.mrb[0].mxu0
    %v1099 = vadd.f32 0.0, %v1098
    %v1100 = vpop.f32.mrb[0].mxu0
    %v1101 = vadd.f32 0.0, %v1100
    %1102 = vdwg.mxu0
    %1103 = vmatprep.subr.mxu0 %v111
    %1104 = vmatpush1.msra.mxu0 %v110
    %1105 = vmatprep.subr.mxu0 %v115
    %1106 = vmatpush1.msra.mxu0 %v114
    %1107 = vmatprep.subr.mxu0 %v119
    %1108 = vmatpush1.msra.mxu0 %v118
    %1109 = vmatprep.subr.mxu0 %v123
    %1110 = vmatpush1.msra.mxu0 %v122
    %1111 = vmatprep.subr.mxu0 %v127
    %1112 = vmatpush1.msra.mxu0 %v126
    %1113 = vmatprep.subr.mxu0 %v131
    %1114 = vmatpush1.msra.mxu0 %v130
    %1115 = vmatprep.subr.mxu0 %v135
    %1116 = vmatpush1.msra.mxu0 %v134
    %1117 = vmatprep.subr.mxu0 %v139
    %1118 = vmatpush1.msra.mxu0 %v138
    %1119 = vmatprep.subr.mxu0 %v143
    %1120 = vmatpush1.msra.mxu0 %v142
    %1121 = vmatprep.subr.mxu0 %v147
    %1122 = vmatpush1.msra.mxu0 %v146
    %1123 = vmatprep.subr.mxu0 %v151
    %1124 = vmatpush1.msra.mxu0 %v150
    %1125 = vmatprep.subr.mxu0 %v155
    %1126 = vmatpush1.msra.mxu0 %v154
    %1127 = vmatprep.subr.mxu0 %v159
    %1128 = vmatpush1.msra.mxu0 %v158
    %1129 = vmatprep.subr.mxu0 %v163
    %1130 = vmatpush1.msra.mxu0 %v162
    %1131 = vmatprep.subr.mxu0 %v167
    %1132 = vmatpush1.msra.mxu0 %v166
    %1133 = vmatprep.subr.mxu0 %v171
    %1134 = vmatpush1.msra.mxu0 %v170
    %1135 = vmatprep.subr.mxu0 0.0
    %1136 = vmatpush1.msra.mxu0 0.0
    %1137 = vmatprep.subr.mxu0 0.0
    %1138 = vmatpush1.msra.mxu0 0.0
    %1139 = vmatprep.subr.mxu0 0.0
    %1140 = vmatpush1.msra.mxu0 0.0
    %1141 = vmatprep.subr.mxu0 0.0
    %1142 = vmatpush1.msra.mxu0 0.0
    %1143 = vmatprep.subr.mxu0 0.0
    %1144 = vmatpush1.msra.mxu0 0.0
    %1145 = vmatprep.subr.mxu0 0.0
    %1146 = vmatpush1.msra.mxu0 0.0
    %1147 = vmatprep.subr.mxu0 0.0
    %1148 = vmatpush1.msra.mxu0 0.0
    %1149 = vmatprep.subr.mxu0 0.0
    %1150 = vmatpush1.msra.mxu0 0.0
    %1151 = vmatprep.subr.mxu0 0.0
    %1152 = vmatpush1.msra.mxu0 0.0
    %1153 = vmatprep.subr.mxu0 0.0
    %1154 = vmatpush1.msra.mxu0 0.0
    %1155 = vmatprep.subr.mxu0 0.0
    %1156 = vmatpush1.msra.mxu0 0.0
    %1157 = vmatprep.subr.mxu0 0.0
    %1158 = vmatpush1.msra.mxu0 0.0
    %1159 = vmatprep.subr.mxu0 0.0
    %1160 = vmatpush1.msra.mxu0 0.0
    %1161 = vmatprep.subr.mxu0 0.0
    %1162 = vmatpush1.msra.mxu0 0.0
    %1163 = vmatprep.subr.mxu0 0.0
    %1164 = vmatpush1.msra.mxu0 0.0
    %1165 = vmatprep.subr.mxu0 0.0
    %1166 = vmatpush1.msra.mxu0 0.0
    %1167 = vmatprep.mubr.f32.mxu0 0.0
    %1168 = vmatmul.mubr.f32.gmra.mrb[0].mxu0 %v1022
    %v1169 = vpop.f32.mrb[0].mxu0
    %v1170 = vadd.f32 0.0, %v1169
    %v1171 = vpop.f32.mrb[0].mxu0
    %v1172 = vadd.f32 0.0, %v1171
    %1173 = vdwg.mxu0
    %v1174 = vadd.f32 %v1028, %v1099
    %v1175 = vadd.f32 %v1029, %v1101
    %v1176 = vadd.f32 %v1030, %v1170
    %v1177 = vadd.f32 %v1031, %v1172
    %v1178 = vsub.f32 0.0, %v1174
    %v1179 = vmul.f32 %v1178, 1.442695
    %v1180 = vpow.pop %v1179
    %v1181 = vadd.f32 %v1180, 1.0
    %v1182 = vrcp.pop %v1181
    %v1183 = vsub.f32 0.0, %v1175
    %v1184 = vmul.f32 %v1183, 1.442695
    %v1185 = vpow.pop %v1184
    %v1186 = vadd.f32 %v1185, 1.0
    %v1187 = vrcp.pop %v1186
    %v1188 = vtanh.pop %v1176
    %v1189 = vsub.f32 0.0, %v1177
    %v1190 = vmul.f32 %v1189, 1.442695
    %v1191 = vpow.pop %v1190
    %v1192 = vadd.f32 %v1191, 1.0
    %v1193 = vrcp.pop %v1192
    %v1194 = vmul.f32 %v1187, %v1020
    %v1195 = vmul.f32 %v1182, %v1188
    %v1196 = vadd.f32 %v1194, %v1195
    %v1197 = vtanh.pop %v1196
    %v1198 = vmul.f32 %v1193, %v1197
    %s1199 = scalar_lea.vmem [#allocation3], 24
    %1200 = vst [vmem:[%s1199] sm:$0xff] %v1198
    %s1201 = smul.u32 4, 4
    %s1202 = smul.addr %s1201, 8
    %s1203 = scalar_lea.vmem [#allocation2], %s1202
    %v1204 = vld [vmem:[%s1203] sm:$0xff]
    %v1205 = vld [vmem:[%s1203 + $0x8] sm:$0xff]
    %v1206 = vld [vmem:[%s1203 + $0x10] sm:$0xff]
    %v1207 = vld [vmem:[%s1203 + $0x18] sm:$0xff]
    %1208 = vmatprep.subr.mxu0 %v109
    %1209 = vmatpush1.msra.mxu0 %v108
    %1210 = vmatprep.subr.mxu0 %v113
    %1211 = vmatpush1.msra.mxu0 %v112
    %1212 = vmatprep.subr.mxu0 %v117
    %1213 = vmatpush1.msra.mxu0 %v116
    %1214 = vmatprep.subr.mxu0 %v121
    %1215 = vmatpush1.msra.mxu0 %v120
    %1216 = vmatprep.subr.mxu0 %v125
    %1217 = vmatpush1.msra.mxu0 %v124
    %1218 = vmatprep.subr.mxu0 %v129
    %1219 = vmatpush1.msra.mxu0 %v128
    %1220 = vmatprep.subr.mxu0 %v133
    %1221 = vmatpush1.msra.mxu0 %v132
    %1222 = vmatprep.subr.mxu0 %v137
    %1223 = vmatpush1.msra.mxu0 %v136
    %1224 = vmatprep.subr.mxu0 %v141
    %1225 = vmatpush1.msra.mxu0 %v140
    %1226 = vmatprep.subr.mxu0 %v145
    %1227 = vmatpush1.msra.mxu0 %v144
    %1228 = vmatprep.subr.mxu0 %v149
    %1229 = vmatpush1.msra.mxu0 %v148
    %1230 = vmatprep.subr.mxu0 %v153
    %1231 = vmatpush1.msra.mxu0 %v152
    %1232 = vmatprep.subr.mxu0 %v157
    %1233 = vmatpush1.msra.mxu0 %v156
    %1234 = vmatprep.subr.mxu0 %v161
    %1235 = vmatpush1.msra.mxu0 %v160
    %1236 = vmatprep.subr.mxu0 %v165
    %1237 = vmatpush1.msra.mxu0 %v164
    %1238 = vmatprep.subr.mxu0 %v169
    %1239 = vmatpush1.msra.mxu0 %v168
    %1240 = vmatprep.subr.mxu0 0.0
    %1241 = vmatpush1.msra.mxu0 0.0
    %1242 = vmatprep.subr.mxu0 0.0
    %1243 = vmatpush1.msra.mxu0 0.0
    %1244 = vmatprep.subr.mxu0 0.0
    %1245 = vmatpush1.msra.mxu0 0.0
    %1246 = vmatprep.subr.mxu0 0.0
    %1247 = vmatpush1.msra.mxu0 0.0
    %1248 = vmatprep.subr.mxu0 0.0
    %1249 = vmatpush1.msra.mxu0 0.0
    %1250 = vmatprep.subr.mxu0 0.0
    %1251 = vmatpush1.msra.mxu0 0.0
    %1252 = vmatprep.subr.mxu0 0.0
    %1253 = vmatpush1.msra.mxu0 0.0
    %1254 = vmatprep.subr.mxu0 0.0
    %1255 = vmatpush1.msra.mxu0 0.0
    %1256 = vmatprep.subr.mxu0 0.0
    %1257 = vmatpush1.msra.mxu0 0.0
    %1258 = vmatprep.subr.mxu0 0.0
    %1259 = vmatpush1.msra.mxu0 0.0
    %1260 = vmatprep.subr.mxu0 0.0
    %1261 = vmatpush1.msra.mxu0 0.0
    %1262 = vmatprep.subr.mxu0 0.0
    %1263 = vmatpush1.msra.mxu0 0.0
    %1264 = vmatprep.subr.mxu0 0.0
    %1265 = vmatpush1.msra.mxu0 0.0
    %1266 = vmatprep.subr.mxu0 0.0
    %1267 = vmatpush1.msra.mxu0 0.0
    %1268 = vmatprep.subr.mxu0 0.0
    %1269 = vmatpush1.msra.mxu0 0.0
    %1270 = vmatprep.subr.mxu0 0.0
    %1271 = vmatpush1.msra.mxu0 0.0
    %1272 = vmatprep.mubr.f32.mxu0 0.0
    %1273 = vmatmul.mubr.f32.gmra.mrb[0].mxu0 %v1198
    %v1274 = vpop.f32.mrb[0].mxu0
    %v1275 = vadd.f32 0.0, %v1274
    %v1276 = vpop.f32.mrb[0].mxu0
    %v1277 = vadd.f32 0.0, %v1276
    %1278 = vdwg.mxu0
    %1279 = vmatprep.subr.mxu0 %v111
    %1280 = vmatpush1.msra.mxu0 %v110
    %1281 = vmatprep.subr.mxu0 %v115
    %1282 = vmatpush1.msra.mxu0 %v114
    %1283 = vmatprep.subr.mxu0 %v119
    %1284 = vmatpush1.msra.mxu0 %v118
    %1285 = vmatprep.subr.mxu0 %v123
    %1286 = vmatpush1.msra.mxu0 %v122
    %1287 = vmatprep.subr.mxu0 %v127
    %1288 = vmatpush1.msra.mxu0 %v126
    %1289 = vmatprep.subr.mxu0 %v131
    %1290 = vmatpush1.msra.mxu0 %v130
    %1291 = vmatprep.subr.mxu0 %v135
    %1292 = vmatpush1.msra.mxu0 %v134
    %1293 = vmatprep.subr.mxu0 %v139
    %1294 = vmatpush1.msra.mxu0 %v138
    %1295 = vmatprep.subr.mxu0 %v143
    %1296 = vmatpush1.msra.mxu0 %v142
    %1297 = vmatprep.subr.mxu0 %v147
    %1298 = vmatpush1.msra.mxu0 %v146
    %1299 = vmatprep.subr.mxu0 %v151
    %1300 = vmatpush1.msra.mxu0 %v150
    %1301 = vmatprep.subr.mxu0 %v155
    %1302 = vmatpush1.msra.mxu0 %v154
    %1303 = vmatprep.subr.mxu0 %v159
    %1304 = vmatpush1.msra.mxu0 %v158
    %1305 = vmatprep.subr.mxu0 %v163
    %1306 = vmatpush1.msra.mxu0 %v162
    %1307 = vmatprep.subr.mxu0 %v167
    %1308 = vmatpush1.msra.mxu0 %v166
    %1309 = vmatprep.subr.mxu0 %v171
    %1310 = vmatpush1.msra.mxu0 %v170
    %1311 = vmatprep.subr.mxu0 0.0
    %1312 = vmatpush1.msra.mxu0 0.0
    %1313 = vmatprep.subr.mxu0 0.0
    %1314 = vmatpush1.msra.mxu0 0.0
    %1315 = vmatprep.subr.mxu0 0.0
    %1316 = vmatpush1.msra.mxu0 0.0
    %1317 = vmatprep.subr.mxu0 0.0
    %1318 = vmatpush1.msra.mxu0 0.0
    %1319 = vmatprep.subr.mxu0 0.0
    %1320 = vmatpush1.msra.mxu0 0.0
    %1321 = vmatprep.subr.mxu0 0.0
    %1322 = vmatpush1.msra.mxu0 0.0
    %1323 = vmatprep.subr.mxu0 0.0
    %1324 = vmatpush1.msra.mxu0 0.0
    %1325 = vmatprep.subr.mxu0 0.0
    %1326 = vmatpush1.msra.mxu0 0.0
    %1327 = vmatprep.subr.mxu0 0.0
    %1328 = vmatpush1.msra.mxu0 0.0
    %1329 = vmatprep.subr.mxu0 0.0
    %1330 = vmatpush1.msra.mxu0 0.0
    %1331 = vmatprep.subr.mxu0 0.0
    %1332 = vmatpush1.msra.mxu0 0.0
    %1333 = vmatprep.subr.mxu0 0.0
    %1334 = vmatpush1.msra.mxu0 0.0
    %1335 = vmatprep.subr.mxu0 0.0
    %1336 = vmatpush1.msra.mxu0 0.0
    %1337 = vmatprep.subr.mxu0 0.0
    %1338 = vmatpush1.msra.mxu0 0.0
    %1339 = vmatprep.subr.mxu0 0.0
    %1340 = vmatpush1.msra.mxu0 0.0
    %1341 = vmatprep.subr.mxu0 0.0
    %1342 = vmatpush1.msra.mxu0 0.0
    %1343 = vmatprep.mubr.f32.mxu0 0.0
    %1344 = vmatmul.mubr.f32.gmra.mrb[0].mxu0 %v1198
    %v1345 = vpop.f32.mrb[0].mxu0
    %v1346 = vadd.f32 0.0, %v1345
    %v1347 = vpop.f32.mrb[0].mxu0
    %v1348 = vadd.f32 0.0, %v1347
    %1349 = vdwg.mxu0
    %v1350 = vadd.f32 %v1204, %v1275
    %v1351 = vadd.f32 %v1205, %v1277
    %v1352 = vadd.f32 %v1206, %v1346
    %v1353 = vadd.f32 %v1207, %v1348
    %v1354 = vsub.f32 0.0, %v1350
    %v1355 = vmul.f32 %v1354, 1.442695
    %v1356 = vpow.pop %v1355
    %v1357 = vadd.f32 %v1356, 1.0
    %v1358 = vrcp.pop %v1357
    %v1359 = vsub.f32 0.0, %v1351
    %v1360 = vmul.f32 %v1359, 1.442695
    %v1361 = vpow.pop %v1360
    %v1362 = vadd.f32 %v1361, 1.0
    %v1363 = vrcp.pop %v1362
    %v1364 = vtanh.pop %v1352
    %v1365 = vsub.f32 0.0, %v1353
    %v1366 = vmul.f32 %v1365, 1.442695
    %v1367 = vpow.pop %v1366
    %v1368 = vadd.f32 %v1367, 1.0
    %v1369 = vrcp.pop %v1368
    %v1370 = vmul.f32 %v1363, %v1196
    %v1371 = vmul.f32 %v1358, %v1364
    %v1372 = vadd.f32 %v1370, %v1371
    %v1373 = vtanh.pop %v1372
    %v1374 = vmul.f32 %v1369, %v1373
    %s1375 = scalar_lea.vmem [#allocation3], 32
    %1376 = vst [vmem:[%s1375] sm:$0xff] %v1374
    %s1377 = smul.u32 5, 4
    %s1378 = smul.addr %s1377, 8
    %s1379 = scalar_lea.vmem [#allocation2], %s1378
    %v1380 = vld [vmem:[%s1379] sm:$0xff]
    %v1381 = vld [vmem:[%s1379 + $0x8] sm:$0xff]
    %v1382 = vld [vmem:[%s1379 + $0x10] sm:$0xff]
    %v1383 = vld [vmem:[%s1379 + $0x18] sm:$0xff]
    %1384 = vmatprep.subr.mxu0 %v109
    %1385 = vmatpush1.msra.mxu0 %v108
    %1386 = vmatprep.subr.mxu0 %v113
    %1387 = vmatpush1.msra.mxu0 %v112
    %1388 = vmatprep.subr.mxu0 %v117
    %1389 = vmatpush1.msra.mxu0 %v116
    %1390 = vmatprep.subr.mxu0 %v121
    %1391 = vmatpush1.msra.mxu0 %v120
    %1392 = vmatprep.subr.mxu0 %v125
    %1393 = vmatpush1.msra.mxu0 %v124
    %1394 = vmatprep.subr.mxu0 %v129
    %1395 = vmatpush1.msra.mxu0 %v128
    %1396 = vmatprep.subr.mxu0 %v133
    %1397 = vmatpush1.msra.mxu0 %v132
    %1398 = vmatprep.subr.mxu0 %v137
    %1399 = vmatpush1.msra.mxu0 %v136
    %1400 = vmatprep.subr.mxu0 %v141
    %1401 = vmatpush1.msra.mxu0 %v140
    %1402 = vmatprep.subr.mxu0 %v145
    %1403 = vmatpush1.msra.mxu0 %v144
    %1404 = vmatprep.subr.mxu0 %v149
    %1405 = vmatpush1.msra.mxu0 %v148
    %1406 = vmatprep.subr.mxu0 %v153
    %1407 = vmatpush1.msra.mxu0 %v152
    %1408 = vmatprep.subr.mxu0 %v157
    %1409 = vmatpush1.msra.mxu0 %v156
    %1410 = vmatprep.subr.mxu0 %v161
    %1411 = vmatpush1.msra.mxu0 %v160
    %1412 = vmatprep.subr.mxu0 %v165
    %1413 = vmatpush1.msra.mxu0 %v164
    %1414 = vmatprep.subr.mxu0 %v169
    %1415 = vmatpush1.msra.mxu0 %v168
    %1416 = vmatprep.subr.mxu0 0.0
    %1417 = vmatpush1.msra.mxu0 0.0
    %1418 = vmatprep.subr.mxu0 0.0
    %1419 = vmatpush1.msra.mxu0 0.0
    %1420 = vmatprep.subr.mxu0 0.0
    %1421 = vmatpush1.msra.mxu0 0.0
    %1422 = vmatprep.subr.mxu0 0.0
    %1423 = vmatpush1.msra.mxu0 0.0
    %1424 = vmatprep.subr.mxu0 0.0
    %1425 = vmatpush1.msra.mxu0 0.0
    %1426 = vmatprep.subr.mxu0 0.0
    %1427 = vmatpush1.msra.mxu0 0.0
    %1428 = vmatprep.subr.mxu0 0.0
    %1429 = vmatpush1.msra.mxu0 0.0
    %1430 = vmatprep.subr.mxu0 0.0
    %1431 = vmatpush1.msra.mxu0 0.0
    %1432 = vmatprep.subr.mxu0 0.0
    %1433 = vmatpush1.msra.mxu0 0.0
    %1434 = vmatprep.subr.mxu0 0.0
    %1435 = vmatpush1.msra.mxu0 0.0
    %1436 = vmatprep.subr.mxu0 0.0
    %1437 = vmatpush1.msra.mxu0 0.0
    %1438 = vmatprep.subr.mxu0 0.0
    %1439 = vmatpush1.msra.mxu0 0.0
    %1440 = vmatprep.subr.mxu0 0.0
    %1441 = vmatpush1.msra.mxu0 0.0
    %1442 = vmatprep.subr.mxu0 0.0
    %1443 = vmatpush1.msra.mxu0 0.0
    %1444 = vmatprep.subr.mxu0 0.0
    %1445 = vmatpush1.msra.mxu0 0.0
    %1446 = vmatprep.subr.mxu0 0.0
    %1447 = vmatpush1.msra.mxu0 0.0
    %1448 = vmatprep.mubr.f32.mxu0 0.0
    %1449 = vmatmul.mubr.f32.gmra.mrb[0].mxu0 %v1374
    %v1450 = vpop.f32.mrb[0].mxu0
    %v1451 = vadd.f32 0.0, %v1450
    %v1452 = vpop.f32.mrb[0].mxu0
    %v1453 = vadd.f32 0.0, %v1452
    %1454 = vdwg.mxu0
    %1455 = vmatprep.subr.mxu0 %v111
    %1456 = vmatpush1.msra.mxu0 %v110
    %1457 = vmatprep.subr.mxu0 %v115
    %1458 = vmatpush1.msra.mxu0 %v114
    %1459 = vmatprep.subr.mxu0 %v119
    %1460 = vmatpush1.msra.mxu0 %v118
    %1461 = vmatprep.subr.mxu0 %v123
    %1462 = vmatpush1.msra.mxu0 %v122
    %1463 = vmatprep.subr.mxu0 %v127
    %1464 = vmatpush1.msra.mxu0 %v126
    %1465 = vmatprep.subr.mxu0 %v131
    %1466 = vmatpush1.msra.mxu0 %v130
    %1467 = vmatprep.subr.mxu0 %v135
    %1468 = vmatpush1.msra.mxu0 %v134
    %1469 = vmatprep.subr.mxu0 %v139
    %1470 = vmatpush1.msra.mxu0 %v138
    %1471 = vmatprep.subr.mxu0 %v143
    %1472 = vmatpush1.msra.mxu0 %v142
    %1473 = vmatprep.subr.mxu0 %v147
    %1474 = vmatpush1.msra.mxu0 %v146
    %1475 = vmatprep.subr.mxu0 %v151
    %1476 = vmatpush1.msra.mxu0 %v150
    %1477 = vmatprep.subr.mxu0 %v155
    %1478 = vmatpush1.msra.mxu0 %v154
    %1479 = vmatprep.subr.mxu0 %v159
    %1480 = vmatpush1.msra.mxu0 %v158
    %1481 = vmatprep.subr.mxu0 %v163
    %1482 = vmatpush1.msra.mxu0 %v162
    %1483 = vmatprep.subr.mxu0 %v167
    %1484 = vmatpush1.msra.mxu0 %v166
    %1485 = vmatprep.subr.mxu0 %v171
    %1486 = vmatpush1.msra.mxu0 %v170
    %1487 = vmatprep.subr.mxu0 0.0
    %1488 = vmatpush1.msra.mxu0 0.0
    %1489 = vmatprep.subr.mxu0 0.0
    %1490 = vmatpush1.msra.mxu0 0.0
    %1491 = vmatprep.subr.mxu0 0.0
    %1492 = vmatpush1.msra.mxu0 0.0
    %1493 = vmatprep.subr.mxu0 0.0
    %1494 = vmatpush1.msra.mxu0 0.0
    %1495 = vmatprep.subr.mxu0 0.0
    %1496 = vmatpush1.msra.mxu0 0.0
    %1497 = vmatprep.subr.mxu0 0.0
    %1498 = vmatpush1.msra.mxu0 0.0
    %1499 = vmatprep.subr.mxu0 0.0
    %1500 = vmatpush1.msra.mxu0 0.0
    %1501 = vmatprep.subr.mxu0 0.0
    %1502 = vmatpush1.msra.mxu0 0.0
    %1503 = vmatprep.subr.mxu0 0.0
    %1504 = vmatpush1.msra.mxu0 0.0
    %1505 = vmatprep.subr.mxu0 0.0
    %1506 = vmatpush1.msra.mxu0 0.0
    %1507 = vmatprep.subr.mxu0 0.0
    %1508 = vmatpush1.msra.mxu0 0.0
    %1509 = vmatprep.subr.mxu0 0.0
    %1510 = vmatpush1.msra.mxu0 0.0
    %1511 = vmatprep.subr.mxu0 0.0
    %1512 = vmatpush1.msra.mxu0 0.0
    %1513 = vmatprep.subr.mxu0 0.0
    %1514 = vmatpush1.msra.mxu0 0.0
    %1515 = vmatprep.subr.mxu0 0.0
    %1516 = vmatpush1.msra.mxu0 0.0
    %1517 = vmatprep.subr.mxu0 0.0
    %1518 = vmatpush1.msra.mxu0 0.0
    %1519 = vmatprep.mubr.f32.mxu0 0.0
    %1520 = vmatmul.mubr.f32.gmra.mrb[0].mxu0 %v1374
    %v1521 = vpop.f32.mrb[0].mxu0
    %v1522 = vadd.f32 0.0, %v1521
    %v1523 = vpop.f32.mrb[0].mxu0
    %v1524 = vadd.f32 0.0, %v1523
    %1525 = vdwg.mxu0
    %v1526 = vadd.f32 %v1380, %v1451
    %v1527 = vadd.f32 %v1381, %v1453
    %v1528 = vadd.f32 %v1382, %v1522
    %v1529 = vadd.f32 %v1383, %v1524
    %v1530 = vsub.f32 0.0, %v1526
    %v1531 = vmul.f32 %v1530, 1.442695
    %v1532 = vpow.pop %v1531
    %v1533 = vadd.f32 %v1532, 1.0
    %v1534 = vrcp.pop %v1533
    %v1535 = vsub.f32 0.0, %v1527
    %v1536 = vmul.f32 %v1535, 1.442695
    %v1537 = vpow.pop %v1536
    %v1538 = vadd.f32 %v1537, 1.0
    %v1539 = vrcp.pop %v1538
    %v1540 = vtanh.pop %v1528
    %v1541 = vsub.f32 0.0, %v1529
    %v1542 = vmul.f32 %v1541, 1.442695
    %v1543 = vpow.pop %v1542
    %v1544 = vadd.f32 %v1543, 1.0
    %v1545 = vrcp.pop %v1544
    %v1546 = vmul.f32 %v1539, %v1372
    %v1547 = vmul.f32 %v1534, %v1540
    %v1548 = vadd.f32 %v1546, %v1547
    %v1549 = vtanh.pop %v1548
    %v1550 = vmul.f32 %v1545, %v1549
    %s1551 = scalar_lea.vmem [#allocation3], 40
    %1552 = vst [vmem:[%s1551] sm:$0xff] %v1550
    %s1553 = smul.u32 6, 4
    %s1554 = smul.addr %s1553, 8
    %s1555 = scalar_lea.vmem [#allocation2], %s1554
    %v1556 = vld [vmem:[%s1555] sm:$0xff]
    %v1557 = vld [vmem:[%s1555 + $0x8] sm:$0xff]
    %v1558 = vld [vmem:[%s1555 + $0x10] sm:$0xff]
    %v1559 = vld [vmem:[%s1555 + $0x18] sm:$0xff]
    %1560 = vmatprep.subr.mxu0 %v109
    %1561 = vmatpush1.msra.mxu0 %v108
    %1562 = vmatprep.subr.mxu0 %v113
    %1563 = vmatpush1.msra.mxu0 %v112
    %1564 = vmatprep.subr.mxu0 %v117
    %1565 = vmatpush1.msra.mxu0 %v116
    %1566 = vmatprep.subr.mxu0 %v121
    %1567 = vmatpush1.msra.mxu0 %v120
    %1568 = vmatprep.subr.mxu0 %v125
    %1569 = vmatpush1.msra.mxu0 %v124
    %1570 = vmatprep.subr.mxu0 %v129
    %1571 = vmatpush1.msra.mxu0 %v128
    %1572 = vmatprep.subr.mxu0 %v133
    %1573 = vmatpush1.msra.mxu0 %v132
    %1574 = vmatprep.subr.mxu0 %v137
    %1575 = vmatpush1.msra.mxu0 %v136
    %1576 = vmatprep.subr.mxu0 %v141
    %1577 = vmatpush1.msra.mxu0 %v140
    %1578 = vmatprep.subr.mxu0 %v145
    %1579 = vmatpush1.msra.mxu0 %v144
    %1580 = vmatprep.subr.mxu0 %v149
    %1581 = vmatpush1.msra.mxu0 %v148
    %1582 = vmatprep.subr.mxu0 %v153
    %1583 = vmatpush1.msra.mxu0 %v152
    %1584 = vmatprep.subr.mxu0 %v157
    %1585 = vmatpush1.msra.mxu0 %v156
    %1586 = vmatprep.subr.mxu0 %v161
    %1587 = vmatpush1.msra.mxu0 %v160
    %1588 = vmatprep.subr.mxu0 %v165
    %1589 = vmatpush1.msra.mxu0 %v164
    %1590 = vmatprep.subr.mxu0 %v169
    %1591 = vmatpush1.msra.mxu0 %v168
    %1592 = vmatprep.subr.mxu0 0.0
    %1593 = vmatpush1.msra.mxu0 0.0
    %1594 = vmatprep.subr.mxu0 0.0
    %1595 = vmatpush1.msra.mxu0 0.0
    %1596 = vmatprep.subr.mxu0 0.0
    %1597 = vmatpush1.msra.mxu0 0.0
    %1598 = vmatprep.subr.mxu0 0.0
    %1599 = vmatpush1.msra.mxu0 0.0
    %1600 = vmatprep.subr.mxu0 0.0
    %1601 = vmatpush1.msra.mxu0 0.0
    %1602 = vmatprep.subr.mxu0 0.0
    %1603 = vmatpush1.msra.mxu0 0.0
    %1604 = vmatprep.subr.mxu0 0.0
    %1605 = vmatpush1.msra.mxu0 0.0
    %1606 = vmatprep.subr.mxu0 0.0
    %1607 = vmatpush1.msra.mxu0 0.0
    %1608 = vmatprep.subr.mxu0 0.0
    %1609 = vmatpush1.msra.mxu0 0.0
    %1610 = vmatprep.subr.mxu0 0.0
    %1611 = vmatpush1.msra.mxu0 0.0
    %1612 = vmatprep.subr.mxu0 0.0
    %1613 = vmatpush1.msra.mxu0 0.0
    %1614 = vmatprep.subr.mxu0 0.0
    %1615 = vmatpush1.msra.mxu0 0.0
    %1616 = vmatprep.subr.mxu0 0.0
    %1617 = vmatpush1.msra.mxu0 0.0
    %1618 = vmatprep.subr.mxu0 0.0
    %1619 = vmatpush1.msra.mxu0 0.0
    %1620 = vmatprep.subr.mxu0 0.0
    %1621 = vmatpush1.msra.mxu0 0.0
    %1622 = vmatprep.subr.mxu0 0.0
    %1623 = vmatpush1.msra.mxu0 0.0
    %1624 = vmatprep.mubr.f32.mxu0 0.0
    %1625 = vmatmul.mubr.f32.gmra.mrb[0].mxu0 %v1550
    %v1626 = vpop.f32.mrb[0].mxu0
    %v1627 = vadd.f32 0.0, %v1626
    %v1628 = vpop.f32.mrb[0].mxu0
    %v1629 = vadd.f32 0.0, %v1628
    %1630 = vdwg.mxu0
    %1631 = vmatprep.subr.mxu0 %v111
    %1632 = vmatpush1.msra.mxu0 %v110
    %1633 = vmatprep.subr.mxu0 %v115
    %1634 = vmatpush1.msra.mxu0 %v114
    %1635 = vmatprep.subr.mxu0 %v119
    %1636 = vmatpush1.msra.mxu0 %v118
    %1637 = vmatprep.subr.mxu0 %v123
    %1638 = vmatpush1.msra.mxu0 %v122
    %1639 = vmatprep.subr.mxu0 %v127
    %1640 = vmatpush1.msra.mxu0 %v126
    %1641 = vmatprep.subr.mxu0 %v131
    %1642 = vmatpush1.msra.mxu0 %v130
    %1643 = vmatprep.subr.mxu0 %v135
    %1644 = vmatpush1.msra.mxu0 %v134
    %1645 = vmatprep.subr.mxu0 %v139
    %1646 = vmatpush1.msra.mxu0 %v138
    %1647 = vmatprep.subr.mxu0 %v143
    %1648 = vmatpush1.msra.mxu0 %v142
    %1649 = vmatprep.subr.mxu0 %v147
    %1650 = vmatpush1.msra.mxu0 %v146
    %1651 = vmatprep.subr.mxu0 %v151
    %1652 = vmatpush1.msra.mxu0 %v150
    %1653 = vmatprep.subr.mxu0 %v155
    %1654 = vmatpush1.msra.mxu0 %v154
    %1655 = vmatprep.subr.mxu0 %v159
    %1656 = vmatpush1.msra.mxu0 %v158
    %1657 = vmatprep.subr.mxu0 %v163
    %1658 = vmatpush1.msra.mxu0 %v162
    %1659 = vmatprep.subr.mxu0 %v167
    %1660 = vmatpush1.msra.mxu0 %v166
    %1661 = vmatprep.subr.mxu0 %v171
    %1662 = vmatpush1.msra.mxu0 %v170
    %1663 = vmatprep.subr.mxu0 0.0
    %1664 = vmatpush1.msra.mxu0 0.0
    %1665 = vmatprep.subr.mxu0 0.0
    %1666 = vmatpush1.msra.mxu0 0.0
    %1667 = vmatprep.subr.mxu0 0.0
    %1668 = vmatpush1.msra.mxu0 0.0
    %1669 = vmatprep.subr.mxu0 0.0
    %1670 = vmatpush1.msra.mxu0 0.0
    %1671 = vmatprep.subr.mxu0 0.0
    %1672 = vmatpush1.msra.mxu0 0.0
    %1673 = vmatprep.subr.mxu0 0.0
    %1674 = vmatpush1.msra.mxu0 0.0
    %1675 = vmatprep.subr.mxu0 0.0
    %1676 = vmatpush1.msra.mxu0 0.0
    %1677 = vmatprep.subr.mxu0 0.0
    %1678 = vmatpush1.msra.mxu0 0.0
    %1679 = vmatprep.subr.mxu0 0.0
    %1680 = vmatpush1.msra.mxu0 0.0
    %1681 = vmatprep.subr.mxu0 0.0
    %1682 = vmatpush1.msra.mxu0 0.0
    %1683 = vmatprep.subr.mxu0 0.0
    %1684 = vmatpush1.msra.mxu0 0.0
    %1685 = vmatprep.subr.mxu0 0.0
    %1686 = vmatpush1.msra.mxu0 0.0
    %1687 = vmatprep.subr.mxu0 0.0
    %1688 = vmatpush1.msra.mxu0 0.0
    %1689 = vmatprep.subr.mxu0 0.0
    %1690 = vmatpush1.msra.mxu0 0.0
    %1691 = vmatprep.subr.mxu0 0.0
    %1692 = vmatpush1.msra.mxu0 0.0
    %1693 = vmatprep.subr.mxu0 0.0
    %1694 = vmatpush1.msra.mxu0 0.0
    %1695 = vmatprep.mubr.f32.mxu0 0.0
    %1696 = vmatmul.mubr.f32.gmra.mrb[0].mxu0 %v1550
    %v1697 = vpop.f32.mrb[0].mxu0
    %v1698 = vadd.f32 0.0, %v1697
    %v1699 = vpop.f32.mrb[0].mxu0
    %v1700 = vadd.f32 0.0, %v1699
    %1701 = vdwg.mxu0
    %v1702 = vadd.f32 %v1556, %v1627
    %v1703 = vadd.f32 %v1557, %v1629
    %v1704 = vadd.f32 %v1558, %v1698
    %v1705 = vadd.f32 %v1559, %v1700
    %v1706 = vsub.f32 0.0, %v1702
    %v1707 = vmul.f32 %v1706, 1.442695
    %v1708 = vpow.pop %v1707
    %v1709 = vadd.f32 %v1708, 1.0
    %v1710 = vrcp.pop %v1709
    %v1711 = vsub.f32 0.0, %v1703
    %v1712 = vmul.f32 %v1711, 1.442695
    %v1713 = vpow.pop %v1712
    %v1714 = vadd.f32 %v1713, 1.0
    %v1715 = vrcp.pop %v1714
    %v1716 = vtanh.pop %v1704
    %v1717 = vsub.f32 0.0, %v1705
    %v1718 = vmul.f32 %v1717, 1.442695
    %v1719 = vpow.pop %v1718
    %v1720 = vadd.f32 %v1719, 1.0
    %v1721 = vrcp.pop %v1720
    %v1722 = vmul.f32 %v1715, %v1548
    %v1723 = vmul.f32 %v1710, %v1716
    %v1724 = vadd.f32 %v1722, %v1723
    %v1725 = vtanh.pop %v1724
    %v1726 = vmul.f32 %v1721, %v1725
    %s1727 = scalar_lea.vmem [#allocation3], 48
    %1728 = vst [vmem:[%s1727] sm:$0xff] %v1726
    %s1729 = smul.u32 7, 4
    %s1730 = smul.addr %s1729, 8
    %s1731 = scalar_lea.vmem [#allocation2], %s1730
    %v1732 = vld [vmem:[%s1731] sm:$0xff]
    %v1733 = vld [vmem:[%s1731 + $0x8] sm:$0xff]
    %v1734 = vld [vmem:[%s1731 + $0x10] sm:$0xff]
    %v1735 = vld [vmem:[%s1731 + $0x18] sm:$0xff]
    %1736 = vmatprep.subr.mxu0 %v109
    %1737 = vmatpush1.msra.mxu0 %v108
    %1738 = vmatprep.subr.mxu0 %v113
    %1739 = vmatpush1.msra.mxu0 %v112
    %1740 = vmatprep.subr.mxu0 %v117
    %1741 = vmatpush1.msra.mxu0 %v116
    %1742 = vmatprep.subr.mxu0 %v121
    %1743 = vmatpush1.msra.mxu0 %v120
    %1744 = vmatprep.subr.mxu0 %v125
    %1745 = vmatpush1.msra.mxu0 %v124
    %1746 = vmatprep.subr.mxu0 %v129
    %1747 = vmatpush1.msra.mxu0 %v128
    %1748 = vmatprep.subr.mxu0 %v133
    %1749 = vmatpush1.msra.mxu0 %v132
    %1750 = vmatprep.subr.mxu0 %v137
    %1751 = vmatpush1.msra.mxu0 %v136
    %1752 = vmatprep.subr.mxu0 %v141
    %1753 = vmatpush1.msra.mxu0 %v140
    %1754 = vmatprep.subr.mxu0 %v145
    %1755 = vmatpush1.msra.mxu0 %v144
    %1756 = vmatprep.subr.mxu0 %v149
    %1757 = vmatpush1.msra.mxu0 %v148
    %1758 = vmatprep.subr.mxu0 %v153
    %1759 = vmatpush1.msra.mxu0 %v152
    %1760 = vmatprep.subr.mxu0 %v157
    %1761 = vmatpush1.msra.mxu0 %v156
    %1762 = vmatprep.subr.mxu0 %v161
    %1763 = vmatpush1.msra.mxu0 %v160
    %1764 = vmatprep.subr.mxu0 %v165
    %1765 = vmatpush1.msra.mxu0 %v164
    %1766 = vmatprep.subr.mxu0 %v169
    %1767 = vmatpush1.msra.mxu0 %v168
    %1768 = vmatprep.subr.mxu0 0.0
    %1769 = vmatpush1.msra.mxu0 0.0
    %1770 = vmatprep.subr.mxu0 0.0
    %1771 = vmatpush1.msra.mxu0 0.0
    %1772 = vmatprep.subr.mxu0 0.0
    %1773 = vmatpush1.msra.mxu0 0.0
    %1774 = vmatprep.subr.mxu0 0.0
    %1775 = vmatpush1.msra.mxu0 0.0
    %1776 = vmatprep.subr.mxu0 0.0
    %1777 = vmatpush1.msra.mxu0 0.0
    %1778 = vmatprep.subr.mxu0 0.0
    %1779 = vmatpush1.msra.mxu0 0.0
    %1780 = vmatprep.subr.mxu0 0.0
    %1781 = vmatpush1.msra.mxu0 0.0
    %1782 = vmatprep.subr.mxu0 0.0
    %1783 = vmatpush1.msra.mxu0 0.0
    %1784 = vmatprep.subr.mxu0 0.0
    %1785 = vmatpush1.msra.mxu0 0.0
    %1786 = vmatprep.subr.mxu0 0.0
    %1787 = vmatpush1.msra.mxu0 0.0
    %1788 = vmatprep.subr.mxu0 0.0
    %1789 = vmatpush1.msra.mxu0 0.0
    %1790 = vmatprep.subr.mxu0 0.0
    %1791 = vmatpush1.msra.mxu0 0.0
    %1792 = vmatprep.subr.mxu0 0.0
    %1793 = vmatpush1.msra.mxu0 0.0
    %1794 = vmatprep.subr.mxu0 0.0
    %1795 = vmatpush1.msra.mxu0 0.0
    %1796 = vmatprep.subr.mxu0 0.0
    %1797 = vmatpush1.msra.mxu0 0.0
    %1798 = vmatprep.subr.mxu0 0.0
    %1799 = vmatpush1.msra.mxu0 0.0
    %1800 = vmatprep.mubr.f32.mxu0 0.0
    %1801 = vmatmul.mubr.f32.gmra.mrb[0].mxu0 %v1726
    %v1802 = vpop.f32.mrb[0].mxu0
    %v1803 = vadd.f32 0.0, %v1802
    %v1804 = vpop.f32.mrb[0].mxu0
    %v1805 = vadd.f32 0.0, %v1804
    %1806 = vdwg.mxu0
    %1807 = vmatprep.subr.mxu0 %v111
    %1808 = vmatpush1.msra.mxu0 %v110
    %1809 = vmatprep.subr.mxu0 %v115
    %1810 = vmatpush1.msra.mxu0 %v114
    %1811 = vmatprep.subr.mxu0 %v119
    %1812 = vmatpush1.msra.mxu0 %v118
    %1813 = vmatprep.subr.mxu0 %v123
    %1814 = vmatpush1.msra.mxu0 %v122
    %1815 = vmatprep.subr.mxu0 %v127
    %1816 = vmatpush1.msra.mxu0 %v126
    %1817 = vmatprep.subr.mxu0 %v131
    %1818 = vmatpush1.msra.mxu0 %v130
    %1819 = vmatprep.subr.mxu0 %v135
    %1820 = vmatpush1.msra.mxu0 %v134
    %1821 = vmatprep.subr.mxu0 %v139
    %1822 = vmatpush1.msra.mxu0 %v138
    %1823 = vmatprep.subr.mxu0 %v143
    %1824 = vmatpush1.msra.mxu0 %v142
    %1825 = vmatprep.subr.mxu0 %v147
    %1826 = vmatpush1.msra.mxu0 %v146
    %1827 = vmatprep.subr.mxu0 %v151
    %1828 = vmatpush1.msra.mxu0 %v150
    %1829 = vmatprep.subr.mxu0 %v155
    %1830 = vmatpush1.msra.mxu0 %v154
    %1831 = vmatprep.subr.mxu0 %v159
    %1832 = vmatpush1.msra.mxu0 %v158
    %1833 = vmatprep.subr.mxu0 %v163
    %1834 = vmatpush1.msra.mxu0 %v162
    %1835 = vmatprep.subr.mxu0 %v167
    %1836 = vmatpush1.msra.mxu0 %v166
    %1837 = vmatprep.subr.mxu0 %v171
    %1838 = vmatpush1.msra.mxu0 %v170
    %1839 = vmatprep.subr.mxu0 0.0
    %1840 = vmatpush1.msra.mxu0 0.0
    %1841 = vmatprep.subr.mxu0 0.0
    %1842 = vmatpush1.msra.mxu0 0.0
    %1843 = vmatprep.subr.mxu0 0.0
    %1844 = vmatpush1.msra.mxu0 0.0
    %1845 = vmatprep.subr.mxu0 0.0
    %1846 = vmatpush1.msra.mxu0 0.0
    %1847 = vmatprep.subr.mxu0 0.0
    %1848 = vmatpush1.msra.mxu0 0.0
    %1849 = vmatprep.subr.mxu0 0.0
    %1850 = vmatpush1.msra.mxu0 0.0
    %1851 = vmatprep.subr.mxu0 0.0
    %1852 = vmatpush1.msra.mxu0 0.0
    %1853 = vmatprep.subr.mxu0 0.0
    %1854 = vmatpush1.msra.mxu0 0.0
    %1855 = vmatprep.subr.mxu0 0.0
    %1856 = vmatpush1.msra.mxu0 0.0
    %1857 = vmatprep.subr.mxu0 0.0
    %1858 = vmatpush1.msra.mxu0 0.0
    %1859 = vmatprep.subr.mxu0 0.0
    %1860 = vmatpush1.msra.mxu0 0.0
    %1861 = vmatprep.subr.mxu0 0.0
    %1862 = vmatpush1.msra.mxu0 0.0
    %1863 = vmatprep.subr.mxu0 0.0
    %1864 = vmatpush1.msra.mxu0 0.0
    %1865 = vmatprep.subr.mxu0 0.0
    %1866 = vmatpush1.msra.mxu0 0.0
    %1867 = vmatprep.subr.mxu0 0.0
    %1868 = vmatpush1.msra.mxu0 0.0
    %1869 = vmatprep.subr.mxu0 0.0
    %1870 = vmatpush1.msra.mxu0 0.0
    %1871 = vmatprep.mubr.f32.mxu0 0.0
    %1872 = vmatmul.mubr.f32.gmra.mrb[0].mxu0 %v1726
    %v1873 = vpop.f32.mrb[0].mxu0
    %v1874 = vadd.f32 0.0, %v1873
    %v1875 = vpop.f32.mrb[0].mxu0
    %v1876 = vadd.f32 0.0, %v1875
    %1877 = vdwg.mxu0
    %v1878 = vadd.f32 %v1732, %v1803
    %v1879 = vadd.f32 %v1733, %v1805
    %v1880 = vadd.f32 %v1734, %v1874
    %v1881 = vadd.f32 %v1735, %v1876
    %v1882 = vsub.f32 0.0, %v1878
    %v1883 = vmul.f32 %v1882, 1.442695
    %v1884 = vpow.pop %v1883
    %v1885 = vadd.f32 %v1884, 1.0
    %v1886 = vrcp.pop %v1885
    %v1887 = vsub.f32 0.0, %v1879
    %v1888 = vmul.f32 %v1887, 1.442695
    %v1889 = vpow.pop %v1888
    %v1890 = vadd.f32 %v1889, 1.0
    %v1891 = vrcp.pop %v1890
    %v1892 = vtanh.pop %v1880
    %v1893 = vsub.f32 0.0, %v1881
    %v1894 = vmul.f32 %v1893, 1.442695
    %v1895 = vpow.pop %v1894
    %v1896 = vadd.f32 %v1895, 1.0
    %v1897 = vrcp.pop %v1896
    %v1898 = vmul.f32 %v1891, %v1724
    %v1899 = vmul.f32 %v1886, %v1892
    %v1900 = vadd.f32 %v1898, %v1899
    %v1901 = vtanh.pop %v1900
    %v1902 = vmul.f32 %v1897, %v1901
    %s1903 = scalar_lea.vmem [#allocation3], 56
    %1904 = vst [vmem:[%s1903] sm:$0xff] %v1902
    %1905 = vst [vmem:[%s11] sm:$0xff] %v1902
    %1906 = vst [vmem:[%s12] sm:$0xff] %v1900
    %v1907 = vld [vmem:[#allocation6] sm:$0xff]
    %v1908 = vld [vmem:[#allocation6 + $0x8] sm:$0xff]
    %v1909 = vld [vmem:[#allocation6 + $0x10] sm:$0xff]
    %v1910 = vld [vmem:[#allocation6 + $0x18] sm:$0xff]
    %v1911 = vld [vmem:[#allocation6 + $0x20] sm:$0xff]
    %v1912 = vld [vmem:[#allocation6 + $0x28] sm:$0xff]
    %v1913 = vld [vmem:[#allocation6 + $0x30] sm:$0xff]
    %v1914 = vld [vmem:[#allocation6 + $0x38] sm:$0xff]
    %v1915 = vld [vmem:[#allocation6 + $0x40] sm:$0xff]
    %v1916 = vld [vmem:[#allocation6 + $0x48] sm:$0xff]
    %v1917 = vld [vmem:[#allocation6 + $0x50] sm:$0xff]
    %v1918 = vld [vmem:[#allocation6 + $0x58] sm:$0xff]
    %v1919 = vld [vmem:[#allocation6 + $0x60] sm:$0xff]
    %v1920 = vld [vmem:[#allocation6 + $0x68] sm:$0xff]
    %v1921 = vld [vmem:[#allocation6 + $0x70] sm:$0xff]
    %v1922 = vld [vmem:[#allocation6 + $0x78] sm:$0xff]
    %v1923 = vld [vmem:[#allocation6 + $0x80] sm:$0xff]
    %v1924 = vld [vmem:[#allocation6 + $0x88] sm:$0xff]
    %v1925 = vld [vmem:[#allocation6 + $0x90] sm:$0xff]
    %v1926 = vld [vmem:[#allocation6 + $0x98] sm:$0xff]
    %v1927 = vld [vmem:[#allocation6 + $0xa0] sm:$0xff]
    %v1928 = vld [vmem:[#allocation6 + $0xa8] sm:$0xff]
    %v1929 = vld [vmem:[#allocation6 + $0xb0] sm:$0xff]
    %v1930 = vld [vmem:[#allocation6 + $0xb8] sm:$0xff]
    %v1931 = vld [vmem:[#allocation6 + $0xc0] sm:$0xff]
    %v1932 = vld [vmem:[#allocation6 + $0xc8] sm:$0xff]
    %v1933 = vld [vmem:[#allocation6 + $0xd0] sm:$0xff]
    %v1934 = vld [vmem:[#allocation6 + $0xd8] sm:$0xff]
    %v1935 = vld [vmem:[#allocation6 + $0xe0] sm:$0xff]
    %v1936 = vld [vmem:[#allocation6 + $0xe8] sm:$0xff]
    %v1937 = vld [vmem:[#allocation6 + $0xf0] sm:$0xff]
    %v1938 = vld [vmem:[#allocation6 + $0xf8] sm:$0xff]
    %v1939 = vld [vmem:[#allocation6 + $0x100] sm:$0xff]
    %v1940 = vld [vmem:[#allocation6 + $0x108] sm:$0xff]
    %v1941 = vld [vmem:[#allocation6 + $0x110] sm:$0xff]
    %v1942 = vld [vmem:[#allocation6 + $0x118] sm:$0xff]
    %v1943 = vld [vmem:[#allocation6 + $0x120] sm:$0xff]
    %v1944 = vld [vmem:[#allocation6 + $0x128] sm:$0xff]
    %v1945 = vld [vmem:[#allocation6 + $0x130] sm:$0xff]
    %v1946 = vld [vmem:[#allocation6 + $0x138] sm:$0xff]
    %v1947 = vld [vmem:[#allocation6 + $0x140] sm:$0xff]
    %v1948 = vld [vmem:[#allocation6 + $0x148] sm:$0xff]
    %v1949 = vld [vmem:[#allocation6 + $0x150] sm:$0xff]
    %v1950 = vld [vmem:[#allocation6 + $0x158] sm:$0xff]
    %v1951 = vld [vmem:[#allocation6 + $0x160] sm:$0xff]
    %v1952 = vld [vmem:[#allocation6 + $0x168] sm:$0xff]
    %v1953 = vld [vmem:[#allocation6 + $0x170] sm:$0xff]
    %v1954 = vld [vmem:[#allocation6 + $0x178] sm:$0xff]
    %v1955 = vld [vmem:[#allocation6 + $0x180] sm:$0xff]
    %v1956 = vld [vmem:[#allocation6 + $0x188] sm:$0xff]
    %v1957 = vld [vmem:[#allocation6 + $0x190] sm:$0xff]
    %v1958 = vld [vmem:[#allocation6 + $0x198] sm:$0xff]
    %v1959 = vld [vmem:[#allocation6 + $0x1a0] sm:$0xff]
    %v1960 = vld [vmem:[#allocation6 + $0x1a8] sm:$0xff]
    %v1961 = vld [vmem:[#allocation6 + $0x1b0] sm:$0xff]
    %v1962 = vld [vmem:[#allocation6 + $0x1b8] sm:$0xff]
    %v1963 = vld [vmem:[#allocation6 + $0x1c0] sm:$0xff]
    %v1964 = vld [vmem:[#allocation6 + $0x1c8] sm:$0xff]
    %v1965 = vld [vmem:[#allocation6 + $0x1d0] sm:$0xff]
    %v1966 = vld [vmem:[#allocation6 + $0x1d8] sm:$0xff]
    %v1967 = vld [vmem:[#allocation6 + $0x1e0] sm:$0xff]
    %v1968 = vld [vmem:[#allocation6 + $0x1e8] sm:$0xff]
    %v1969 = vld [vmem:[#allocation6 + $0x1f0] sm:$0xff]
    %v1970 = vld [vmem:[#allocation6 + $0x1f8] sm:$0xff]
    %v1971 = vld [vmem:[#allocation8] sm:$0xff]
    %v1972 = vld [vmem:[#allocation8 + $0x8] sm:$0xff]
    %v1973 = vld [vmem:[#allocation8 + $0x10] sm:$0xff]
    %v1974 = vld [vmem:[#allocation8 + $0x18] sm:$0xff]
    %v1975 = vld [vmem:[#allocation8 + $0x20] sm:$0xff]
    %v1976 = vld [vmem:[#allocation8 + $0x28] sm:$0xff]
    %v1977 = vld [vmem:[#allocation8 + $0x30] sm:$0xff]
    %v1978 = vld [vmem:[#allocation8 + $0x38] sm:$0xff]
    %v1979 = vld [vmem:[#allocation8 + $0x40] sm:$0xff]
    %v1980 = vld [vmem:[#allocation8 + $0x48] sm:$0xff]
    %v1981 = vld [vmem:[#allocation8 + $0x50] sm:$0xff]
    %v1982 = vld [vmem:[#allocation8 + $0x58] sm:$0xff]
    %v1983 = vld [vmem:[#allocation8 + $0x60] sm:$0xff]
    %v1984 = vld [vmem:[#allocation8 + $0x68] sm:$0xff]
    %v1985 = vld [vmem:[#allocation8 + $0x70] sm:$0xff]
    %v1986 = vld [vmem:[#allocation8 + $0x78] sm:$0xff]
    %v1987 = vld [vmem:[#allocation8 + $0x80] sm:$0xff]
    %v1988 = vld [vmem:[#allocation8 + $0x88] sm:$0xff]
    %v1989 = vld [vmem:[#allocation8 + $0x90] sm:$0xff]
    %v1990 = vld [vmem:[#allocation8 + $0x98] sm:$0xff]
    %v1991 = vld [vmem:[#allocation8 + $0xa0] sm:$0xff]
    %v1992 = vld [vmem:[#allocation8 + $0xa8] sm:$0xff]
    %v1993 = vld [vmem:[#allocation8 + $0xb0] sm:$0xff]
    %v1994 = vld [vmem:[#allocation8 + $0xb8] sm:$0xff]
    %v1995 = vld [vmem:[#allocation8 + $0xc0] sm:$0xff]
    %v1996 = vld [vmem:[#allocation8 + $0xc8] sm:$0xff]
    %v1997 = vld [vmem:[#allocation8 + $0xd0] sm:$0xff]
    %v1998 = vld [vmem:[#allocation8 + $0xd8] sm:$0xff]
    %v1999 = vld [vmem:[#allocation8 + $0xe0] sm:$0xff]
    %v2000 = vld [vmem:[#allocation8 + $0xe8] sm:$0xff]
    %v2001 = vld [vmem:[#allocation8 + $0xf0] sm:$0xff]
    %v2002 = vld [vmem:[#allocation8 + $0xf8] sm:$0xff]
    %v2003 = vld [vmem:[#allocation8 + $0x100] sm:$0xff]
    %v2004 = vld [vmem:[#allocation8 + $0x108] sm:$0xff]
    %v2005 = vld [vmem:[#allocation8 + $0x110] sm:$0xff]
    %v2006 = vld [vmem:[#allocation8 + $0x118] sm:$0xff]
    %v2007 = vld [vmem:[#allocation8 + $0x120] sm:$0xff]
    %v2008 = vld [vmem:[#allocation8 + $0x128] sm:$0xff]
    %v2009 = vld [vmem:[#allocation8 + $0x130] sm:$0xff]
    %v2010 = vld [vmem:[#allocation8 + $0x138] sm:$0xff]
    %v2011 = vld [vmem:[#allocation8 + $0x140] sm:$0xff]
    %v2012 = vld [vmem:[#allocation8 + $0x148] sm:$0xff]
    %v2013 = vld [vmem:[#allocation8 + $0x150] sm:$0xff]
    %v2014 = vld [vmem:[#allocation8 + $0x158] sm:$0xff]
    %v2015 = vld [vmem:[#allocation8 + $0x160] sm:$0xff]
    %v2016 = vld [vmem:[#allocation8 + $0x168] sm:$0xff]
    %v2017 = vld [vmem:[#allocation8 + $0x170] sm:$0xff]
    %v2018 = vld [vmem:[#allocation8 + $0x178] sm:$0xff]
    %v2019 = vld [vmem:[#allocation8 + $0x180] sm:$0xff]
    %v2020 = vld [vmem:[#allocation8 + $0x188] sm:$0xff]
    %v2021 = vld [vmem:[#allocation8 + $0x190] sm:$0xff]
    %v2022 = vld [vmem:[#allocation8 + $0x198] sm:$0xff]
    %v2023 = vld [vmem:[#allocation8 + $0x1a0] sm:$0xff]
    %v2024 = vld [vmem:[#allocation8 + $0x1a8] sm:$0xff]
    %v2025 = vld [vmem:[#allocation8 + $0x1b0] sm:$0xff]
    %v2026 = vld [vmem:[#allocation8 + $0x1b8] sm:$0xff]
    %v2027 = vld [vmem:[#allocation8 + $0x1c0] sm:$0xff]
    %v2028 = vld [vmem:[#allocation8 + $0x1c8] sm:$0xff]
    %v2029 = vld [vmem:[#allocation8 + $0x1d0] sm:$0xff]
    %v2030 = vld [vmem:[#allocation8 + $0x1d8] sm:$0xff]
    %v2031 = vld [vmem:[#allocation8 + $0x1e0] sm:$0xff]
    %v2032 = vld [vmem:[#allocation8 + $0x1e8] sm:$0xff]
    %v2033 = vld [vmem:[#allocation8 + $0x1f0] sm:$0xff]
    %v2034 = vld [vmem:[#allocation8 + $0x1f8] sm:$0xff]
    %v2035 = vld [vmem:[%s6] sm:$0xf]
    %v2036 = vld [vmem:[#allocation3] sm:$0xff]
    %v2037 = vld [vmem:[#allocation3 + $0x8] sm:$0xff]
    %v2038 = vld [vmem:[#allocation3 + $0x10] sm:$0xff]
    %v2039 = vld [vmem:[#allocation3 + $0x18] sm:$0xff]
    %v2040 = vld [vmem:[#allocation3 + $0x20] sm:$0xff]
    %v2041 = vld [vmem:[#allocation3 + $0x28] sm:$0xff]
    %v2042 = vld [vmem:[#allocation3 + $0x30] sm:$0xff]
    %v2043 = vld [vmem:[#allocation3 + $0x38] sm:$0xff]
    %v2045 = vlaneseq
    %v2046 = vshrl.u32 %v2045, 7
    %v2047 = vsub.s32 0, %v2046
    %v2048 = vrot.slane %v2035, %v2047
    %v2049 = vlaneseq
    %v2050 = vshrl.u32 %v2049, 7
    %v2051 = vsub.s32 1, %v2050
    %v2052 = vrot.slane %v2035, %v2051
    %v2053 = vlaneseq
    %v2054 = vshrl.u32 %v2053, 7
    %v2055 = vsub.s32 2, %v2054
    %v2056 = vrot.slane %v2035, %v2055
    %v2057 = vlaneseq
    %v2058 = vshrl.u32 %v2057, 7
    %v2059 = vsub.s32 3, %v2058
    %v2060 = vrot.slane %v2035, %v2059
    %2065 = vmatprep.subr.mxu0 %v1908
    %2066 = vmatpush1.msra.mxu0 %v1907
    %2067 = vmatprep.subr.mxu0 %v1912
    %2068 = vmatpush1.msra.mxu0 %v1911
    %2069 = vmatprep.subr.mxu0 %v1916
    %2070 = vmatpush1.msra.mxu0 %v1915
    %2071 = vmatprep.subr.mxu0 %v1920
    %2072 = vmatpush1.msra.mxu0 %v1919
    %2073 = vmatprep.subr.mxu0 %v1924
    %2074 = vmatpush1.msra.mxu0 %v1923
    %2075 = vmatprep.subr.mxu0 %v1928
    %2076 = vmatpush1.msra.mxu0 %v1927
    %2077 = vmatprep.subr.mxu0 %v1932
    %2078 = vmatpush1.msra.mxu0 %v1931
    %2079 = vmatprep.subr.mxu0 %v1936
    %2080 = vmatpush1.msra.mxu0 %v1935
    %2081 = vmatprep.subr.mxu0 %v1940
    %2082 = vmatpush1.msra.mxu0 %v1939
    %2083 = vmatprep.subr.mxu0 %v1944
    %2084 = vmatpush1.msra.mxu0 %v1943
    %2085 = vmatprep.subr.mxu0 %v1948
    %2086 = vmatpush1.msra.mxu0 %v1947
    %2087 = vmatprep.subr.mxu0 %v1952
    %2088 = vmatpush1.msra.mxu0 %v1951
    %2089 = vmatprep.subr.mxu0 %v1956
    %2090 = vmatpush1.msra.mxu0 %v1955
    %2091 = vmatprep.subr.mxu0 %v1960
    %2092 = vmatpush1.msra.mxu0 %v1959
    %2093 = vmatprep.subr.mxu0 %v1964
    %2094 = vmatpush1.msra.mxu0 %v1963
    %2095 = vmatprep.subr.mxu0 %v1968
    %2096 = vmatpush1.msra.mxu0 %v1967
    %2097 = vmatprep.subr.mxu0 0.0
    %2098 = vmatpush1.msra.mxu0 0.0
    %2099 = vmatprep.subr.mxu0 0.0
    %2100 = vmatpush1.msra.mxu0 0.0
    %2101 = vmatprep.subr.mxu0 0.0
    %2102 = vmatpush1.msra.mxu0 0.0
    %2103 = vmatprep.subr.mxu0 0.0
    %2104 = vmatpush1.msra.mxu0 0.0
    %2105 = vmatprep.subr.mxu0 0.0
    %2106 = vmatpush1.msra.mxu0 0.0
    %2107 = vmatprep.subr.mxu0 0.0
    %2108 = vmatpush1.msra.mxu0 0.0
    %2109 = vmatprep.subr.mxu0 0.0
    %2110 = vmatpush1.msra.mxu0 0.0
    %2111 = vmatprep.subr.mxu0 0.0
    %2112 = vmatpush1.msra.mxu0 0.0
    %2113 = vmatprep.subr.mxu0 0.0
    %2114 = vmatpush1.msra.mxu0 0.0
    %2115 = vmatprep.subr.mxu0 0.0
    %2116 = vmatpush1.msra.mxu0 0.0
    %2117 = vmatprep.subr.mxu0 0.0
    %2118 = vmatpush1.msra.mxu0 0.0
    %2119 = vmatprep.subr.mxu0 0.0
    %2120 = vmatpush1.msra.mxu0 0.0
    %2121 = vmatprep.subr.mxu0 0.0
    %2122 = vmatpush1.msra.mxu0 0.0
    %2123 = vmatprep.subr.mxu0 0.0
    %2124 = vmatpush1.msra.mxu0 0.0
    %2125 = vmatprep.subr.mxu0 0.0
    %2126 = vmatpush1.msra.mxu0 0.0
    %2127 = vmatprep.subr.mxu0 0.0
    %2128 = vmatpush1.msra.mxu0 0.0
    %2129 = vmatprep.mubr.f32.mxu0 0.0
    %2130 = vmatmul.mubr.f32.gmra.mrb[0].mxu0 %v2036
    %v2131 = vpop.f32.mrb[0].mxu0
    %v2132 = vadd.f32 %v2048, %v2131
    %v2133 = vpop.f32.mrb[0].mxu0
    %v2134 = vadd.f32 %v2052, %v2133
    %2135 = vmatprep.mubr.f32.mxu0 0.0
    %2136 = vmatmul.mubr.f32.gmra.mrb[0].mxu0 %v2037
    %v2137 = vpop.f32.mrb[0].mxu0
    %v2138 = vadd.f32 %v2048, %v2137
    %v2139 = vpop.f32.mrb[0].mxu0
    %v2140 = vadd.f32 %v2052, %v2139
    %2141 = vmatprep.mubr.f32.mxu0 0.0
    %2142 = vmatmul.mubr.f32.gmra.mrb[0].mxu0 %v2038
    %v2143 = vpop.f32.mrb[0].mxu0
    %v2144 = vadd.f32 %v2048, %v2143
    %v2145 = vpop.f32.mrb[0].mxu0
    %v2146 = vadd.f32 %v2052, %v2145
    %2147 = vmatprep.mubr.f32.mxu0 0.0
    %2148 = vmatmul.mubr.f32.gmra.mrb[0].mxu0 %v2039
    %v2149 = vpop.f32.mrb[0].mxu0
    %v2150 = vadd.f32 %v2048, %v2149
    %v2151 = vpop.f32.mrb[0].mxu0
    %v2152 = vadd.f32 %v2052, %v2151
    %2153 = vmatprep.mubr.f32.mxu0 0.0
    %2154 = vmatmul.mubr.f32.gmra.mrb[0].mxu0 %v2040
    %v2155 = vpop.f32.mrb[0].mxu0
    %v2156 = vadd.f32 %v2048, %v2155
    %v2157 = vpop.f32.mrb[0].mxu0
    %v2158 = vadd.f32 %v2052, %v2157
    %2159 = vmatprep.mubr.f32.mxu0 0.0
    %2160 = vmatmul.mubr.f32.gmra.mrb[0].mxu0 %v2041
    %v2161 = vpop.f32.mrb[0].mxu0
    %v2162 = vadd.f32 %v2048, %v2161
    %v2163 = vpop.f32.mrb[0].mxu0
    %v2164 = vadd.f32 %v2052, %v2163
    %2165 = vmatprep.mubr.f32.mxu0 0.0
    %2166 = vmatmul.mubr.f32.gmra.mrb[0].mxu0 %v2042
    %v2167 = vpop.f32.mrb[0].mxu0
    %v2168 = vadd.f32 %v2048, %v2167
    %v2169 = vpop.f32.mrb[0].mxu0
    %v2170 = vadd.f32 %v2052, %v2169
    %2171 = vmatprep.mubr.f32.mxu0 0.0
    %2172 = vmatmul.mubr.f32.gmra.mrb[0].mxu0 %v2043
    %v2173 = vpop.f32.mrb[0].mxu0
    %v2174 = vadd.f32 %v2048, %v2173
    %v2175 = vpop.f32.mrb[0].mxu0
    %v2176 = vadd.f32 %v2052, %v2175
    %2177 = vdwg.mxu0
    %2178 = vmatprep.subr.mxu0 %v1910
    %2179 = vmatpush1.msra.mxu0 %v1909
    %2180 = vmatprep.subr.mxu0 %v1914
    %2181 = vmatpush1.msra.mxu0 %v1913
    %2182 = vmatprep.subr.mxu0 %v1918
    %2183 = vmatpush1.msra.mxu0 %v1917
    %2184 = vmatprep.subr.mxu0 %v1922
    %2185 = vmatpush1.msra.mxu0 %v1921
    %2186 = vmatprep.subr.mxu0 %v1926
    %2187 = vmatpush1.msra.mxu0 %v1925
    %2188 = vmatprep.subr.mxu0 %v1930
    %2189 = vmatpush1.msra.mxu0 %v1929
    %2190 = vmatprep.subr.mxu0 %v1934
    %2191 = vmatpush1.msra.mxu0 %v1933
    %2192 = vmatprep.subr.mxu0 %v1938
    %2193 = vmatpush1.msra.mxu0 %v1937
    %2194 = vmatprep.subr.mxu0 %v1942
    %2195 = vmatpush1.msra.mxu0 %v1941
    %2196 = vmatprep.subr.mxu0 %v1946
    %2197 = vmatpush1.msra.mxu0 %v1945
    %2198 = vmatprep.subr.mxu0 %v1950
    %2199 = vmatpush1.msra.mxu0 %v1949
    %2200 = vmatprep.subr.mxu0 %v1954
    %2201 = vmatpush1.msra.mxu0 %v1953
    %2202 = vmatprep.subr.mxu0 %v1958
    %2203 = vmatpush1.msra.mxu0 %v1957
    %2204 = vmatprep.subr.mxu0 %v1962
    %2205 = vmatpush1.msra.mxu0 %v1961
    %2206 = vmatprep.subr.mxu0 %v1966
    %2207 = vmatpush1.msra.mxu0 %v1965
    %2208 = vmatprep.subr.mxu0 %v1970
    %2209 = vmatpush1.msra.mxu0 %v1969
    %2210 = vmatprep.subr.mxu0 0.0
    %2211 = vmatpush1.msra.mxu0 0.0
    %2212 = vmatprep.subr.mxu0 0.0
    %2213 = vmatpush1.msra.mxu0 0.0
    %2214 = vmatprep.subr.mxu0 0.0
    %2215 = vmatpush1.msra.mxu0 0.0
    %2216 = vmatprep.subr.mxu0 0.0
    %2217 = vmatpush1.msra.mxu0 0.0
    %2218 = vmatprep.subr.mxu0 0.0
    %2219 = vmatpush1.msra.mxu0 0.0
    %2220 = vmatprep.subr.mxu0 0.0
    %2221 = vmatpush1.msra.mxu0 0.0
    %2222 = vmatprep.subr.mxu0 0.0
    %2223 = vmatpush1.msra.mxu0 0.0
    %2224 = vmatprep.subr.mxu0 0.0
    %2225 = vmatpush1.msra.mxu0 0.0
    %2226 = vmatprep.subr.mxu0 0.0
    %2227 = vmatpush1.msra.mxu0 0.0
    %2228 = vmatprep.subr.mxu0 0.0
    %2229 = vmatpush1.msra.mxu0 0.0
    %2230 = vmatprep.subr.mxu0 0.0
    %2231 = vmatpush1.msra.mxu0 0.0
    %2232 = vmatprep.subr.mxu0 0.0
    %2233 = vmatpush1.msra.mxu0 0.0
    %2234 = vmatprep.subr.mxu0 0.0
    %2235 = vmatpush1.msra.mxu0 0.0
    %2236 = vmatprep.subr.mxu0 0.0
    %2237 = vmatpush1.msra.mxu0 0.0
    %2238 = vmatprep.subr.mxu0 0.0
    %2239 = vmatpush1.msra.mxu0 0.0
    %2240 = vmatprep.subr.mxu0 0.0
    %2241 = vmatpush1.msra.mxu0 0.0
    %2242 = vmatprep.mubr.f32.mxu0 0.0
    %2243 = vmatmul.mubr.f32.gmra.mrb[0].mxu0 %v2036
    %v2244 = vpop.f32.mrb[0].mxu0
    %v2245 = vadd.f32 %v2056, %v2244
    %v2246 = vpop.f32.mrb[0].mxu0
    %v2247 = vadd.f32 %v2060, %v2246
    %2248 = vmatprep.mubr.f32.mxu0 0.0
    %2249 = vmatmul.mubr.f32.gmra.mrb[0].mxu0 %v2037
    %v2250 = vpop.f32.mrb[0].mxu0
    %v2251 = vadd.f32 %v2056, %v2250
    %v2252 = vpop.f32.mrb[0].mxu0
    %v2253 = vadd.f32 %v2060, %v2252
    %2254 = vmatprep.mubr.f32.mxu0 0.0
    %2255 = vmatmul.mubr.f32.gmra.mrb[0].mxu0 %v2038
    %v2256 = vpop.f32.mrb[0].mxu0
    %v2257 = vadd.f32 %v2056, %v2256
    %v2258 = vpop.f32.mrb[0].mxu0
    %v2259 = vadd.f32 %v2060, %v2258
    %2260 = vmatprep.mubr.f32.mxu0 0.0
    %2261 = vmatmul.mubr.f32.gmra.mrb[0].mxu0 %v2039
    %v2262 = vpop.f32.mrb[0].mxu0
    %v2263 = vadd.f32 %v2056, %v2262
    %v2264 = vpop.f32.mrb[0].mxu0
    %v2265 = vadd.f32 %v2060, %v2264
    %2266 = vmatprep.mubr.f32.mxu0 0.0
    %2267 = vmatmul.mubr.f32.gmra.mrb[0].mxu0 %v2040
    %v2268 = vpop.f32.mrb[0].mxu0
    %v2269 = vadd.f32 %v2056, %v2268
    %v2270 = vpop.f32.mrb[0].mxu0
    %v2271 = vadd.f32 %v2060, %v2270
    %2272 = vmatprep.mubr.f32.mxu0 0.0
    %2273 = vmatmul.mubr.f32.gmra.mrb[0].mxu0 %v2041
    %v2274 = vpop.f32.mrb[0].mxu0
    %v2275 = vadd.f32 %v2056, %v2274
    %v2276 = vpop.f32.mrb[0].mxu0
    %v2277 = vadd.f32 %v2060, %v2276
    %2278 = vmatprep.mubr.f32.mxu0 0.0
    %2279 = vmatmul.mubr.f32.gmra.mrb[0].mxu0 %v2042
    %v2280 = vpop.f32.mrb[0].mxu0
    %v2281 = vadd.f32 %v2056, %v2280
    %v2282 = vpop.f32.mrb[0].mxu0
    %v2283 = vadd.f32 %v2060, %v2282
    %2284 = vmatprep.mubr.f32.mxu0 0.0
    %2285 = vmatmul.mubr.f32.gmra.mrb[0].mxu0 %v2043
    %v2286 = vpop.f32.mrb[0].mxu0
    %v2287 = vadd.f32 %v2056, %v2286
    %v2288 = vpop.f32.mrb[0].mxu0
    %v2289 = vadd.f32 %v2060, %v2288
    %2290 = vdwg.mxu0
    %2291 = vst [vmem:[#allocation2] sm:$0xff] %v2132
    %2292 = vst [vmem:[#allocation2 + $0x8] sm:$0xff] %v2134
    %2293 = vst [vmem:[#allocation2 + $0x10] sm:$0xff] %v2245
    %2294 = vst [vmem:[#allocation2 + $0x18] sm:$0xff] %v2247
    %2295 = vst [vmem:[#allocation2 + $0x20] sm:$0xff] %v2138
    %2296 = vst [vmem:[#allocation2 + $0x28] sm:$0xff] %v2140
    %2297 = vst [vmem:[#allocation2 + $0x30] sm:$0xff] %v2251
    %2298 = vst [vmem:[#allocation2 + $0x38] sm:$0xff] %v2253
    %2299 = vst [vmem:[#allocation2 + $0x40] sm:$0xff] %v2144
    %2300 = vst [vmem:[#allocation2 + $0x48] sm:$0xff] %v2146
    %2301 = vst [vmem:[#allocation2 + $0x50] sm:$0xff] %v2257
    %2302 = vst [vmem:[#allocation2 + $0x58] sm:$0xff] %v2259
    %2303 = vst [vmem:[#allocation2 + $0x60] sm:$0xff] %v2150
    %2304 = vst [vmem:[#allocation2 + $0x68] sm:$0xff] %v2152
    %2305 = vst [vmem:[#allocation2 + $0x70] sm:$0xff] %v2263
    %2306 = vst [vmem:[#allocation2 + $0x78] sm:$0xff] %v2265
    %2307 = vst [vmem:[#allocation2 + $0x80] sm:$0xff] %v2156
    %2308 = vst [vmem:[#allocation2 + $0x88] sm:$0xff] %v2158
    %2309 = vst [vmem:[#allocation2 + $0x90] sm:$0xff] %v2269
    %2310 = vst [vmem:[#allocation2 + $0x98] sm:$0xff] %v2271
    %2311 = vst [vmem:[#allocation2 + $0xa0] sm:$0xff] %v2162
    %2312 = vst [vmem:[#allocation2 + $0xa8] sm:$0xff] %v2164
    %2313 = vst [vmem:[#allocation2 + $0xb0] sm:$0xff] %v2275
    %2314 = vst [vmem:[#allocation2 + $0xb8] sm:$0xff] %v2277
    %2315 = vst [vmem:[#allocation2 + $0xc0] sm:$0xff] %v2168
    %2316 = vst [vmem:[#allocation2 + $0xc8] sm:$0xff] %v2170
    %2317 = vst [vmem:[#allocation2 + $0xd0] sm:$0xff] %v2281
    %2318 = vst [vmem:[#allocation2 + $0xd8] sm:$0xff] %v2283
    %2319 = vst [vmem:[#allocation2 + $0xe0] sm:$0xff] %v2174
    %2320 = vst [vmem:[#allocation2 + $0xe8] sm:$0xff] %v2176
    %2321 = vst [vmem:[#allocation2 + $0xf0] sm:$0xff] %v2287
    %2322 = vst [vmem:[#allocation2 + $0xf8] sm:$0xff] %v2289
    %v2323 = vld [vmem:[%s500] sm:$0xff]
    %v2324 = vld [vmem:[%s500 + $0x8] sm:$0xff]
    %v2325 = vld [vmem:[%s500 + $0x10] sm:$0xff]
    %v2326 = vld [vmem:[%s500 + $0x18] sm:$0xff]
    %2327 = vmatprep.subr.mxu0 %v1972
    %2328 = vmatpush1.msra.mxu0 %v1971
    %2329 = vmatprep.subr.mxu0 %v1976
    %2330 = vmatpush1.msra.mxu0 %v1975
    %2331 = vmatprep.subr.mxu0 %v1980
    %2332 = vmatpush1.msra.mxu0 %v1979
    %2333 = vmatprep.subr.mxu0 %v1984
    %2334 = vmatpush1.msra.mxu0 %v1983
    %2335 = vmatprep.subr.mxu0 %v1988
    %2336 = vmatpush1.msra.mxu0 %v1987
    %2337 = vmatprep.subr.mxu0 %v1992
    %2338 = vmatpush1.msra.mxu0 %v1991
    %2339 = vmatprep.subr.mxu0 %v1996
    %2340 = vmatpush1.msra.mxu0 %v1995
    %2341 = vmatprep.subr.mxu0 %v2000
    %2342 = vmatpush1.msra.mxu0 %v1999
    %2343 = vmatprep.subr.mxu0 %v2004
    %2344 = vmatpush1.msra.mxu0 %v2003
    %2345 = vmatprep.subr.mxu0 %v2008
    %2346 = vmatpush1.msra.mxu0 %v2007
    %2347 = vmatprep.subr.mxu0 %v2012
    %2348 = vmatpush1.msra.mxu0 %v2011
    %2349 = vmatprep.subr.mxu0 %v2016
    %2350 = vmatpush1.msra.mxu0 %v2015
    %2351 = vmatprep.subr.mxu0 %v2020
    %2352 = vmatpush1.msra.mxu0 %v2019
    %2353 = vmatprep.subr.mxu0 %v2024
    %2354 = vmatpush1.msra.mxu0 %v2023
    %2355 = vmatprep.subr.mxu0 %v2028
    %2356 = vmatpush1.msra.mxu0 %v2027
    %2357 = vmatprep.subr.mxu0 %v2032
    %2358 = vmatpush1.msra.mxu0 %v2031
    %2359 = vmatprep.subr.mxu0 0.0
    %2360 = vmatpush1.msra.mxu0 0.0
    %2361 = vmatprep.subr.mxu0 0.0
    %2362 = vmatpush1.msra.mxu0 0.0
    %2363 = vmatprep.subr.mxu0 0.0
    %2364 = vmatpush1.msra.mxu0 0.0
    %2365 = vmatprep.subr.mxu0 0.0
    %2366 = vmatpush1.msra.mxu0 0.0
    %2367 = vmatprep.subr.mxu0 0.0
    %2368 = vmatpush1.msra.mxu0 0.0
    %2369 = vmatprep.subr.mxu0 0.0
    %2370 = vmatpush1.msra.mxu0 0.0
    %2371 = vmatprep.subr.mxu0 0.0
    %2372 = vmatpush1.msra.mxu0 0.0
    %2373 = vmatprep.subr.mxu0 0.0
    %2374 = vmatpush1.msra.mxu0 0.0
    %2375 = vmatprep.subr.mxu0 0.0
    %2376 = vmatpush1.msra.mxu0 0.0
    %2377 = vmatprep.subr.mxu0 0.0
    %2378 = vmatpush1.msra.mxu0 0.0
    %2379 = vmatprep.subr.mxu0 0.0
    %2380 = vmatpush1.msra.mxu0 0.0
    %2381 = vmatprep.subr.mxu0 0.0
    %2382 = vmatpush1.msra.mxu0 0.0
    %2383 = vmatprep.subr.mxu0 0.0
    %2384 = vmatpush1.msra.mxu0 0.0
    %2385 = vmatprep.subr.mxu0 0.0
    %2386 = vmatpush1.msra.mxu0 0.0
    %2387 = vmatprep.subr.mxu0 0.0
    %2388 = vmatpush1.msra.mxu0 0.0
    %2389 = vmatprep.subr.mxu0 0.0
    %2390 = vmatpush1.msra.mxu0 0.0
    %2391 = vmatprep.mubr.f32.mxu0 0.0
    %2392 = vmatmul.mubr.f32.gmra.mrb[0].mxu0 0.0
    %v2393 = vpop.f32.mrb[0].mxu0
    %v2394 = vadd.f32 0.0, %v2393
    %v2395 = vpop.f32.mrb[0].mxu0
    %v2396 = vadd.f32 0.0, %v2395
    %2397 = vdwg.mxu0
    %2398 = vmatprep.subr.mxu0 %v1974
    %2399 = vmatpush1.msra.mxu0 %v1973
    %2400 = vmatprep.subr.mxu0 %v1978
    %2401 = vmatpush1.msra.mxu0 %v1977
    %2402 = vmatprep.subr.mxu0 %v1982
    %2403 = vmatpush1.msra.mxu0 %v1981
    %2404 = vmatprep.subr.mxu0 %v1986
    %2405 = vmatpush1.msra.mxu0 %v1985
    %2406 = vmatprep.subr.mxu0 %v1990
    %2407 = vmatpush1.msra.mxu0 %v1989
    %2408 = vmatprep.subr.mxu0 %v1994
    %2409 = vmatpush1.msra.mxu0 %v1993
    %2410 = vmatprep.subr.mxu0 %v1998
    %2411 = vmatpush1.msra.mxu0 %v1997
    %2412 = vmatprep.subr.mxu0 %v2002
    %2413 = vmatpush1.msra.mxu0 %v2001
    %2414 = vmatprep.subr.mxu0 %v2006
    %2415 = vmatpush1.msra.mxu0 %v2005
    %2416 = vmatprep.subr.mxu0 %v2010
    %2417 = vmatpush1.msra.mxu0 %v2009
    %2418 = vmatprep.subr.mxu0 %v2014
    %2419 = vmatpush1.msra.mxu0 %v2013
    %2420 = vmatprep.subr.mxu0 %v2018
    %2421 = vmatpush1.msra.mxu0 %v2017
    %2422 = vmatprep.subr.mxu0 %v2022
    %2423 = vmatpush1.msra.mxu0 %v2021
    %2424 = vmatprep.subr.mxu0 %v2026
    %2425 = vmatpush1.msra.mxu0 %v2025
    %2426 = vmatprep.subr.mxu0 %v2030
    %2427 = vmatpush1.msra.mxu0 %v2029
    %2428 = vmatprep.subr.mxu0 %v2034
    %2429 = vmatpush1.msra.mxu0 %v2033
    %2430 = vmatprep.subr.mxu0 0.0
    %2431 = vmatpush1.msra.mxu0 0.0
    %2432 = vmatprep.subr.mxu0 0.0
    %2433 = vmatpush1.msra.mxu0 0.0
    %2434 = vmatprep.subr.mxu0 0.0
    %2435 = vmatpush1.msra.mxu0 0.0
    %2436 = vmatprep.subr.mxu0 0.0
    %2437 = vmatpush1.msra.mxu0 0.0
    %2438 = vmatprep.subr.mxu0 0.0
    %2439 = vmatpush1.msra.mxu0 0.0
    %2440 = vmatprep.subr.mxu0 0.0
    %2441 = vmatpush1.msra.mxu0 0.0
    %2442 = vmatprep.subr.mxu0 0.0
    %2443 = vmatpush1.msra.mxu0 0.0
    %2444 = vmatprep.subr.mxu0 0.0
    %2445 = vmatpush1.msra.mxu0 0.0
    %2446 = vmatprep.subr.mxu0 0.0
    %2447 = vmatpush1.msra.mxu0 0.0
    %2448 = vmatprep.subr.mxu0 0.0
    %2449 = vmatpush1.msra.mxu0 0.0
    %2450 = vmatprep.subr.mxu0 0.0
    %2451 = vmatpush1.msra.mxu0 0.0
    %2452 = vmatprep.subr.mxu0 0.0
    %2453 = vmatpush1.msra.mxu0 0.0
    %2454 = vmatprep.subr.mxu0 0.0
    %2455 = vmatpush1.msra.mxu0 0.0
    %2456 = vmatprep.subr.mxu0 0.0
    %2457 = vmatpush1.msra.mxu0 0.0
    %2458 = vmatprep.subr.mxu0 0.0
    %2459 = vmatpush1.msra.mxu0 0.0
    %2460 = vmatprep.subr.mxu0 0.0
    %2461 = vmatpush1.msra.mxu0 0.0
    %2462 = vmatprep.mubr.f32.mxu0 0.0
    %2463 = vmatmul.mubr.f32.gmra.mrb[0].mxu0 0.0
    %v2464 = vpop.f32.mrb[0].mxu0
    %v2465 = vadd.f32 0.0, %v2464
    %v2466 = vpop.f32.mrb[0].mxu0
    %v2467 = vadd.f32 0.0, %v2466
    %2468 = vdwg.mxu0
    %v2469 = vadd.f32 %v2323, %v2394
    %v2470 = vadd.f32 %v2324, %v2396
    %v2471 = vadd.f32 %v2325, %v2465
    %v2472 = vadd.f32 %v2326, %v2467
    %v2473 = vsub.f32 0.0, %v2469
    %v2474 = vmul.f32 %v2473, 1.442695
    %v2475 = vpow.pop %v2474
    %v2476 = vadd.f32 %v2475, 1.0
    %v2477 = vrcp.pop %v2476
    %v2478 = vsub.f32 0.0, %v2470
    %v2479 = vmul.f32 %v2478, 1.442695
    %v2480 = vpow.pop %v2479
    %v2481 = vadd.f32 %v2480, 1.0
    %v2482 = vrcp.pop %v2481
    %v2483 = vtanh.pop %v2471
    %v2484 = vsub.f32 0.0, %v2472
    %v2485 = vmul.f32 %v2484, 1.442695
    %v2486 = vpow.pop %v2485
    %v2487 = vadd.f32 %v2486, 1.0
    %v2488 = vrcp.pop %v2487
    %v2489 = vmul.f32 %v2482, 0.0
    %v2490 = vmul.f32 %v2477, %v2483
    %v2491 = vadd.f32 %v2489, %v2490
    %v2492 = vtanh.pop %v2491
    %v2493 = vmul.f32 %v2488, %v2492
    %2494 = vst [vmem:[#allocation3] sm:$0xff] %v2493
    %v2495 = vld [vmem:[%s675] sm:$0xff]
    %v2496 = vld [vmem:[%s675 + $0x8] sm:$0xff]
    %v2497 = vld [vmem:[%s675 + $0x10] sm:$0xff]
    %v2498 = vld [vmem:[%s675 + $0x18] sm:$0xff]
    %2499 = vmatprep.subr.mxu0 %v1972
    %2500 = vmatpush1.msra.mxu0 %v1971
    %2501 = vmatprep.subr.mxu0 %v1976
    %2502 = vmatpush1.msra.mxu0 %v1975
    %2503 = vmatprep.subr.mxu0 %v1980
    %2504 = vmatpush1.msra.mxu0 %v1979
    %2505 = vmatprep.subr.mxu0 %v1984
    %2506 = vmatpush1.msra.mxu0 %v1983
    %2507 = vmatprep.subr.mxu0 %v1988
    %2508 = vmatpush1.msra.mxu0 %v1987
    %2509 = vmatprep.subr.mxu0 %v1992
    %2510 = vmatpush1.msra.mxu0 %v1991
    %2511 = vmatprep.subr.mxu0 %v1996
    %2512 = vmatpush1.msra.mxu0 %v1995
    %2513 = vmatprep.subr.mxu0 %v2000
    %2514 = vmatpush1.msra.mxu0 %v1999
    %2515 = vmatprep.subr.mxu0 %v2004
    %2516 = vmatpush1.msra.mxu0 %v2003
    %2517 = vmatprep.subr.mxu0 %v2008
    %2518 = vmatpush1.msra.mxu0 %v2007
    %2519 = vmatprep.subr.mxu0 %v2012
    %2520 = vmatpush1.msra.mxu0 %v2011
    %2521 = vmatprep.subr.mxu0 %v2016
    %2522 = vmatpush1.msra.mxu0 %v2015
    %2523 = vmatprep.subr.mxu0 %v2020
    %2524 = vmatpush1.msra.mxu0 %v2019
    %2525 = vmatprep.subr.mxu0 %v2024
    %2526 = vmatpush1.msra.mxu0 %v2023
    %2527 = vmatprep.subr.mxu0 %v2028
    %2528 = vmatpush1.msra.mxu0 %v2027
    %2529 = vmatprep.subr.mxu0 %v2032
    %2530 = vmatpush1.msra.mxu0 %v2031
    %2531 = vmatprep.subr.mxu0 0.0
    %2532 = vmatpush1.msra.mxu0 0.0
    %2533 = vmatprep.subr.mxu0 0.0
    %2534 = vmatpush1.msra.mxu0 0.0
    %2535 = vmatprep.subr.mxu0 0.0
    %2536 = vmatpush1.msra.mxu0 0.0
    %2537 = vmatprep.subr.mxu0 0.0
    %2538 = vmatpush1.msra.mxu0 0.0
    %2539 = vmatprep.subr.mxu0 0.0
    %2540 = vmatpush1.msra.mxu0 0.0
    %2541 = vmatprep.subr.mxu0 0.0
    %2542 = vmatpush1.msra.mxu0 0.0
    %2543 = vmatprep.subr.mxu0 0.0
    %2544 = vmatpush1.msra.mxu0 0.0
    %2545 = vmatprep.subr.mxu0 0.0
    %2546 = vmatpush1.msra.mxu0 0.0
    %2547 = vmatprep.subr.mxu0 0.0
    %2548 = vmatpush1.msra.mxu0 0.0
    %2549 = vmatprep.subr.mxu0 0.0
    %2550 = vmatpush1.msra.mxu0 0.0
    %2551 = vmatprep.subr.mxu0 0.0
    %2552 = vmatpush1.msra.mxu0 0.0
    %2553 = vmatprep.subr.mxu0 0.0
    %2554 = vmatpush1.msra.mxu0 0.0
    %2555 = vmatprep.subr.mxu0 0.0
    %2556 = vmatpush1.msra.mxu0 0.0
    %2557 = vmatprep.subr.mxu0 0.0
    %2558 = vmatpush1.msra.mxu0 0.0
    %2559 = vmatprep.subr.mxu0 0.0
    %2560 = vmatpush1.msra.mxu0 0.0
    %2561 = vmatprep.subr.mxu0 0.0
    %2562 = vmatpush1.msra.mxu0 0.0
    %2563 = vmatprep.mubr.f32.mxu0 0.0
    %2564 = vmatmul.mubr.f32.gmra.mrb[0].mxu0 %v2493
    %v2565 = vpop.f32.mrb[0].mxu0
    %v2566 = vadd.f32 0.0, %v2565
    %v2567 = vpop.f32.mrb[0].mxu0
    %v2568 = vadd.f32 0.0, %v2567
    %2569 = vdwg.mxu0
    %2570 = vmatprep.subr.mxu0 %v1974
    %2571 = vmatpush1.msra.mxu0 %v1973
    %2572 = vmatprep.subr.mxu0 %v1978
    %2573 = vmatpush1.msra.mxu0 %v1977
    %2574 = vmatprep.subr.mxu0 %v1982
    %2575 = vmatpush1.msra.mxu0 %v1981
    %2576 = vmatprep.subr.mxu0 %v1986
    %2577 = vmatpush1.msra.mxu0 %v1985
    %2578 = vmatprep.subr.mxu0 %v1990
    %2579 = vmatpush1.msra.mxu0 %v1989
    %2580 = vmatprep.subr.mxu0 %v1994
    %2581 = vmatpush1.msra.mxu0 %v1993
    %2582 = vmatprep.subr.mxu0 %v1998
    %2583 = vmatpush1.msra.mxu0 %v1997
    %2584 = vmatprep.subr.mxu0 %v2002
    %2585 = vmatpush1.msra.mxu0 %v2001
    %2586 = vmatprep.subr.mxu0 %v2006
    %2587 = vmatpush1.msra.mxu0 %v2005
    %2588 = vmatprep.subr.mxu0 %v2010
    %2589 = vmatpush1.msra.mxu0 %v2009
    %2590 = vmatprep.subr.mxu0 %v2014
    %2591 = vmatpush1.msra.mxu0 %v2013
    %2592 = vmatprep.subr.mxu0 %v2018
    %2593 = vmatpush1.msra.mxu0 %v2017
    %2594 = vmatprep.subr.mxu0 %v2022
    %2595 = vmatpush1.msra.mxu0 %v2021
    %2596 = vmatprep.subr.mxu0 %v2026
    %2597 = vmatpush1.msra.mxu0 %v2025
    %2598 = vmatprep.subr.mxu0 %v2030
    %2599 = vmatpush1.msra.mxu0 %v2029
    %2600 = vmatprep.subr.mxu0 %v2034
    %2601 = vmatpush1.msra.mxu0 %v2033
    %2602 = vmatprep.subr.mxu0 0.0
    %2603 = vmatpush1.msra.mxu0 0.0
    %2604 = vmatprep.subr.mxu0 0.0
    %2605 = vmatpush1.msra.mxu0 0.0
    %2606 = vmatprep.subr.mxu0 0.0
    %2607 = vmatpush1.msra.mxu0 0.0
    %2608 = vmatprep.subr.mxu0 0.0
    %2609 = vmatpush1.msra.mxu0 0.0
    %2610 = vmatprep.subr.mxu0 0.0
    %2611 = vmatpush1.msra.mxu0 0.0
    %2612 = vmatprep.subr.mxu0 0.0
    %2613 = vmatpush1.msra.mxu0 0.0
    %2614 = vmatprep.subr.mxu0 0.0
    %2615 = vmatpush1.msra.mxu0 0.0
    %2616 = vmatprep.subr.mxu0 0.0
    %2617 = vmatpush1.msra.mxu0 0.0
    %2618 = vmatprep.subr.mxu0 0.0
    %2619 = vmatpush1.msra.mxu0 0.0
    %2620 = vmatprep.subr.mxu0 0.0
    %2621 = vmatpush1.msra.mxu0 0.0
    %2622 = vmatprep.subr.mxu0 0.0
    %2623 = vmatpush1.msra.mxu0 0.0
    %2624 = vmatprep.subr.mxu0 0.0
    %2625 = vmatpush1.msra.mxu0 0.0
    %2626 = vmatprep.subr.mxu0 0.0
    %2627 = vmatpush1.msra.mxu0 0.0
    %2628 = vmatprep.subr.mxu0 0.0
    %2629 = vmatpush1.msra.mxu0 0.0
    %2630 = vmatprep.subr.mxu0 0.0
    %2631 = vmatpush1.msra.mxu0 0.0
    %2632 = vmatprep.subr.mxu0 0.0
    %2633 = vmatpush1.msra.mxu0 0.0
    %2634 = vmatprep.mubr.f32.mxu0 0.0
    %2635 = vmatmul.mubr.f32.gmra.mrb[0].mxu0 %v2493
    %v2636 = vpop.f32.mrb[0].mxu0
    %v2637 = vadd.f32 0.0, %v2636
    %v2638 = vpop.f32.mrb[0].mxu0
    %v2639 = vadd.f32 0.0, %v2638
    %2640 = vdwg.mxu0
    %v2641 = vadd.f32 %v2495, %v2566
    %v2642 = vadd.f32 %v2496, %v2568
    %v2643 = vadd.f32 %v2497, %v2637
    %v2644 = vadd.f32 %v2498, %v2639
    %v2645 = vsub.f32 0.0, %v2641
    %v2646 = vmul.f32 %v2645, 1.442695
    %v2647 = vpow.pop %v2646
    %v2648 = vadd.f32 %v2647, 1.0
    %v2649 = vrcp.pop %v2648
    %v2650 = vsub.f32 0.0, %v2642
    %v2651 = vmul.f32 %v2650, 1.442695
    %v2652 = vpow.pop %v2651
    %v2653 = vadd.f32 %v2652, 1.0
    %v2654 = vrcp.pop %v2653
    %v2655 = vtanh.pop %v2643
    %v2656 = vsub.f32 0.0, %v2644
    %v2657 = vmul.f32 %v2656, 1.442695
    %v2658 = vpow.pop %v2657
    %v2659 = vadd.f32 %v2658, 1.0
    %v2660 = vrcp.pop %v2659
    %v2661 = vmul.f32 %v2654, %v2491
    %v2662 = vmul.f32 %v2649, %v2655
    %v2663 = vadd.f32 %v2661, %v2662
    %v2664 = vtanh.pop %v2663
    %v2665 = vmul.f32 %v2660, %v2664
    %2666 = vst [vmem:[%s847] sm:$0xff] %v2665
    %v2667 = vld [vmem:[%s851] sm:$0xff]
    %v2668 = vld [vmem:[%s851 + $0x8] sm:$0xff]
    %v2669 = vld [vmem:[%s851 + $0x10] sm:$0xff]
    %v2670 = vld [vmem:[%s851 + $0x18] sm:$0xff]
    %2671 = vmatprep.subr.mxu0 %v1972
    %2672 = vmatpush1.msra.mxu0 %v1971
    %2673 = vmatprep.subr.mxu0 %v1976
    %2674 = vmatpush1.msra.mxu0 %v1975
    %2675 = vmatprep.subr.mxu0 %v1980
    %2676 = vmatpush1.msra.mxu0 %v1979
    %2677 = vmatprep.subr.mxu0 %v1984
    %2678 = vmatpush1.msra.mxu0 %v1983
    %2679 = vmatprep.subr.mxu0 %v1988
    %2680 = vmatpush1.msra.mxu0 %v1987
    %2681 = vmatprep.subr.mxu0 %v1992
    %2682 = vmatpush1.msra.mxu0 %v1991
    %2683 = vmatprep.subr.mxu0 %v1996
    %2684 = vmatpush1.msra.mxu0 %v1995
    %2685 = vmatprep.subr.mxu0 %v2000
    %2686 = vmatpush1.msra.mxu0 %v1999
    %2687 = vmatprep.subr.mxu0 %v2004
    %2688 = vmatpush1.msra.mxu0 %v2003
    %2689 = vmatprep.subr.mxu0 %v2008
    %2690 = vmatpush1.msra.mxu0 %v2007
    %2691 = vmatprep.subr.mxu0 %v2012
    %2692 = vmatpush1.msra.mxu0 %v2011
    %2693 = vmatprep.subr.mxu0 %v2016
    %2694 = vmatpush1.msra.mxu0 %v2015
    %2695 = vmatprep.subr.mxu0 %v2020
    %2696 = vmatpush1.msra.mxu0 %v2019
    %2697 = vmatprep.subr.mxu0 %v2024
    %2698 = vmatpush1.msra.mxu0 %v2023
    %2699 = vmatprep.subr.mxu0 %v2028
    %2700 = vmatpush1.msra.mxu0 %v2027
    %2701 = vmatprep.subr.mxu0 %v2032
    %2702 = vmatpush1.msra.mxu0 %v2031
    %2703 = vmatprep.subr.mxu0 0.0
    %2704 = vmatpush1.msra.mxu0 0.0
    %2705 = vmatprep.subr.mxu0 0.0
    %2706 = vmatpush1.msra.mxu0 0.0
    %2707 = vmatprep.subr.mxu0 0.0
    %2708 = vmatpush1.msra.mxu0 0.0
    %2709 = vmatprep.subr.mxu0 0.0
    %2710 = vmatpush1.msra.mxu0 0.0
    %2711 = vmatprep.subr.mxu0 0.0
    %2712 = vmatpush1.msra.mxu0 0.0
    %2713 = vmatprep.subr.mxu0 0.0
    %2714 = vmatpush1.msra.mxu0 0.0
    %2715 = vmatprep.subr.mxu0 0.0
    %2716 = vmatpush1.msra.mxu0 0.0
    %2717 = vmatprep.subr.mxu0 0.0
    %2718 = vmatpush1.msra.mxu0 0.0
    %2719 = vmatprep.subr.mxu0 0.0
    %2720 = vmatpush1.msra.mxu0 0.0
    %2721 = vmatprep.subr.mxu0 0.0
    %2722 = vmatpush1.msra.mxu0 0.0
    %2723 = vmatprep.subr.mxu0 0.0
    %2724 = vmatpush1.msra.mxu0 0.0
    %2725 = vmatprep.subr.mxu0 0.0
    %2726 = vmatpush1.msra.mxu0 0.0
    %2727 = vmatprep.subr.mxu0 0.0
    %2728 = vmatpush1.msra.mxu0 0.0
    %2729 = vmatprep.subr.mxu0 0.0
    %2730 = vmatpush1.msra.mxu0 0.0
    %2731 = vmatprep.subr.mxu0 0.0
    %2732 = vmatpush1.msra.mxu0 0.0
    %2733 = vmatprep.subr.mxu0 0.0
    %2734 = vmatpush1.msra.mxu0 0.0
    %2735 = vmatprep.mubr.f32.mxu0 0.0
    %2736 = vmatmul.mubr.f32.gmra.mrb[0].mxu0 %v2665
    %v2737 = vpop.f32.mrb[0].mxu0
    %v2738 = vadd.f32 0.0, %v2737
    %v2739 = vpop.f32.mrb[0].mxu0
    %v2740 = vadd.f32 0.0, %v2739
    %2741 = vdwg.mxu0
    %2742 = vmatprep.subr.mxu0 %v1974
    %2743 = vmatpush1.msra.mxu0 %v1973
    %2744 = vmatprep.subr.mxu0 %v1978
    %2745 = vmatpush1.msra.mxu0 %v1977
    %2746 = vmatprep.subr.mxu0 %v1982
    %2747 = vmatpush1.msra.mxu0 %v1981
    %2748 = vmatprep.subr.mxu0 %v1986
    %2749 = vmatpush1.msra.mxu0 %v1985
    %2750 = vmatprep.subr.mxu0 %v1990
    %2751 = vmatpush1.msra.mxu0 %v1989
    %2752 = vmatprep.subr.mxu0 %v1994
    %2753 = vmatpush1.msra.mxu0 %v1993
    %2754 = vmatprep.subr.mxu0 %v1998
    %2755 = vmatpush1.msra.mxu0 %v1997
    %2756 = vmatprep.subr.mxu0 %v2002
    %2757 = vmatpush1.msra.mxu0 %v2001
    %2758 = vmatprep.subr.mxu0 %v2006
    %2759 = vmatpush1.msra.mxu0 %v2005
    %2760 = vmatprep.subr.mxu0 %v2010
    %2761 = vmatpush1.msra.mxu0 %v2009
    %2762 = vmatprep.subr.mxu0 %v2014
    %2763 = vmatpush1.msra.mxu0 %v2013
    %2764 = vmatprep.subr.mxu0 %v2018
    %2765 = vmatpush1.msra.mxu0 %v2017
    %2766 = vmatprep.subr.mxu0 %v2022
    %2767 = vmatpush1.msra.mxu0 %v2021
    %2768 = vmatprep.subr.mxu0 %v2026
    %2769 = vmatpush1.msra.mxu0 %v2025
    %2770 = vmatprep.subr.mxu0 %v2030
    %2771 = vmatpush1.msra.mxu0 %v2029
    %2772 = vmatprep.subr.mxu0 %v2034
    %2773 = vmatpush1.msra.mxu0 %v2033
    %2774 = vmatprep.subr.mxu0 0.0
    %2775 = vmatpush1.msra.mxu0 0.0
    %2776 = vmatprep.subr.mxu0 0.0
    %2777 = vmatpush1.msra.mxu0 0.0
    %2778 = vmatprep.subr.mxu0 0.0
    %2779 = vmatpush1.msra.mxu0 0.0
    %2780 = vmatprep.subr.mxu0 0.0
    %2781 = vmatpush1.msra.mxu0 0.0
    %2782 = vmatprep.subr.mxu0 0.0
    %2783 = vmatpush1.msra.mxu0 0.0
    %2784 = vmatprep.subr.mxu0 0.0
    %2785 = vmatpush1.msra.mxu0 0.0
    %2786 = vmatprep.subr.mxu0 0.0
    %2787 = vmatpush1.msra.mxu0 0.0
    %2788 = vmatprep.subr.mxu0 0.0
    %2789 = vmatpush1.msra.mxu0 0.0
    %2790 = vmatprep.subr.mxu0 0.0
    %2791 = vmatpush1.msra.mxu0 0.0
    %2792 = vmatprep.subr.mxu0 0.0
    %2793 = vmatpush1.msra.mxu0 0.0
    %2794 = vmatprep.subr.mxu0 0.0
    %2795 = vmatpush1.msra.mxu0 0.0
    %2796 = vmatprep.subr.mxu0 0.0
    %2797 = vmatpush1.msra.mxu0 0.0
    %2798 = vmatprep.subr.mxu0 0.0
    %2799 = vmatpush1.msra.mxu0 0.0
    %2800 = vmatprep.subr.mxu0 0.0
    %2801 = vmatpush1.msra.mxu0 0.0
    %2802 = vmatprep.subr.mxu0 0.0
    %2803 = vmatpush1.msra.mxu0 0.0
    %2804 = vmatprep.subr.mxu0 0.0
    %2805 = vmatpush1.msra.mxu0 0.0
    %2806 = vmatprep.mubr.f32.mxu0 0.0
    %2807 = vmatmul.mubr.f32.gmra.mrb[0].mxu0 %v2665
    %v2808 = vpop.f32.mrb[0].mxu0
    %v2809 = vadd.f32 0.0, %v2808
    %v2810 = vpop.f32.mrb[0].mxu0
    %v2811 = vadd.f32 0.0, %v2810
    %2812 = vdwg.mxu0
    %v2813 = vadd.f32 %v2667, %v2738
    %v2814 = vadd.f32 %v2668, %v2740
    %v2815 = vadd.f32 %v2669, %v2809
    %v2816 = vadd.f32 %v2670, %v2811
    %v2817 = vsub.f32 0.0, %v2813
    %v2818 = vmul.f32 %v2817, 1.442695
    %v2819 = vpow.pop %v2818
    %v2820 = vadd.f32 %v2819, 1.0
    %v2821 = vrcp.pop %v2820
    %v2822 = vsub.f32 0.0, %v2814
    %v2823 = vmul.f32 %v2822, 1.442695
    %v2824 = vpow.pop %v2823
    %v2825 = vadd.f32 %v2824, 1.0
    %v2826 = vrcp.pop %v2825
    %v2827 = vtanh.pop %v2815
    %v2828 = vsub.f32 0.0, %v2816
    %v2829 = vmul.f32 %v2828, 1.442695
    %v2830 = vpow.pop %v2829
    %v2831 = vadd.f32 %v2830, 1.0
    %v2832 = vrcp.pop %v2831
    %v2833 = vmul.f32 %v2826, %v2663
    %v2834 = vmul.f32 %v2821, %v2827
    %v2835 = vadd.f32 %v2833, %v2834
    %v2836 = vtanh.pop %v2835
    %v2837 = vmul.f32 %v2832, %v2836
    %2838 = vst [vmem:[%s1023] sm:$0xff] %v2837
    %v2839 = vld [vmem:[%s1027] sm:$0xff]
    %v2840 = vld [vmem:[%s1027 + $0x8] sm:$0xff]
    %v2841 = vld [vmem:[%s1027 + $0x10] sm:$0xff]
    %v2842 = vld [vmem:[%s1027 + $0x18] sm:$0xff]
    %2843 = vmatprep.subr.mxu0 %v1972
    %2844 = vmatpush1.msra.mxu0 %v1971
    %2845 = vmatprep.subr.mxu0 %v1976
    %2846 = vmatpush1.msra.mxu0 %v1975
    %2847 = vmatprep.subr.mxu0 %v1980
    %2848 = vmatpush1.msra.mxu0 %v1979
    %2849 = vmatprep.subr.mxu0 %v1984
    %2850 = vmatpush1.msra.mxu0 %v1983
    %2851 = vmatprep.subr.mxu0 %v1988
    %2852 = vmatpush1.msra.mxu0 %v1987
    %2853 = vmatprep.subr.mxu0 %v1992
    %2854 = vmatpush1.msra.mxu0 %v1991
    %2855 = vmatprep.subr.mxu0 %v1996
    %2856 = vmatpush1.msra.mxu0 %v1995
    %2857 = vmatprep.subr.mxu0 %v2000
    %2858 = vmatpush1.msra.mxu0 %v1999
    %2859 = vmatprep.subr.mxu0 %v2004
    %2860 = vmatpush1.msra.mxu0 %v2003
    %2861 = vmatprep.subr.mxu0 %v2008
    %2862 = vmatpush1.msra.mxu0 %v2007
    %2863 = vmatprep.subr.mxu0 %v2012
    %2864 = vmatpush1.msra.mxu0 %v2011
    %2865 = vmatprep.subr.mxu0 %v2016
    %2866 = vmatpush1.msra.mxu0 %v2015
    %2867 = vmatprep.subr.mxu0 %v2020
    %2868 = vmatpush1.msra.mxu0 %v2019
    %2869 = vmatprep.subr.mxu0 %v2024
    %2870 = vmatpush1.msra.mxu0 %v2023
    %2871 = vmatprep.subr.mxu0 %v2028
    %2872 = vmatpush1.msra.mxu0 %v2027
    %2873 = vmatprep.subr.mxu0 %v2032
    %2874 = vmatpush1.msra.mxu0 %v2031
    %2875 = vmatprep.subr.mxu0 0.0
    %2876 = vmatpush1.msra.mxu0 0.0
    %2877 = vmatprep.subr.mxu0 0.0
    %2878 = vmatpush1.msra.mxu0 0.0
    %2879 = vmatprep.subr.mxu0 0.0
    %2880 = vmatpush1.msra.mxu0 0.0
    %2881 = vmatprep.subr.mxu0 0.0
    %2882 = vmatpush1.msra.mxu0 0.0
    %2883 = vmatprep.subr.mxu0 0.0
    %2884 = vmatpush1.msra.mxu0 0.0
    %2885 = vmatprep.subr.mxu0 0.0
    %2886 = vmatpush1.msra.mxu0 0.0
    %2887 = vmatprep.subr.mxu0 0.0
    %2888 = vmatpush1.msra.mxu0 0.0
    %2889 = vmatprep.subr.mxu0 0.0
    %2890 = vmatpush1.msra.mxu0 0.0
    %2891 = vmatprep.subr.mxu0 0.0
    %2892 = vmatpush1.msra.mxu0 0.0
    %2893 = vmatprep.subr.mxu0 0.0
    %2894 = vmatpush1.msra.mxu0 0.0
    %2895 = vmatprep.subr.mxu0 0.0
    %2896 = vmatpush1.msra.mxu0 0.0
    %2897 = vmatprep.subr.mxu0 0.0
    %2898 = vmatpush1.msra.mxu0 0.0
    %2899 = vmatprep.subr.mxu0 0.0
    %2900 = vmatpush1.msra.mxu0 0.0
    %2901 = vmatprep.subr.mxu0 0.0
    %2902 = vmatpush1.msra.mxu0 0.0
    %2903 = vmatprep.subr.mxu0 0.0
    %2904 = vmatpush1.msra.mxu0 0.0
    %2905 = vmatprep.subr.mxu0 0.0
    %2906 = vmatpush1.msra.mxu0 0.0
    %2907 = vmatprep.mubr.f32.mxu0 0.0
    %2908 = vmatmul.mubr.f32.gmra.mrb[0].mxu0 %v2837
    %v2909 = vpop.f32.mrb[0].mxu0
    %v2910 = vadd.f32 0.0, %v2909
    %v2911 = vpop.f32.mrb[0].mxu0
    %v2912 = vadd.f32 0.0, %v2911
    %2913 = vdwg.mxu0
    %2914 = vmatprep.subr.mxu0 %v1974
    %2915 = vmatpush1.msra.mxu0 %v1973
    %2916 = vmatprep.subr.mxu0 %v1978
    %2917 = vmatpush1.msra.mxu0 %v1977
    %2918 = vmatprep.subr.mxu0 %v1982
    %2919 = vmatpush1.msra.mxu0 %v1981
    %2920 = vmatprep.subr.mxu0 %v1986
    %2921 = vmatpush1.msra.mxu0 %v1985
    %2922 = vmatprep.subr.mxu0 %v1990
    %2923 = vmatpush1.msra.mxu0 %v1989
    %2924 = vmatprep.subr.mxu0 %v1994
    %2925 = vmatpush1.msra.mxu0 %v1993
    %2926 = vmatprep.subr.mxu0 %v1998
    %2927 = vmatpush1.msra.mxu0 %v1997
    %2928 = vmatprep.subr.mxu0 %v2002
    %2929 = vmatpush1.msra.mxu0 %v2001
    %2930 = vmatprep.subr.mxu0 %v2006
    %2931 = vmatpush1.msra.mxu0 %v2005
    %2932 = vmatprep.subr.mxu0 %v2010
    %2933 = vmatpush1.msra.mxu0 %v2009
    %2934 = vmatprep.subr.mxu0 %v2014
    %2935 = vmatpush1.msra.mxu0 %v2013
    %2936 = vmatprep.subr.mxu0 %v2018
    %2937 = vmatpush1.msra.mxu0 %v2017
    %2938 = vmatprep.subr.mxu0 %v2022
    %2939 = vmatpush1.msra.mxu0 %v2021
    %2940 = vmatprep.subr.mxu0 %v2026
    %2941 = vmatpush1.msra.mxu0 %v2025
    %2942 = vmatprep.subr.mxu0 %v2030
    %2943 = vmatpush1.msra.mxu0 %v2029
    %2944 = vmatprep.subr.mxu0 %v2034
    %2945 = vmatpush1.msra.mxu0 %v2033
    %2946 = vmatprep.subr.mxu0 0.0
    %2947 = vmatpush1.msra.mxu0 0.0
    %2948 = vmatprep.subr.mxu0 0.0
    %2949 = vmatpush1.msra.mxu0 0.0
    %2950 = vmatprep.subr.mxu0 0.0
    %2951 = vmatpush1.msra.mxu0 0.0
    %2952 = vmatprep.subr.mxu0 0.0
    %2953 = vmatpush1.msra.mxu0 0.0
    %2954 = vmatprep.subr.mxu0 0.0
    %2955 = vmatpush1.msra.mxu0 0.0
    %2956 = vmatprep.subr.mxu0 0.0
    %2957 = vmatpush1.msra.mxu0 0.0
    %2958 = vmatprep.subr.mxu0 0.0
    %2959 = vmatpush1.msra.mxu0 0.0
    %2960 = vmatprep.subr.mxu0 0.0
    %2961 = vmatpush1.msra.mxu0 0.0
    %2962 = vmatprep.subr.mxu0 0.0
    %2963 = vmatpush1.msra.mxu0 0.0
    %2964 = vmatprep.subr.mxu0 0.0
    %2965 = vmatpush1.msra.mxu0 0.0
    %2966 = vmatprep.subr.mxu0 0.0
    %2967 = vmatpush1.msra.mxu0 0.0
    %2968 = vmatprep.subr.mxu0 0.0
    %2969 = vmatpush1.msra.mxu0 0.0
    %2970 = vmatprep.subr.mxu0 0.0
    %2971 = vmatpush1.msra.mxu0 0.0
    %2972 = vmatprep.subr.mxu0 0.0
    %2973 = vmatpush1.msra.mxu0 0.0
    %2974 = vmatprep.subr.mxu0 0.0
    %2975 = vmatpush1.msra.mxu0 0.0
    %2976 = vmatprep.subr.mxu0 0.0
    %2977 = vmatpush1.msra.mxu0 0.0
    %2978 = vmatprep.mubr.f32.mxu0 0.0
    %2979 = vmatmul.mubr.f32.gmra.mrb[0].mxu0 %v2837
    %v2980 = vpop.f32.mrb[0].mxu0
    %v2981 = vadd.f32 0.0, %v2980
    %v2982 = vpop.f32.mrb[0].mxu0
    %v2983 = vadd.f32 0.0, %v2982
    %2984 = vdwg.mxu0
    %v2985 = vadd.f32 %v2839, %v2910
    %v2986 = vadd.f32 %v2840, %v2912
    %v2987 = vadd.f32 %v2841, %v2981
    %v2988 = vadd.f32 %v2842, %v2983
    %v2989 = vsub.f32 0.0, %v2985
    %v2990 = vmul.f32 %v2989, 1.442695
    %v2991 = vpow.pop %v2990
    %v2992 = vadd.f32 %v2991, 1.0
    %v2993 = vrcp.pop %v2992
    %v2994 = vsub.f32 0.0, %v2986
    %v2995 = vmul.f32 %v2994, 1.442695
    %v2996 = vpow.pop %v2995
    %v2997 = vadd.f32 %v2996, 1.0
    %v2998 = vrcp.pop %v2997
    %v2999 = vtanh.pop %v2987
    %v3000 = vsub.f32 0.0, %v2988
    %v3001 = vmul.f32 %v3000, 1.442695
    %v3002 = vpow.pop %v3001
    %v3003 = vadd.f32 %v3002, 1.0
    %v3004 = vrcp.pop %v3003
    %v3005 = vmul.f32 %v2998, %v2835
    %v3006 = vmul.f32 %v2993, %v2999
    %v3007 = vadd.f32 %v3005, %v3006
    %v3008 = vtanh.pop %v3007
    %v3009 = vmul.f32 %v3004, %v3008
    %3010 = vst [vmem:[%s1199] sm:$0xff] %v3009
    %v3011 = vld [vmem:[%s1203] sm:$0xff]
    %v3012 = vld [vmem:[%s1203 + $0x8] sm:$0xff]
    %v3013 = vld [vmem:[%s1203 + $0x10] sm:$0xff]
    %v3014 = vld [vmem:[%s1203 + $0x18] sm:$0xff]
    %3015 = vmatprep.subr.mxu0 %v1972
    %3016 = vmatpush1.msra.mxu0 %v1971
    %3017 = vmatprep.subr.mxu0 %v1976
    %3018 = vmatpush1.msra.mxu0 %v1975
    %3019 = vmatprep.subr.mxu0 %v1980
    %3020 = vmatpush1.msra.mxu0 %v1979
    %3021 = vmatprep.subr.mxu0 %v1984
    %3022 = vmatpush1.msra.mxu0 %v1983
    %3023 = vmatprep.subr.mxu0 %v1988
    %3024 = vmatpush1.msra.mxu0 %v1987
    %3025 = vmatprep.subr.mxu0 %v1992
    %3026 = vmatpush1.msra.mxu0 %v1991
    %3027 = vmatprep.subr.mxu0 %v1996
    %3028 = vmatpush1.msra.mxu0 %v1995
    %3029 = vmatprep.subr.mxu0 %v2000
    %3030 = vmatpush1.msra.mxu0 %v1999
    %3031 = vmatprep.subr.mxu0 %v2004
    %3032 = vmatpush1.msra.mxu0 %v2003
    %3033 = vmatprep.subr.mxu0 %v2008
    %3034 = vmatpush1.msra.mxu0 %v2007
    %3035 = vmatprep.subr.mxu0 %v2012
    %3036 = vmatpush1.msra.mxu0 %v2011
    %3037 = vmatprep.subr.mxu0 %v2016
    %3038 = vmatpush1.msra.mxu0 %v2015
    %3039 = vmatprep.subr.mxu0 %v2020
    %3040 = vmatpush1.msra.mxu0 %v2019
    %3041 = vmatprep.subr.mxu0 %v2024
    %3042 = vmatpush1.msra.mxu0 %v2023
    %3043 = vmatprep.subr.mxu0 %v2028
    %3044 = vmatpush1.msra.mxu0 %v2027
    %3045 = vmatprep.subr.mxu0 %v2032
    %3046 = vmatpush1.msra.mxu0 %v2031
    %3047 = vmatprep.subr.mxu0 0.0
    %3048 = vmatpush1.msra.mxu0 0.0
    %3049 = vmatprep.subr.mxu0 0.0
    %3050 = vmatpush1.msra.mxu0 0.0
    %3051 = vmatprep.subr.mxu0 0.0
    %3052 = vmatpush1.msra.mxu0 0.0
    %3053 = vmatprep.subr.mxu0 0.0
    %3054 = vmatpush1.msra.mxu0 0.0
    %3055 = vmatprep.subr.mxu0 0.0
    %3056 = vmatpush1.msra.mxu0 0.0
    %3057 = vmatprep.subr.mxu0 0.0
    %3058 = vmatpush1.msra.mxu0 0.0
    %3059 = vmatprep.subr.mxu0 0.0
    %3060 = vmatpush1.msra.mxu0 0.0
    %3061 = vmatprep.subr.mxu0 0.0
    %3062 = vmatpush1.msra.mxu0 0.0
    %3063 = vmatprep.subr.mxu0 0.0
    %3064 = vmatpush1.msra.mxu0 0.0
    %3065 = vmatprep.subr.mxu0 0.0
    %3066 = vmatpush1.msra.mxu0 0.0
    %3067 = vmatprep.subr.mxu0 0.0
    %3068 = vmatpush1.msra.mxu0 0.0
    %3069 = vmatprep.subr.mxu0 0.0
    %3070 = vmatpush1.msra.mxu0 0.0
    %3071 = vmatprep.subr.mxu0 0.0
    %3072 = vmatpush1.msra.mxu0 0.0
    %3073 = vmatprep.subr.mxu0 0.0
    %3074 = vmatpush1.msra.mxu0 0.0
    %3075 = vmatprep.subr.mxu0 0.0
    %3076 = vmatpush1.msra.mxu0 0.0
    %3077 = vmatprep.subr.mxu0 0.0
    %3078 = vmatpush1.msra.mxu0 0.0
    %3079 = vmatprep.mubr.f32.mxu0 0.0
    %3080 = vmatmul.mubr.f32.gmra.mrb[0].mxu0 %v3009
    %v3081 = vpop.f32.mrb[0].mxu0
    %v3082 = vadd.f32 0.0, %v3081
    %v3083 = vpop.f32.mrb[0].mxu0
    %v3084 = vadd.f32 0.0, %v3083
    %3085 = vdwg.mxu0
    %3086 = vmatprep.subr.mxu0 %v1974
    %3087 = vmatpush1.msra.mxu0 %v1973
    %3088 = vmatprep.subr.mxu0 %v1978
    %3089 = vmatpush1.msra.mxu0 %v1977
    %3090 = vmatprep.subr.mxu0 %v1982
    %3091 = vmatpush1.msra.mxu0 %v1981
    %3092 = vmatprep.subr.mxu0 %v1986
    %3093 = vmatpush1.msra.mxu0 %v1985
    %3094 = vmatprep.subr.mxu0 %v1990
    %3095 = vmatpush1.msra.mxu0 %v1989
    %3096 = vmatprep.subr.mxu0 %v1994
    %3097 = vmatpush1.msra.mxu0 %v1993
    %3098 = vmatprep.subr.mxu0 %v1998
    %3099 = vmatpush1.msra.mxu0 %v1997
    %3100 = vmatprep.subr.mxu0 %v2002
    %3101 = vmatpush1.msra.mxu0 %v2001
    %3102 = vmatprep.subr.mxu0 %v2006
    %3103 = vmatpush1.msra.mxu0 %v2005
    %3104 = vmatprep.subr.mxu0 %v2010
    %3105 = vmatpush1.msra.mxu0 %v2009
    %3106 = vmatprep.subr.mxu0 %v2014
    %3107 = vmatpush1.msra.mxu0 %v2013
    %3108 = vmatprep.subr.mxu0 %v2018
    %3109 = vmatpush1.msra.mxu0 %v2017
    %3110 = vmatprep.subr.mxu0 %v2022
    %3111 = vmatpush1.msra.mxu0 %v2021
    %3112 = vmatprep.subr.mxu0 %v2026
    %3113 = vmatpush1.msra.mxu0 %v2025
    %3114 = vmatprep.subr.mxu0 %v2030
    %3115 = vmatpush1.msra.mxu0 %v2029
    %3116 = vmatprep.subr.mxu0 %v2034
    %3117 = vmatpush1.msra.mxu0 %v2033
    %3118 = vmatprep.subr.mxu0 0.0
    %3119 = vmatpush1.msra.mxu0 0.0
    %3120 = vmatprep.subr.mxu0 0.0
    %3121 = vmatpush1.msra.mxu0 0.0
    %3122 = vmatprep.subr.mxu0 0.0
    %3123 = vmatpush1.msra.mxu0 0.0
    %3124 = vmatprep.subr.mxu0 0.0
    %3125 = vmatpush1.msra.mxu0 0.0
    %3126 = vmatprep.subr.mxu0 0.0
    %3127 = vmatpush1.msra.mxu0 0.0
    %3128 = vmatprep.subr.mxu0 0.0
    %3129 = vmatpush1.msra.mxu0 0.0
    %3130 = vmatprep.subr.mxu0 0.0
    %3131 = vmatpush1.msra.mxu0 0.0
    %3132 = vmatprep.subr.mxu0 0.0
    %3133 = vmatpush1.msra.mxu0 0.0
    %3134 = vmatprep.subr.mxu0 0.0
    %3135 = vmatpush1.msra.mxu0 0.0
    %3136 = vmatprep.subr.mxu0 0.0
    %3137 = vmatpush1.msra.mxu0 0.0
    %3138 = vmatprep.subr.mxu0 0.0
    %3139 = vmatpush1.msra.mxu0 0.0
    %3140 = vmatprep.subr.mxu0 0.0
    %3141 = vmatpush1.msra.mxu0 0.0
    %3142 = vmatprep.subr.mxu0 0.0
    %3143 = vmatpush1.msra.mxu0 0.0
    %3144 = vmatprep.subr.mxu0 0.0
    %3145 = vmatpush1.msra.mxu0 0.0
    %3146 = vmatprep.subr.mxu0 0.0
    %3147 = vmatpush1.msra.mxu0 0.0
    %3148 = vmatprep.subr.mxu0 0.0
    %3149 = vmatpush1.msra.mxu0 0.0
    %3150 = vmatprep.mubr.f32.mxu0 0.0
    %3151 = vmatmul.mubr.f32.gmra.mrb[0].mxu0 %v3009
    %v3152 = vpop.f32.mrb[0].mxu0
    %v3153 = vadd.f32 0.0, %v3152
    %v3154 = vpop.f32.mrb[0].mxu0
    %v3155 = vadd.f32 0.0, %v3154
    %3156 = vdwg.mxu0
    %v3157 = vadd.f32 %v3011, %v3082
    %v3158 = vadd.f32 %v3012, %v3084
    %v3159 = vadd.f32 %v3013, %v3153
    %v3160 = vadd.f32 %v3014, %v3155
    %v3161 = vsub.f32 0.0, %v3157
    %v3162 = vmul.f32 %v3161, 1.442695
    %v3163 = vpow.pop %v3162
    %v3164 = vadd.f32 %v3163, 1.0
    %v3165 = vrcp.pop %v3164
    %v3166 = vsub.f32 0.0, %v3158
    %v3167 = vmul.f32 %v3166, 1.442695
    %v3168 = vpow.pop %v3167
    %v3169 = vadd.f32 %v3168, 1.0
    %v3170 = vrcp.pop %v3169
    %v3171 = vtanh.pop %v3159
    %v3172 = vsub.f32 0.0, %v3160
    %v3173 = vmul.f32 %v3172, 1.442695
    %v3174 = vpow.pop %v3173
    %v3175 = vadd.f32 %v3174, 1.0
    %v3176 = vrcp.pop %v3175
    %v3177 = vmul.f32 %v3170, %v3007
    %v3178 = vmul.f32 %v3165, %v3171
    %v3179 = vadd.f32 %v3177, %v3178
    %v3180 = vtanh.pop %v3179
    %v3181 = vmul.f32 %v3176, %v3180
    %3182 = vst [vmem:[%s1375] sm:$0xff] %v3181
    %v3183 = vld [vmem:[%s1379] sm:$0xff]
    %v3184 = vld [vmem:[%s1379 + $0x8] sm:$0xff]
    %v3185 = vld [vmem:[%s1379 + $0x10] sm:$0xff]
    %v3186 = vld [vmem:[%s1379 + $0x18] sm:$0xff]
    %3187 = vmatprep.subr.mxu0 %v1972
    %3188 = vmatpush1.msra.mxu0 %v1971
    %3189 = vmatprep.subr.mxu0 %v1976
    %3190 = vmatpush1.msra.mxu0 %v1975
    %3191 = vmatprep.subr.mxu0 %v1980
    %3192 = vmatpush1.msra.mxu0 %v1979
    %3193 = vmatprep.subr.mxu0 %v1984
    %3194 = vmatpush1.msra.mxu0 %v1983
    %3195 = vmatprep.subr.mxu0 %v1988
    %3196 = vmatpush1.msra.mxu0 %v1987
    %3197 = vmatprep.subr.mxu0 %v1992
    %3198 = vmatpush1.msra.mxu0 %v1991
    %3199 = vmatprep.subr.mxu0 %v1996
    %3200 = vmatpush1.msra.mxu0 %v1995
    %3201 = vmatprep.subr.mxu0 %v2000
    %3202 = vmatpush1.msra.mxu0 %v1999
    %3203 = vmatprep.subr.mxu0 %v2004
    %3204 = vmatpush1.msra.mxu0 %v2003
    %3205 = vmatprep.subr.mxu0 %v2008
    %3206 = vmatpush1.msra.mxu0 %v2007
    %3207 = vmatprep.subr.mxu0 %v2012
    %3208 = vmatpush1.msra.mxu0 %v2011
    %3209 = vmatprep.subr.mxu0 %v2016
    %3210 = vmatpush1.msra.mxu0 %v2015
    %3211 = vmatprep.subr.mxu0 %v2020
    %3212 = vmatpush1.msra.mxu0 %v2019
    %3213 = vmatprep.subr.mxu0 %v2024
    %3214 = vmatpush1.msra.mxu0 %v2023
    %3215 = vmatprep.subr.mxu0 %v2028
    %3216 = vmatpush1.msra.mxu0 %v2027
    %3217 = vmatprep.subr.mxu0 %v2032
    %3218 = vmatpush1.msra.mxu0 %v2031
    %3219 = vmatprep.subr.mxu0 0.0
    %3220 = vmatpush1.msra.mxu0 0.0
    %3221 = vmatprep.subr.mxu0 0.0
    %3222 = vmatpush1.msra.mxu0 0.0
    %3223 = vmatprep.subr.mxu0 0.0
    %3224 = vmatpush1.msra.mxu0 0.0
    %3225 = vmatprep.subr.mxu0 0.0
    %3226 = vmatpush1.msra.mxu0 0.0
    %3227 = vmatprep.subr.mxu0 0.0
    %3228 = vmatpush1.msra.mxu0 0.0
    %3229 = vmatprep.subr.mxu0 0.0
    %3230 = vmatpush1.msra.mxu0 0.0
    %3231 = vmatprep.subr.mxu0 0.0
    %3232 = vmatpush1.msra.mxu0 0.0
    %3233 = vmatprep.subr.mxu0 0.0
    %3234 = vmatpush1.msra.mxu0 0.0
    %3235 = vmatprep.subr.mxu0 0.0
    %3236 = vmatpush1.msra.mxu0 0.0
    %3237 = vmatprep.subr.mxu0 0.0
    %3238 = vmatpush1.msra.mxu0 0.0
    %3239 = vmatprep.subr.mxu0 0.0
    %3240 = vmatpush1.msra.mxu0 0.0
    %3241 = vmatprep.subr.mxu0 0.0
    %3242 = vmatpush1.msra.mxu0 0.0
    %3243 = vmatprep.subr.mxu0 0.0
    %3244 = vmatpush1.msra.mxu0 0.0
    %3245 = vmatprep.subr.mxu0 0.0
    %3246 = vmatpush1.msra.mxu0 0.0
    %3247 = vmatprep.subr.mxu0 0.0
    %3248 = vmatpush1.msra.mxu0 0.0
    %3249 = vmatprep.subr.mxu0 0.0
    %3250 = vmatpush1.msra.mxu0 0.0
    %3251 = vmatprep.mubr.f32.mxu0 0.0
    %3252 = vmatmul.mubr.f32.gmra.mrb[0].mxu0 %v3181
    %v3253 = vpop.f32.mrb[0].mxu0
    %v3254 = vadd.f32 0.0, %v3253
    %v3255 = vpop.f32.mrb[0].mxu0
    %v3256 = vadd.f32 0.0, %v3255
    %3257 = vdwg.mxu0
    %3258 = vmatprep.subr.mxu0 %v1974
    %3259 = vmatpush1.msra.mxu0 %v1973
    %3260 = vmatprep.subr.mxu0 %v1978
    %3261 = vmatpush1.msra.mxu0 %v1977
    %3262 = vmatprep.subr.mxu0 %v1982
    %3263 = vmatpush1.msra.mxu0 %v1981
    %3264 = vmatprep.subr.mxu0 %v1986
    %3265 = vmatpush1.msra.mxu0 %v1985
    %3266 = vmatprep.subr.mxu0 %v1990
    %3267 = vmatpush1.msra.mxu0 %v1989
    %3268 = vmatprep.subr.mxu0 %v1994
    %3269 = vmatpush1.msra.mxu0 %v1993
    %3270 = vmatprep.subr.mxu0 %v1998
    %3271 = vmatpush1.msra.mxu0 %v1997
    %3272 = vmatprep.subr.mxu0 %v2002
    %3273 = vmatpush1.msra.mxu0 %v2001
    %3274 = vmatprep.subr.mxu0 %v2006
    %3275 = vmatpush1.msra.mxu0 %v2005
    %3276 = vmatprep.subr.mxu0 %v2010
    %3277 = vmatpush1.msra.mxu0 %v2009
    %3278 = vmatprep.subr.mxu0 %v2014
    %3279 = vmatpush1.msra.mxu0 %v2013
    %3280 = vmatprep.subr.mxu0 %v2018
    %3281 = vmatpush1.msra.mxu0 %v2017
    %3282 = vmatprep.subr.mxu0 %v2022
    %3283 = vmatpush1.msra.mxu0 %v2021
    %3284 = vmatprep.subr.mxu0 %v2026
    %3285 = vmatpush1.msra.mxu0 %v2025
    %3286 = vmatprep.subr.mxu0 %v2030
    %3287 = vmatpush1.msra.mxu0 %v2029
    %3288 = vmatprep.subr.mxu0 %v2034
    %3289 = vmatpush1.msra.mxu0 %v2033
    %3290 = vmatprep.subr.mxu0 0.0
    %3291 = vmatpush1.msra.mxu0 0.0
    %3292 = vmatprep.subr.mxu0 0.0
    %3293 = vmatpush1.msra.mxu0 0.0
    %3294 = vmatprep.subr.mxu0 0.0
    %3295 = vmatpush1.msra.mxu0 0.0
    %3296 = vmatprep.subr.mxu0 0.0
    %3297 = vmatpush1.msra.mxu0 0.0
    %3298 = vmatprep.subr.mxu0 0.0
    %3299 = vmatpush1.msra.mxu0 0.0
    %3300 = vmatprep.subr.mxu0 0.0
    %3301 = vmatpush1.msra.mxu0 0.0
    %3302 = vmatprep.subr.mxu0 0.0
    %3303 = vmatpush1.msra.mxu0 0.0
    %3304 = vmatprep.subr.mxu0 0.0
    %3305 = vmatpush1.msra.mxu0 0.0
    %3306 = vmatprep.subr.mxu0 0.0
    %3307 = vmatpush1.msra.mxu0 0.0
    %3308 = vmatprep.subr.mxu0 0.0
    %3309 = vmatpush1.msra.mxu0 0.0
    %3310 = vmatprep.subr.mxu0 0.0
    %3311 = vmatpush1.msra.mxu0 0.0
    %3312 = vmatprep.subr.mxu0 0.0
    %3313 = vmatpush1.msra.mxu0 0.0
    %3314 = vmatprep.subr.mxu0 0.0
    %3315 = vmatpush1.msra.mxu0 0.0
    %3316 = vmatprep.subr.mxu0 0.0
    %3317 = vmatpush1.msra.mxu0 0.0
    %3318 = vmatprep.subr.mxu0 0.0
    %3319 = vmatpush1.msra.mxu0 0.0
    %3320 = vmatprep.subr.mxu0 0.0
    %3321 = vmatpush1.msra.mxu0 0.0
    %3322 = vmatprep.mubr.f32.mxu0 0.0
    %3323 = vmatmul.mubr.f32.gmra.mrb[0].mxu0 %v3181
    %v3324 = vpop.f32.mrb[0].mxu0
    %v3325 = vadd.f32 0.0, %v3324
    %v3326 = vpop.f32.mrb[0].mxu0
    %v3327 = vadd.f32 0.0, %v3326
    %3328 = vdwg.mxu0
    %v3329 = vadd.f32 %v3183, %v3254
    %v3330 = vadd.f32 %v3184, %v3256
    %v3331 = vadd.f32 %v3185, %v3325
    %v3332 = vadd.f32 %v3186, %v3327
    %v3333 = vsub.f32 0.0, %v3329
    %v3334 = vmul.f32 %v3333, 1.442695
    %v3335 = vpow.pop %v3334
    %v3336 = vadd.f32 %v3335, 1.0
    %v3337 = vrcp.pop %v3336
    %v3338 = vsub.f32 0.0, %v3330
    %v3339 = vmul.f32 %v3338, 1.442695
    %v3340 = vpow.pop %v3339
    %v3341 = vadd.f32 %v3340, 1.0
    %v3342 = vrcp.pop %v3341
    %v3343 = vtanh.pop %v3331
    %v3344 = vsub.f32 0.0, %v3332
    %v3345 = vmul.f32 %v3344, 1.442695
    %v3346 = vpow.pop %v3345
    %v3347 = vadd.f32 %v3346, 1.0
    %v3348 = vrcp.pop %v3347
    %v3349 = vmul.f32 %v3342, %v3179
    %v3350 = vmul.f32 %v3337, %v3343
    %v3351 = vadd.f32 %v3349, %v3350
    %v3352 = vtanh.pop %v3351
    %v3353 = vmul.f32 %v3348, %v3352
    %3354 = vst [vmem:[%s1551] sm:$0xff] %v3353
    %v3355 = vld [vmem:[%s1555] sm:$0xff]
    %v3356 = vld [vmem:[%s1555 + $0x8] sm:$0xff]
    %v3357 = vld [vmem:[%s1555 + $0x10] sm:$0xff]
    %v3358 = vld [vmem:[%s1555 + $0x18] sm:$0xff]
    %3359 = vmatprep.subr.mxu0 %v1972
    %3360 = vmatpush1.msra.mxu0 %v1971
    %3361 = vmatprep.subr.mxu0 %v1976
    %3362 = vmatpush1.msra.mxu0 %v1975
    %3363 = vmatprep.subr.mxu0 %v1980
    %3364 = vmatpush1.msra.mxu0 %v1979
    %3365 = vmatprep.subr.mxu0 %v1984
    %3366 = vmatpush1.msra.mxu0 %v1983
    %3367 = vmatprep.subr.mxu0 %v1988
    %3368 = vmatpush1.msra.mxu0 %v1987
    %3369 = vmatprep.subr.mxu0 %v1992
    %3370 = vmatpush1.msra.mxu0 %v1991
    %3371 = vmatprep.subr.mxu0 %v1996
    %3372 = vmatpush1.msra.mxu0 %v1995
    %3373 = vmatprep.subr.mxu0 %v2000
    %3374 = vmatpush1.msra.mxu0 %v1999
    %3375 = vmatprep.subr.mxu0 %v2004
    %3376 = vmatpush1.msra.mxu0 %v2003
    %3377 = vmatprep.subr.mxu0 %v2008
    %3378 = vmatpush1.msra.mxu0 %v2007
    %3379 = vmatprep.subr.mxu0 %v2012
    %3380 = vmatpush1.msra.mxu0 %v2011
    %3381 = vmatprep.subr.mxu0 %v2016
    %3382 = vmatpush1.msra.mxu0 %v2015
    %3383 = vmatprep.subr.mxu0 %v2020
    %3384 = vmatpush1.msra.mxu0 %v2019
    %3385 = vmatprep.subr.mxu0 %v2024
    %3386 = vmatpush1.msra.mxu0 %v2023
    %3387 = vmatprep.subr.mxu0 %v2028
    %3388 = vmatpush1.msra.mxu0 %v2027
    %3389 = vmatprep.subr.mxu0 %v2032
    %3390 = vmatpush1.msra.mxu0 %v2031
    %3391 = vmatprep.subr.mxu0 0.0
    %3392 = vmatpush1.msra.mxu0 0.0
    %3393 = vmatprep.subr.mxu0 0.0
    %3394 = vmatpush1.msra.mxu0 0.0
    %3395 = vmatprep.subr.mxu0 0.0
    %3396 = vmatpush1.msra.mxu0 0.0
    %3397 = vmatprep.subr.mxu0 0.0
    %3398 = vmatpush1.msra.mxu0 0.0
    %3399 = vmatprep.subr.mxu0 0.0
    %3400 = vmatpush1.msra.mxu0 0.0
    %3401 = vmatprep.subr.mxu0 0.0
    %3402 = vmatpush1.msra.mxu0 0.0
    %3403 = vmatprep.subr.mxu0 0.0
    %3404 = vmatpush1.msra.mxu0 0.0
    %3405 = vmatprep.subr.mxu0 0.0
    %3406 = vmatpush1.msra.mxu0 0.0
    %3407 = vmatprep.subr.mxu0 0.0
    %3408 = vmatpush1.msra.mxu0 0.0
    %3409 = vmatprep.subr.mxu0 0.0
    %3410 = vmatpush1.msra.mxu0 0.0
    %3411 = vmatprep.subr.mxu0 0.0
    %3412 = vmatpush1.msra.mxu0 0.0
    %3413 = vmatprep.subr.mxu0 0.0
    %3414 = vmatpush1.msra.mxu0 0.0
    %3415 = vmatprep.subr.mxu0 0.0
    %3416 = vmatpush1.msra.mxu0 0.0
    %3417 = vmatprep.subr.mxu0 0.0
    %3418 = vmatpush1.msra.mxu0 0.0
    %3419 = vmatprep.subr.mxu0 0.0
    %3420 = vmatpush1.msra.mxu0 0.0
    %3421 = vmatprep.subr.mxu0 0.0
    %3422 = vmatpush1.msra.mxu0 0.0
    %3423 = vmatprep.mubr.f32.mxu0 0.0
    %3424 = vmatmul.mubr.f32.gmra.mrb[0].mxu0 %v3353
    %v3425 = vpop.f32.mrb[0].mxu0
    %v3426 = vadd.f32 0.0, %v3425
    %v3427 = vpop.f32.mrb[0].mxu0
    %v3428 = vadd.f32 0.0, %v3427
    %3429 = vdwg.mxu0
    %3430 = vmatprep.subr.mxu0 %v1974
    %3431 = vmatpush1.msra.mxu0 %v1973
    %3432 = vmatprep.subr.mxu0 %v1978
    %3433 = vmatpush1.msra.mxu0 %v1977
    %3434 = vmatprep.subr.mxu0 %v1982
    %3435 = vmatpush1.msra.mxu0 %v1981
    %3436 = vmatprep.subr.mxu0 %v1986
    %3437 = vmatpush1.msra.mxu0 %v1985
    %3438 = vmatprep.subr.mxu0 %v1990
    %3439 = vmatpush1.msra.mxu0 %v1989
    %3440 = vmatprep.subr.mxu0 %v1994
    %3441 = vmatpush1.msra.mxu0 %v1993
    %3442 = vmatprep.subr.mxu0 %v1998
    %3443 = vmatpush1.msra.mxu0 %v1997
    %3444 = vmatprep.subr.mxu0 %v2002
    %3445 = vmatpush1.msra.mxu0 %v2001
    %3446 = vmatprep.subr.mxu0 %v2006
    %3447 = vmatpush1.msra.mxu0 %v2005
    %3448 = vmatprep.subr.mxu0 %v2010
    %3449 = vmatpush1.msra.mxu0 %v2009
    %3450 = vmatprep.subr.mxu0 %v2014
    %3451 = vmatpush1.msra.mxu0 %v2013
    %3452 = vmatprep.subr.mxu0 %v2018
    %3453 = vmatpush1.msra.mxu0 %v2017
    %3454 = vmatprep.subr.mxu0 %v2022
    %3455 = vmatpush1.msra.mxu0 %v2021
    %3456 = vmatprep.subr.mxu0 %v2026
    %3457 = vmatpush1.msra.mxu0 %v2025
    %3458 = vmatprep.subr.mxu0 %v2030
    %3459 = vmatpush1.msra.mxu0 %v2029
    %3460 = vmatprep.subr.mxu0 %v2034
    %3461 = vmatpush1.msra.mxu0 %v2033
    %3462 = vmatprep.subr.mxu0 0.0
    %3463 = vmatpush1.msra.mxu0 0.0
    %3464 = vmatprep.subr.mxu0 0.0
    %3465 = vmatpush1.msra.mxu0 0.0
    %3466 = vmatprep.subr.mxu0 0.0
    %3467 = vmatpush1.msra.mxu0 0.0
    %3468 = vmatprep.subr.mxu0 0.0
    %3469 = vmatpush1.msra.mxu0 0.0
    %3470 = vmatprep.subr.mxu0 0.0
    %3471 = vmatpush1.msra.mxu0 0.0
    %3472 = vmatprep.subr.mxu0 0.0
    %3473 = vmatpush1.msra.mxu0 0.0
    %3474 = vmatprep.subr.mxu0 0.0
    %3475 = vmatpush1.msra.mxu0 0.0
    %3476 = vmatprep.subr.mxu0 0.0
    %3477 = vmatpush1.msra.mxu0 0.0
    %3478 = vmatprep.subr.mxu0 0.0
    %3479 = vmatpush1.msra.mxu0 0.0
    %3480 = vmatprep.subr.mxu0 0.0
    %3481 = vmatpush1.msra.mxu0 0.0
    %3482 = vmatprep.subr.mxu0 0.0
    %3483 = vmatpush1.msra.mxu0 0.0
    %3484 = vmatprep.subr.mxu0 0.0
    %3485 = vmatpush1.msra.mxu0 0.0
    %3486 = vmatprep.subr.mxu0 0.0
    %3487 = vmatpush1.msra.mxu0 0.0
    %3488 = vmatprep.subr.mxu0 0.0
    %3489 = vmatpush1.msra.mxu0 0.0
    %3490 = vmatprep.subr.mxu0 0.0
    %3491 = vmatpush1.msra.mxu0 0.0
    %3492 = vmatprep.subr.mxu0 0.0
    %3493 = vmatpush1.msra.mxu0 0.0
    %3494 = vmatprep.mubr.f32.mxu0 0.0
    %3495 = vmatmul.mubr.f32.gmra.mrb[0].mxu0 %v3353
    %v3496 = vpop.f32.mrb[0].mxu0
    %v3497 = vadd.f32 0.0, %v3496
    %v3498 = vpop.f32.mrb[0].mxu0
    %v3499 = vadd.f32 0.0, %v3498
    %3500 = vdwg.mxu0
    %v3501 = vadd.f32 %v3355, %v3426
    %v3502 = vadd.f32 %v3356, %v3428
    %v3503 = vadd.f32 %v3357, %v3497
    %v3504 = vadd.f32 %v3358, %v3499
    %v3505 = vsub.f32 0.0, %v3501
    %v3506 = vmul.f32 %v3505, 1.442695
    %v3507 = vpow.pop %v3506
    %v3508 = vadd.f32 %v3507, 1.0
    %v3509 = vrcp.pop %v3508
    %v3510 = vsub.f32 0.0, %v3502
    %v3511 = vmul.f32 %v3510, 1.442695
    %v3512 = vpow.pop %v3511
    %v3513 = vadd.f32 %v3512, 1.0
    %v3514 = vrcp.pop %v3513
    %v3515 = vtanh.pop %v3503
    %v3516 = vsub.f32 0.0, %v3504
    %v3517 = vmul.f32 %v3516, 1.442695
    %v3518 = vpow.pop %v3517
    %v3519 = vadd.f32 %v3518, 1.0
    %v3520 = vrcp.pop %v3519
    %v3521 = vmul.f32 %v3514, %v3351
    %v3522 = vmul.f32 %v3509, %v3515
    %v3523 = vadd.f32 %v3521, %v3522
    %v3524 = vtanh.pop %v3523
    %v3525 = vmul.f32 %v3520, %v3524
    %3526 = vst [vmem:[%s1727] sm:$0xff] %v3525
    %v3527 = vld [vmem:[%s1731] sm:$0xff]
    %v3528 = vld [vmem:[%s1731 + $0x8] sm:$0xff]
    %v3529 = vld [vmem:[%s1731 + $0x10] sm:$0xff]
    %v3530 = vld [vmem:[%s1731 + $0x18] sm:$0xff]
    %3531 = vmatprep.subr.mxu0 %v1972
    %3532 = vmatpush1.msra.mxu0 %v1971
    %3533 = vmatprep.subr.mxu0 %v1976
    %3534 = vmatpush1.msra.mxu0 %v1975
    %3535 = vmatprep.subr.mxu0 %v1980
    %3536 = vmatpush1.msra.mxu0 %v1979
    %3537 = vmatprep.subr.mxu0 %v1984
    %3538 = vmatpush1.msra.mxu0 %v1983
    %3539 = vmatprep.subr.mxu0 %v1988
    %3540 = vmatpush1.msra.mxu0 %v1987
    %3541 = vmatprep.subr.mxu0 %v1992
    %3542 = vmatpush1.msra.mxu0 %v1991
    %3543 = vmatprep.subr.mxu0 %v1996
    %3544 = vmatpush1.msra.mxu0 %v1995
    %3545 = vmatprep.subr.mxu0 %v2000
    %3546 = vmatpush1.msra.mxu0 %v1999
    %3547 = vmatprep.subr.mxu0 %v2004
    %3548 = vmatpush1.msra.mxu0 %v2003
    %3549 = vmatprep.subr.mxu0 %v2008
    %3550 = vmatpush1.msra.mxu0 %v2007
    %3551 = vmatprep.subr.mxu0 %v2012
    %3552 = vmatpush1.msra.mxu0 %v2011
    %3553 = vmatprep.subr.mxu0 %v2016
    %3554 = vmatpush1.msra.mxu0 %v2015
    %3555 = vmatprep.subr.mxu0 %v2020
    %3556 = vmatpush1.msra.mxu0 %v2019
    %3557 = vmatprep.subr.mxu0 %v2024
    %3558 = vmatpush1.msra.mxu0 %v2023
    %3559 = vmatprep.subr.mxu0 %v2028
    %3560 = vmatpush1.msra.mxu0 %v2027
    %3561 = vmatprep.subr.mxu0 %v2032
    %3562 = vmatpush1.msra.mxu0 %v2031
    %3563 = vmatprep.subr.mxu0 0.0
    %3564 = vmatpush1.msra.mxu0 0.0
    %3565 = vmatprep.subr.mxu0 0.0
    %3566 = vmatpush1.msra.mxu0 0.0
    %3567 = vmatprep.subr.mxu0 0.0
    %3568 = vmatpush1.msra.mxu0 0.0
    %3569 = vmatprep.subr.mxu0 0.0
    %3570 = vmatpush1.msra.mxu0 0.0
    %3571 = vmatprep.subr.mxu0 0.0
    %3572 = vmatpush1.msra.mxu0 0.0
    %3573 = vmatprep.subr.mxu0 0.0
    %3574 = vmatpush1.msra.mxu0 0.0
    %3575 = vmatprep.subr.mxu0 0.0
    %3576 = vmatpush1.msra.mxu0 0.0
    %3577 = vmatprep.subr.mxu0 0.0
    %3578 = vmatpush1.msra.mxu0 0.0
    %3579 = vmatprep.subr.mxu0 0.0
    %3580 = vmatpush1.msra.mxu0 0.0
    %3581 = vmatprep.subr.mxu0 0.0
    %3582 = vmatpush1.msra.mxu0 0.0
    %3583 = vmatprep.subr.mxu0 0.0
    %3584 = vmatpush1.msra.mxu0 0.0
    %3585 = vmatprep.subr.mxu0 0.0
    %3586 = vmatpush1.msra.mxu0 0.0
    %3587 = vmatprep.subr.mxu0 0.0
    %3588 = vmatpush1.msra.mxu0 0.0
    %3589 = vmatprep.subr.mxu0 0.0
    %3590 = vmatpush1.msra.mxu0 0.0
    %3591 = vmatprep.subr.mxu0 0.0
    %3592 = vmatpush1.msra.mxu0 0.0
    %3593 = vmatprep.subr.mxu0 0.0
    %3594 = vmatpush1.msra.mxu0 0.0
    %3595 = vmatprep.mubr.f32.mxu0 0.0
    %3596 = vmatmul.mubr.f32.gmra.mrb[0].mxu0 %v3525
    %v3597 = vpop.f32.mrb[0].mxu0
    %v3598 = vadd.f32 0.0, %v3597
    %v3599 = vpop.f32.mrb[0].mxu0
    %v3600 = vadd.f32 0.0, %v3599
    %3601 = vdwg.mxu0
    %3602 = vmatprep.subr.mxu0 %v1974
    %3603 = vmatpush1.msra.mxu0 %v1973
    %3604 = vmatprep.subr.mxu0 %v1978
    %3605 = vmatpush1.msra.mxu0 %v1977
    %3606 = vmatprep.subr.mxu0 %v1982
    %3607 = vmatpush1.msra.mxu0 %v1981
    %3608 = vmatprep.subr.mxu0 %v1986
    %3609 = vmatpush1.msra.mxu0 %v1985
    %3610 = vmatprep.subr.mxu0 %v1990
    %3611 = vmatpush1.msra.mxu0 %v1989
    %3612 = vmatprep.subr.mxu0 %v1994
    %3613 = vmatpush1.msra.mxu0 %v1993
    %3614 = vmatprep.subr.mxu0 %v1998
    %3615 = vmatpush1.msra.mxu0 %v1997
    %3616 = vmatprep.subr.mxu0 %v2002
    %3617 = vmatpush1.msra.mxu0 %v2001
    %3618 = vmatprep.subr.mxu0 %v2006
    %3619 = vmatpush1.msra.mxu0 %v2005
    %3620 = vmatprep.subr.mxu0 %v2010
    %3621 = vmatpush1.msra.mxu0 %v2009
    %3622 = vmatprep.subr.mxu0 %v2014
    %3623 = vmatpush1.msra.mxu0 %v2013
    %3624 = vmatprep.subr.mxu0 %v2018
    %3625 = vmatpush1.msra.mxu0 %v2017
    %3626 = vmatprep.subr.mxu0 %v2022
    %3627 = vmatpush1.msra.mxu0 %v2021
    %3628 = vmatprep.subr.mxu0 %v2026
    %3629 = vmatpush1.msra.mxu0 %v2025
    %3630 = vmatprep.subr.mxu0 %v2030
    %3631 = vmatpush1.msra.mxu0 %v2029
    %3632 = vmatprep.subr.mxu0 %v2034
    %3633 = vmatpush1.msra.mxu0 %v2033
    %3634 = vmatprep.subr.mxu0 0.0
    %3635 = vmatpush1.msra.mxu0 0.0
    %3636 = vmatprep.subr.mxu0 0.0
    %3637 = vmatpush1.msra.mxu0 0.0
    %3638 = vmatprep.subr.mxu0 0.0
    %3639 = vmatpush1.msra.mxu0 0.0
    %3640 = vmatprep.subr.mxu0 0.0
    %3641 = vmatpush1.msra.mxu0 0.0
    %3642 = vmatprep.subr.mxu0 0.0
    %3643 = vmatpush1.msra.mxu0 0.0
    %3644 = vmatprep.subr.mxu0 0.0
    %3645 = vmatpush1.msra.mxu0 0.0
    %3646 = vmatprep.subr.mxu0 0.0
    %3647 = vmatpush1.msra.mxu0 0.0
    %3648 = vmatprep.subr.mxu0 0.0
    %3649 = vmatpush1.msra.mxu0 0.0
    %3650 = vmatprep.subr.mxu0 0.0
    %3651 = vmatpush1.msra.mxu0 0.0
    %3652 = vmatprep.subr.mxu0 0.0
    %3653 = vmatpush1.msra.mxu0 0.0
    %3654 = vmatprep.subr.mxu0 0.0
    %3655 = vmatpush1.msra.mxu0 0.0
    %3656 = vmatprep.subr.mxu0 0.0
    %3657 = vmatpush1.msra.mxu0 0.0
    %3658 = vmatprep.subr.mxu0 0.0
    %3659 = vmatpush1.msra.mxu0 0.0
    %3660 = vmatprep.subr.mxu0 0.0
    %3661 = vmatpush1.msra.mxu0 0.0
    %3662 = vmatprep.subr.mxu0 0.0
    %3663 = vmatpush1.msra.mxu0 0.0
    %3664 = vmatprep.subr.mxu0 0.0
    %3665 = vmatpush1.msra.mxu0 0.0
    %3666 = vmatprep.mubr.f32.mxu0 0.0
    %3667 = vmatmul.mubr.f32.gmra.mrb[0].mxu0 %v3525
    %v3668 = vpop.f32.mrb[0].mxu0
    %v3669 = vadd.f32 0.0, %v3668
    %v3670 = vpop.f32.mrb[0].mxu0
    %v3671 = vadd.f32 0.0, %v3670
    %3672 = vdwg.mxu0
    %v3673 = vadd.f32 %v3527, %v3598
    %v3674 = vadd.f32 %v3528, %v3600
    %v3675 = vadd.f32 %v3529, %v3669
    %v3676 = vadd.f32 %v3530, %v3671
    %v3677 = vsub.f32 0.0, %v3673
    %v3678 = vmul.f32 %v3677, 1.442695
    %v3679 = vpow.pop %v3678
    %v3680 = vadd.f32 %v3679, 1.0
    %v3681 = vrcp.pop %v3680
    %v3682 = vsub.f32 0.0, %v3674
    %v3683 = vmul.f32 %v3682, 1.442695
    %v3684 = vpow.pop %v3683
    %v3685 = vadd.f32 %v3684, 1.0
    %v3686 = vrcp.pop %v3685
    %v3687 = vtanh.pop %v3675
    %v3688 = vsub.f32 0.0, %v3676
    %v3689 = vmul.f32 %v3688, 1.442695
    %v3690 = vpow.pop %v3689
    %v3691 = vadd.f32 %v3690, 1.0
    %v3692 = vrcp.pop %v3691
    %v3693 = vmul.f32 %v3686, %v3523
    %v3694 = vmul.f32 %v3681, %v3687
    %v3695 = vadd.f32 %v3693, %v3694
    %v3696 = vtanh.pop %v3695
    %v3697 = vmul.f32 %v3692, %v3696
    %3698 = vst [vmem:[%s1903] sm:$0xff] %v3697
    %s3699 = scalar_lea.vmem %s11, 8
    %3700 = vst [vmem:[%s3699] sm:$0xff] %v3697
    %s3701 = scalar_lea.vmem %s12, 8
    %3702 = vst [vmem:[%s3701] sm:$0xff] %v3695
    %v3703 = vld [vmem:[#allocation9] sm:$0xff]
    %v3704 = vld [vmem:[#allocation9 + $0x8] sm:$0xff]
    %v3705 = vld [vmem:[#allocation9 + $0x10] sm:$0xff]
    %v3706 = vld [vmem:[#allocation9 + $0x18] sm:$0xff]
    %v3707 = vld [vmem:[#allocation9 + $0x20] sm:$0xff]
    %v3708 = vld [vmem:[#allocation9 + $0x28] sm:$0xff]
    %v3709 = vld [vmem:[#allocation9 + $0x30] sm:$0xff]
    %v3710 = vld [vmem:[#allocation9 + $0x38] sm:$0xff]
    %v3711 = vld [vmem:[#allocation9 + $0x40] sm:$0xff]
    %v3712 = vld [vmem:[#allocation9 + $0x48] sm:$0xff]
    %v3713 = vld [vmem:[#allocation9 + $0x50] sm:$0xff]
    %v3714 = vld [vmem:[#allocation9 + $0x58] sm:$0xff]
    %v3715 = vld [vmem:[#allocation9 + $0x60] sm:$0xff]
    %v3716 = vld [vmem:[#allocation9 + $0x68] sm:$0xff]
    %v3717 = vld [vmem:[#allocation9 + $0x70] sm:$0xff]
    %v3718 = vld [vmem:[#allocation9 + $0x78] sm:$0xff]
    %v3719 = vld [vmem:[#allocation9 + $0x80] sm:$0xff]
    %v3720 = vld [vmem:[#allocation9 + $0x88] sm:$0xff]
    %v3721 = vld [vmem:[#allocation9 + $0x90] sm:$0xff]
    %v3722 = vld [vmem:[#allocation9 + $0x98] sm:$0xff]
    %v3723 = vld [vmem:[#allocation9 + $0xa0] sm:$0xff]
    %v3724 = vld [vmem:[#allocation9 + $0xa8] sm:$0xff]
    %v3725 = vld [vmem:[#allocation9 + $0xb0] sm:$0xff]
    %v3726 = vld [vmem:[#allocation9 + $0xb8] sm:$0xff]
    %v3727 = vld [vmem:[#allocation9 + $0xc0] sm:$0xff]
    %v3728 = vld [vmem:[#allocation9 + $0xc8] sm:$0xff]
    %v3729 = vld [vmem:[#allocation9 + $0xd0] sm:$0xff]
    %v3730 = vld [vmem:[#allocation9 + $0xd8] sm:$0xff]
    %v3731 = vld [vmem:[#allocation9 + $0xe0] sm:$0xff]
    %v3732 = vld [vmem:[#allocation9 + $0xe8] sm:$0xff]
    %v3733 = vld [vmem:[#allocation9 + $0xf0] sm:$0xff]
    %v3734 = vld [vmem:[#allocation9 + $0xf8] sm:$0xff]
    %v3735 = vld [vmem:[#allocation9 + $0x100] sm:$0xff]
    %v3736 = vld [vmem:[#allocation9 + $0x108] sm:$0xff]
    %v3737 = vld [vmem:[#allocation9 + $0x110] sm:$0xff]
    %v3738 = vld [vmem:[#allocation9 + $0x118] sm:$0xff]
    %v3739 = vld [vmem:[#allocation9 + $0x120] sm:$0xff]
    %v3740 = vld [vmem:[#allocation9 + $0x128] sm:$0xff]
    %v3741 = vld [vmem:[#allocation9 + $0x130] sm:$0xff]
    %v3742 = vld [vmem:[#allocation9 + $0x138] sm:$0xff]
    %v3743 = vld [vmem:[#allocation9 + $0x140] sm:$0xff]
    %v3744 = vld [vmem:[#allocation9 + $0x148] sm:$0xff]
    %v3745 = vld [vmem:[#allocation9 + $0x150] sm:$0xff]
    %v3746 = vld [vmem:[#allocation9 + $0x158] sm:$0xff]
    %v3747 = vld [vmem:[#allocation9 + $0x160] sm:$0xff]
    %v3748 = vld [vmem:[#allocation9 + $0x168] sm:$0xff]
    %v3749 = vld [vmem:[#allocation9 + $0x170] sm:$0xff]
    %v3750 = vld [vmem:[#allocation9 + $0x178] sm:$0xff]
    %v3751 = vld [vmem:[#allocation9 + $0x180] sm:$0xff]
    %v3752 = vld [vmem:[#allocation9 + $0x188] sm:$0xff]
    %v3753 = vld [vmem:[#allocation9 + $0x190] sm:$0xff]
    %v3754 = vld [vmem:[#allocation9 + $0x198] sm:$0xff]
    %v3755 = vld [vmem:[#allocation9 + $0x1a0] sm:$0xff]
    %v3756 = vld [vmem:[#allocation9 + $0x1a8] sm:$0xff]
    %v3757 = vld [vmem:[#allocation9 + $0x1b0] sm:$0xff]
    %v3758 = vld [vmem:[#allocation9 + $0x1b8] sm:$0xff]
    %v3759 = vld [vmem:[#allocation9 + $0x1c0] sm:$0xff]
    %v3760 = vld [vmem:[#allocation9 + $0x1c8] sm:$0xff]
    %v3761 = vld [vmem:[#allocation9 + $0x1d0] sm:$0xff]
    %v3762 = vld [vmem:[#allocation9 + $0x1d8] sm:$0xff]
    %v3763 = vld [vmem:[#allocation9 + $0x1e0] sm:$0xff]
    %v3764 = vld [vmem:[#allocation9 + $0x1e8] sm:$0xff]
    %v3765 = vld [vmem:[#allocation9 + $0x1f0] sm:$0xff]
    %v3766 = vld [vmem:[#allocation9 + $0x1f8] sm:$0xff]
    %v3767 = vld [vmem:[#allocation11] sm:$0xff]
    %v3768 = vld [vmem:[#allocation11 + $0x8] sm:$0xff]
    %v3769 = vld [vmem:[#allocation11 + $0x10] sm:$0xff]
    %v3770 = vld [vmem:[#allocation11 + $0x18] sm:$0xff]
    %v3771 = vld [vmem:[#allocation11 + $0x20] sm:$0xff]
    %v3772 = vld [vmem:[#allocation11 + $0x28] sm:$0xff]
    %v3773 = vld [vmem:[#allocation11 + $0x30] sm:$0xff]
    %v3774 = vld [vmem:[#allocation11 + $0x38] sm:$0xff]
    %v3775 = vld [vmem:[#allocation11 + $0x40] sm:$0xff]
    %v3776 = vld [vmem:[#allocation11 + $0x48] sm:$0xff]
    %v3777 = vld [vmem:[#allocation11 + $0x50] sm:$0xff]
    %v3778 = vld [vmem:[#allocation11 + $0x58] sm:$0xff]
    %v3779 = vld [vmem:[#allocation11 + $0x60] sm:$0xff]
    %v3780 = vld [vmem:[#allocation11 + $0x68] sm:$0xff]
    %v3781 = vld [vmem:[#allocation11 + $0x70] sm:$0xff]
    %v3782 = vld [vmem:[#allocation11 + $0x78] sm:$0xff]
    %v3783 = vld [vmem:[#allocation11 + $0x80] sm:$0xff]
    %v3784 = vld [vmem:[#allocation11 + $0x88] sm:$0xff]
    %v3785 = vld [vmem:[#allocation11 + $0x90] sm:$0xff]
    %v3786 = vld [vmem:[#allocation11 + $0x98] sm:$0xff]
    %v3787 = vld [vmem:[#allocation11 + $0xa0] sm:$0xff]
    %v3788 = vld [vmem:[#allocation11 + $0xa8] sm:$0xff]
    %v3789 = vld [vmem:[#allocation11 + $0xb0] sm:$0xff]
    %v3790 = vld [vmem:[#allocation11 + $0xb8] sm:$0xff]
    %v3791 = vld [vmem:[#allocation11 + $0xc0] sm:$0xff]
    %v3792 = vld [vmem:[#allocation11 + $0xc8] sm:$0xff]
    %v3793 = vld [vmem:[#allocation11 + $0xd0] sm:$0xff]
    %v3794 = vld [vmem:[#allocation11 + $0xd8] sm:$0xff]
    %v3795 = vld [vmem:[#allocation11 + $0xe0] sm:$0xff]
    %v3796 = vld [vmem:[#allocation11 + $0xe8] sm:$0xff]
    %v3797 = vld [vmem:[#allocation11 + $0xf0] sm:$0xff]
    %v3798 = vld [vmem:[#allocation11 + $0xf8] sm:$0xff]
    %v3799 = vld [vmem:[#allocation11 + $0x100] sm:$0xff]
    %v3800 = vld [vmem:[#allocation11 + $0x108] sm:$0xff]
    %v3801 = vld [vmem:[#allocation11 + $0x110] sm:$0xff]
    %v3802 = vld [vmem:[#allocation11 + $0x118] sm:$0xff]
    %v3803 = vld [vmem:[#allocation11 + $0x120] sm:$0xff]
    %v3804 = vld [vmem:[#allocation11 + $0x128] sm:$0xff]
    %v3805 = vld [vmem:[#allocation11 + $0x130] sm:$0xff]
    %v3806 = vld [vmem:[#allocation11 + $0x138] sm:$0xff]
    %v3807 = vld [vmem:[#allocation11 + $0x140] sm:$0xff]
    %v3808 = vld [vmem:[#allocation11 + $0x148] sm:$0xff]
    %v3809 = vld [vmem:[#allocation11 + $0x150] sm:$0xff]
    %v3810 = vld [vmem:[#allocation11 + $0x158] sm:$0xff]
    %v3811 = vld [vmem:[#allocation11 + $0x160] sm:$0xff]
    %v3812 = vld [vmem:[#allocation11 + $0x168] sm:$0xff]
    %v3813 = vld [vmem:[#allocation11 + $0x170] sm:$0xff]
    %v3814 = vld [vmem:[#allocation11 + $0x178] sm:$0xff]
    %v3815 = vld [vmem:[#allocation11 + $0x180] sm:$0xff]
    %v3816 = vld [vmem:[#allocation11 + $0x188] sm:$0xff]
    %v3817 = vld [vmem:[#allocation11 + $0x190] sm:$0xff]
    %v3818 = vld [vmem:[#allocation11 + $0x198] sm:$0xff]
    %v3819 = vld [vmem:[#allocation11 + $0x1a0] sm:$0xff]
    %v3820 = vld [vmem:[#allocation11 + $0x1a8] sm:$0xff]
    %v3821 = vld [vmem:[#allocation11 + $0x1b0] sm:$0xff]
    %v3822 = vld [vmem:[#allocation11 + $0x1b8] sm:$0xff]
    %v3823 = vld [vmem:[#allocation11 + $0x1c0] sm:$0xff]
    %v3824 = vld [vmem:[#allocation11 + $0x1c8] sm:$0xff]
    %v3825 = vld [vmem:[#allocation11 + $0x1d0] sm:$0xff]
    %v3826 = vld [vmem:[#allocation11 + $0x1d8] sm:$0xff]
    %v3827 = vld [vmem:[#allocation11 + $0x1e0] sm:$0xff]
    %v3828 = vld [vmem:[#allocation11 + $0x1e8] sm:$0xff]
    %v3829 = vld [vmem:[#allocation11 + $0x1f0] sm:$0xff]
    %v3830 = vld [vmem:[#allocation11 + $0x1f8] sm:$0xff]
    %v3831 = vld [vmem:[%s9] sm:$0xf]
    %v3832 = vld [vmem:[#allocation3] sm:$0xff]
    %v3833 = vld [vmem:[#allocation3 + $0x8] sm:$0xff]
    %v3834 = vld [vmem:[#allocation3 + $0x10] sm:$0xff]
    %v3835 = vld [vmem:[#allocation3 + $0x18] sm:$0xff]
    %v3836 = vld [vmem:[#allocation3 + $0x20] sm:$0xff]
    %v3837 = vld [vmem:[#allocation3 + $0x28] sm:$0xff]
    %v3838 = vld [vmem:[#allocation3 + $0x30] sm:$0xff]
    %v3839 = vld [vmem:[#allocation3 + $0x38] sm:$0xff]
    %v3841 = vlaneseq
    %v3842 = vshrl.u32 %v3841, 7
    %v3843 = vsub.s32 0, %v3842
    %v3844 = vrot.slane %v3831, %v3843
    %v3845 = vlaneseq
    %v3846 = vshrl.u32 %v3845, 7
    %v3847 = vsub.s32 1, %v3846
    %v3848 = vrot.slane %v3831, %v3847
    %v3849 = vlaneseq
    %v3850 = vshrl.u32 %v3849, 7
    %v3851 = vsub.s32 2, %v3850
    %v3852 = vrot.slane %v3831, %v3851
    %v3853 = vlaneseq
    %v3854 = vshrl.u32 %v3853, 7
    %v3855 = vsub.s32 3, %v3854
    %v3856 = vrot.slane %v3831, %v3855
    %3861 = vmatprep.subr.mxu0 %v3704
    %3862 = vmatpush1.msra.mxu0 %v3703
    %3863 = vmatprep.subr.mxu0 %v3708
    %3864 = vmatpush1.msra.mxu0 %v3707
    %3865 = vmatprep.subr.mxu0 %v3712
    %3866 = vmatpush1.msra.mxu0 %v3711
    %3867 = vmatprep.subr.mxu0 %v3716
    %3868 = vmatpush1.msra.mxu0 %v3715
    %3869 = vmatprep.subr.mxu0 %v3720
    %3870 = vmatpush1.msra.mxu0 %v3719
    %3871 = vmatprep.subr.mxu0 %v3724
    %3872 = vmatpush1.msra.mxu0 %v3723
    %3873 = vmatprep.subr.mxu0 %v3728
    %3874 = vmatpush1.msra.mxu0 %v3727
    %3875 = vmatprep.subr.mxu0 %v3732
    %3876 = vmatpush1.msra.mxu0 %v3731
    %3877 = vmatprep.subr.mxu0 %v3736
    %3878 = vmatpush1.msra.mxu0 %v3735
    %3879 = vmatprep.subr.mxu0 %v3740
    %3880 = vmatpush1.msra.mxu0 %v3739
    %3881 = vmatprep.subr.mxu0 %v3744
    %3882 = vmatpush1.msra.mxu0 %v3743
    %3883 = vmatprep.subr.mxu0 %v3748
    %3884 = vmatpush1.msra.mxu0 %v3747
    %3885 = vmatprep.subr.mxu0 %v3752
    %3886 = vmatpush1.msra.mxu0 %v3751
    %3887 = vmatprep.subr.mxu0 %v3756
    %3888 = vmatpush1.msra.mxu0 %v3755
    %3889 = vmatprep.subr.mxu0 %v3760
    %3890 = vmatpush1.msra.mxu0 %v3759
    %3891 = vmatprep.subr.mxu0 %v3764
    %3892 = vmatpush1.msra.mxu0 %v3763
    %3893 = vmatprep.subr.mxu0 0.0
    %3894 = vmatpush1.msra.mxu0 0.0
    %3895 = vmatprep.subr.mxu0 0.0
    %3896 = vmatpush1.msra.mxu0 0.0
    %3897 = vmatprep.subr.mxu0 0.0
    %3898 = vmatpush1.msra.mxu0 0.0
    %3899 = vmatprep.subr.mxu0 0.0
    %3900 = vmatpush1.msra.mxu0 0.0
    %3901 = vmatprep.subr.mxu0 0.0
    %3902 = vmatpush1.msra.mxu0 0.0
    %3903 = vmatprep.subr.mxu0 0.0
    %3904 = vmatpush1.msra.mxu0 0.0
    %3905 = vmatprep.subr.mxu0 0.0
    %3906 = vmatpush1.msra.mxu0 0.0
    %3907 = vmatprep.subr.mxu0 0.0
    %3908 = vmatpush1.msra.mxu0 0.0
    %3909 = vmatprep.subr.mxu0 0.0
    %3910 = vmatpush1.msra.mxu0 0.0
    %3911 = vmatprep.subr.mxu0 0.0
    %3912 = vmatpush1.msra.mxu0 0.0
    %3913 = vmatprep.subr.mxu0 0.0
    %3914 = vmatpush1.msra.mxu0 0.0
    %3915 = vmatprep.subr.mxu0 0.0
    %3916 = vmatpush1.msra.mxu0 0.0
    %3917 = vmatprep.subr.mxu0 0.0
    %3918 = vmatpush1.msra.mxu0 0.0
    %3919 = vmatprep.subr.mxu0 0.0
    %3920 = vmatpush1.msra.mxu0 0.0
    %3921 = vmatprep.subr.mxu0 0.0
    %3922 = vmatpush1.msra.mxu0 0.0
    %3923 = vmatprep.subr.mxu0 0.0
    %3924 = vmatpush1.msra.mxu0 0.0
    %3925 = vmatprep.mubr.f32.mxu0 0.0
    %3926 = vmatmul.mubr.f32.gmra.mrb[0].mxu0 %v3832
    %v3927 = vpop.f32.mrb[0].mxu0
    %v3928 = vadd.f32 %v3844, %v3927
    %v3929 = vpop.f32.mrb[0].mxu0
    %v3930 = vadd.f32 %v3848, %v3929
    %3931 = vmatprep.mubr.f32.mxu0 0.0
    %3932 = vmatmul.mubr.f32.gmra.mrb[0].mxu0 %v3833
    %v3933 = vpop.f32.mrb[0].mxu0
    %v3934 = vadd.f32 %v3844, %v3933
    %v3935 = vpop.f32.mrb[0].mxu0
    %v3936 = vadd.f32 %v3848, %v3935
    %3937 = vmatprep.mubr.f32.mxu0 0.0
    %3938 = vmatmul.mubr.f32.gmra.mrb[0].mxu0 %v3834
    %v3939 = vpop.f32.mrb[0].mxu0
    %v3940 = vadd.f32 %v3844, %v3939
    %v3941 = vpop.f32.mrb[0].mxu0
    %v3942 = vadd.f32 %v3848, %v3941
    %3943 = vmatprep.mubr.f32.mxu0 0.0
    %3944 = vmatmul.mubr.f32.gmra.mrb[0].mxu0 %v3835
    %v3945 = vpop.f32.mrb[0].mxu0
    %v3946 = vadd.f32 %v3844, %v3945
    %v3947 = vpop.f32.mrb[0].mxu0
    %v3948 = vadd.f32 %v3848, %v3947
    %3949 = vmatprep.mubr.f32.mxu0 0.0
    %3950 = vmatmul.mubr.f32.gmra.mrb[0].mxu0 %v3836
    %v3951 = vpop.f32.mrb[0].mxu0
    %v3952 = vadd.f32 %v3844, %v3951
    %v3953 = vpop.f32.mrb[0].mxu0
    %v3954 = vadd.f32 %v3848, %v3953
    %3955 = vmatprep.mubr.f32.mxu0 0.0
    %3956 = vmatmul.mubr.f32.gmra.mrb[0].mxu0 %v3837
    %v3957 = vpop.f32.mrb[0].mxu0
    %v3958 = vadd.f32 %v3844, %v3957
    %v3959 = vpop.f32.mrb[0].mxu0
    %v3960 = vadd.f32 %v3848, %v3959
    %3961 = vmatprep.mubr.f32.mxu0 0.0
    %3962 = vmatmul.mubr.f32.gmra.mrb[0].mxu0 %v3838
    %v3963 = vpop.f32.mrb[0].mxu0
    %v3964 = vadd.f32 %v3844, %v3963
    %v3965 = vpop.f32.mrb[0].mxu0
    %v3966 = vadd.f32 %v3848, %v3965
    %3967 = vmatprep.mubr.f32.mxu0 0.0
    %3968 = vmatmul.mubr.f32.gmra.mrb[0].mxu0 %v3839
    %v3969 = vpop.f32.mrb[0].mxu0
    %v3970 = vadd.f32 %v3844, %v3969
    %v3971 = vpop.f32.mrb[0].mxu0
    %v3972 = vadd.f32 %v3848, %v3971
    %3973 = vdwg.mxu0
    %3974 = vmatprep.subr.mxu0 %v3706
    %3975 = vmatpush1.msra.mxu0 %v3705
    %3976 = vmatprep.subr.mxu0 %v3710
    %3977 = vmatpush1.msra.mxu0 %v3709
    %3978 = vmatprep.subr.mxu0 %v3714
    %3979 = vmatpush1.msra.mxu0 %v3713
    %3980 = vmatprep.subr.mxu0 %v3718
    %3981 = vmatpush1.msra.mxu0 %v3717
    %3982 = vmatprep.subr.mxu0 %v3722
    %3983 = vmatpush1.msra.mxu0 %v3721
    %3984 = vmatprep.subr.mxu0 %v3726
    %3985 = vmatpush1.msra.mxu0 %v3725
    %3986 = vmatprep.subr.mxu0 %v3730
    %3987 = vmatpush1.msra.mxu0 %v3729
    %3988 = vmatprep.subr.mxu0 %v3734
    %3989 = vmatpush1.msra.mxu0 %v3733
    %3990 = vmatprep.subr.mxu0 %v3738
    %3991 = vmatpush1.msra.mxu0 %v3737
    %3992 = vmatprep.subr.mxu0 %v3742
    %3993 = vmatpush1.msra.mxu0 %v3741
    %3994 = vmatprep.subr.mxu0 %v3746
    %3995 = vmatpush1.msra.mxu0 %v3745
    %3996 = vmatprep.subr.mxu0 %v3750
    %3997 = vmatpush1.msra.mxu0 %v3749
    %3998 = vmatprep.subr.mxu0 %v3754
    %3999 = vmatpush1.msra.mxu0 %v3753
    %4000 = vmatprep.subr.mxu0 %v3758
    %4001 = vmatpush1.msra.mxu0 %v3757
    %4002 = vmatprep.subr.mxu0 %v3762
    %4003 = vmatpush1.msra.mxu0 %v3761
    %4004 = vmatprep.subr.mxu0 %v3766
    %4005 = vmatpush1.msra.mxu0 %v3765
    %4006 = vmatprep.subr.mxu0 0.0
    %4007 = vmatpush1.msra.mxu0 0.0
    %4008 = vmatprep.subr.mxu0 0.0
    %4009 = vmatpush1.msra.mxu0 0.0
    %4010 = vmatprep.subr.mxu0 0.0
    %4011 = vmatpush1.msra.mxu0 0.0
    %4012 = vmatprep.subr.mxu0 0.0
    %4013 = vmatpush1.msra.mxu0 0.0
    %4014 = vmatprep.subr.mxu0 0.0
    %4015 = vmatpush1.msra.mxu0 0.0
    %4016 = vmatprep.subr.mxu0 0.0
    %4017 = vmatpush1.msra.mxu0 0.0
    %4018 = vmatprep.subr.mxu0 0.0
    %4019 = vmatpush1.msra.mxu0 0.0
    %4020 = vmatprep.subr.mxu0 0.0
    %4021 = vmatpush1.msra.mxu0 0.0
    %4022 = vmatprep.subr.mxu0 0.0
    %4023 = vmatpush1.msra.mxu0 0.0
    %4024 = vmatprep.subr.mxu0 0.0
    %4025 = vmatpush1.msra.mxu0 0.0
    %4026 = vmatprep.subr.mxu0 0.0
    %4027 = vmatpush1.msra.mxu0 0.0
    %4028 = vmatprep.subr.mxu0 0.0
    %4029 = vmatpush1.msra.mxu0 0.0
    %4030 = vmatprep.subr.mxu0 0.0
    %4031 = vmatpush1.msra.mxu0 0.0
    %4032 = vmatprep.subr.mxu0 0.0
    %4033 = vmatpush1.msra.mxu0 0.0
    %4034 = vmatprep.subr.mxu0 0.0
    %4035 = vmatpush1.msra.mxu0 0.0
    %4036 = vmatprep.subr.mxu0 0.0
    %4037 = vmatpush1.msra.mxu0 0.0
    %4038 = vmatprep.mubr.f32.mxu0 0.0
    %4039 = vmatmul.mubr.f32.gmra.mrb[0].mxu0 %v3832
    %v4040 = vpop.f32.mrb[0].mxu0
    %v4041 = vadd.f32 %v3852, %v4040
    %v4042 = vpop.f32.mrb[0].mxu0
    %v4043 = vadd.f32 %v3856, %v4042
    %4044 = vmatprep.mubr.f32.mxu0 0.0
    %4045 = vmatmul.mubr.f32.gmra.mrb[0].mxu0 %v3833
    %v4046 = vpop.f32.mrb[0].mxu0
    %v4047 = vadd.f32 %v3852, %v4046
    %v4048 = vpop.f32.mrb[0].mxu0
    %v4049 = vadd.f32 %v3856, %v4048
    %4050 = vmatprep.mubr.f32.mxu0 0.0
    %4051 = vmatmul.mubr.f32.gmra.mrb[0].mxu0 %v3834
    %v4052 = vpop.f32.mrb[0].mxu0
    %v4053 = vadd.f32 %v3852, %v4052
    %v4054 = vpop.f32.mrb[0].mxu0
    %v4055 = vadd.f32 %v3856, %v4054
    %4056 = vmatprep.mubr.f32.mxu0 0.0
    %4057 = vmatmul.mubr.f32.gmra.mrb[0].mxu0 %v3835
    %v4058 = vpop.f32.mrb[0].mxu0
    %v4059 = vadd.f32 %v3852, %v4058
    %v4060 = vpop.f32.mrb[0].mxu0
    %v4061 = vadd.f32 %v3856, %v4060
    %4062 = vmatprep.mubr.f32.mxu0 0.0
    %4063 = vmatmul.mubr.f32.gmra.mrb[0].mxu0 %v3836
    %v4064 = vpop.f32.mrb[0].mxu0
    %v4065 = vadd.f32 %v3852, %v4064
    %v4066 = vpop.f32.mrb[0].mxu0
    %v4067 = vadd.f32 %v3856, %v4066
    %4068 = vmatprep.mubr.f32.mxu0 0.0
    %4069 = vmatmul.mubr.f32.gmra.mrb[0].mxu0 %v3837
    %v4070 = vpop.f32.mrb[0].mxu0
    %v4071 = vadd.f32 %v3852, %v4070
    %v4072 = vpop.f32.mrb[0].mxu0
    %v4073 = vadd.f32 %v3856, %v4072
    %4074 = vmatprep.mubr.f32.mxu0 0.0
    %4075 = vmatmul.mubr.f32.gmra.mrb[0].mxu0 %v3838
    %v4076 = vpop.f32.mrb[0].mxu0
    %v4077 = vadd.f32 %v3852, %v4076
    %v4078 = vpop.f32.mrb[0].mxu0
    %v4079 = vadd.f32 %v3856, %v4078
    %4080 = vmatprep.mubr.f32.mxu0 0.0
    %4081 = vmatmul.mubr.f32.gmra.mrb[0].mxu0 %v3839
    %v4082 = vpop.f32.mrb[0].mxu0
    %v4083 = vadd.f32 %v3852, %v4082
    %v4084 = vpop.f32.mrb[0].mxu0
    %v4085 = vadd.f32 %v3856, %v4084
    %4086 = vdwg.mxu0
    %4087 = vst [vmem:[#allocation2] sm:$0xff] %v3928
    %4088 = vst [vmem:[#allocation2 + $0x8] sm:$0xff] %v3930
    %4089 = vst [vmem:[#allocation2 + $0x10] sm:$0xff] %v4041
    %4090 = vst [vmem:[#allocation2 + $0x18] sm:$0xff] %v4043
    %4091 = vst [vmem:[#allocation2 + $0x20] sm:$0xff] %v3934
    %4092 = vst [vmem:[#allocation2 + $0x28] sm:$0xff] %v3936
    %4093 = vst [vmem:[#allocation2 + $0x30] sm:$0xff] %v4047
    %4094 = vst [vmem:[#allocation2 + $0x38] sm:$0xff] %v4049
    %4095 = vst [vmem:[#allocation2 + $0x40] sm:$0xff] %v3940
    %4096 = vst [vmem:[#allocation2 + $0x48] sm:$0xff] %v3942
    %4097 = vst [vmem:[#allocation2 + $0x50] sm:$0xff] %v4053
    %4098 = vst [vmem:[#allocation2 + $0x58] sm:$0xff] %v4055
    %4099 = vst [vmem:[#allocation2 + $0x60] sm:$0xff] %v3946
    %4100 = vst [vmem:[#allocation2 + $0x68] sm:$0xff] %v3948
    %4101 = vst [vmem:[#allocation2 + $0x70] sm:$0xff] %v4059
    %4102 = vst [vmem:[#allocation2 + $0x78] sm:$0xff] %v4061
    %4103 = vst [vmem:[#allocation2 + $0x80] sm:$0xff] %v3952
    %4104 = vst [vmem:[#allocation2 + $0x88] sm:$0xff] %v3954
    %4105 = vst [vmem:[#allocation2 + $0x90] sm:$0xff] %v4065
    %4106 = vst [vmem:[#allocation2 + $0x98] sm:$0xff] %v4067
    %4107 = vst [vmem:[#allocation2 + $0xa0] sm:$0xff] %v3958
    %4108 = vst [vmem:[#allocation2 + $0xa8] sm:$0xff] %v3960
    %4109 = vst [vmem:[#allocation2 + $0xb0] sm:$0xff] %v4071
    %4110 = vst [vmem:[#allocation2 + $0xb8] sm:$0xff] %v4073
    %4111 = vst [vmem:[#allocation2 + $0xc0] sm:$0xff] %v3964
    %4112 = vst [vmem:[#allocation2 + $0xc8] sm:$0xff] %v3966
    %4113 = vst [vmem:[#allocation2 + $0xd0] sm:$0xff] %v4077
    %4114 = vst [vmem:[#allocation2 + $0xd8] sm:$0xff] %v4079
    %4115 = vst [vmem:[#allocation2 + $0xe0] sm:$0xff] %v3970
    %4116 = vst [vmem:[#allocation2 + $0xe8] sm:$0xff] %v3972
    %4117 = vst [vmem:[#allocation2 + $0xf0] sm:$0xff] %v4083
    %4118 = vst [vmem:[#allocation2 + $0xf8] sm:$0xff] %v4085
    %v4119 = vld [vmem:[%s500] sm:$0xff]
    %v4120 = vld [vmem:[%s500 + $0x8] sm:$0xff]
    %v4121 = vld [vmem:[%s500 + $0x10] sm:$0xff]
    %v4122 = vld [vmem:[%s500 + $0x18] sm:$0xff]
    %4123 = vmatprep.subr.mxu0 %v3768
    %4124 = vmatpush1.msra.mxu0 %v3767
    %4125 = vmatprep.subr.mxu0 %v3772
    %4126 = vmatpush1.msra.mxu0 %v3771
    %4127 = vmatprep.subr.mxu0 %v3776
    %4128 = vmatpush1.msra.mxu0 %v3775
    %4129 = vmatprep.subr.mxu0 %v3780
    %4130 = vmatpush1.msra.mxu0 %v3779
    %4131 = vmatprep.subr.mxu0 %v3784
    %4132 = vmatpush1.msra.mxu0 %v3783
    %4133 = vmatprep.subr.mxu0 %v3788
    %4134 = vmatpush1.msra.mxu0 %v3787
    %4135 = vmatprep.subr.mxu0 %v3792
    %4136 = vmatpush1.msra.mxu0 %v3791
    %4137 = vmatprep.subr.mxu0 %v3796
    %4138 = vmatpush1.msra.mxu0 %v3795
    %4139 = vmatprep.subr.mxu0 %v3800
    %4140 = vmatpush1.msra.mxu0 %v3799
    %4141 = vmatprep.subr.mxu0 %v3804
    %4142 = vmatpush1.msra.mxu0 %v3803
    %4143 = vmatprep.subr.mxu0 %v3808
    %4144 = vmatpush1.msra.mxu0 %v3807
    %4145 = vmatprep.subr.mxu0 %v3812
    %4146 = vmatpush1.msra.mxu0 %v3811
    %4147 = vmatprep.subr.mxu0 %v3816
    %4148 = vmatpush1.msra.mxu0 %v3815
    %4149 = vmatprep.subr.mxu0 %v3820
    %4150 = vmatpush1.msra.mxu0 %v3819
    %4151 = vmatprep.subr.mxu0 %v3824
    %4152 = vmatpush1.msra.mxu0 %v3823
    %4153 = vmatprep.subr.mxu0 %v3828
    %4154 = vmatpush1.msra.mxu0 %v3827
    %4155 = vmatprep.subr.mxu0 0.0
    %4156 = vmatpush1.msra.mxu0 0.0
    %4157 = vmatprep.subr.mxu0 0.0
    %4158 = vmatpush1.msra.mxu0 0.0
    %4159 = vmatprep.subr.mxu0 0.0
    %4160 = vmatpush1.msra.mxu0 0.0
    %4161 = vmatprep.subr.mxu0 0.0
    %4162 = vmatpush1.msra.mxu0 0.0
    %4163 = vmatprep.subr.mxu0 0.0
    %4164 = vmatpush1.msra.mxu0 0.0
    %4165 = vmatprep.subr.mxu0 0.0
    %4166 = vmatpush1.msra.mxu0 0.0
    %4167 = vmatprep.subr.mxu0 0.0
    %4168 = vmatpush1.msra.mxu0 0.0
    %4169 = vmatprep.subr.mxu0 0.0
    %4170 = vmatpush1.msra.mxu0 0.0
    %4171 = vmatprep.subr.mxu0 0.0
    %4172 = vmatpush1.msra.mxu0 0.0
    %4173 = vmatprep.subr.mxu0 0.0
    %4174 = vmatpush1.msra.mxu0 0.0
    %4175 = vmatprep.subr.mxu0 0.0
    %4176 = vmatpush1.msra.mxu0 0.0
    %4177 = vmatprep.subr.mxu0 0.0
    %4178 = vmatpush1.msra.mxu0 0.0
    %4179 = vmatprep.subr.mxu0 0.0
    %4180 = vmatpush1.msra.mxu0 0.0
    %4181 = vmatprep.subr.mxu0 0.0
    %4182 = vmatpush1.msra.mxu0 0.0
    %4183 = vmatprep.subr.mxu0 0.0
    %4184 = vmatpush1.msra.mxu0 0.0
    %4185 = vmatprep.subr.mxu0 0.0
    %4186 = vmatpush1.msra.mxu0 0.0
    %4187 = vmatprep.mubr.f32.mxu0 0.0
    %4188 = vmatmul.mubr.f32.gmra.mrb[0].mxu0 0.0
    %v4189 = vpop.f32.mrb[0].mxu0
    %v4190 = vadd.f32 0.0, %v4189
    %v4191 = vpop.f32.mrb[0].mxu0
    %v4192 = vadd.f32 0.0, %v4191
    %4193 = vdwg.mxu0
    %4194 = vmatprep.subr.mxu0 %v3770
    %4195 = vmatpush1.msra.mxu0 %v3769
    %4196 = vmatprep.subr.mxu0 %v3774
    %4197 = vmatpush1.msra.mxu0 %v3773
    %4198 = vmatprep.subr.mxu0 %v3778
    %4199 = vmatpush1.msra.mxu0 %v3777
    %4200 = vmatprep.subr.mxu0 %v3782
    %4201 = vmatpush1.msra.mxu0 %v3781
    %4202 = vmatprep.subr.mxu0 %v3786
    %4203 = vmatpush1.msra.mxu0 %v3785
    %4204 = vmatprep.subr.mxu0 %v3790
    %4205 = vmatpush1.msra.mxu0 %v3789
    %4206 = vmatprep.subr.mxu0 %v3794
    %4207 = vmatpush1.msra.mxu0 %v3793
    %4208 = vmatprep.subr.mxu0 %v3798
    %4209 = vmatpush1.msra.mxu0 %v3797
    %4210 = vmatprep.subr.mxu0 %v3802
    %4211 = vmatpush1.msra.mxu0 %v3801
    %4212 = vmatprep.subr.mxu0 %v3806
    %4213 = vmatpush1.msra.mxu0 %v3805
    %4214 = vmatprep.subr.mxu0 %v3810
    %4215 = vmatpush1.msra.mxu0 %v3809
    %4216 = vmatprep.subr.mxu0 %v3814
    %4217 = vmatpush1.msra.mxu0 %v3813
    %4218 = vmatprep.subr.mxu0 %v3818
    %4219 = vmatpush1.msra.mxu0 %v3817
    %4220 = vmatprep.subr.mxu0 %v3822
    %4221 = vmatpush1.msra.mxu0 %v3821
    %4222 = vmatprep.subr.mxu0 %v3826
    %4223 = vmatpush1.msra.mxu0 %v3825
    %4224 = vmatprep.subr.mxu0 %v3830
    %4225 = vmatpush1.msra.mxu0 %v3829
    %4226 = vmatprep.subr.mxu0 0.0
    %4227 = vmatpush1.msra.mxu0 0.0
    %4228 = vmatprep.subr.mxu0 0.0
    %4229 = vmatpush1.msra.mxu0 0.0
    %4230 = vmatprep.subr.mxu0 0.0
    %4231 = vmatpush1.msra.mxu0 0.0
    %4232 = vmatprep.subr.mxu0 0.0
    %4233 = vmatpush1.msra.mxu0 0.0
    %4234 = vmatprep.subr.mxu0 0.0
    %4235 = vmatpush1.msra.mxu0 0.0
    %4236 = vmatprep.subr.mxu0 0.0
    %4237 = vmatpush1.msra.mxu0 0.0
    %4238 = vmatprep.subr.mxu0 0.0
    %4239 = vmatpush1.msra.mxu0 0.0
    %4240 = vmatprep.subr.mxu0 0.0
    %4241 = vmatpush1.msra.mxu0 0.0
    %4242 = vmatprep.subr.mxu0 0.0
    %4243 = vmatpush1.msra.mxu0 0.0
    %4244 = vmatprep.subr.mxu0 0.0
    %4245 = vmatpush1.msra.mxu0 0.0
    %4246 = vmatprep.subr.mxu0 0.0
    %4247 = vmatpush1.msra.mxu0 0.0
    %4248 = vmatprep.subr.mxu0 0.0
    %4249 = vmatpush1.msra.mxu0 0.0
    %4250 = vmatprep.subr.mxu0 0.0
    %4251 = vmatpush1.msra.mxu0 0.0
    %4252 = vmatprep.subr.mxu0 0.0
    %4253 = vmatpush1.msra.mxu0 0.0
    %4254 = vmatprep.subr.mxu0 0.0
    %4255 = vmatpush1.msra.mxu0 0.0
    %4256 = vmatprep.subr.mxu0 0.0
    %4257 = vmatpush1.msra.mxu0 0.0
    %4258 = vmatprep.mubr.f32.mxu0 0.0
    %4259 = vmatmul.mubr.f32.gmra.mrb[0].mxu0 0.0
    %v4260 = vpop.f32.mrb[0].mxu0
    %v4261 = vadd.f32 0.0, %v4260
    %v4262 = vpop.f32.mrb[0].mxu0
    %v4263 = vadd.f32 0.0, %v4262
    %4264 = vdwg.mxu0
    %v4265 = vadd.f32 %v4119, %v4190
    %v4266 = vadd.f32 %v4120, %v4192
    %v4267 = vadd.f32 %v4121, %v4261
    %v4268 = vadd.f32 %v4122, %v4263
    %v4269 = vsub.f32 0.0, %v4265
    %v4270 = vmul.f32 %v4269, 1.442695
    %v4271 = vpow.pop %v4270
    %v4272 = vadd.f32 %v4271, 1.0
    %v4273 = vrcp.pop %v4272
    %v4274 = vsub.f32 0.0, %v4266
    %v4275 = vmul.f32 %v4274, 1.442695
    %v4276 = vpow.pop %v4275
    %v4277 = vadd.f32 %v4276, 1.0
    %v4278 = vrcp.pop %v4277
    %v4279 = vtanh.pop %v4267
    %v4280 = vsub.f32 0.0, %v4268
    %v4281 = vmul.f32 %v4280, 1.442695
    %v4282 = vpow.pop %v4281
    %v4283 = vadd.f32 %v4282, 1.0
    %v4284 = vrcp.pop %v4283
    %v4285 = vmul.f32 %v4278, 0.0
    %v4286 = vmul.f32 %v4273, %v4279
    %v4287 = vadd.f32 %v4285, %v4286
    %v4288 = vtanh.pop %v4287
    %v4289 = vmul.f32 %v4284, %v4288
    %4290 = vst [vmem:[%s10] sm:$0xff] %v4289
    %v4291 = vld [vmem:[%s675] sm:$0xff]
    %v4292 = vld [vmem:[%s675 + $0x8] sm:$0xff]
    %v4293 = vld [vmem:[%s675 + $0x10] sm:$0xff]
    %v4294 = vld [vmem:[%s675 + $0x18] sm:$0xff]
    %4295 = vmatprep.subr.mxu0 %v3768
    %4296 = vmatpush1.msra.mxu0 %v3767
    %4297 = vmatprep.subr.mxu0 %v3772
    %4298 = vmatpush1.msra.mxu0 %v3771
    %4299 = vmatprep.subr.mxu0 %v3776
    %4300 = vmatpush1.msra.mxu0 %v3775
    %4301 = vmatprep.subr.mxu0 %v3780
    %4302 = vmatpush1.msra.mxu0 %v3779
    %4303 = vmatprep.subr.mxu0 %v3784
    %4304 = vmatpush1.msra.mxu0 %v3783
    %4305 = vmatprep.subr.mxu0 %v3788
    %4306 = vmatpush1.msra.mxu0 %v3787
    %4307 = vmatprep.subr.mxu0 %v3792
    %4308 = vmatpush1.msra.mxu0 %v3791
    %4309 = vmatprep.subr.mxu0 %v3796
    %4310 = vmatpush1.msra.mxu0 %v3795
    %4311 = vmatprep.subr.mxu0 %v3800
    %4312 = vmatpush1.msra.mxu0 %v3799
    %4313 = vmatprep.subr.mxu0 %v3804
    %4314 = vmatpush1.msra.mxu0 %v3803
    %4315 = vmatprep.subr.mxu0 %v3808
    %4316 = vmatpush1.msra.mxu0 %v3807
    %4317 = vmatprep.subr.mxu0 %v3812
    %4318 = vmatpush1.msra.mxu0 %v3811
    %4319 = vmatprep.subr.mxu0 %v3816
    %4320 = vmatpush1.msra.mxu0 %v3815
    %4321 = vmatprep.subr.mxu0 %v3820
    %4322 = vmatpush1.msra.mxu0 %v3819
    %4323 = vmatprep.subr.mxu0 %v3824
    %4324 = vmatpush1.msra.mxu0 %v3823
    %4325 = vmatprep.subr.mxu0 %v3828
    %4326 = vmatpush1.msra.mxu0 %v3827
    %4327 = vmatprep.subr.mxu0 0.0
    %4328 = vmatpush1.msra.mxu0 0.0
    %4329 = vmatprep.subr.mxu0 0.0
    %4330 = vmatpush1.msra.mxu0 0.0
    %4331 = vmatprep.subr.mxu0 0.0
    %4332 = vmatpush1.msra.mxu0 0.0
    %4333 = vmatprep.subr.mxu0 0.0
    %4334 = vmatpush1.msra.mxu0 0.0
    %4335 = vmatprep.subr.mxu0 0.0
    %4336 = vmatpush1.msra.mxu0 0.0
    %4337 = vmatprep.subr.mxu0 0.0
    %4338 = vmatpush1.msra.mxu0 0.0
    %4339 = vmatprep.subr.mxu0 0.0
    %4340 = vmatpush1.msra.mxu0 0.0
    %4341 = vmatprep.subr.mxu0 0.0
    %4342 = vmatpush1.msra.mxu0 0.0
    %4343 = vmatprep.subr.mxu0 0.0
    %4344 = vmatpush1.msra.mxu0 0.0
    %4345 = vmatprep.subr.mxu0 0.0
    %4346 = vmatpush1.msra.mxu0 0.0
    %4347 = vmatprep.subr.mxu0 0.0
    %4348 = vmatpush1.msra.mxu0 0.0
    %4349 = vmatprep.subr.mxu0 0.0
    %4350 = vmatpush1.msra.mxu0 0.0
    %4351 = vmatprep.subr.mxu0 0.0
    %4352 = vmatpush1.msra.mxu0 0.0
    %4353 = vmatprep.subr.mxu0 0.0
    %4354 = vmatpush1.msra.mxu0 0.0
    %4355 = vmatprep.subr.mxu0 0.0
    %4356 = vmatpush1.msra.mxu0 0.0
    %4357 = vmatprep.subr.mxu0 0.0
    %4358 = vmatpush1.msra.mxu0 0.0
    %4359 = vmatprep.mubr.f32.mxu0 0.0
    %4360 = vmatmul.mubr.f32.gmra.mrb[0].mxu0 %v4289
    %v4361 = vpop.f32.mrb[0].mxu0
    %v4362 = vadd.f32 0.0, %v4361
    %v4363 = vpop.f32.mrb[0].mxu0
    %v4364 = vadd.f32 0.0, %v4363
    %4365 = vdwg.mxu0
    %4366 = vmatprep.subr.mxu0 %v3770
    %4367 = vmatpush1.msra.mxu0 %v3769
    %4368 = vmatprep.subr.mxu0 %v3774
    %4369 = vmatpush1.msra.mxu0 %v3773
    %4370 = vmatprep.subr.mxu0 %v3778
    %4371 = vmatpush1.msra.mxu0 %v3777
    %4372 = vmatprep.subr.mxu0 %v3782
    %4373 = vmatpush1.msra.mxu0 %v3781
    %4374 = vmatprep.subr.mxu0 %v3786
    %4375 = vmatpush1.msra.mxu0 %v3785
    %4376 = vmatprep.subr.mxu0 %v3790
    %4377 = vmatpush1.msra.mxu0 %v3789
    %4378 = vmatprep.subr.mxu0 %v3794
    %4379 = vmatpush1.msra.mxu0 %v3793
    %4380 = vmatprep.subr.mxu0 %v3798
    %4381 = vmatpush1.msra.mxu0 %v3797
    %4382 = vmatprep.subr.mxu0 %v3802
    %4383 = vmatpush1.msra.mxu0 %v3801
    %4384 = vmatprep.subr.mxu0 %v3806
    %4385 = vmatpush1.msra.mxu0 %v3805
    %4386 = vmatprep.subr.mxu0 %v3810
    %4387 = vmatpush1.msra.mxu0 %v3809
    %4388 = vmatprep.subr.mxu0 %v3814
    %4389 = vmatpush1.msra.mxu0 %v3813
    %4390 = vmatprep.subr.mxu0 %v3818
    %4391 = vmatpush1.msra.mxu0 %v3817
    %4392 = vmatprep.subr.mxu0 %v3822
    %4393 = vmatpush1.msra.mxu0 %v3821
    %4394 = vmatprep.subr.mxu0 %v3826
    %4395 = vmatpush1.msra.mxu0 %v3825
    %4396 = vmatprep.subr.mxu0 %v3830
    %4397 = vmatpush1.msra.mxu0 %v3829
    %4398 = vmatprep.subr.mxu0 0.0
    %4399 = vmatpush1.msra.mxu0 0.0
    %4400 = vmatprep.subr.mxu0 0.0
    %4401 = vmatpush1.msra.mxu0 0.0
    %4402 = vmatprep.subr.mxu0 0.0
    %4403 = vmatpush1.msra.mxu0 0.0
    %4404 = vmatprep.subr.mxu0 0.0
    %4405 = vmatpush1.msra.mxu0 0.0
    %4406 = vmatprep.subr.mxu0 0.0
    %4407 = vmatpush1.msra.mxu0 0.0
    %4408 = vmatprep.subr.mxu0 0.0
    %4409 = vmatpush1.msra.mxu0 0.0
    %4410 = vmatprep.subr.mxu0 0.0
    %4411 = vmatpush1.msra.mxu0 0.0
    %4412 = vmatprep.subr.mxu0 0.0
    %4413 = vmatpush1.msra.mxu0 0.0
    %4414 = vmatprep.subr.mxu0 0.0
    %4415 = vmatpush1.msra.mxu0 0.0
    %4416 = vmatprep.subr.mxu0 0.0
    %4417 = vmatpush1.msra.mxu0 0.0
    %4418 = vmatprep.subr.mxu0 0.0
    %4419 = vmatpush1.msra.mxu0 0.0
    %4420 = vmatprep.subr.mxu0 0.0
    %4421 = vmatpush1.msra.mxu0 0.0
    %4422 = vmatprep.subr.mxu0 0.0
    %4423 = vmatpush1.msra.mxu0 0.0
    %4424 = vmatprep.subr.mxu0 0.0
    %4425 = vmatpush1.msra.mxu0 0.0
    %4426 = vmatprep.subr.mxu0 0.0
    %4427 = vmatpush1.msra.mxu0 0.0
    %4428 = vmatprep.subr.mxu0 0.0
    %4429 = vmatpush1.msra.mxu0 0.0
    %4430 = vmatprep.mubr.f32.mxu0 0.0
    %4431 = vmatmul.mubr.f32.gmra.mrb[0].mxu0 %v4289
    %v4432 = vpop.f32.mrb[0].mxu0
    %v4433 = vadd.f32 0.0, %v4432
    %v4434 = vpop.f32.mrb[0].mxu0
    %v4435 = vadd.f32 0.0, %v4434
    %4436 = vdwg.mxu0
    %v4437 = vadd.f32 %v4291, %v4362
    %v4438 = vadd.f32 %v4292, %v4364
    %v4439 = vadd.f32 %v4293, %v4433
    %v4440 = vadd.f32 %v4294, %v4435
    %v4441 = vsub.f32 0.0, %v4437
    %v4442 = vmul.f32 %v4441, 1.442695
    %v4443 = vpow.pop %v4442
    %v4444 = vadd.f32 %v4443, 1.0
    %v4445 = vrcp.pop %v4444
    %v4446 = vsub.f32 0.0, %v4438
    %v4447 = vmul.f32 %v4446, 1.442695
    %v4448 = vpow.pop %v4447
    %v4449 = vadd.f32 %v4448, 1.0
    %v4450 = vrcp.pop %v4449
    %v4451 = vtanh.pop %v4439
    %v4452 = vsub.f32 0.0, %v4440
    %v4453 = vmul.f32 %v4452, 1.442695
    %v4454 = vpow.pop %v4453
    %v4455 = vadd.f32 %v4454, 1.0
    %v4456 = vrcp.pop %v4455
    %v4457 = vmul.f32 %v4450, %v4287
    %v4458 = vmul.f32 %v4445, %v4451
    %v4459 = vadd.f32 %v4457, %v4458
    %v4460 = vtanh.pop %v4459
    %v4461 = vmul.f32 %v4456, %v4460
    %s4462 = scalar_lea.vmem %s10, 8
    %4463 = vst [vmem:[%s4462] sm:$0xff] %v4461
    %v4464 = vld [vmem:[%s851] sm:$0xff]
    %v4465 = vld [vmem:[%s851 + $0x8] sm:$0xff]
    %v4466 = vld [vmem:[%s851 + $0x10] sm:$0xff]
    %v4467 = vld [vmem:[%s851 + $0x18] sm:$0xff]
    %4468 = vmatprep.subr.mxu0 %v3768
    %4469 = vmatpush1.msra.mxu0 %v3767
    %4470 = vmatprep.subr.mxu0 %v3772
    %4471 = vmatpush1.msra.mxu0 %v3771
    %4472 = vmatprep.subr.mxu0 %v3776
    %4473 = vmatpush1.msra.mxu0 %v3775
    %4474 = vmatprep.subr.mxu0 %v3780
    %4475 = vmatpush1.msra.mxu0 %v3779
    %4476 = vmatprep.subr.mxu0 %v3784
    %4477 = vmatpush1.msra.mxu0 %v3783
    %4478 = vmatprep.subr.mxu0 %v3788
    %4479 = vmatpush1.msra.mxu0 %v3787
    %4480 = vmatprep.subr.mxu0 %v3792
    %4481 = vmatpush1.msra.mxu0 %v3791
    %4482 = vmatprep.subr.mxu0 %v3796
    %4483 = vmatpush1.msra.mxu0 %v3795
    %4484 = vmatprep.subr.mxu0 %v3800
    %4485 = vmatpush1.msra.mxu0 %v3799
    %4486 = vmatprep.subr.mxu0 %v3804
    %4487 = vmatpush1.msra.mxu0 %v3803
    %4488 = vmatprep.subr.mxu0 %v3808
    %4489 = vmatpush1.msra.mxu0 %v3807
    %4490 = vmatprep.subr.mxu0 %v3812
    %4491 = vmatpush1.msra.mxu0 %v3811
    %4492 = vmatprep.subr.mxu0 %v3816
    %4493 = vmatpush1.msra.mxu0 %v3815
    %4494 = vmatprep.subr.mxu0 %v3820
    %4495 = vmatpush1.msra.mxu0 %v3819
    %4496 = vmatprep.subr.mxu0 %v3824
    %4497 = vmatpush1.msra.mxu0 %v3823
    %4498 = vmatprep.subr.mxu0 %v3828
    %4499 = vmatpush1.msra.mxu0 %v3827
    %4500 = vmatprep.subr.mxu0 0.0
    %4501 = vmatpush1.msra.mxu0 0.0
    %4502 = vmatprep.subr.mxu0 0.0
    %4503 = vmatpush1.msra.mxu0 0.0
    %4504 = vmatprep.subr.mxu0 0.0
    %4505 = vmatpush1.msra.mxu0 0.0
    %4506 = vmatprep.subr.mxu0 0.0
    %4507 = vmatpush1.msra.mxu0 0.0
    %4508 = vmatprep.subr.mxu0 0.0
    %4509 = vmatpush1.msra.mxu0 0.0
    %4510 = vmatprep.subr.mxu0 0.0
    %4511 = vmatpush1.msra.mxu0 0.0
    %4512 = vmatprep.subr.mxu0 0.0
    %4513 = vmatpush1.msra.mxu0 0.0
    %4514 = vmatprep.subr.mxu0 0.0
    %4515 = vmatpush1.msra.mxu0 0.0
    %4516 = vmatprep.subr.mxu0 0.0
    %4517 = vmatpush1.msra.mxu0 0.0
    %4518 = vmatprep.subr.mxu0 0.0
    %4519 = vmatpush1.msra.mxu0 0.0
    %4520 = vmatprep.subr.mxu0 0.0
    %4521 = vmatpush1.msra.mxu0 0.0
    %4522 = vmatprep.subr.mxu0 0.0
    %4523 = vmatpush1.msra.mxu0 0.0
    %4524 = vmatprep.subr.mxu0 0.0
    %4525 = vmatpush1.msra.mxu0 0.0
    %4526 = vmatprep.subr.mxu0 0.0
    %4527 = vmatpush1.msra.mxu0 0.0
    %4528 = vmatprep.subr.mxu0 0.0
    %4529 = vmatpush1.msra.mxu0 0.0
    %4530 = vmatprep.subr.mxu0 0.0
    %4531 = vmatpush1.msra.mxu0 0.0
    %4532 = vmatprep.mubr.f32.mxu0 0.0
    %4533 = vmatmul.mubr.f32.gmra.mrb[0].mxu0 %v4461
    %v4534 = vpop.f32.mrb[0].mxu0
    %v4535 = vadd.f32 0.0, %v4534
    %v4536 = vpop.f32.mrb[0].mxu0
    %v4537 = vadd.f32 0.0, %v4536
    %4538 = vdwg.mxu0
    %4539 = vmatprep.subr.mxu0 %v3770
    %4540 = vmatpush1.msra.mxu0 %v3769
    %4541 = vmatprep.subr.mxu0 %v3774
    %4542 = vmatpush1.msra.mxu0 %v3773
    %4543 = vmatprep.subr.mxu0 %v3778
    %4544 = vmatpush1.msra.mxu0 %v3777
    %4545 = vmatprep.subr.mxu0 %v3782
    %4546 = vmatpush1.msra.mxu0 %v3781
    %4547 = vmatprep.subr.mxu0 %v3786
    %4548 = vmatpush1.msra.mxu0 %v3785
    %4549 = vmatprep.subr.mxu0 %v3790
    %4550 = vmatpush1.msra.mxu0 %v3789
    %4551 = vmatprep.subr.mxu0 %v3794
    %4552 = vmatpush1.msra.mxu0 %v3793
    %4553 = vmatprep.subr.mxu0 %v3798
    %4554 = vmatpush1.msra.mxu0 %v3797
    %4555 = vmatprep.subr.mxu0 %v3802
    %4556 = vmatpush1.msra.mxu0 %v3801
    %4557 = vmatprep.subr.mxu0 %v3806
    %4558 = vmatpush1.msra.mxu0 %v3805
    %4559 = vmatprep.subr.mxu0 %v3810
    %4560 = vmatpush1.msra.mxu0 %v3809
    %4561 = vmatprep.subr.mxu0 %v3814
    %4562 = vmatpush1.msra.mxu0 %v3813
    %4563 = vmatprep.subr.mxu0 %v3818
    %4564 = vmatpush1.msra.mxu0 %v3817
    %4565 = vmatprep.subr.mxu0 %v3822
    %4566 = vmatpush1.msra.mxu0 %v3821
    %4567 = vmatprep.subr.mxu0 %v3826
    %4568 = vmatpush1.msra.mxu0 %v3825
    %4569 = vmatprep.subr.mxu0 %v3830
    %4570 = vmatpush1.msra.mxu0 %v3829
    %4571 = vmatprep.subr.mxu0 0.0
    %4572 = vmatpush1.msra.mxu0 0.0
    %4573 = vmatprep.subr.mxu0 0.0
    %4574 = vmatpush1.msra.mxu0 0.0
    %4575 = vmatprep.subr.mxu0 0.0
    %4576 = vmatpush1.msra.mxu0 0.0
    %4577 = vmatprep.subr.mxu0 0.0
    %4578 = vmatpush1.msra.mxu0 0.0
    %4579 = vmatprep.subr.mxu0 0.0
    %4580 = vmatpush1.msra.mxu0 0.0
    %4581 = vmatprep.subr.mxu0 0.0
    %4582 = vmatpush1.msra.mxu0 0.0
    %4583 = vmatprep.subr.mxu0 0.0
    %4584 = vmatpush1.msra.mxu0 0.0
    %4585 = vmatprep.subr.mxu0 0.0
    %4586 = vmatpush1.msra.mxu0 0.0
    %4587 = vmatprep.subr.mxu0 0.0
    %4588 = vmatpush1.msra.mxu0 0.0
    %4589 = vmatprep.subr.mxu0 0.0
    %4590 = vmatpush1.msra.mxu0 0.0
    %4591 = vmatprep.subr.mxu0 0.0
    %4592 = vmatpush1.msra.mxu0 0.0
    %4593 = vmatprep.subr.mxu0 0.0
    %4594 = vmatpush1.msra.mxu0 0.0
    %4595 = vmatprep.subr.mxu0 0.0
    %4596 = vmatpush1.msra.mxu0 0.0
    %4597 = vmatprep.subr.mxu0 0.0
    %4598 = vmatpush1.msra.mxu0 0.0
    %4599 = vmatprep.subr.mxu0 0.0
    %4600 = vmatpush1.msra.mxu0 0.0
    %4601 = vmatprep.subr.mxu0 0.0
    %4602 = vmatpush1.msra.mxu0 0.0
    %4603 = vmatprep.mubr.f32.mxu0 0.0
    %4604 = vmatmul.mubr.f32.gmra.mrb[0].mxu0 %v4461
    %v4605 = vpop.f32.mrb[0].mxu0
    %v4606 = vadd.f32 0.0, %v4605
    %v4607 = vpop.f32.mrb[0].mxu0
    %v4608 = vadd.f32 0.0, %v4607
    %4609 = vdwg.mxu0
    %v4610 = vadd.f32 %v4464, %v4535
    %v4611 = vadd.f32 %v4465, %v4537
    %v4612 = vadd.f32 %v4466, %v4606
    %v4613 = vadd.f32 %v4467, %v4608
    %v4614 = vsub.f32 0.0, %v4610
    %v4615 = vmul.f32 %v4614, 1.442695
    %v4616 = vpow.pop %v4615
    %v4617 = vadd.f32 %v4616, 1.0
    %v4618 = vrcp.pop %v4617
    %v4619 = vsub.f32 0.0, %v4611
    %v4620 = vmul.f32 %v4619, 1.442695
    %v4621 = vpow.pop %v4620
    %v4622 = vadd.f32 %v4621, 1.0
    %v4623 = vrcp.pop %v4622
    %v4624 = vtanh.pop %v4612
    %v4625 = vsub.f32 0.0, %v4613
    %v4626 = vmul.f32 %v4625, 1.442695
    %v4627 = vpow.pop %v4626
    %v4628 = vadd.f32 %v4627, 1.0
    %v4629 = vrcp.pop %v4628
    %v4630 = vmul.f32 %v4623, %v4459
    %v4631 = vmul.f32 %v4618, %v4624
    %v4632 = vadd.f32 %v4630, %v4631
    %v4633 = vtanh.pop %v4632
    %v4634 = vmul.f32 %v4629, %v4633
    %s4635 = scalar_lea.vmem %s10, 16
    %4636 = vst [vmem:[%s4635] sm:$0xff] %v4634
    %v4637 = vld [vmem:[%s1027] sm:$0xff]
    %v4638 = vld [vmem:[%s1027 + $0x8] sm:$0xff]
    %v4639 = vld [vmem:[%s1027 + $0x10] sm:$0xff]
    %v4640 = vld [vmem:[%s1027 + $0x18] sm:$0xff]
    %4641 = vmatprep.subr.mxu0 %v3768
    %4642 = vmatpush1.msra.mxu0 %v3767
    %4643 = vmatprep.subr.mxu0 %v3772
    %4644 = vmatpush1.msra.mxu0 %v3771
    %4645 = vmatprep.subr.mxu0 %v3776
    %4646 = vmatpush1.msra.mxu0 %v3775
    %4647 = vmatprep.subr.mxu0 %v3780
    %4648 = vmatpush1.msra.mxu0 %v3779
    %4649 = vmatprep.subr.mxu0 %v3784
    %4650 = vmatpush1.msra.mxu0 %v3783
    %4651 = vmatprep.subr.mxu0 %v3788
    %4652 = vmatpush1.msra.mxu0 %v3787
    %4653 = vmatprep.subr.mxu0 %v3792
    %4654 = vmatpush1.msra.mxu0 %v3791
    %4655 = vmatprep.subr.mxu0 %v3796
    %4656 = vmatpush1.msra.mxu0 %v3795
    %4657 = vmatprep.subr.mxu0 %v3800
    %4658 = vmatpush1.msra.mxu0 %v3799
    %4659 = vmatprep.subr.mxu0 %v3804
    %4660 = vmatpush1.msra.mxu0 %v3803
    %4661 = vmatprep.subr.mxu0 %v3808
    %4662 = vmatpush1.msra.mxu0 %v3807
    %4663 = vmatprep.subr.mxu0 %v3812
    %4664 = vmatpush1.msra.mxu0 %v3811
    %4665 = vmatprep.subr.mxu0 %v3816
    %4666 = vmatpush1.msra.mxu0 %v3815
    %4667 = vmatprep.subr.mxu0 %v3820
    %4668 = vmatpush1.msra.mxu0 %v3819
    %4669 = vmatprep.subr.mxu0 %v3824
    %4670 = vmatpush1.msra.mxu0 %v3823
    %4671 = vmatprep.subr.mxu0 %v3828
    %4672 = vmatpush1.msra.mxu0 %v3827
    %4673 = vmatprep.subr.mxu0 0.0
    %4674 = vmatpush1.msra.mxu0 0.0
    %4675 = vmatprep.subr.mxu0 0.0
    %4676 = vmatpush1.msra.mxu0 0.0
    %4677 = vmatprep.subr.mxu0 0.0
    %4678 = vmatpush1.msra.mxu0 0.0
    %4679 = vmatprep.subr.mxu0 0.0
    %4680 = vmatpush1.msra.mxu0 0.0
    %4681 = vmatprep.subr.mxu0 0.0
    %4682 = vmatpush1.msra.mxu0 0.0
    %4683 = vmatprep.subr.mxu0 0.0
    %4684 = vmatpush1.msra.mxu0 0.0
    %4685 = vmatprep.subr.mxu0 0.0
    %4686 = vmatpush1.msra.mxu0 0.0
    %4687 = vmatprep.subr.mxu0 0.0
    %4688 = vmatpush1.msra.mxu0 0.0
    %4689 = vmatprep.subr.mxu0 0.0
    %4690 = vmatpush1.msra.mxu0 0.0
    %4691 = vmatprep.subr.mxu0 0.0
    %4692 = vmatpush1.msra.mxu0 0.0
    %4693 = vmatprep.subr.mxu0 0.0
    %4694 = vmatpush1.msra.mxu0 0.0
    %4695 = vmatprep.subr.mxu0 0.0
    %4696 = vmatpush1.msra.mxu0 0.0
    %4697 = vmatprep.subr.mxu0 0.0
    %4698 = vmatpush1.msra.mxu0 0.0
    %4699 = vmatprep.subr.mxu0 0.0
    %4700 = vmatpush1.msra.mxu0 0.0
    %4701 = vmatprep.subr.mxu0 0.0
    %4702 = vmatpush1.msra.mxu0 0.0
    %4703 = vmatprep.subr.mxu0 0.0
    %4704 = vmatpush1.msra.mxu0 0.0
    %4705 = vmatprep.mubr.f32.mxu0 0.0
    %4706 = vmatmul.mubr.f32.gmra.mrb[0].mxu0 %v4634
    %v4707 = vpop.f32.mrb[0].mxu0
    %v4708 = vadd.f32 0.0, %v4707
    %v4709 = vpop.f32.mrb[0].mxu0
    %v4710 = vadd.f32 0.0, %v4709
    %4711 = vdwg.mxu0
    %4712 = vmatprep.subr.mxu0 %v3770
    %4713 = vmatpush1.msra.mxu0 %v3769
    %4714 = vmatprep.subr.mxu0 %v3774
    %4715 = vmatpush1.msra.mxu0 %v3773
    %4716 = vmatprep.subr.mxu0 %v3778
    %4717 = vmatpush1.msra.mxu0 %v3777
    %4718 = vmatprep.subr.mxu0 %v3782
    %4719 = vmatpush1.msra.mxu0 %v3781
    %4720 = vmatprep.subr.mxu0 %v3786
    %4721 = vmatpush1.msra.mxu0 %v3785
    %4722 = vmatprep.subr.mxu0 %v3790
    %4723 = vmatpush1.msra.mxu0 %v3789
    %4724 = vmatprep.subr.mxu0 %v3794
    %4725 = vmatpush1.msra.mxu0 %v3793
    %4726 = vmatprep.subr.mxu0 %v3798
    %4727 = vmatpush1.msra.mxu0 %v3797
    %4728 = vmatprep.subr.mxu0 %v3802
    %4729 = vmatpush1.msra.mxu0 %v3801
    %4730 = vmatprep.subr.mxu0 %v3806
    %4731 = vmatpush1.msra.mxu0 %v3805
    %4732 = vmatprep.subr.mxu0 %v3810
    %4733 = vmatpush1.msra.mxu0 %v3809
    %4734 = vmatprep.subr.mxu0 %v3814
    %4735 = vmatpush1.msra.mxu0 %v3813
    %4736 = vmatprep.subr.mxu0 %v3818
    %4737 = vmatpush1.msra.mxu0 %v3817
    %4738 = vmatprep.subr.mxu0 %v3822
    %4739 = vmatpush1.msra.mxu0 %v3821
    %4740 = vmatprep.subr.mxu0 %v3826
    %4741 = vmatpush1.msra.mxu0 %v3825
    %4742 = vmatprep.subr.mxu0 %v3830
    %4743 = vmatpush1.msra.mxu0 %v3829
    %4744 = vmatprep.subr.mxu0 0.0
    %4745 = vmatpush1.msra.mxu0 0.0
    %4746 = vmatprep.subr.mxu0 0.0
    %4747 = vmatpush1.msra.mxu0 0.0
    %4748 = vmatprep.subr.mxu0 0.0
    %4749 = vmatpush1.msra.mxu0 0.0
    %4750 = vmatprep.subr.mxu0 0.0
    %4751 = vmatpush1.msra.mxu0 0.0
    %4752 = vmatprep.subr.mxu0 0.0
    %4753 = vmatpush1.msra.mxu0 0.0
    %4754 = vmatprep.subr.mxu0 0.0
    %4755 = vmatpush1.msra.mxu0 0.0
    %4756 = vmatprep.subr.mxu0 0.0
    %4757 = vmatpush1.msra.mxu0 0.0
    %4758 = vmatprep.subr.mxu0 0.0
    %4759 = vmatpush1.msra.mxu0 0.0
    %4760 = vmatprep.subr.mxu0 0.0
    %4761 = vmatpush1.msra.mxu0 0.0
    %4762 = vmatprep.subr.mxu0 0.0
    %4763 = vmatpush1.msra.mxu0 0.0
    %4764 = vmatprep.subr.mxu0 0.0
    %4765 = vmatpush1.msra.mxu0 0.0
    %4766 = vmatprep.subr.mxu0 0.0
    %4767 = vmatpush1.msra.mxu0 0.0
    %4768 = vmatprep.subr.mxu0 0.0
    %4769 = vmatpush1.msra.mxu0 0.0
    %4770 = vmatprep.subr.mxu0 0.0
    %4771 = vmatpush1.msra.mxu0 0.0
    %4772 = vmatprep.subr.mxu0 0.0
    %4773 = vmatpush1.msra.mxu0 0.0
    %4774 = vmatprep.subr.mxu0 0.0
    %4775 = vmatpush1.msra.mxu0 0.0
    %4776 = vmatprep.mubr.f32.mxu0 0.0
    %4777 = vmatmul.mubr.f32.gmra.mrb[0].mxu0 %v4634
    %v4778 = vpop.f32.mrb[0].mxu0
    %v4779 = vadd.f32 0.0, %v4778
    %v4780 = vpop.f32.mrb[0].mxu0
    %v4781 = vadd.f32 0.0, %v4780
    %4782 = vdwg.mxu0
    %v4783 = vadd.f32 %v4637, %v4708
    %v4784 = vadd.f32 %v4638, %v4710
    %v4785 = vadd.f32 %v4639, %v4779
    %v4786 = vadd.f32 %v4640, %v4781
    %v4787 = vsub.f32 0.0, %v4783
    %v4788 = vmul.f32 %v4787, 1.442695
    %v4789 = vpow.pop %v4788
    %v4790 = vadd.f32 %v4789, 1.0
    %v4791 = vrcp.pop %v4790
    %v4792 = vsub.f32 0.0, %v4784
    %v4793 = vmul.f32 %v4792, 1.442695
    %v4794 = vpow.pop %v4793
    %v4795 = vadd.f32 %v4794, 1.0
    %v4796 = vrcp.pop %v4795
    %v4797 = vtanh.pop %v4785
    %v4798 = vsub.f32 0.0, %v4786
    %v4799 = vmul.f32 %v4798, 1.442695
    %v4800 = vpow.pop %v4799
    %v4801 = vadd.f32 %v4800, 1.0
    %v4802 = vrcp.pop %v4801
    %v4803 = vmul.f32 %v4796, %v4632
    %v4804 = vmul.f32 %v4791, %v4797
    %v4805 = vadd.f32 %v4803, %v4804
    %v4806 = vtanh.pop %v4805
    %v4807 = vmul.f32 %v4802, %v4806
    %s4808 = scalar_lea.vmem %s10, 24
    %4809 = vst [vmem:[%s4808] sm:$0xff] %v4807
    %v4810 = vld [vmem:[%s1203] sm:$0xff]
    %v4811 = vld [vmem:[%s1203 + $0x8] sm:$0xff]
    %v4812 = vld [vmem:[%s1203 + $0x10] sm:$0xff]
    %v4813 = vld [vmem:[%s1203 + $0x18] sm:$0xff]
    %4814 = vmatprep.subr.mxu0 %v3768
    %4815 = vmatpush1.msra.mxu0 %v3767
    %4816 = vmatprep.subr.mxu0 %v3772
    %4817 = vmatpush1.msra.mxu0 %v3771
    %4818 = vmatprep.subr.mxu0 %v3776
    %4819 = vmatpush1.msra.mxu0 %v3775
    %4820 = vmatprep.subr.mxu0 %v3780
    %4821 = vmatpush1.msra.mxu0 %v3779
    %4822 = vmatprep.subr.mxu0 %v3784
    %4823 = vmatpush1.msra.mxu0 %v3783
    %4824 = vmatprep.subr.mxu0 %v3788
    %4825 = vmatpush1.msra.mxu0 %v3787
    %4826 = vmatprep.subr.mxu0 %v3792
    %4827 = vmatpush1.msra.mxu0 %v3791
    %4828 = vmatprep.subr.mxu0 %v3796
    %4829 = vmatpush1.msra.mxu0 %v3795
    %4830 = vmatprep.subr.mxu0 %v3800
    %4831 = vmatpush1.msra.mxu0 %v3799
    %4832 = vmatprep.subr.mxu0 %v3804
    %4833 = vmatpush1.msra.mxu0 %v3803
    %4834 = vmatprep.subr.mxu0 %v3808
    %4835 = vmatpush1.msra.mxu0 %v3807
    %4836 = vmatprep.subr.mxu0 %v3812
    %4837 = vmatpush1.msra.mxu0 %v3811
    %4838 = vmatprep.subr.mxu0 %v3816
    %4839 = vmatpush1.msra.mxu0 %v3815
    %4840 = vmatprep.subr.mxu0 %v3820
    %4841 = vmatpush1.msra.mxu0 %v3819
    %4842 = vmatprep.subr.mxu0 %v3824
    %4843 = vmatpush1.msra.mxu0 %v3823
    %4844 = vmatprep.subr.mxu0 %v3828
    %4845 = vmatpush1.msra.mxu0 %v3827
    %4846 = vmatprep.subr.mxu0 0.0
    %4847 = vmatpush1.msra.mxu0 0.0
    %4848 = vmatprep.subr.mxu0 0.0
    %4849 = vmatpush1.msra.mxu0 0.0
    %4850 = vmatprep.subr.mxu0 0.0
    %4851 = vmatpush1.msra.mxu0 0.0
    %4852 = vmatprep.subr.mxu0 0.0
    %4853 = vmatpush1.msra.mxu0 0.0
    %4854 = vmatprep.subr.mxu0 0.0
    %4855 = vmatpush1.msra.mxu0 0.0
    %4856 = vmatprep.subr.mxu0 0.0
    %4857 = vmatpush1.msra.mxu0 0.0
    %4858 = vmatprep.subr.mxu0 0.0
    %4859 = vmatpush1.msra.mxu0 0.0
    %4860 = vmatprep.subr.mxu0 0.0
    %4861 = vmatpush1.msra.mxu0 0.0
    %4862 = vmatprep.subr.mxu0 0.0
    %4863 = vmatpush1.msra.mxu0 0.0
    %4864 = vmatprep.subr.mxu0 0.0
    %4865 = vmatpush1.msra.mxu0 0.0
    %4866 = vmatprep.subr.mxu0 0.0
    %4867 = vmatpush1.msra.mxu0 0.0
    %4868 = vmatprep.subr.mxu0 0.0
    %4869 = vmatpush1.msra.mxu0 0.0
    %4870 = vmatprep.subr.mxu0 0.0
    %4871 = vmatpush1.msra.mxu0 0.0
    %4872 = vmatprep.subr.mxu0 0.0
    %4873 = vmatpush1.msra.mxu0 0.0
    %4874 = vmatprep.subr.mxu0 0.0
    %4875 = vmatpush1.msra.mxu0 0.0
    %4876 = vmatprep.subr.mxu0 0.0
    %4877 = vmatpush1.msra.mxu0 0.0
    %4878 = vmatprep.mubr.f32.mxu0 0.0
    %4879 = vmatmul.mubr.f32.gmra.mrb[0].mxu0 %v4807
    %v4880 = vpop.f32.mrb[0].mxu0
    %v4881 = vadd.f32 0.0, %v4880
    %v4882 = vpop.f32.mrb[0].mxu0
    %v4883 = vadd.f32 0.0, %v4882
    %4884 = vdwg.mxu0
    %4885 = vmatprep.subr.mxu0 %v3770
    %4886 = vmatpush1.msra.mxu0 %v3769
    %4887 = vmatprep.subr.mxu0 %v3774
    %4888 = vmatpush1.msra.mxu0 %v3773
    %4889 = vmatprep.subr.mxu0 %v3778
    %4890 = vmatpush1.msra.mxu0 %v3777
    %4891 = vmatprep.subr.mxu0 %v3782
    %4892 = vmatpush1.msra.mxu0 %v3781
    %4893 = vmatprep.subr.mxu0 %v3786
    %4894 = vmatpush1.msra.mxu0 %v3785
    %4895 = vmatprep.subr.mxu0 %v3790
    %4896 = vmatpush1.msra.mxu0 %v3789
    %4897 = vmatprep.subr.mxu0 %v3794
    %4898 = vmatpush1.msra.mxu0 %v3793
    %4899 = vmatprep.subr.mxu0 %v3798
    %4900 = vmatpush1.msra.mxu0 %v3797
    %4901 = vmatprep.subr.mxu0 %v3802
    %4902 = vmatpush1.msra.mxu0 %v3801
    %4903 = vmatprep.subr.mxu0 %v3806
    %4904 = vmatpush1.msra.mxu0 %v3805
    %4905 = vmatprep.subr.mxu0 %v3810
    %4906 = vmatpush1.msra.mxu0 %v3809
    %4907 = vmatprep.subr.mxu0 %v3814
    %4908 = vmatpush1.msra.mxu0 %v3813
    %4909 = vmatprep.subr.mxu0 %v3818
    %4910 = vmatpush1.msra.mxu0 %v3817
    %4911 = vmatprep.subr.mxu0 %v3822
    %4912 = vmatpush1.msra.mxu0 %v3821
    %4913 = vmatprep.subr.mxu0 %v3826
    %4914 = vmatpush1.msra.mxu0 %v3825
    %4915 = vmatprep.subr.mxu0 %v3830
    %4916 = vmatpush1.msra.mxu0 %v3829
    %4917 = vmatprep.subr.mxu0 0.0
    %4918 = vmatpush1.msra.mxu0 0.0
    %4919 = vmatprep.subr.mxu0 0.0
    %4920 = vmatpush1.msra.mxu0 0.0
    %4921 = vmatprep.subr.mxu0 0.0
    %4922 = vmatpush1.msra.mxu0 0.0
    %4923 = vmatprep.subr.mxu0 0.0
    %4924 = vmatpush1.msra.mxu0 0.0
    %4925 = vmatprep.subr.mxu0 0.0
    %4926 = vmatpush1.msra.mxu0 0.0
    %4927 = vmatprep.subr.mxu0 0.0
    %4928 = vmatpush1.msra.mxu0 0.0
    %4929 = vmatprep.subr.mxu0 0.0
    %4930 = vmatpush1.msra.mxu0 0.0
    %4931 = vmatprep.subr.mxu0 0.0
    %4932 = vmatpush1.msra.mxu0 0.0
    %4933 = vmatprep.subr.mxu0 0.0
    %4934 = vmatpush1.msra.mxu0 0.0
    %4935 = vmatprep.subr.mxu0 0.0
    %4936 = vmatpush1.msra.mxu0 0.0
    %4937 = vmatprep.subr.mxu0 0.0
    %4938 = vmatpush1.msra.mxu0 0.0
    %4939 = vmatprep.subr.mxu0 0.0
    %4940 = vmatpush1.msra.mxu0 0.0
    %4941 = vmatprep.subr.mxu0 0.0
    %4942 = vmatpush1.msra.mxu0 0.0
    %4943 = vmatprep.subr.mxu0 0.0
    %4944 = vmatpush1.msra.mxu0 0.0
    %4945 = vmatprep.subr.mxu0 0.0
    %4946 = vmatpush1.msra.mxu0 0.0
    %4947 = vmatprep.subr.mxu0 0.0
    %4948 = vmatpush1.msra.mxu0 0.0
    %4949 = vmatprep.mubr.f32.mxu0 0.0
    %4950 = vmatmul.mubr.f32.gmra.mrb[0].mxu0 %v4807
    %v4951 = vpop.f32.mrb[0].mxu0
    %v4952 = vadd.f32 0.0, %v4951
    %v4953 = vpop.f32.mrb[0].mxu0
    %v4954 = vadd.f32 0.0, %v4953
    %4955 = vdwg.mxu0
    %v4956 = vadd.f32 %v4810, %v4881
    %v4957 = vadd.f32 %v4811, %v4883
    %v4958 = vadd.f32 %v4812, %v4952
    %v4959 = vadd.f32 %v4813, %v4954
    %v4960 = vsub.f32 0.0, %v4956
    %v4961 = vmul.f32 %v4960, 1.442695
    %v4962 = vpow.pop %v4961
    %v4963 = vadd.f32 %v4962, 1.0
    %v4964 = vrcp.pop %v4963
    %v4965 = vsub.f32 0.0, %v4957
    %v4966 = vmul.f32 %v4965, 1.442695
    %v4967 = vpow.pop %v4966
    %v4968 = vadd.f32 %v4967, 1.0
    %v4969 = vrcp.pop %v4968
    %v4970 = vtanh.pop %v4958
    %v4971 = vsub.f32 0.0, %v4959
    %v4972 = vmul.f32 %v4971, 1.442695
    %v4973 = vpow.pop %v4972
    %v4974 = vadd.f32 %v4973, 1.0
    %v4975 = vrcp.pop %v4974
    %v4976 = vmul.f32 %v4969, %v4805
    %v4977 = vmul.f32 %v4964, %v4970
    %v4978 = vadd.f32 %v4976, %v4977
    %v4979 = vtanh.pop %v4978
    %v4980 = vmul.f32 %v4975, %v4979
    %s4981 = scalar_lea.vmem %s10, 32
    %4982 = vst [vmem:[%s4981] sm:$0xff] %v4980
    %v4983 = vld [vmem:[%s1379] sm:$0xff]
    %v4984 = vld [vmem:[%s1379 + $0x8] sm:$0xff]
    %v4985 = vld [vmem:[%s1379 + $0x10] sm:$0xff]
    %v4986 = vld [vmem:[%s1379 + $0x18] sm:$0xff]
    %4987 = vmatprep.subr.mxu0 %v3768
    %4988 = vmatpush1.msra.mxu0 %v3767
    %4989 = vmatprep.subr.mxu0 %v3772
    %4990 = vmatpush1.msra.mxu0 %v3771
    %4991 = vmatprep.subr.mxu0 %v3776
    %4992 = vmatpush1.msra.mxu0 %v3775
    %4993 = vmatprep.subr.mxu0 %v3780
    %4994 = vmatpush1.msra.mxu0 %v3779
    %4995 = vmatprep.subr.mxu0 %v3784
    %4996 = vmatpush1.msra.mxu0 %v3783
    %4997 = vmatprep.subr.mxu0 %v3788
    %4998 = vmatpush1.msra.mxu0 %v3787
    %4999 = vmatprep.subr.mxu0 %v3792
    %5000 = vmatpush1.msra.mxu0 %v3791
    %5001 = vmatprep.subr.mxu0 %v3796
    %5002 = vmatpush1.msra.mxu0 %v3795
    %5003 = vmatprep.subr.mxu0 %v3800
    %5004 = vmatpush1.msra.mxu0 %v3799
    %5005 = vmatprep.subr.mxu0 %v3804
    %5006 = vmatpush1.msra.mxu0 %v3803
    %5007 = vmatprep.subr.mxu0 %v3808
    %5008 = vmatpush1.msra.mxu0 %v3807
    %5009 = vmatprep.subr.mxu0 %v3812
    %5010 = vmatpush1.msra.mxu0 %v3811
    %5011 = vmatprep.subr.mxu0 %v3816
    %5012 = vmatpush1.msra.mxu0 %v3815
    %5013 = vmatprep.subr.mxu0 %v3820
    %5014 = vmatpush1.msra.mxu0 %v3819
    %5015 = vmatprep.subr.mxu0 %v3824
    %5016 = vmatpush1.msra.mxu0 %v3823
    %5017 = vmatprep.subr.mxu0 %v3828
    %5018 = vmatpush1.msra.mxu0 %v3827
    %5019 = vmatprep.subr.mxu0 0.0
    %5020 = vmatpush1.msra.mxu0 0.0
    %5021 = vmatprep.subr.mxu0 0.0
    %5022 = vmatpush1.msra.mxu0 0.0
    %5023 = vmatprep.subr.mxu0 0.0
    %5024 = vmatpush1.msra.mxu0 0.0
    %5025 = vmatprep.subr.mxu0 0.0
    %5026 = vmatpush1.msra.mxu0 0.0
    %5027 = vmatprep.subr.mxu0 0.0
    %5028 = vmatpush1.msra.mxu0 0.0
    %5029 = vmatprep.subr.mxu0 0.0
    %5030 = vmatpush1.msra.mxu0 0.0
    %5031 = vmatprep.subr.mxu0 0.0
    %5032 = vmatpush1.msra.mxu0 0.0
    %5033 = vmatprep.subr.mxu0 0.0
    %5034 = vmatpush1.msra.mxu0 0.0
    %5035 = vmatprep.subr.mxu0 0.0
    %5036 = vmatpush1.msra.mxu0 0.0
    %5037 = vmatprep.subr.mxu0 0.0
    %5038 = vmatpush1.msra.mxu0 0.0
    %5039 = vmatprep.subr.mxu0 0.0
    %5040 = vmatpush1.msra.mxu0 0.0
    %5041 = vmatprep.subr.mxu0 0.0
    %5042 = vmatpush1.msra.mxu0 0.0
    %5043 = vmatprep.subr.mxu0 0.0
    %5044 = vmatpush1.msra.mxu0 0.0
    %5045 = vmatprep.subr.mxu0 0.0
    %5046 = vmatpush1.msra.mxu0 0.0
    %5047 = vmatprep.subr.mxu0 0.0
    %5048 = vmatpush1.msra.mxu0 0.0
    %5049 = vmatprep.subr.mxu0 0.0
    %5050 = vmatpush1.msra.mxu0 0.0
    %5051 = vmatprep.mubr.f32.mxu0 0.0
    %5052 = vmatmul.mubr.f32.gmra.mrb[0].mxu0 %v4980
    %v5053 = vpop.f32.mrb[0].mxu0
    %v5054 = vadd.f32 0.0, %v5053
    %v5055 = vpop.f32.mrb[0].mxu0
    %v5056 = vadd.f32 0.0, %v5055
    %5057 = vdwg.mxu0
    %5058 = vmatprep.subr.mxu0 %v3770
    %5059 = vmatpush1.msra.mxu0 %v3769
    %5060 = vmatprep.subr.mxu0 %v3774
    %5061 = vmatpush1.msra.mxu0 %v3773
    %5062 = vmatprep.subr.mxu0 %v3778
    %5063 = vmatpush1.msra.mxu0 %v3777
    %5064 = vmatprep.subr.mxu0 %v3782
    %5065 = vmatpush1.msra.mxu0 %v3781
    %5066 = vmatprep.subr.mxu0 %v3786
    %5067 = vmatpush1.msra.mxu0 %v3785
    %5068 = vmatprep.subr.mxu0 %v3790
    %5069 = vmatpush1.msra.mxu0 %v3789
    %5070 = vmatprep.subr.mxu0 %v3794
    %5071 = vmatpush1.msra.mxu0 %v3793
    %5072 = vmatprep.subr.mxu0 %v3798
    %5073 = vmatpush1.msra.mxu0 %v3797
    %5074 = vmatprep.subr.mxu0 %v3802
    %5075 = vmatpush1.msra.mxu0 %v3801
    %5076 = vmatprep.subr.mxu0 %v3806
    %5077 = vmatpush1.msra.mxu0 %v3805
    %5078 = vmatprep.subr.mxu0 %v3810
    %5079 = vmatpush1.msra.mxu0 %v3809
    %5080 = vmatprep.subr.mxu0 %v3814
    %5081 = vmatpush1.msra.mxu0 %v3813
    %5082 = vmatprep.subr.mxu0 %v3818
    %5083 = vmatpush1.msra.mxu0 %v3817
    %5084 = vmatprep.subr.mxu0 %v3822
    %5085 = vmatpush1.msra.mxu0 %v3821
    %5086 = vmatprep.subr.mxu0 %v3826
    %5087 = vmatpush1.msra.mxu0 %v3825
    %5088 = vmatprep.subr.mxu0 %v3830
    %5089 = vmatpush1.msra.mxu0 %v3829
    %5090 = vmatprep.subr.mxu0 0.0
    %5091 = vmatpush1.msra.mxu0 0.0
    %5092 = vmatprep.subr.mxu0 0.0
    %5093 = vmatpush1.msra.mxu0 0.0
    %5094 = vmatprep.subr.mxu0 0.0
    %5095 = vmatpush1.msra.mxu0 0.0
    %5096 = vmatprep.subr.mxu0 0.0
    %5097 = vmatpush1.msra.mxu0 0.0
    %5098 = vmatprep.subr.mxu0 0.0
    %5099 = vmatpush1.msra.mxu0 0.0
    %5100 = vmatprep.subr.mxu0 0.0
    %5101 = vmatpush1.msra.mxu0 0.0
    %5102 = vmatprep.subr.mxu0 0.0
    %5103 = vmatpush1.msra.mxu0 0.0
    %5104 = vmatprep.subr.mxu0 0.0
    %5105 = vmatpush1.msra.mxu0 0.0
    %5106 = vmatprep.subr.mxu0 0.0
    %5107 = vmatpush1.msra.mxu0 0.0
    %5108 = vmatprep.subr.mxu0 0.0
    %5109 = vmatpush1.msra.mxu0 0.0
    %5110 = vmatprep.subr.mxu0 0.0
    %5111 = vmatpush1.msra.mxu0 0.0
    %5112 = vmatprep.subr.mxu0 0.0
    %5113 = vmatpush1.msra.mxu0 0.0
    %5114 = vmatprep.subr.mxu0 0.0
    %5115 = vmatpush1.msra.mxu0 0.0
    %5116 = vmatprep.subr.mxu0 0.0
    %5117 = vmatpush1.msra.mxu0 0.0
    %5118 = vmatprep.subr.mxu0 0.0
    %5119 = vmatpush1.msra.mxu0 0.0
    %5120 = vmatprep.subr.mxu0 0.0
    %5121 = vmatpush1.msra.mxu0 0.0
    %5122 = vmatprep.mubr.f32.mxu0 0.0
    %5123 = vmatmul.mubr.f32.gmra.mrb[0].mxu0 %v4980
    %v5124 = vpop.f32.mrb[0].mxu0
    %v5125 = vadd.f32 0.0, %v5124
    %v5126 = vpop.f32.mrb[0].mxu0
    %v5127 = vadd.f32 0.0, %v5126
    %5128 = vdwg.mxu0
    %v5129 = vadd.f32 %v4983, %v5054
    %v5130 = vadd.f32 %v4984, %v5056
    %v5131 = vadd.f32 %v4985, %v5125
    %v5132 = vadd.f32 %v4986, %v5127
    %v5133 = vsub.f32 0.0, %v5129
    %v5134 = vmul.f32 %v5133, 1.442695
    %v5135 = vpow.pop %v5134
    %v5136 = vadd.f32 %v5135, 1.0
    %v5137 = vrcp.pop %v5136
    %v5138 = vsub.f32 0.0, %v5130
    %v5139 = vmul.f32 %v5138, 1.442695
    %v5140 = vpow.pop %v5139
    %v5141 = vadd.f32 %v5140, 1.0
    %v5142 = vrcp.pop %v5141
    %v5143 = vtanh.pop %v5131
    %v5144 = vsub.f32 0.0, %v5132
    %v5145 = vmul.f32 %v5144, 1.442695
    %v5146 = vpow.pop %v5145
    %v5147 = vadd.f32 %v5146, 1.0
    %v5148 = vrcp.pop %v5147
    %v5149 = vmul.f32 %v5142, %v4978
    %v5150 = vmul.f32 %v5137, %v5143
    %v5151 = vadd.f32 %v5149, %v5150
    %v5152 = vtanh.pop %v5151
    %v5153 = vmul.f32 %v5148, %v5152
    %s5154 = scalar_lea.vmem %s10, 40
    %5155 = vst [vmem:[%s5154] sm:$0xff] %v5153
    %v5156 = vld [vmem:[%s1555] sm:$0xff]
    %v5157 = vld [vmem:[%s1555 + $0x8] sm:$0xff]
    %v5158 = vld [vmem:[%s1555 + $0x10] sm:$0xff]
    %v5159 = vld [vmem:[%s1555 + $0x18] sm:$0xff]
    %5160 = vmatprep.subr.mxu0 %v3768
    %5161 = vmatpush1.msra.mxu0 %v3767
    %5162 = vmatprep.subr.mxu0 %v3772
    %5163 = vmatpush1.msra.mxu0 %v3771
    %5164 = vmatprep.subr.mxu0 %v3776
    %5165 = vmatpush1.msra.mxu0 %v3775
    %5166 = vmatprep.subr.mxu0 %v3780
    %5167 = vmatpush1.msra.mxu0 %v3779
    %5168 = vmatprep.subr.mxu0 %v3784
    %5169 = vmatpush1.msra.mxu0 %v3783
    %5170 = vmatprep.subr.mxu0 %v3788
    %5171 = vmatpush1.msra.mxu0 %v3787
    %5172 = vmatprep.subr.mxu0 %v3792
    %5173 = vmatpush1.msra.mxu0 %v3791
    %5174 = vmatprep.subr.mxu0 %v3796
    %5175 = vmatpush1.msra.mxu0 %v3795
    %5176 = vmatprep.subr.mxu0 %v3800
    %5177 = vmatpush1.msra.mxu0 %v3799
    %5178 = vmatprep.subr.mxu0 %v3804
    %5179 = vmatpush1.msra.mxu0 %v3803
    %5180 = vmatprep.subr.mxu0 %v3808
    %5181 = vmatpush1.msra.mxu0 %v3807
    %5182 = vmatprep.subr.mxu0 %v3812
    %5183 = vmatpush1.msra.mxu0 %v3811
    %5184 = vmatprep.subr.mxu0 %v3816
    %5185 = vmatpush1.msra.mxu0 %v3815
    %5186 = vmatprep.subr.mxu0 %v3820
    %5187 = vmatpush1.msra.mxu0 %v3819
    %5188 = vmatprep.subr.mxu0 %v3824
    %5189 = vmatpush1.msra.mxu0 %v3823
    %5190 = vmatprep.subr.mxu0 %v3828
    %5191 = vmatpush1.msra.mxu0 %v3827
    %5192 = vmatprep.subr.mxu0 0.0
    %5193 = vmatpush1.msra.mxu0 0.0
    %5194 = vmatprep.subr.mxu0 0.0
    %5195 = vmatpush1.msra.mxu0 0.0
    %5196 = vmatprep.subr.mxu0 0.0
    %5197 = vmatpush1.msra.mxu0 0.0
    %5198 = vmatprep.subr.mxu0 0.0
    %5199 = vmatpush1.msra.mxu0 0.0
    %5200 = vmatprep.subr.mxu0 0.0
    %5201 = vmatpush1.msra.mxu0 0.0
    %5202 = vmatprep.subr.mxu0 0.0
    %5203 = vmatpush1.msra.mxu0 0.0
    %5204 = vmatprep.subr.mxu0 0.0
    %5205 = vmatpush1.msra.mxu0 0.0
    %5206 = vmatprep.subr.mxu0 0.0
    %5207 = vmatpush1.msra.mxu0 0.0
    %5208 = vmatprep.subr.mxu0 0.0
    %5209 = vmatpush1.msra.mxu0 0.0
    %5210 = vmatprep.subr.mxu0 0.0
    %5211 = vmatpush1.msra.mxu0 0.0
    %5212 = vmatprep.subr.mxu0 0.0
    %5213 = vmatpush1.msra.mxu0 0.0
    %5214 = vmatprep.subr.mxu0 0.0
    %5215 = vmatpush1.msra.mxu0 0.0
    %5216 = vmatprep.subr.mxu0 0.0
    %5217 = vmatpush1.msra.mxu0 0.0
    %5218 = vmatprep.subr.mxu0 0.0
    %5219 = vmatpush1.msra.mxu0 0.0
    %5220 = vmatprep.subr.mxu0 0.0
    %5221 = vmatpush1.msra.mxu0 0.0
    %5222 = vmatprep.subr.mxu0 0.0
    %5223 = vmatpush1.msra.mxu0 0.0
    %5224 = vmatprep.mubr.f32.mxu0 0.0
    %5225 = vmatmul.mubr.f32.gmra.mrb[0].mxu0 %v5153
    %v5226 = vpop.f32.mrb[0].mxu0
    %v5227 = vadd.f32 0.0, %v5226
    %v5228 = vpop.f32.mrb[0].mxu0
    %v5229 = vadd.f32 0.0, %v5228
    %5230 = vdwg.mxu0
    %5231 = vmatprep.subr.mxu0 %v3770
    %5232 = vmatpush1.msra.mxu0 %v3769
    %5233 = vmatprep.subr.mxu0 %v3774
    %5234 = vmatpush1.msra.mxu0 %v3773
    %5235 = vmatprep.subr.mxu0 %v3778
    %5236 = vmatpush1.msra.mxu0 %v3777
    %5237 = vmatprep.subr.mxu0 %v3782
    %5238 = vmatpush1.msra.mxu0 %v3781
    %5239 = vmatprep.subr.mxu0 %v3786
    %5240 = vmatpush1.msra.mxu0 %v3785
    %5241 = vmatprep.subr.mxu0 %v3790
    %5242 = vmatpush1.msra.mxu0 %v3789
    %5243 = vmatprep.subr.mxu0 %v3794
    %5244 = vmatpush1.msra.mxu0 %v3793
    %5245 = vmatprep.subr.mxu0 %v3798
    %5246 = vmatpush1.msra.mxu0 %v3797
    %5247 = vmatprep.subr.mxu0 %v3802
    %5248 = vmatpush1.msra.mxu0 %v3801
    %5249 = vmatprep.subr.mxu0 %v3806
    %5250 = vmatpush1.msra.mxu0 %v3805
    %5251 = vmatprep.subr.mxu0 %v3810
    %5252 = vmatpush1.msra.mxu0 %v3809
    %5253 = vmatprep.subr.mxu0 %v3814
    %5254 = vmatpush1.msra.mxu0 %v3813
    %5255 = vmatprep.subr.mxu0 %v3818
    %5256 = vmatpush1.msra.mxu0 %v3817
    %5257 = vmatprep.subr.mxu0 %v3822
    %5258 = vmatpush1.msra.mxu0 %v3821
    %5259 = vmatprep.subr.mxu0 %v3826
    %5260 = vmatpush1.msra.mxu0 %v3825
    %5261 = vmatprep.subr.mxu0 %v3830
    %5262 = vmatpush1.msra.mxu0 %v3829
    %5263 = vmatprep.subr.mxu0 0.0
    %5264 = vmatpush1.msra.mxu0 0.0
    %5265 = vmatprep.subr.mxu0 0.0
    %5266 = vmatpush1.msra.mxu0 0.0
    %5267 = vmatprep.subr.mxu0 0.0
    %5268 = vmatpush1.msra.mxu0 0.0
    %5269 = vmatprep.subr.mxu0 0.0
    %5270 = vmatpush1.msra.mxu0 0.0
    %5271 = vmatprep.subr.mxu0 0.0
    %5272 = vmatpush1.msra.mxu0 0.0
    %5273 = vmatprep.subr.mxu0 0.0
    %5274 = vmatpush1.msra.mxu0 0.0
    %5275 = vmatprep.subr.mxu0 0.0
    %5276 = vmatpush1.msra.mxu0 0.0
    %5277 = vmatprep.subr.mxu0 0.0
    %5278 = vmatpush1.msra.mxu0 0.0
    %5279 = vmatprep.subr.mxu0 0.0
    %5280 = vmatpush1.msra.mxu0 0.0
    %5281 = vmatprep.subr.mxu0 0.0
    %5282 = vmatpush1.msra.mxu0 0.0
    %5283 = vmatprep.subr.mxu0 0.0
    %5284 = vmatpush1.msra.mxu0 0.0
    %5285 = vmatprep.subr.mxu0 0.0
    %5286 = vmatpush1.msra.mxu0 0.0
    %5287 = vmatprep.subr.mxu0 0.0
    %5288 = vmatpush1.msra.mxu0 0.0
    %5289 = vmatprep.subr.mxu0 0.0
    %5290 = vmatpush1.msra.mxu0 0.0
    %5291 = vmatprep.subr.mxu0 0.0
    %5292 = vmatpush1.msra.mxu0 0.0
    %5293 = vmatprep.subr.mxu0 0.0
    %5294 = vmatpush1.msra.mxu0 0.0
    %5295 = vmatprep.mubr.f32.mxu0 0.0
    %5296 = vmatmul.mubr.f32.gmra.mrb[0].mxu0 %v5153
    %v5297 = vpop.f32.mrb[0].mxu0
    %v5298 = vadd.f32 0.0, %v5297
    %v5299 = vpop.f32.mrb[0].mxu0
    %v5300 = vadd.f32 0.0, %v5299
    %5301 = vdwg.mxu0
    %v5302 = vadd.f32 %v5156, %v5227
    %v5303 = vadd.f32 %v5157, %v5229
    %v5304 = vadd.f32 %v5158, %v5298
    %v5305 = vadd.f32 %v5159, %v5300
    %v5306 = vsub.f32 0.0, %v5302
    %v5307 = vmul.f32 %v5306, 1.442695
    %v5308 = vpow.pop %v5307
    %v5309 = vadd.f32 %v5308, 1.0
    %v5310 = vrcp.pop %v5309
    %v5311 = vsub.f32 0.0, %v5303
    %v5312 = vmul.f32 %v5311, 1.442695
    %v5313 = vpow.pop %v5312
    %v5314 = vadd.f32 %v5313, 1.0
    %v5315 = vrcp.pop %v5314
    %v5316 = vtanh.pop %v5304
    %v5317 = vsub.f32 0.0, %v5305
    %v5318 = vmul.f32 %v5317, 1.442695
    %v5319 = vpow.pop %v5318
    %v5320 = vadd.f32 %v5319, 1.0
    %v5321 = vrcp.pop %v5320
    %v5322 = vmul.f32 %v5315, %v5151
    %v5323 = vmul.f32 %v5310, %v5316
    %v5324 = vadd.f32 %v5322, %v5323
    %v5325 = vtanh.pop %v5324
    %v5326 = vmul.f32 %v5321, %v5325
    %s5327 = scalar_lea.vmem %s10, 48
    %5328 = vst [vmem:[%s5327] sm:$0xff] %v5326
    %v5329 = vld [vmem:[%s1731] sm:$0xff]
    %v5330 = vld [vmem:[%s1731 + $0x8] sm:$0xff]
    %v5331 = vld [vmem:[%s1731 + $0x10] sm:$0xff]
    %v5332 = vld [vmem:[%s1731 + $0x18] sm:$0xff]
    %5333 = vmatprep.subr.mxu0 %v3768
    %5334 = vmatpush1.msra.mxu0 %v3767
    %5335 = vmatprep.subr.mxu0 %v3772
    %5336 = vmatpush1.msra.mxu0 %v3771
    %5337 = vmatprep.subr.mxu0 %v3776
    %5338 = vmatpush1.msra.mxu0 %v3775
    %5339 = vmatprep.subr.mxu0 %v3780
    %5340 = vmatpush1.msra.mxu0 %v3779
    %5341 = vmatprep.subr.mxu0 %v3784
    %5342 = vmatpush1.msra.mxu0 %v3783
    %5343 = vmatprep.subr.mxu0 %v3788
    %5344 = vmatpush1.msra.mxu0 %v3787
    %5345 = vmatprep.subr.mxu0 %v3792
    %5346 = vmatpush1.msra.mxu0 %v3791
    %5347 = vmatprep.subr.mxu0 %v3796
    %5348 = vmatpush1.msra.mxu0 %v3795
    %5349 = vmatprep.subr.mxu0 %v3800
    %5350 = vmatpush1.msra.mxu0 %v3799
    %5351 = vmatprep.subr.mxu0 %v3804
    %5352 = vmatpush1.msra.mxu0 %v3803
    %5353 = vmatprep.subr.mxu0 %v3808
    %5354 = vmatpush1.msra.mxu0 %v3807
    %5355 = vmatprep.subr.mxu0 %v3812
    %5356 = vmatpush1.msra.mxu0 %v3811
    %5357 = vmatprep.subr.mxu0 %v3816
    %5358 = vmatpush1.msra.mxu0 %v3815
    %5359 = vmatprep.subr.mxu0 %v3820
    %5360 = vmatpush1.msra.mxu0 %v3819
    %5361 = vmatprep.subr.mxu0 %v3824
    %5362 = vmatpush1.msra.mxu0 %v3823
    %5363 = vmatprep.subr.mxu0 %v3828
    %5364 = vmatpush1.msra.mxu0 %v3827
    %5365 = vmatprep.subr.mxu0 0.0
    %5366 = vmatpush1.msra.mxu0 0.0
    %5367 = vmatprep.subr.mxu0 0.0
    %5368 = vmatpush1.msra.mxu0 0.0
    %5369 = vmatprep.subr.mxu0 0.0
    %5370 = vmatpush1.msra.mxu0 0.0
    %5371 = vmatprep.subr.mxu0 0.0
    %5372 = vmatpush1.msra.mxu0 0.0
    %5373 = vmatprep.subr.mxu0 0.0
    %5374 = vmatpush1.msra.mxu0 0.0
    %5375 = vmatprep.subr.mxu0 0.0
    %5376 = vmatpush1.msra.mxu0 0.0
    %5377 = vmatprep.subr.mxu0 0.0
    %5378 = vmatpush1.msra.mxu0 0.0
    %5379 = vmatprep.subr.mxu0 0.0
    %5380 = vmatpush1.msra.mxu0 0.0
    %5381 = vmatprep.subr.mxu0 0.0
    %5382 = vmatpush1.msra.mxu0 0.0
    %5383 = vmatprep.subr.mxu0 0.0
    %5384 = vmatpush1.msra.mxu0 0.0
    %5385 = vmatprep.subr.mxu0 0.0
    %5386 = vmatpush1.msra.mxu0 0.0
    %5387 = vmatprep.subr.mxu0 0.0
    %5388 = vmatpush1.msra.mxu0 0.0
    %5389 = vmatprep.subr.mxu0 0.0
    %5390 = vmatpush1.msra.mxu0 0.0
    %5391 = vmatprep.subr.mxu0 0.0
    %5392 = vmatpush1.msra.mxu0 0.0
    %5393 = vmatprep.subr.mxu0 0.0
    %5394 = vmatpush1.msra.mxu0 0.0
    %5395 = vmatprep.subr.mxu0 0.0
    %5396 = vmatpush1.msra.mxu0 0.0
    %5397 = vmatprep.mubr.f32.mxu0 0.0
    %5398 = vmatmul.mubr.f32.gmra.mrb[0].mxu0 %v5326
    %v5399 = vpop.f32.mrb[0].mxu0
    %v5400 = vadd.f32 0.0, %v5399
    %v5401 = vpop.f32.mrb[0].mxu0
    %v5402 = vadd.f32 0.0, %v5401
    %5403 = vdwg.mxu0
    %5404 = vmatprep.subr.mxu0 %v3770
    %5405 = vmatpush1.msra.mxu0 %v3769
    %5406 = vmatprep.subr.mxu0 %v3774
    %5407 = vmatpush1.msra.mxu0 %v3773
    %5408 = vmatprep.subr.mxu0 %v3778
    %5409 = vmatpush1.msra.mxu0 %v3777
    %5410 = vmatprep.subr.mxu0 %v3782
    %5411 = vmatpush1.msra.mxu0 %v3781
    %5412 = vmatprep.subr.mxu0 %v3786
    %5413 = vmatpush1.msra.mxu0 %v3785
    %5414 = vmatprep.subr.mxu0 %v3790
    %5415 = vmatpush1.msra.mxu0 %v3789
    %5416 = vmatprep.subr.mxu0 %v3794
    %5417 = vmatpush1.msra.mxu0 %v3793
    %5418 = vmatprep.subr.mxu0 %v3798
    %5419 = vmatpush1.msra.mxu0 %v3797
    %5420 = vmatprep.subr.mxu0 %v3802
    %5421 = vmatpush1.msra.mxu0 %v3801
    %5422 = vmatprep.subr.mxu0 %v3806
    %5423 = vmatpush1.msra.mxu0 %v3805
    %5424 = vmatprep.subr.mxu0 %v3810
    %5425 = vmatpush1.msra.mxu0 %v3809
    %5426 = vmatprep.subr.mxu0 %v3814
    %5427 = vmatpush1.msra.mxu0 %v3813
    %5428 = vmatprep.subr.mxu0 %v3818
    %5429 = vmatpush1.msra.mxu0 %v3817
    %5430 = vmatprep.subr.mxu0 %v3822
    %5431 = vmatpush1.msra.mxu0 %v3821
    %5432 = vmatprep.subr.mxu0 %v3826
    %5433 = vmatpush1.msra.mxu0 %v3825
    %5434 = vmatprep.subr.mxu0 %v3830
    %5435 = vmatpush1.msra.mxu0 %v3829
    %5436 = vmatprep.subr.mxu0 0.0
    %5437 = vmatpush1.msra.mxu0 0.0
    %5438 = vmatprep.subr.mxu0 0.0
    %5439 = vmatpush1.msra.mxu0 0.0
    %5440 = vmatprep.subr.mxu0 0.0
    %5441 = vmatpush1.msra.mxu0 0.0
    %5442 = vmatprep.subr.mxu0 0.0
    %5443 = vmatpush1.msra.mxu0 0.0
    %5444 = vmatprep.subr.mxu0 0.0
    %5445 = vmatpush1.msra.mxu0 0.0
    %5446 = vmatprep.subr.mxu0 0.0
    %5447 = vmatpush1.msra.mxu0 0.0
    %5448 = vmatprep.subr.mxu0 0.0
    %5449 = vmatpush1.msra.mxu0 0.0
    %5450 = vmatprep.subr.mxu0 0.0
    %5451 = vmatpush1.msra.mxu0 0.0
    %5452 = vmatprep.subr.mxu0 0.0
    %5453 = vmatpush1.msra.mxu0 0.0
    %5454 = vmatprep.subr.mxu0 0.0
    %5455 = vmatpush1.msra.mxu0 0.0
    %5456 = vmatprep.subr.mxu0 0.0
    %5457 = vmatpush1.msra.mxu0 0.0
    %5458 = vmatprep.subr.mxu0 0.0
    %5459 = vmatpush1.msra.mxu0 0.0
    %5460 = vmatprep.subr.mxu0 0.0
    %5461 = vmatpush1.msra.mxu0 0.0
    %5462 = vmatprep.subr.mxu0 0.0
    %5463 = vmatpush1.msra.mxu0 0.0
    %5464 = vmatprep.subr.mxu0 0.0
    %5465 = vmatpush1.msra.mxu0 0.0
    %5466 = vmatprep.subr.mxu0 0.0
    %5467 = vmatpush1.msra.mxu0 0.0
    %5468 = vmatprep.mubr.f32.mxu0 0.0
    %5469 = vmatmul.mubr.f32.gmra.mrb[0].mxu0 %v5326
    %v5470 = vpop.f32.mrb[0].mxu0
    %v5471 = vadd.f32 0.0, %v5470
    %v5472 = vpop.f32.mrb[0].mxu0
    %v5473 = vadd.f32 0.0, %v5472
    %5474 = vdwg.mxu0
    %v5475 = vadd.f32 %v5329, %v5400
    %v5476 = vadd.f32 %v5330, %v5402
    %v5477 = vadd.f32 %v5331, %v5471
    %v5478 = vadd.f32 %v5332, %v5473
    %v5479 = vsub.f32 0.0, %v5475
    %v5480 = vmul.f32 %v5479, 1.442695
    %v5481 = vpow.pop %v5480
    %v5482 = vadd.f32 %v5481, 1.0
    %v5483 = vrcp.pop %v5482
    %v5484 = vsub.f32 0.0, %v5476
    %v5485 = vmul.f32 %v5484, 1.442695
    %v5486 = vpow.pop %v5485
    %v5487 = vadd.f32 %v5486, 1.0
    %v5488 = vrcp.pop %v5487
    %v5489 = vtanh.pop %v5477
    %v5490 = vsub.f32 0.0, %v5478
    %v5491 = vmul.f32 %v5490, 1.442695
    %v5492 = vpow.pop %v5491
    %v5493 = vadd.f32 %v5492, 1.0
    %v5494 = vrcp.pop %v5493
    %v5495 = vmul.f32 %v5488, %v5324
    %v5496 = vmul.f32 %v5483, %v5489
    %v5497 = vadd.f32 %v5495, %v5496
    %v5498 = vtanh.pop %v5497
    %v5499 = vmul.f32 %v5494, %v5498
    %s5500 = scalar_lea.vmem %s10, 56
    %5501 = vst [vmem:[%s5500] sm:$0xff] %v5499
    %s5502 = scalar_lea.vmem %s11, 16
    %5503 = vst [vmem:[%s5502] sm:$0xff] %v5499
    %s5504 = scalar_lea.vmem %s12, 16
    %5505 = vst [vmem:[%s5504] sm:$0xff] %v5497
    // Predicated region
    $region62: #{lstm_encoder_forward.1} parent=1 // pred_check
      _
    $region63: #{lstm_encoder_forward.1} parent=1 // pred_check_branch
      %5507 = sbr.rel (0) target = $region65
    $region64: #{lstm_encoder_forward.1} parent=1 // pred_region
      _
    $region65: #{lstm_encoder_forward.1} parent=1 // pred_fallthru
      _
    // Predicated region
    $region66: #{lstm_encoder_forward.1} parent=1 // pred_check
      _
    $region67: #{lstm_encoder_forward.1} parent=1 // pred_check_branch
      %5509 = sbr.rel (0) target = $region69
    $region68: #{lstm_encoder_forward.1} parent=1 // pred_region
      _
    $region69: #{lstm_encoder_forward.1} parent=1 // pred_fallthru
      _
    // Predicated region
    $region70: #{lstm_encoder_forward.1} parent=1 // pred_check
      _
    $region71: #{lstm_encoder_forward.1} parent=1 // pred_check_branch
      %5511 = sbr.rel (0) target = $region73
    $region72: #{lstm_encoder_forward.1} parent=1 // pred_region
      _
    $region73: #{lstm_encoder_forward.1} parent=1 // pred_fallthru
      _
    // Predicated region
    $region74: #{lstm_encoder_forward.1} parent=1 // pred_check
      _
    $region75: #{lstm_encoder_forward.1} parent=1 // pred_check_branch
      %5513 = sbr.rel (0) target = $region77
    $region76: #{lstm_encoder_forward.1} parent=1 // pred_region
      _
    $region77: #{lstm_encoder_forward.1} parent=1 // pred_fallthru
      _
    // Predicated region
    $region78: #{lstm_encoder_forward.1} parent=1 // pred_check
      _
    $region79: #{lstm_encoder_forward.1} parent=1 // pred_check_branch
      %5515 = sbr.rel (0) target = $region81
    $region80: #{lstm_encoder_forward.1} parent=1 // pred_region
      _
    $region81: #{lstm_encoder_forward.1} parent=1 // pred_fallthru
      _
    // Predicated region
    $region82: #{lstm_encoder_forward.1} parent=1 // pred_check
      _
    $region83: #{lstm_encoder_forward.1} parent=1 // pred_check_branch
      %5517 = sbr.rel (0) target = $region85
    $region84: #{lstm_encoder_forward.1} parent=1 // pred_region
      _
    $region85: #{lstm_encoder_forward.1} parent=1 // pred_fallthru
      _
    %5518 = vsyncpa [#allocation5], 1
    %5519 = vsyncpa [#allocation7], 1
    %5520 = vsyncpa [#allocation10], 1

</llo_original>
